<compile_context>
chip_gen: v7x
topology: tpu7x:2x2x1
jax: 0.10.0
libtpu: 0.0.40
codegen_flags: <defaults>
</compile_context>

<pallas_src>
import jax
import jax.numpy as jnp
from jax.experimental import pallas as pl
from jax.experimental.pallas import tpu as pltpu

EPS = 1e-5

# MXU operand dtype.  The review recommends bf16 operands (f32 accumulate) for
# 2-4x MXU throughput; at the stem-sized test below we deliberately keep f32
# operands to preserve 1e-4 parity with the f32 reference (the explicit
# accuracy/perf decision the review asks for).  Flip to jnp.bfloat16 for
# production channel counts -- the accumulator, BN stats and the BN/ReLU
# epilogue stay f32 either way, and the test tolerance adapts automatically.
MXU_DTYPE = jnp.float32


def _round_up(x, m):
    return (x + m - 1) // m * m


# --------------------------- in-kernel helpers --------------------------- #

def _store_padded(pad_ref, tile, H, W):
    """Write `tile` (H, W, C) into the (H+2, Wp, C) halo scratch.

    Border is re-zeroed every grid step (2 rows + 2 one-wide columns, cheap)
    so correctness does not depend on a program_id==0 init that would never
    run on the second TensorCore under "parallel" partitioning.  Columns
    >= W+2 of the scratch are never read by any tap, so they are untouched.
    """
    Wp = pad_ref.shape[1]
    C = pad_ref.shape[2]
    dt = pad_ref.dtype
    pad_ref[0:1, :, :] = jnp.zeros((1, Wp, C), dt)
    pad_ref[H + 1:H + 2, :, :] = jnp.zeros((1, Wp, C), dt)
    pad_ref[1:H + 1, 0:1, :] = jnp.zeros((H, 1, C), dt)
    pad_ref[1:H + 1, W + 1:W + 2, :] = jnp.zeros((H, 1, C), dt)
    pad_ref[1:H + 1, 1:W + 1, :] = tile.astype(dt)          # interior, once


def _conv3x3_taps(pad_ref, w_ref, H, W):
    """3x3 conv as 9 accumulating MXU matmuls (K = C per tap).

    No im2col slab is materialized: each tap LHS is the (H*W, C) window read
    straight from the padded VMEM scratch.  Accumulation is f32.
    """
    acc = None
    for kh in range(3):
        for kw in range(3):
            tap = pad_ref[kh:kh + H, kw:kw + W, :]
            lhs = tap.reshape(H * W, tap.shape[-1])
            contrib = jnp.dot(lhs, w_ref[kh * 3 + kw],
                              preferred_element_type=jnp.float32)
            acc = contrib if acc is None else acc + contrib
    return acc                                              # (H*W, Cout) f32


def _tile_stats(acc):
    """Per-tile BN partials: [sum, sum((y - tile_mean)^2)], shape (2, C).

    Centered per tile (combined across tiles with Chan's formula in the
    wrapper) instead of one-pass E[y^2]-E[y]^2, which is cancellation-prone.
    Computed while the f32 conv accumulator is still live in VMEM.
    """
    s = jnp.sum(acc, axis=0, keepdims=True)                  # (1, C)
    m = s * (1.0 / acc.shape[0])
    m2 = jnp.sum((acc - m) ** 2, axis=0, keepdims=True)      # (1, C)
    return jnp.concatenate([s, m2], axis=0)                  # (2, C)


# ------------------------------- kernels --------------------------------- #

def conv1_stats_kernel(x_ref, w_ref, y_ref, st_ref, pad_ref):
    # x_ref: (1,H,W,Cin)  w_ref: (9,Cin,Cout)  y_ref: (1,H,W,Cout)
    # st_ref: (1,2,Cout)  pad_ref: (H+2,Wp,Cin) VMEM scratch
    H, W = x_ref.shape[1], x_ref.shape[2]
    _store_padded(pad_ref, x_ref[0], H, W)
    acc = _conv3x3_taps(pad_ref, w_ref, H, W)
    st_ref[0] = _tile_stats(acc)
    y_ref[0] = acc.reshape(H, W, -1).astype(y_ref.dtype)


def bn_relu_conv2_stats_kernel(y1_ref, ss_ref, w_ref, y_ref, st_ref, pad_ref):
    # y1_ref: (1,H,W,C)  ss_ref: (2,C) [scale; shift]  w_ref: (9,C,Cout)
    H, W = y1_ref.shape[1], y1_ref.shape[2]
    a = jnp.maximum(y1_ref[0].astype(jnp.float32) * ss_ref[0] + ss_ref[1], 0.0)
    _store_padded(pad_ref, a, H, W)
    acc = _conv3x3_taps(pad_ref, w_ref, H, W)
    st_ref[0] = _tile_stats(acc)
    y_ref[0] = acc.reshape(H, W, -1).astype(y_ref.dtype)


def bn_relu_finalize_kernel(y_ref, ss_ref, out_ref):
    out_ref[0] = jnp.maximum(
        y_ref[0].astype(jnp.float32) * ss_ref[0] + ss_ref[1], 0.0
    ).astype(out_ref.dtype)


# ------------------------------- wrapper ---------------------------------- #

def _bn_fold(stats, gamma, beta, n_pix_per_tile):
    """Combine per-tile (sum, centered M2) partials -> per-channel (scale, shift).

    Chan's parallel-variance combine; biased variance (train-mode BatchNorm2d).
    Tiny O(Cout) work, done between passes in plain JAX.
    """
    sums = stats[:, 0, :]                                    # (T, C)
    m2s = stats[:, 1, :]                                     # (T, C)
    total = stats.shape[0] * n_pix_per_tile
    mean = jnp.sum(sums, axis=0) / total
    tile_mean = sums / n_pix_per_tile
    var = (jnp.sum(m2s, axis=0)
           + n_pix_per_tile * jnp.sum((tile_mean - mean) ** 2, axis=0)) / total
    scale = gamma * jax.lax.rsqrt(var + EPS)
    shift = beta - mean * scale
    return jnp.stack([scale, shift], axis=0).astype(jnp.float32)   # (2, C)


def _vmem_limit_bytes(H, W, Wp, Cin, Cout):
    """Explicit VMEM budget from per-grid-step buffer math, capped for v7x.

    Per step: double-buffered input/output/stats blocks, resident weights,
    the padded-halo scratch, the f32 accumulator and per-tap operand copies.
    """
    f32 = 4
    op = jnp.dtype(MXU_DTYPE).itemsize
    c = max(Cin, Cout)
    per_step = (2 * H * W * Cin * f32                       # input block x2 bufs
                + 2 * (H * W * Cout + 2 * Cout) * f32       # conv out + stats x2
                + 9 * c * Cout * op                         # resident weights
                + (H + 2) * Wp * c * op                     # halo scratch
                + 6 * H * W * c * f32)                      # acc + tap temporaries
    return int(min(max(2 * per_step, 32 * 1024 * 1024), 64 * 1024 * 1024))


def double_conv(x_nchw, params):
    """x_nchw: (N, Cin, H, W) float32 -> (N, Cout, H, W) float32."""
    w1, b1, g1, be1, w2, b2, g2, be2 = params
    N, Cin, H, W = x_nchw.shape
    Cout = w1.shape[-1]
    Wp = _round_up(W + 2, 8)
    npix = H * W

    # NHWC boundary; NO channel padding (no 32x-inflated HBM copy of x).
    x = jnp.transpose(x_nchw, (0, 2, 3, 1))

    # Weights as (9, Cin, Cout) / (9, Cout, Cout); row t = kh*3 + kw matches the
    # kernel's tap order.  Conv biases b1/b2 are exactly cancelled by train-mode
    # BN mean subtraction, so they are not passed to the kernels.
    w1r = jnp.reshape(w1, (9, Cin, Cout)).astype(MXU_DTYPE)
    w2r = jnp.reshape(w2, (9, Cout, Cout)).astype(MXU_DTYPE)

    cp = pltpu.CompilerParams(
        dimension_semantics=("parallel",),
        vmem_limit_bytes=_vmem_limit_bytes(H, W, Wp, Cin, Cout))

    img_in = lambda n: (n, 0, 0, 0)
    const3 = lambda n: (0, 0, 0)
    const2 = lambda n: (0, 0)
    stat_ix = lambda n: (n, 0, 0)

    # ---- pass 1: conv1 + per-tile BN1 partials ----
    y1_raw, st1 = pl.pallas_call(
        conv1_stats_kernel,
        grid=(N,),
        in_specs=[pl.BlockSpec((1, H, W, Cin), img_in),
                  pl.BlockSpec((9, Cin, Cout), const3)],      # resident weights
        out_specs=[pl.BlockSpec((1, H, W, Cout), img_in),
                   pl.BlockSpec((1, 2, Cout), stat_ix)],
        out_shape=(jax.ShapeDtypeStruct((N, H, W, Cout), jnp.float32),
                   jax.ShapeDtypeStruct((N, 2, Cout), jnp.float32)),
        scratch_shapes=[pltpu.VMEM((H + 2, Wp, Cin), MXU_DTYPE)],
        compiler_params=cp,
    )(x, w1r)

    ss1 = _bn_fold(st1, g1, be1, npix)                        # (2, Cout)

    # ---- pass 2: BN1+ReLU (folded) -> conv2 + per-tile BN2 partials ----
    y2_raw, st2 = pl.pallas_call(
        bn_relu_conv2_stats_kernel,
        grid=(N,),
        in_specs=[pl.BlockSpec((1, H, W, Cout), img_in),
                  pl.BlockSpec((2, Cout), const2),            # scale/shift resident
                  pl.BlockSpec((9, Cout, Cout), const3)],     # resident weights
        out_specs=[pl.BlockSpec((1, H, W, Cout), img_in),
                   pl.BlockSpec((1, 2, Cout), stat_ix)],
        out_shape=(jax.ShapeDtypeStruct((N, H, W, Cout), jnp.float32),
                   jax.ShapeDtypeStruct((N, 2, Cout), jnp.float32)),
        scratch_shapes=[pltpu.VMEM((H + 2, Wp, Cout), MXU_DTYPE)],
        compiler_params=cp,
    )(y1_raw, ss1, w2r)

    ss2 = _bn_fold(st2, g2, be2, npix)

    # ---- pass 3: finalize BN2 + ReLU ----
    out_nhwc = pl.pallas_call(
        bn_relu_finalize_kernel,
        grid=(N,),
        in_specs=[pl.BlockSpec((1, H, W, Cout), img_in),
                  pl.BlockSpec((2, Cout), const2)],
        out_specs=pl.BlockSpec((1, H, W, Cout), img_in),
        out_shape=jax.ShapeDtypeStruct((N, H, W, Cout), jnp.float32),
        compiler_params=cp,
    )(y2_raw, ss2)

    return jnp.transpose(out_nhwc, (0, 3, 1, 2))              # back to NCHW


# ----------------------- pure-JAX reference for sanity -----------------------
def ref_double_conv(x_nchw, params):
    w1, b1, g1, be1, w2, b2, g2, be2 = params

    def conv(x, w, b):
        w_oihw = jnp.transpose(w, (3, 2, 0, 1))
        y = jax.lax.conv_general_dilated(
            x, w_oihw, (1, 1), ((1, 1), (1, 1)),
            dimension_numbers=('NCHW', 'OIHW', 'NCHW'))
        return y + b.reshape(1, -1, 1, 1)

    def bn_relu(x, g, be):
        mean = jnp.mean(x, axis=(0, 2, 3), keepdims=True)
        var = jnp.mean((x - mean) ** 2, axis=(0, 2, 3), keepdims=True)
        y = (x - mean) * jax.lax.rsqrt(var + EPS) * g.reshape(1, -1, 1, 1) \
            + be.reshape(1, -1, 1, 1)
        return jnp.maximum(y, 0.0)

    y = bn_relu(conv(x_nchw, w1, b1), g1, be1)
    y = bn_relu(conv(y, w2, b2), g2, be2)
    return y


if __name__ == "__main__":
    key = jax.random.PRNGKey(0)
    N, Cin, Cout, H, W = 2, 4, 8, 16, 16
    k = jax.random.split(key, 5)

    x = jax.random.normal(k[0], (N, Cin, H, W), jnp.float32)

    # deterministic parameter init (PyTorch-like fan-in scaling; BN gamma=1, beta=0)
    fan1 = Cin * 9
    w1 = jax.random.uniform(k[1], (3, 3, Cin, Cout), jnp.float32, -1., 1.) / jnp.sqrt(fan1)
    b1 = jax.random.uniform(k[2], (Cout,), jnp.float32, -1., 1.) / jnp.sqrt(fan1)
    fan2 = Cout * 9
    w2 = jax.random.uniform(k[3], (3, 3, Cout, Cout), jnp.float32, -1., 1.) / jnp.sqrt(fan2)
    b2 = jax.random.uniform(k[4], (Cout,), jnp.float32, -1., 1.) / jnp.sqrt(fan2)
    g1 = jnp.ones((Cout,), jnp.float32); be1 = jnp.zeros((Cout,), jnp.float32)
    g2 = jnp.ones((Cout,), jnp.float32); be2 = jnp.zeros((Cout,), jnp.float32)
    params = (w1, b1, g1, be1, w2, b2, g2, be2)

    out = jax.jit(double_conv)(x, params)
    jax.block_until_ready(out)

    ref = ref_double_conv(x, params)
    tol = 1e-4 if MXU_DTYPE == jnp.float32 else 5e-2   # explicit bf16 tradeoff
    assert out.shape == (N, Cout, H, W)
    err = float(jnp.max(jnp.abs(out - ref)))
    assert jnp.allclose(out, ref, atol=tol, rtol=tol), err

    print("KERNEL_OK")
</pallas_src>

<mosaic_0001>
module attributes {stable_mosaic.version = 11 : i64} {
  func.func @conv1_stats_kernel(%arg0: i32, %arg1: memref<1x16x16x4xf32, #tpu.memory_space<vmem>>, %arg2: memref<9x4x8xf32, #tpu.memory_space<vmem>>, %arg3: memref<1x16x16x8xf32, #tpu.memory_space<vmem>>, %arg4: memref<1x2x8xf32, #tpu.memory_space<vmem>>, %arg5: memref<18x24x4xf32, #tpu.memory_space<vmem>>) attributes {dimension_semantics = [#tpu.dimension_semantics<parallel>], iteration_bounds = array<i64: 2>, scalar_prefetch = 0 : i64, scratch_operands = 1 : i64, tpu.core_type = #tpu.core_type<tc>, window_params = [{transform_indices = @transform_0, window_bounds = array<i64: 1, 16, 16, 4>}, {pipeline_mode = #tpu.pipeline_mode<synchronous>, transform_indices = @transform_1, window_bounds = array<i64: 9, 4, 8>}, {transform_indices = @transform_2, window_bounds = array<i64: 1, 16, 16, 8>}, {transform_indices = @transform_3, window_bounds = array<i64: 1, 2, 8>}]} {
    %c0 = arith.constant 0 : index
    %c0_0 = arith.constant 0 : index
    %c0_1 = arith.constant 0 : index
    %c0_2 = arith.constant 0 : index
    %0 = vector.load %arg1[%c0, %c0_0, %c0_1, %c0_2] : memref<1x16x16x4xf32, #tpu.memory_space<vmem>>, vector<1x16x16x4xf32>
    %1 = vector.shape_cast %0 : vector<1x16x16x4xf32> to vector<16x16x4xf32>
    %cst = arith.constant 0.000000e+00 : f32
    %2 = vector.broadcast %cst : f32 to vector<1x24x4xf32>
    %c0_3 = arith.constant 0 : index
    %c0_4 = arith.constant 0 : index
    %c0_5 = arith.constant 0 : index
    %3 = vector.load %arg5[%c0_3, %c0_4, %c0_5] : memref<18x24x4xf32, #tpu.memory_space<vmem>>, vector<1x24x4xf32>
    tpu.vector_store %arg5[%c0_3, %c0_4, %c0_5], %2 {strides = array<i32>} : memref<18x24x4xf32, #tpu.memory_space<vmem>>, vector<1x24x4xf32>,
    %cst_6 = arith.constant 0.000000e+00 : f32
    %4 = vector.broadcast %cst_6 : f32 to vector<1x24x4xf32>
    %c17 = arith.constant 17 : index
    %c0_7 = arith.constant 0 : index
    %c0_8 = arith.constant 0 : index
    %5 = vector.load %arg5[%c17, %c0_7, %c0_8] : memref<18x24x4xf32, #tpu.memory_space<vmem>>, vector<1x24x4xf32>
    tpu.vector_store %arg5[%c17, %c0_7, %c0_8], %4 {strides = array<i32>} : memref<18x24x4xf32, #tpu.memory_space<vmem>>, vector<1x24x4xf32>,
    %cst_9 = arith.constant 0.000000e+00 : f32
    %6 = vector.broadcast %cst_9 : f32 to vector<16x1x4xf32>
    %c1 = arith.constant 1 : index
    %c0_10 = arith.constant 0 : index
    %c0_11 = arith.constant 0 : index
    %7 = vector.load %arg5[%c1, %c0_10, %c0_11] : memref<18x24x4xf32, #tpu.memory_space<vmem>>, vector<16x1x4xf32>
    tpu.vector_store %arg5[%c1, %c0_10, %c0_11], %6 {strides = array<i32>} : memref<18x24x4xf32, #tpu.memory_space<vmem>>, vector<16x1x4xf32>,
    %cst_12 = arith.constant 0.000000e+00 : f32
    %8 = vector.broadcast %cst_12 : f32 to vector<16x1x4xf32>
    %c1_13 = arith.constant 1 : index
    %c17_14 = arith.constant 17 : index
    %c0_15 = arith.constant 0 : index
    %9 = vector.load %arg5[%c1_13, %c17_14, %c0_15] : memref<18x24x4xf32, #tpu.memory_space<vmem>>, vector<16x1x4xf32>
    tpu.vector_store %arg5[%c1_13, %c17_14, %c0_15], %8 {strides = array<i32>} : memref<18x24x4xf32, #tpu.memory_space<vmem>>, vector<16x1x4xf32>,
    %c1_16 = arith.constant 1 : index
    %c1_17 = arith.constant 1 : index
    %c0_18 = arith.constant 0 : index
    %10 = vector.load %arg5[%c1_16, %c1_17, %c0_18] : memref<18x24x4xf32, #tpu.memory_space<vmem>>, vector<16x16x4xf32>
    tpu.vector_store %arg5[%c1_16, %c1_17, %c0_18], %1 {strides = array<i32>} : memref<18x24x4xf32, #tpu.memory_space<vmem>>, vector<16x16x4xf32>,
    %c0_19 = arith.constant 0 : index
    %c0_20 = arith.constant 0 : index
    %c0_21 = arith.constant 0 : index
    %11 = vector.load %arg5[%c0_19, %c0_20, %c0_21] : memref<18x24x4xf32, #tpu.memory_space<vmem>>, vector<16x16x4xf32>
    %12 = vector.shape_cast %11 : vector<16x16x4xf32> to vector<256x4xf32>
    %c0_22 = arith.constant 0 : index
    %c0_23 = arith.constant 0 : index
    %c0_24 = arith.constant 0 : index
    %13 = vector.load %arg2[%c0_22, %c0_23, %c0_24] : memref<9x4x8xf32, #tpu.memory_space<vmem>>, vector<1x4x8xf32>
    %14 = vector.shape_cast %13 : vector<1x4x8xf32> to vector<4x8xf32>
    %cst_25 = arith.constant dense<0.000000e+00> : vector<256x8xf32>
    %15 = tpu.matmul %12, %14, %cst_25 {dimension_numbers = #tpu.dot_dimension_numbers<[1], [0], [0], [1], [0, 0, 1, 1], [], []>} : vector<256x4xf32>, vector<4x8xf32>, vector<256x8xf32> -> vector<256x8xf32>
    %c0_26 = arith.constant 0 : index
    %c1_27 = arith.constant 1 : index
    %c0_28 = arith.constant 0 : index
    %16 = vector.load %arg5[%c0_26, %c1_27, %c0_28] : memref<18x24x4xf32, #tpu.memory_space<vmem>>, vector<16x16x4xf32>
    %17 = vector.shape_cast %16 : vector<16x16x4xf32> to vector<256x4xf32>
    %c1_29 = arith.constant 1 : index
    %c0_30 = arith.constant 0 : index
    %c0_31 = arith.constant 0 : index
    %18 = vector.load %arg2[%c1_29, %c0_30, %c0_31] : memref<9x4x8xf32, #tpu.memory_space<vmem>>, vector<1x4x8xf32>
    %19 = vector.shape_cast %18 : vector<1x4x8xf32> to vector<4x8xf32>
    %cst_32 = arith.constant dense<0.000000e+00> : vector<256x8xf32>
    %20 = tpu.matmul %17, %19, %cst_32 {dimension_numbers = #tpu.dot_dimension_numbers<[1], [0], [0], [1], [0, 0, 1, 1], [], []>} : vector<256x4xf32>, vector<4x8xf32>, vector<256x8xf32> -> vector<256x8xf32>
    %21 = arith.addf %15, %20 : vector<256x8xf32>
    %c0_33 = arith.constant 0 : index
    %c2 = arith.constant 2 : index
    %c0_34 = arith.constant 0 : index
    %22 = vector.load %arg5[%c0_33, %c2, %c0_34] : memref<18x24x4xf32, #tpu.memory_space<vmem>>, vector<16x16x4xf32>
    %23 = vector.shape_cast %22 : vector<16x16x4xf32> to vector<256x4xf32>
    %c2_35 = arith.constant 2 : index
    %c0_36 = arith.constant 0 : index
    %c0_37 = arith.constant 0 : index
    %24 = vector.load %arg2[%c2_35, %c0_36, %c0_37] : memref<9x4x8xf32, #tpu.memory_space<vmem>>, vector<1x4x8xf32>
    %25 = vector.shape_cast %24 : vector<1x4x8xf32> to vector<4x8xf32>
    %cst_38 = arith.constant dense<0.000000e+00> : vector<256x8xf32>
    %26 = tpu.matmul %23, %25, %cst_38 {dimension_numbers = #tpu.dot_dimension_numbers<[1], [0], [0], [1], [0, 0, 1, 1], [], []>} : vector<256x4xf32>, vector<4x8xf32>, vector<256x8xf32> -> vector<256x8xf32>
    %27 = arith.addf %21, %26 : vector<256x8xf32>
    %c1_39 = arith.constant 1 : index
    %c0_40 = arith.constant 0 : index
    %c0_41 = arith.constant 0 : index
    %28 = vector.load %arg5[%c1_39, %c0_40, %c0_41] : memref<18x24x4xf32, #tpu.memory_space<vmem>>, vector<16x16x4xf32>
    %29 = vector.shape_cast %28 : vector<16x16x4xf32> to vector<256x4xf32>
    %c3 = arith.constant 3 : index
    %c0_42 = arith.constant 0 : index
    %c0_43 = arith.constant 0 : index
    %30 = vector.load %arg2[%c3, %c0_42, %c0_43] : memref<9x4x8xf32, #tpu.memory_space<vmem>>, vector<1x4x8xf32>
    %31 = vector.shape_cast %30 : vector<1x4x8xf32> to vector<4x8xf32>
    %cst_44 = arith.constant dense<0.000000e+00> : vector<256x8xf32>
    %32 = tpu.matmul %29, %31, %cst_44 {dimension_numbers = #tpu.dot_dimension_numbers<[1], [0], [0], [1], [0, 0, 1, 1], [], []>} : vector<256x4xf32>, vector<4x8xf32>, vector<256x8xf32> -> vector<256x8xf32>
    %33 = arith.addf %27, %32 : vector<256x8xf32>
    %c1_45 = arith.constant 1 : index
    %c1_46 = arith.constant 1 : index
    %c0_47 = arith.constant 0 : index
    %34 = vector.load %arg5[%c1_45, %c1_46, %c0_47] : memref<18x24x4xf32, #tpu.memory_space<vmem>>, vector<16x16x4xf32>
    %35 = vector.shape_cast %34 : vector<16x16x4xf32> to vector<256x4xf32>
    %c4 = arith.constant 4 : index
    %c0_48 = arith.constant 0 : index
    %c0_49 = arith.constant 0 : index
    %36 = vector.load %arg2[%c4, %c0_48, %c0_49] : memref<9x4x8xf32, #tpu.memory_space<vmem>>, vector<1x4x8xf32>
    %37 = vector.shape_cast %36 : vector<1x4x8xf32> to vector<4x8xf32>
    %cst_50 = arith.constant dense<0.000000e+00> : vector<256x8xf32>
    %38 = tpu.matmul %35, %37, %cst_50 {dimension_numbers = #tpu.dot_dimension_numbers<[1], [0], [0], [1], [0, 0, 1, 1], [], []>} : vector<256x4xf32>, vector<4x8xf32>, vector<256x8xf32> -> vector<256x8xf32>
    %39 = arith.addf %33, %38 : vector<256x8xf32>
    %c1_51 = arith.constant 1 : index
    %c2_52 = arith.constant 2 : index
    %c0_53 = arith.constant 0 : index
    %40 = vector.load %arg5[%c1_51, %c2_52, %c0_53] : memref<18x24x4xf32, #tpu.memory_space<vmem>>, vector<16x16x4xf32>
    %41 = vector.shape_cast %40 : vector<16x16x4xf32> to vector<256x4xf32>
    %c5 = arith.constant 5 : index
    %c0_54 = arith.constant 0 : index
    %c0_55 = arith.constant 0 : index
    %42 = vector.load %arg2[%c5, %c0_54, %c0_55] : memref<9x4x8xf32, #tpu.memory_space<vmem>>, vector<1x4x8xf32>
    %43 = vector.shape_cast %42 : vector<1x4x8xf32> to vector<4x8xf32>
    %cst_56 = arith.constant dense<0.000000e+00> : vector<256x8xf32>
    %44 = tpu.matmul %41, %43, %cst_56 {dimension_numbers = #tpu.dot_dimension_numbers<[1], [0], [0], [1], [0, 0, 1, 1], [], []>} : vector<256x4xf32>, vector<4x8xf32>, vector<256x8xf32> -> vector<256x8xf32>
    %45 = arith.addf %39, %44 : vector<256x8xf32>
    %c2_57 = arith.constant 2 : index
    %c0_58 = arith.constant 0 : index
    %c0_59 = arith.constant 0 : index
    %46 = vector.load %arg5[%c2_57, %c0_58, %c0_59] : memref<18x24x4xf32, #tpu.memory_space<vmem>>, vector<16x16x4xf32>
    %47 = vector.shape_cast %46 : vector<16x16x4xf32> to vector<256x4xf32>
    %c6 = arith.constant 6 : index
    %c0_60 = arith.constant 0 : index
    %c0_61 = arith.constant 0 : index
    %48 = vector.load %arg2[%c6, %c0_60, %c0_61] : memref<9x4x8xf32, #tpu.memory_space<vmem>>, vector<1x4x8xf32>
    %49 = vector.shape_cast %48 : vector<1x4x8xf32> to vector<4x8xf32>
    %cst_62 = arith.constant dense<0.000000e+00> : vector<256x8xf32>
    %50 = tpu.matmul %47, %49, %cst_62 {dimension_numbers = #tpu.dot_dimension_numbers<[1], [0], [0], [1], [0, 0, 1, 1], [], []>} : vector<256x4xf32>, vector<4x8xf32>, vector<256x8xf32> -> vector<256x8xf32>
    %51 = arith.addf %45, %50 : vector<256x8xf32>
    %c2_63 = arith.constant 2 : index
    %c1_64 = arith.constant 1 : index
    %c0_65 = arith.constant 0 : index
    %52 = vector.load %arg5[%c2_63, %c1_64, %c0_65] : memref<18x24x4xf32, #tpu.memory_space<vmem>>, vector<16x16x4xf32>
    %53 = vector.shape_cast %52 : vector<16x16x4xf32> to vector<256x4xf32>
    %c7 = arith.constant 7 : index
    %c0_66 = arith.constant 0 : index
    %c0_67 = arith.constant 0 : index
    %54 = vector.load %arg2[%c7, %c0_66, %c0_67] : memref<9x4x8xf32, #tpu.memory_space<vmem>>, vector<1x4x8xf32>
    %55 = vector.shape_cast %54 : vector<1x4x8xf32> to vector<4x8xf32>
    %cst_68 = arith.constant dense<0.000000e+00> : vector<256x8xf32>
    %56 = tpu.matmul %53, %55, %cst_68 {dimension_numbers = #tpu.dot_dimension_numbers<[1], [0], [0], [1], [0, 0, 1, 1], [], []>} : vector<256x4xf32>, vector<4x8xf32>, vector<256x8xf32> -> vector<256x8xf32>
    %57 = arith.addf %51, %56 : vector<256x8xf32>
    %c2_69 = arith.constant 2 : index
    %c2_70 = arith.constant 2 : index
    %c0_71 = arith.constant 0 : index
    %58 = vector.load %arg5[%c2_69, %c2_70, %c0_71] : memref<18x24x4xf32, #tpu.memory_space<vmem>>, vector<16x16x4xf32>
    %59 = vector.shape_cast %58 : vector<16x16x4xf32> to vector<256x4xf32>
    %c8 = arith.constant 8 : index
    %c0_72 = arith.constant 0 : index
    %c0_73 = arith.constant 0 : index
    %60 = vector.load %arg2[%c8, %c0_72, %c0_73] : memref<9x4x8xf32, #tpu.memory_space<vmem>>, vector<1x4x8xf32>
    %61 = vector.shape_cast %60 : vector<1x4x8xf32> to vector<4x8xf32>
    %cst_74 = arith.constant dense<0.000000e+00> : vector<256x8xf32>
    %62 = tpu.matmul %59, %61, %cst_74 {dimension_numbers = #tpu.dot_dimension_numbers<[1], [0], [0], [1], [0, 0, 1, 1], [], []>} : vector<256x4xf32>, vector<4x8xf32>, vector<256x8xf32> -> vector<256x8xf32>
    %63 = arith.addf %57, %62 : vector<256x8xf32>
    %cst_75 = arith.constant dense<0.000000e+00> : vector<8xf32>
    %64 = vector.multi_reduction <add>, %63, %cst_75 [0] : vector<256x8xf32> to vector<8xf32>
    %65 = vector.shape_cast %64 : vector<8xf32> to vector<1x8xf32>
    %cst_76 = arith.constant 3.906250e-03 : f32
    %66 = vector.broadcast %cst_76 : f32 to vector<1x8xf32>
    %67 = arith.mulf %65, %66 : vector<1x8xf32>
    %68 = vector.broadcast %67 : vector<1x8xf32> to vector<256x8xf32>
    %69 = arith.subf %63, %68 : vector<256x8xf32>
    %70 = arith.mulf %69, %69 : vector<256x8xf32>
    %cst_77 = arith.constant dense<0.000000e+00> : vector<8xf32>
    %71 = vector.multi_reduction <add>, %70, %cst_77 [0] : vector<256x8xf32> to vector<8xf32>
    %72 = vector.shape_cast %71 : vector<8xf32> to vector<1x8xf32>
    %73 = tpu.concatenate %65, %72 in 0 : vector<1x8xf32>, vector<1x8xf32> -> vector<2x8xf32>
    %c0_78 = arith.constant 0 : index
    %c0_79 = arith.constant 0 : index
    %c0_80 = arith.constant 0 : index
    %74 = vector.load %arg4[%c0_78, %c0_79, %c0_80] : memref<1x2x8xf32, #tpu.memory_space<vmem>>, vector<1x2x8xf32>
    %75 = vector.shape_cast %74 : vector<1x2x8xf32> to vector<2x8xf32>
    %76 = vector.shape_cast %73 : vector<2x8xf32> to vector<1x2x8xf32>
    tpu.vector_store %arg4[%c0_78, %c0_79, %c0_80], %76 {strides = array<i32>} : memref<1x2x8xf32, #tpu.memory_space<vmem>>, vector<1x2x8xf32>,
    %77 = vector.shape_cast %63 : vector<256x8xf32> to vector<16x16x8xf32>
    %c0_81 = arith.constant 0 : index
    %c0_82 = arith.constant 0 : index
    %c0_83 = arith.constant 0 : index
    %c0_84 = arith.constant 0 : index
    %78 = vector.load %arg3[%c0_81, %c0_82, %c0_83, %c0_84] : memref<1x16x16x8xf32, #tpu.memory_space<vmem>>, vector<1x16x16x8xf32>
    %79 = vector.shape_cast %78 : vector<1x16x16x8xf32> to vector<16x16x8xf32>
    %80 = vector.shape_cast %77 : vector<16x16x8xf32> to vector<1x16x16x8xf32>
    tpu.vector_store %arg3[%c0_81, %c0_82, %c0_83, %c0_84], %80 {strides = array<i32>} : memref<1x16x16x8xf32, #tpu.memory_space<vmem>>, vector<1x16x16x8xf32>,
    return
  }
  func.func @transform_0(%arg0: i32) -> (i32, i32, i32, i32) {
    %c0_i32 = arith.constant 0 : i32
    %c0_i32_0 = arith.constant 0 : i32
    %c0_i32_1 = arith.constant 0 : i32
    %c0_i32_2 = arith.constant 0 : i32
    return %arg0, %c0_i32, %c0_i32_0, %c0_i32_1 : i32, i32, i32, i32
  }
  func.func @transform_1(%arg0: i32) -> (i32, i32, i32) {
    %c0_i32 = arith.constant 0 : i32
    %c0_i32_0 = arith.constant 0 : i32
    %c0_i32_1 = arith.constant 0 : i32
    %c0_i32_2 = arith.constant 0 : i32
    return %c0_i32, %c0_i32_0, %c0_i32_1 : i32, i32, i32
  }
  func.func @transform_2(%arg0: i32) -> (i32, i32, i32, i32) {
    %c0_i32 = arith.constant 0 : i32
    %c0_i32_0 = arith.constant 0 : i32
    %c0_i32_1 = arith.constant 0 : i32
    %c0_i32_2 = arith.constant 0 : i32
    return %arg0, %c0_i32, %c0_i32_0, %c0_i32_1 : i32, i32, i32, i32
  }
  func.func @transform_3(%arg0: i32) -> (i32, i32, i32) {
    %c0_i32 = arith.constant 0 : i32
    %c0_i32_0 = arith.constant 0 : i32
    %c0_i32_1 = arith.constant 0 : i32
    return %arg0, %c0_i32, %c0_i32_0 : i32, i32, i32
  }
}

module attributes {stable_mosaic.version = 11 : i64} {
  func.func @bn_relu_finalize_kernel(%arg0: i32, %arg1: memref<1x16x16x8xf32, #tpu.memory_space<vmem>>, %arg2: memref<2x8xf32, #tpu.memory_space<vmem>>, %arg3: memref<1x16x16x8xf32, #tpu.memory_space<vmem>>) attributes {dimension_semantics = [#tpu.dimension_semantics<parallel>], iteration_bounds = array<i64: 2>, scalar_prefetch = 0 : i64, scratch_operands = 0 : i64, tpu.core_type = #tpu.core_type<tc>, window_params = [{transform_indices = @transform_0, window_bounds = array<i64: 1, 16, 16, 8>}, {pipeline_mode = #tpu.pipeline_mode<synchronous>, transform_indices = @transform_1, window_bounds = array<i64: 2, 8>}, {transform_indices = @transform_2, window_bounds = array<i64: 1, 16, 16, 8>}]} {
    %c0 = arith.constant 0 : index
    %c0_0 = arith.constant 0 : index
    %c0_1 = arith.constant 0 : index
    %c0_2 = arith.constant 0 : index
    %0 = vector.load %arg1[%c0, %c0_0, %c0_1, %c0_2] : memref<1x16x16x8xf32, #tpu.memory_space<vmem>>, vector<1x16x16x8xf32>
    %1 = vector.shape_cast %0 : vector<1x16x16x8xf32> to vector<16x16x8xf32>
    %c0_3 = arith.constant 0 : index
    %c0_4 = arith.constant 0 : index
    %2 = vector.load %arg2[%c0_3, %c0_4] : memref<2x8xf32, #tpu.memory_space<vmem>>, vector<1x8xf32>
    %3 = vector.shape_cast %2 : vector<1x8xf32> to vector<8xf32>
    %4 = vector.shape_cast %3 : vector<8xf32> to vector<1x1x8xf32>
    %5 = vector.broadcast %4 : vector<1x1x8xf32> to vector<16x16x8xf32>
    %6 = arith.mulf %1, %5 : vector<16x16x8xf32>
    %c1 = arith.constant 1 : index
    %c0_5 = arith.constant 0 : index
    %7 = vector.load %arg2[%c1, %c0_5] : memref<2x8xf32, #tpu.memory_space<vmem>>, vector<1x8xf32>
    %8 = vector.shape_cast %7 : vector<1x8xf32> to vector<8xf32>
    %9 = vector.shape_cast %8 : vector<8xf32> to vector<1x1x8xf32>
    %10 = vector.broadcast %9 : vector<1x1x8xf32> to vector<16x16x8xf32>
    %11 = arith.addf %6, %10 : vector<16x16x8xf32>
    %cst = arith.constant 0.000000e+00 : f32
    %12 = vector.broadcast %cst : f32 to vector<16x16x8xf32>
    %13 = arith.maximumf %11, %12 : vector<16x16x8xf32>
    %c0_6 = arith.constant 0 : index
    %c0_7 = arith.constant 0 : index
    %c0_8 = arith.constant 0 : index
    %c0_9 = arith.constant 0 : index
    %14 = vector.load %arg3[%c0_6, %c0_7, %c0_8, %c0_9] : memref<1x16x16x8xf32, #tpu.memory_space<vmem>>, vector<1x16x16x8xf32>
    %15 = vector.shape_cast %14 : vector<1x16x16x8xf32> to vector<16x16x8xf32>
    %16 = vector.shape_cast %13 : vector<16x16x8xf32> to vector<1x16x16x8xf32>
    tpu.vector_store %arg3[%c0_6, %c0_7, %c0_8, %c0_9], %16 {strides = array<i32>} : memref<1x16x16x8xf32, #tpu.memory_space<vmem>>, vector<1x16x16x8xf32>,
    return
  }
  func.func @transform_0(%arg0: i32) -> (i32, i32, i32, i32) {
    %c0_i32 = arith.constant 0 : i32
    %c0_i32_0 = arith.constant 0 : i32
    %c0_i32_1 = arith.constant 0 : i32
    %c0_i32_2 = arith.constant 0 : i32
    return %arg0, %c0_i32, %c0_i32_0, %c0_i32_1 : i32, i32, i32, i32
  }
  func.func @transform_1(%arg0: i32) -> (i32, i32) {
    %c0_i32 = arith.constant 0 : i32
    %c0_i32_0 = arith.constant 0 : i32
    %c0_i32_1 = arith.constant 0 : i32
    return %c0_i32, %c0_i32_0 : i32, i32
  }
  func.func @transform_2(%arg0: i32) -> (i32, i32, i32, i32) {
    %c0_i32 = arith.constant 0 : i32
    %c0_i32_0 = arith.constant 0 : i32
    %c0_i32_1 = arith.constant 0 : i32
    %c0_i32_2 = arith.constant 0 : i32
    return %arg0, %c0_i32, %c0_i32_0, %c0_i32_1 : i32, i32, i32, i32
  }
}

module attributes {stable_mosaic.version = 11 : i64} {
  func.func @bn_relu_conv2_stats_kernel(%arg0: i32, %arg1: memref<1x16x16x8xf32, #tpu.memory_space<vmem>>, %arg2: memref<2x8xf32, #tpu.memory_space<vmem>>, %arg3: memref<9x8x8xf32, #tpu.memory_space<vmem>>, %arg4: memref<1x16x16x8xf32, #tpu.memory_space<vmem>>, %arg5: memref<1x2x8xf32, #tpu.memory_space<vmem>>, %arg6: memref<18x24x8xf32, #tpu.memory_space<vmem>>) attributes {dimension_semantics = [#tpu.dimension_semantics<parallel>], iteration_bounds = array<i64: 2>, scalar_prefetch = 0 : i64, scratch_operands = 1 : i64, tpu.core_type = #tpu.core_type<tc>, window_params = [{transform_indices = @transform_0, window_bounds = array<i64: 1, 16, 16, 8>}, {pipeline_mode = #tpu.pipeline_mode<synchronous>, transform_indices = @transform_1, window_bounds = array<i64: 2, 8>}, {pipeline_mode = #tpu.pipeline_mode<synchronous>, transform_indices = @transform_2, window_bounds = array<i64: 9, 8, 8>}, {transform_indices = @transform_3, window_bounds = array<i64: 1, 16, 16, 8>}, {transform_indices = @transform_4, window_bounds = array<i64: 1, 2, 8>}]} {
    %c0 = arith.constant 0 : index
    %c0_0 = arith.constant 0 : index
    %c0_1 = arith.constant 0 : index
    %c0_2 = arith.constant 0 : index
    %0 = vector.load %arg1[%c0, %c0_0, %c0_1, %c0_2] : memref<1x16x16x8xf32, #tpu.memory_space<vmem>>, vector<1x16x16x8xf32>
    %1 = vector.shape_cast %0 : vector<1x16x16x8xf32> to vector<16x16x8xf32>
    %c0_3 = arith.constant 0 : index
    %c0_4 = arith.constant 0 : index
    %2 = vector.load %arg2[%c0_3, %c0_4] : memref<2x8xf32, #tpu.memory_space<vmem>>, vector<1x8xf32>
    %3 = vector.shape_cast %2 : vector<1x8xf32> to vector<8xf32>
    %4 = vector.shape_cast %3 : vector<8xf32> to vector<1x1x8xf32>
    %5 = vector.broadcast %4 : vector<1x1x8xf32> to vector<16x16x8xf32>
    %6 = arith.mulf %1, %5 : vector<16x16x8xf32>
    %c1 = arith.constant 1 : index
    %c0_5 = arith.constant 0 : index
    %7 = vector.load %arg2[%c1, %c0_5] : memref<2x8xf32, #tpu.memory_space<vmem>>, vector<1x8xf32>
    %8 = vector.shape_cast %7 : vector<1x8xf32> to vector<8xf32>
    %9 = vector.shape_cast %8 : vector<8xf32> to vector<1x1x8xf32>
    %10 = vector.broadcast %9 : vector<1x1x8xf32> to vector<16x16x8xf32>
    %11 = arith.addf %6, %10 : vector<16x16x8xf32>
    %cst = arith.constant 0.000000e+00 : f32
    %12 = vector.broadcast %cst : f32 to vector<16x16x8xf32>
    %13 = arith.maximumf %11, %12 : vector<16x16x8xf32>
    %cst_6 = arith.constant 0.000000e+00 : f32
    %14 = vector.broadcast %cst_6 : f32 to vector<1x24x8xf32>
    %c0_7 = arith.constant 0 : index
    %c0_8 = arith.constant 0 : index
    %c0_9 = arith.constant 0 : index
    %15 = vector.load %arg6[%c0_7, %c0_8, %c0_9] : memref<18x24x8xf32, #tpu.memory_space<vmem>>, vector<1x24x8xf32>
    tpu.vector_store %arg6[%c0_7, %c0_8, %c0_9], %14 {strides = array<i32>} : memref<18x24x8xf32, #tpu.memory_space<vmem>>, vector<1x24x8xf32>,
    %cst_10 = arith.constant 0.000000e+00 : f32
    %16 = vector.broadcast %cst_10 : f32 to vector<1x24x8xf32>
    %c17 = arith.constant 17 : index
    %c0_11 = arith.constant 0 : index
    %c0_12 = arith.constant 0 : index
    %17 = vector.load %arg6[%c17, %c0_11, %c0_12] : memref<18x24x8xf32, #tpu.memory_space<vmem>>, vector<1x24x8xf32>
    tpu.vector_store %arg6[%c17, %c0_11, %c0_12], %16 {strides = array<i32>} : memref<18x24x8xf32, #tpu.memory_space<vmem>>, vector<1x24x8xf32>,
    %cst_13 = arith.constant 0.000000e+00 : f32
    %18 = vector.broadcast %cst_13 : f32 to vector<16x1x8xf32>
    %c1_14 = arith.constant 1 : index
    %c0_15 = arith.constant 0 : index
    %c0_16 = arith.constant 0 : index
    %19 = vector.load %arg6[%c1_14, %c0_15, %c0_16] : memref<18x24x8xf32, #tpu.memory_space<vmem>>, vector<16x1x8xf32>
    tpu.vector_store %arg6[%c1_14, %c0_15, %c0_16], %18 {strides = array<i32>} : memref<18x24x8xf32, #tpu.memory_space<vmem>>, vector<16x1x8xf32>,
    %cst_17 = arith.constant 0.000000e+00 : f32
    %20 = vector.broadcast %cst_17 : f32 to vector<16x1x8xf32>
    %c1_18 = arith.constant 1 : index
    %c17_19 = arith.constant 17 : index
    %c0_20 = arith.constant 0 : index
    %21 = vector.load %arg6[%c1_18, %c17_19, %c0_20] : memref<18x24x8xf32, #tpu.memory_space<vmem>>, vector<16x1x8xf32>
    tpu.vector_store %arg6[%c1_18, %c17_19, %c0_20], %20 {strides = array<i32>} : memref<18x24x8xf32, #tpu.memory_space<vmem>>, vector<16x1x8xf32>,
    %c1_21 = arith.constant 1 : index
    %c1_22 = arith.constant 1 : index
    %c0_23 = arith.constant 0 : index
    %22 = vector.load %arg6[%c1_21, %c1_22, %c0_23] : memref<18x24x8xf32, #tpu.memory_space<vmem>>, vector<16x16x8xf32>
    tpu.vector_store %arg6[%c1_21, %c1_22, %c0_23], %13 {strides = array<i32>} : memref<18x24x8xf32, #tpu.memory_space<vmem>>, vector<16x16x8xf32>,
    %c0_24 = arith.constant 0 : index
    %c0_25 = arith.constant 0 : index
    %c0_26 = arith.constant 0 : index
    %23 = vector.load %arg6[%c0_24, %c0_25, %c0_26] : memref<18x24x8xf32, #tpu.memory_space<vmem>>, vector<16x16x8xf32>
    %24 = vector.shape_cast %23 : vector<16x16x8xf32> to vector<256x8xf32>
    %c0_27 = arith.constant 0 : index
    %c0_28 = arith.constant 0 : index
    %c0_29 = arith.constant 0 : index
    %25 = vector.load %arg3[%c0_27, %c0_28, %c0_29] : memref<9x8x8xf32, #tpu.memory_space<vmem>>, vector<1x8x8xf32>
    %26 = vector.shape_cast %25 : vector<1x8x8xf32> to vector<8x8xf32>
    %cst_30 = arith.constant dense<0.000000e+00> : vector<256x8xf32>
    %27 = tpu.matmul %24, %26, %cst_30 {dimension_numbers = #tpu.dot_dimension_numbers<[1], [0], [0], [1], [0, 0, 1, 1], [], []>} : vector<256x8xf32>, vector<8x8xf32>, vector<256x8xf32> -> vector<256x8xf32>
    %c0_31 = arith.constant 0 : index
    %c1_32 = arith.constant 1 : index
    %c0_33 = arith.constant 0 : index
    %28 = vector.load %arg6[%c0_31, %c1_32, %c0_33] : memref<18x24x8xf32, #tpu.memory_space<vmem>>, vector<16x16x8xf32>
    %29 = vector.shape_cast %28 : vector<16x16x8xf32> to vector<256x8xf32>
    %c1_34 = arith.constant 1 : index
    %c0_35 = arith.constant 0 : index
    %c0_36 = arith.constant 0 : index
    %30 = vector.load %arg3[%c1_34, %c0_35, %c0_36] : memref<9x8x8xf32, #tpu.memory_space<vmem>>, vector<1x8x8xf32>
    %31 = vector.shape_cast %30 : vector<1x8x8xf32> to vector<8x8xf32>
    %cst_37 = arith.constant dense<0.000000e+00> : vector<256x8xf32>
    %32 = tpu.matmul %29, %31, %cst_37 {dimension_numbers = #tpu.dot_dimension_numbers<[1], [0], [0], [1], [0, 0, 1, 1], [], []>} : vector<256x8xf32>, vector<8x8xf32>, vector<256x8xf32> -> vector<256x8xf32>
    %33 = arith.addf %27, %32 : vector<256x8xf32>
    %c0_38 = arith.constant 0 : index
    %c2 = arith.constant 2 : index
    %c0_39 = arith.constant 0 : index
    %34 = vector.load %arg6[%c0_38, %c2, %c0_39] : memref<18x24x8xf32, #tpu.memory_space<vmem>>, vector<16x16x8xf32>
    %35 = vector.shape_cast %34 : vector<16x16x8xf32> to vector<256x8xf32>
    %c2_40 = arith.constant 2 : index
    %c0_41 = arith.constant 0 : index
    %c0_42 = arith.constant 0 : index
    %36 = vector.load %arg3[%c2_40, %c0_41, %c0_42] : memref<9x8x8xf32, #tpu.memory_space<vmem>>, vector<1x8x8xf32>
    %37 = vector.shape_cast %36 : vector<1x8x8xf32> to vector<8x8xf32>
    %cst_43 = arith.constant dense<0.000000e+00> : vector<256x8xf32>
    %38 = tpu.matmul %35, %37, %cst_43 {dimension_numbers = #tpu.dot_dimension_numbers<[1], [0], [0], [1], [0, 0, 1, 1], [], []>} : vector<256x8xf32>, vector<8x8xf32>, vector<256x8xf32> -> vector<256x8xf32>
    %39 = arith.addf %33, %38 : vector<256x8xf32>
    %c1_44 = arith.constant 1 : index
    %c0_45 = arith.constant 0 : index
    %c0_46 = arith.constant 0 : index
    %40 = vector.load %arg6[%c1_44, %c0_45, %c0_46] : memref<18x24x8xf32, #tpu.memory_space<vmem>>, vector<16x16x8xf32>
    %41 = vector.shape_cast %40 : vector<16x16x8xf32> to vector<256x8xf32>
    %c3 = arith.constant 3 : index
    %c0_47 = arith.constant 0 : index
    %c0_48 = arith.constant 0 : index
    %42 = vector.load %arg3[%c3, %c0_47, %c0_48] : memref<9x8x8xf32, #tpu.memory_space<vmem>>, vector<1x8x8xf32>
    %43 = vector.shape_cast %42 : vector<1x8x8xf32> to vector<8x8xf32>
    %cst_49 = arith.constant dense<0.000000e+00> : vector<256x8xf32>
    %44 = tpu.matmul %41, %43, %cst_49 {dimension_numbers = #tpu.dot_dimension_numbers<[1], [0], [0], [1], [0, 0, 1, 1], [], []>} : vector<256x8xf32>, vector<8x8xf32>, vector<256x8xf32> -> vector<256x8xf32>
    %45 = arith.addf %39, %44 : vector<256x8xf32>
    %c1_50 = arith.constant 1 : index
    %c1_51 = arith.constant 1 : index
    %c0_52 = arith.constant 0 : index
    %46 = vector.load %arg6[%c1_50, %c1_51, %c0_52] : memref<18x24x8xf32, #tpu.memory_space<vmem>>, vector<16x16x8xf32>
    %47 = vector.shape_cast %46 : vector<16x16x8xf32> to vector<256x8xf32>
    %c4 = arith.constant 4 : index
    %c0_53 = arith.constant 0 : index
    %c0_54 = arith.constant 0 : index
    %48 = vector.load %arg3[%c4, %c0_53, %c0_54] : memref<9x8x8xf32, #tpu.memory_space<vmem>>, vector<1x8x8xf32>
    %49 = vector.shape_cast %48 : vector<1x8x8xf32> to vector<8x8xf32>
    %cst_55 = arith.constant dense<0.000000e+00> : vector<256x8xf32>
    %50 = tpu.matmul %47, %49, %cst_55 {dimension_numbers = #tpu.dot_dimension_numbers<[1], [0], [0], [1], [0, 0, 1, 1], [], []>} : vector<256x8xf32>, vector<8x8xf32>, vector<256x8xf32> -> vector<256x8xf32>
    %51 = arith.addf %45, %50 : vector<256x8xf32>
    %c1_56 = arith.constant 1 : index
    %c2_57 = arith.constant 2 : index
    %c0_58 = arith.constant 0 : index
    %52 = vector.load %arg6[%c1_56, %c2_57, %c0_58] : memref<18x24x8xf32, #tpu.memory_space<vmem>>, vector<16x16x8xf32>
    %53 = vector.shape_cast %52 : vector<16x16x8xf32> to vector<256x8xf32>
    %c5 = arith.constant 5 : index
    %c0_59 = arith.constant 0 : index
    %c0_60 = arith.constant 0 : index
    %54 = vector.load %arg3[%c5, %c0_59, %c0_60] : memref<9x8x8xf32, #tpu.memory_space<vmem>>, vector<1x8x8xf32>
    %55 = vector.shape_cast %54 : vector<1x8x8xf32> to vector<8x8xf32>
    %cst_61 = arith.constant dense<0.000000e+00> : vector<256x8xf32>
    %56 = tpu.matmul %53, %55, %cst_61 {dimension_numbers = #tpu.dot_dimension_numbers<[1], [0], [0], [1], [0, 0, 1, 1], [], []>} : vector<256x8xf32>, vector<8x8xf32>, vector<256x8xf32> -> vector<256x8xf32>
    %57 = arith.addf %51, %56 : vector<256x8xf32>
    %c2_62 = arith.constant 2 : index
    %c0_63 = arith.constant 0 : index
    %c0_64 = arith.constant 0 : index
    %58 = vector.load %arg6[%c2_62, %c0_63, %c0_64] : memref<18x24x8xf32, #tpu.memory_space<vmem>>, vector<16x16x8xf32>
    %59 = vector.shape_cast %58 : vector<16x16x8xf32> to vector<256x8xf32>
    %c6 = arith.constant 6 : index
    %c0_65 = arith.constant 0 : index
    %c0_66 = arith.constant 0 : index
    %60 = vector.load %arg3[%c6, %c0_65, %c0_66] : memref<9x8x8xf32, #tpu.memory_space<vmem>>, vector<1x8x8xf32>
    %61 = vector.shape_cast %60 : vector<1x8x8xf32> to vector<8x8xf32>
    %cst_67 = arith.constant dense<0.000000e+00> : vector<256x8xf32>
    %62 = tpu.matmul %59, %61, %cst_67 {dimension_numbers = #tpu.dot_dimension_numbers<[1], [0], [0], [1], [0, 0, 1, 1], [], []>} : vector<256x8xf32>, vector<8x8xf32>, vector<256x8xf32> -> vector<256x8xf32>
    %63 = arith.addf %57, %62 : vector<256x8xf32>
    %c2_68 = arith.constant 2 : index
    %c1_69 = arith.constant 1 : index
    %c0_70 = arith.constant 0 : index
    %64 = vector.load %arg6[%c2_68, %c1_69, %c0_70] : memref<18x24x8xf32, #tpu.memory_space<vmem>>, vector<16x16x8xf32>
    %65 = vector.shape_cast %64 : vector<16x16x8xf32> to vector<256x8xf32>
    %c7 = arith.constant 7 : index
    %c0_71 = arith.constant 0 : index
    %c0_72 = arith.constant 0 : index
    %66 = vector.load %arg3[%c7, %c0_71, %c0_72] : memref<9x8x8xf32, #tpu.memory_space<vmem>>, vector<1x8x8xf32>
    %67 = vector.shape_cast %66 : vector<1x8x8xf32> to vector<8x8xf32>
    %cst_73 = arith.constant dense<0.000000e+00> : vector<256x8xf32>
    %68 = tpu.matmul %65, %67, %cst_73 {dimension_numbers = #tpu.dot_dimension_numbers<[1], [0], [0], [1], [0, 0, 1, 1], [], []>} : vector<256x8xf32>, vector<8x8xf32>, vector<256x8xf32> -> vector<256x8xf32>
    %69 = arith.addf %63, %68 : vector<256x8xf32>
    %c2_74 = arith.constant 2 : index
    %c2_75 = arith.constant 2 : index
    %c0_76 = arith.constant 0 : index
    %70 = vector.load %arg6[%c2_74, %c2_75, %c0_76] : memref<18x24x8xf32, #tpu.memory_space<vmem>>, vector<16x16x8xf32>
    %71 = vector.shape_cast %70 : vector<16x16x8xf32> to vector<256x8xf32>
    %c8 = arith.constant 8 : index
    %c0_77 = arith.constant 0 : index
    %c0_78 = arith.constant 0 : index
    %72 = vector.load %arg3[%c8, %c0_77, %c0_78] : memref<9x8x8xf32, #tpu.memory_space<vmem>>, vector<1x8x8xf32>
    %73 = vector.shape_cast %72 : vector<1x8x8xf32> to vector<8x8xf32>
    %cst_79 = arith.constant dense<0.000000e+00> : vector<256x8xf32>
    %74 = tpu.matmul %71, %73, %cst_79 {dimension_numbers = #tpu.dot_dimension_numbers<[1], [0], [0], [1], [0, 0, 1, 1], [], []>} : vector<256x8xf32>, vector<8x8xf32>, vector<256x8xf32> -> vector<256x8xf32>
    %75 = arith.addf %69, %74 : vector<256x8xf32>
    %cst_80 = arith.constant dense<0.000000e+00> : vector<8xf32>
    %76 = vector.multi_reduction <add>, %75, %cst_80 [0] : vector<256x8xf32> to vector<8xf32>
    %77 = vector.shape_cast %76 : vector<8xf32> to vector<1x8xf32>
    %cst_81 = arith.constant 3.906250e-03 : f32
    %78 = vector.broadcast %cst_81 : f32 to vector<1x8xf32>
    %79 = arith.mulf %77, %78 : vector<1x8xf32>
    %80 = vector.broadcast %79 : vector<1x8xf32> to vector<256x8xf32>
    %81 = arith.subf %75, %80 : vector<256x8xf32>
    %82 = arith.mulf %81, %81 : vector<256x8xf32>
    %cst_82 = arith.constant dense<0.000000e+00> : vector<8xf32>
    %83 = vector.multi_reduction <add>, %82, %cst_82 [0] : vector<256x8xf32> to vector<8xf32>
    %84 = vector.shape_cast %83 : vector<8xf32> to vector<1x8xf32>
    %85 = tpu.concatenate %77, %84 in 0 : vector<1x8xf32>, vector<1x8xf32> -> vector<2x8xf32>
    %c0_83 = arith.constant 0 : index
    %c0_84 = arith.constant 0 : index
    %c0_85 = arith.constant 0 : index
    %86 = vector.load %arg5[%c0_83, %c0_84, %c0_85] : memref<1x2x8xf32, #tpu.memory_space<vmem>>, vector<1x2x8xf32>
    %87 = vector.shape_cast %86 : vector<1x2x8xf32> to vector<2x8xf32>
    %88 = vector.shape_cast %85 : vector<2x8xf32> to vector<1x2x8xf32>
    tpu.vector_store %arg5[%c0_83, %c0_84, %c0_85], %88 {strides = array<i32>} : memref<1x2x8xf32, #tpu.memory_space<vmem>>, vector<1x2x8xf32>,
    %89 = vector.shape_cast %75 : vector<256x8xf32> to vector<16x16x8xf32>
    %c0_86 = arith.constant 0 : index
    %c0_87 = arith.constant 0 : index
    %c0_88 = arith.constant 0 : index
    %c0_89 = arith.constant 0 : index
    %90 = vector.load %arg4[%c0_86, %c0_87, %c0_88, %c0_89] : memref<1x16x16x8xf32, #tpu.memory_space<vmem>>, vector<1x16x16x8xf32>
    %91 = vector.shape_cast %90 : vector<1x16x16x8xf32> to vector<16x16x8xf32>
    %92 = vector.shape_cast %89 : vector<16x16x8xf32> to vector<1x16x16x8xf32>
    tpu.vector_store %arg4[%c0_86, %c0_87, %c0_88, %c0_89], %92 {strides = array<i32>} : memref<1x16x16x8xf32, #tpu.memory_space<vmem>>, vector<1x16x16x8xf32>,
    return
  }
  func.func @transform_0(%arg0: i32) -> (i32, i32, i32, i32) {
    %c0_i32 = arith.constant 0 : i32
    %c0_i32_0 = arith.constant 0 : i32
    %c0_i32_1 = arith.constant 0 : i32
    %c0_i32_2 = arith.constant 0 : i32
    return %arg0, %c0_i32, %c0_i32_0, %c0_i32_1 : i32, i32, i32, i32
  }
  func.func @transform_1(%arg0: i32) -> (i32, i32) {
    %c0_i32 = arith.constant 0 : i32
    %c0_i32_0 = arith.constant 0 : i32
    %c0_i32_1 = arith.constant 0 : i32
    return %c0_i32, %c0_i32_0 : i32, i32
  }
  func.func @transform_2(%arg0: i32) -> (i32, i32, i32) {
    %c0_i32 = arith.constant 0 : i32
    %c0_i32_0 = arith.constant 0 : i32
    %c0_i32_1 = arith.constant 0 : i32
    %c0_i32_2 = arith.constant 0 : i32
    return %c0_i32, %c0_i32_0, %c0_i32_1 : i32, i32, i32
  }
  func.func @transform_3(%arg0: i32) -> (i32, i32, i32, i32) {
    %c0_i32 = arith.constant 0 : i32
    %c0_i32_0 = arith.constant 0 : i32
    %c0_i32_1 = arith.constant 0 : i32
    %c0_i32_2 = arith.constant 0 : i32
    return %arg0, %c0_i32, %c0_i32_0, %c0_i32_1 : i32, i32, i32, i32
  }
  func.func @transform_4(%arg0: i32) -> (i32, i32, i32) {
    %c0_i32 = arith.constant 0 : i32
    %c0_i32_0 = arith.constant 0 : i32
    %c0_i32_1 = arith.constant 0 : i32
    return %arg0, %c0_i32, %c0_i32_0 : i32, i32, i32
  }
}

</mosaic_0001>

<llo_original>
// kernel: double_conv.5
$region0: #{double_conv.5}
  #allocation0 [shape = 'u32[]', space=smem, size = 0x4, offset = 0x4, fixed_abs, tag = 'smem constant byte address 0x4 - core index']
  #allocation1 [shape = 'u32[144,128]{1,0:T(1,128)}', space=vmem, size = 0x12000, scoped, tag = 'internal scratch']
  %s0 = inlined_call_operand.vmem [shape: f32[2,16,16,8], index: 0, kind: input, shape index: {}]
  %s1 = inlined_call_operand.vmem [shape: f32[2,8], index: 1, kind: input, shape index: {}]
  %s2 = inlined_call_operand.vmem [shape: f32[2,16,16,8], index: 2, kind: output, shape index: {}]
  %s3 = sld [smem:[#allocation0]]
  $region41: #{double_conv.5} parent=0
    _
  %s5 = ssub.s32 1, %s3
  %s6 = scalar_select 0, %s5, %s3
  loop: start=0, step=1, limit=4
  $region2: #{double_conv.5} parent=0 // loop_pre_header
    _
  $region3: #{double_conv.5} parent=0 // loop_header
    %s8 = sphi 0, %s12
    %p9 = scmp.ge.s32.totalorder %s8, 4
    %s18 = sphi 0, %s20
    %s21 = sphi 0, %s18
    %s22 = sphi 0, %s21
    %s38 = sphi 0, %s22
    %s42 = sphi 0, %s42
    %s44 = sphi 0, %s42
    %s45 = sphi 0, %s44
    %s59 = sphi 0, %s45
    %s65 = sphi 0, %s67
    %s68 = sphi 0, %s65
    %s69 = sphi 0, %s68
    %s85 = sphi 0, %s69
  $region4: #{double_conv.5} parent=0 // loop_header_branch
    %11 = sbr.rel (%p9) target = $region8
  $region5: #{double_conv.5} parent=0 // loop_body
    %s13 = ssub.s32 %s8, 1
    %s14 = ssub.s32 %s8, 2
    %s15 = sadd.s32 %s8, 1
    %s16 = ssub.s32 %s8, %s15
    %p17 = scmp.eq.s32.totalorder %s16, 0
    %s19 = sadd.s32 %s18, 1
    %s20 = scalar_select %p17, %s18, %s19
    %p23 = pneg %p17
    %p24 = scmp.eq.s32.totalorder %s8, 1
    %p25 = por %p23, %p24
    %p26 = scmp.ne.s32.totalorder %s18, %s21
    %p27 = scmp.eq.s32.totalorder %s8, 0
    %p28 = por %p26, %p27
    %p29 = scmp.ne.s32.totalorder %s18, %s21
    %p30 = scmp.eq.s32.totalorder %s13, 1
    %p31 = por %p29, %p30
    %p32 = scmp.ne.s32.totalorder %s21, %s22
    %p33 = scmp.eq.s32.totalorder %s13, 0
    %p34 = por %p32, %p33
    %p35 = scmp.ne.s32.totalorder %s21, %s22
    %p36 = scmp.eq.s32.totalorder %s14, 1
    %p37 = por %p35, %p36
    %p39 = scmp.ne.s32.totalorder %s22, %s38
    %p40 = scmp.eq.s32.totalorder %s14, 0
    %p41 = por %p39, %p40
    %s43 = sadd.s32 %s42, 1
    %p46 = scmp.eq.s32.totalorder %s8, 1
    %p47 = scmp.ne.s32.totalorder %s42, %s44
    %p48 = scmp.eq.s32.totalorder %s8, 0
    %p49 = por %p47, %p48
    %p50 = scmp.ne.s32.totalorder %s42, %s44
    %p51 = scmp.eq.s32.totalorder %s13, 1
    %p52 = por %p50, %p51
    %p53 = scmp.ne.s32.totalorder %s44, %s45
    %p54 = scmp.eq.s32.totalorder %s13, 0
    %p55 = por %p53, %p54
    %p56 = scmp.ne.s32.totalorder %s44, %s45
    %p57 = scmp.eq.s32.totalorder %s14, 1
    %p58 = por %p56, %p57
    %p60 = scmp.ne.s32.totalorder %s45, %s59
    %p61 = scmp.eq.s32.totalorder %s14, 0
    %p62 = por %p60, %p61
    %s63 = ssub.s32 %s8, %s15
    %p64 = scmp.eq.s32.totalorder %s63, 0
    %s66 = sadd.s32 %s65, 1
    %s67 = scalar_select %p64, %s65, %s66
    %p70 = pneg %p64
    %p71 = scmp.eq.s32.totalorder %s8, 1
    %p72 = por %p70, %p71
    %p73 = scmp.ne.s32.totalorder %s65, %s68
    %p74 = scmp.eq.s32.totalorder %s8, 0
    %p75 = por %p73, %p74
    %p76 = scmp.ne.s32.totalorder %s65, %s68
    %p77 = scmp.eq.s32.totalorder %s13, 1
    %p78 = por %p76, %p77
    %p79 = scmp.ne.s32.totalorder %s68, %s69
    %p80 = scmp.eq.s32.totalorder %s13, 0
    %p81 = por %p79, %p80
    %p82 = scmp.ne.s32.totalorder %s68, %s69
    %p83 = scmp.eq.s32.totalorder %s14, 1
    %p84 = por %p82, %p83
    %p86 = scmp.ne.s32.totalorder %s69, %s85
    %p87 = scmp.eq.s32.totalorder %s14, 0
    %p88 = por %p86, %p87
    %p89 = scmp.le.s32.totalorder 1, %s8
    %p90 = scmp.lt.s32.totalorder %s8, 3
    %p91 = pnand %p89, %p90
    %p92 = pneg %p91
    // Predicated region
    $region9: #{double_conv.5} parent=5 // pred_check
      _
    $region10: #{double_conv.5} parent=5 // pred_check_branch
      %94 = sbr.rel (%p91) target = $region12
    $region11: #{double_conv.5} parent=5 // pred_region
      %s95 = ssub.s32 %s8, 1
      // Predicated region
      $region13: #{double_conv.5} parent=11 // pred_check
        %p96 = pneg %p55
      $region14: #{double_conv.5} parent=11 // pred_check_branch
        %98 = sbr.rel (%p96) target = $region16
      $region15: #{double_conv.5} parent=11 // pred_region
        _
      $region16: #{double_conv.5} parent=11 // pred_fallthru
        _
    $region12: #{double_conv.5} parent=5 // pred_fallthru
      _
    %p99 = scmp.lt.s32.totalorder %s8, 2
    // Predicated region
    $region17: #{double_conv.5} parent=5 // pred_check
      %p100 = pneg %p99
    $region18: #{double_conv.5} parent=5 // pred_check_branch
      %102 = sbr.rel (%p100) target = $region20
    $region19: #{double_conv.5} parent=5 // pred_region
      // Predicated region
      $region21: #{double_conv.5} parent=19 // pred_check
        %p103 = pneg %p28
      $region22: #{double_conv.5} parent=19 // pred_check_branch
        %105 = sbr.rel (%p103) target = $region24
      $region23: #{double_conv.5} parent=19 // pred_region
        %p106 = scmp.lt.s32.totalorder %s8, 1
        %s107 = scalar_select %p106, %s8, 1
        %s108 = smul.addr %s107, 32
        %s109 = smul.addr %s108, 8
        %s110 = scalar_lea.vmem %s0, %s109
      $region24: #{double_conv.5} parent=19 // pred_fallthru
        _
    $region20: #{double_conv.5} parent=5 // pred_fallthru
      _
    %p111 = scmp.le.s32.totalorder 1, %s8
    %p112 = scmp.lt.s32.totalorder %s8, 3
    %p113 = pnand %p111, %p112
    %p114 = pneg %p113
    // Predicated region
    $region25: #{double_conv.5} parent=5 // pred_check
      _
    $region26: #{double_conv.5} parent=5 // pred_check_branch
      %116 = sbr.rel (%p113) target = $region28
    $region27: #{double_conv.5} parent=5 // pred_region
      %s117 = ssub.s32 %s8, 1
      %p118 = scmp.lt.s32.totalorder %s13, 1
      %s119 = scalar_select %p118, %s13, 1
      %s120 = smul.addr %s119, 32
      %s121 = smul.addr %s120, 8
      %s122 = scalar_lea.vmem %s0, %s121
      %p123 = pneg %p34
      %p124 = pneg %p31
      %p125 = pneg %p55
      %p126 = pneg %p52
      %p127 = pneg %p81
      %p128 = pneg %p78
      %p129 = scmp.lt.s32.totalorder %s13, 1
      %s130 = scalar_select %p129, %s13, 1
      %s131 = smul.addr %s130, 32
      %s132 = smul.addr %s131, 8
      %s133 = scalar_lea.vmem %s2, %s132
      %p134 = scmp.lt.s32.totalorder %s13, 1
      %s135 = scalar_select %p134, %s13, 1
      %s136 = smul.addr %s135, 32
      %s137 = smul.addr %s136, 8
      %s138 = scalar_lea.vmem %s0, %s137
      %p139 = scmp.lt.s32.totalorder %s13, 1
      %s140 = scalar_select %p139, %s13, 1
      %s141 = smul.addr %s140, 32
      %s142 = smul.addr %s141, 8
      %s143 = scalar_lea.vmem %s2, %s142
      %v144 = vld [vmem:[%s138] sm:$0xff]
      %v145 = vld [vmem:[%s138 + $0x8] sm:$0xff]
      %v146 = vld [vmem:[%s138 + $0x10] sm:$0xff]
      %v147 = vld [vmem:[%s138 + $0x18] sm:$0xff]
      %v148 = vld [vmem:[%s138 + $0x20] sm:$0xff]
      %v149 = vld [vmem:[%s138 + $0x28] sm:$0xff]
      %v150 = vld [vmem:[%s138 + $0x30] sm:$0xff]
      %v151 = vld [vmem:[%s138 + $0x38] sm:$0xff]
      %v152 = vld [vmem:[%s138 + $0x40] sm:$0xff]
      %v153 = vld [vmem:[%s138 + $0x48] sm:$0xff]
      %v154 = vld [vmem:[%s138 + $0x50] sm:$0xff]
      %v155 = vld [vmem:[%s138 + $0x58] sm:$0xff]
      %v156 = vld [vmem:[%s138 + $0x60] sm:$0xff]
      %v157 = vld [vmem:[%s138 + $0x68] sm:$0xff]
      %v158 = vld [vmem:[%s138 + $0x70] sm:$0xff]
      %v159 = vld [vmem:[%s138 + $0x78] sm:$0xff]
      %v160 = vld [vmem:[%s138 + $0x80] sm:$0xff]
      %v161 = vld [vmem:[%s138 + $0x88] sm:$0xff]
      %v162 = vld [vmem:[%s138 + $0x90] sm:$0xff]
      %v163 = vld [vmem:[%s138 + $0x98] sm:$0xff]
      %v164 = vld [vmem:[%s138 + $0xa0] sm:$0xff]
      %v165 = vld [vmem:[%s138 + $0xa8] sm:$0xff]
      %v166 = vld [vmem:[%s138 + $0xb0] sm:$0xff]
      %v167 = vld [vmem:[%s138 + $0xb8] sm:$0xff]
      %v168 = vld [vmem:[%s138 + $0xc0] sm:$0xff]
      %v169 = vld [vmem:[%s138 + $0xc8] sm:$0xff]
      %v170 = vld [vmem:[%s138 + $0xd0] sm:$0xff]
      %v171 = vld [vmem:[%s138 + $0xd8] sm:$0xff]
      %v172 = vld [vmem:[%s138 + $0xe0] sm:$0xff]
      %v173 = vld [vmem:[%s138 + $0xe8] sm:$0xff]
      %v174 = vld [vmem:[%s138 + $0xf0] sm:$0xff]
      %v175 = vld [vmem:[%s138 + $0xf8] sm:$0xff]
      %v176 = vld [vmem:[%s1] sm:$0x1]
      %v177 = vlaneseq
      %v178 = vshrl.u32 %v177, 7
      %v179 = vsub.s32 0, %v178
      %v180 = vrot.slane %v176, %v179
      %v181 = vmul.f32 %v144, %v180
      %v182 = vmul.f32 %v145, %v180
      %v183 = vmul.f32 %v146, %v180
      %v184 = vmul.f32 %v147, %v180
      %v185 = vmul.f32 %v148, %v180
      %v186 = vmul.f32 %v149, %v180
      %v187 = vmul.f32 %v150, %v180
      %v188 = vmul.f32 %v151, %v180
      %v189 = vmul.f32 %v152, %v180
      %v190 = vmul.f32 %v153, %v180
      %v191 = vmul.f32 %v154, %v180
      %v192 = vmul.f32 %v155, %v180
      %v193 = vmul.f32 %v156, %v180
      %v194 = vmul.f32 %v157, %v180
      %v195 = vmul.f32 %v158, %v180
      %v196 = vmul.f32 %v159, %v180
      %v197 = vmul.f32 %v160, %v180
      %v198 = vmul.f32 %v161, %v180
      %v199 = vmul.f32 %v162, %v180
      %v200 = vmul.f32 %v163, %v180
      %v201 = vmul.f32 %v164, %v180
      %v202 = vmul.f32 %v165, %v180
      %v203 = vmul.f32 %v166, %v180
      %v204 = vmul.f32 %v167, %v180
      %v205 = vmul.f32 %v168, %v180
      %v206 = vmul.f32 %v169, %v180
      %v207 = vmul.f32 %v170, %v180
      %v208 = vmul.f32 %v171, %v180
      %v209 = vmul.f32 %v172, %v180
      %v210 = vmul.f32 %v173, %v180
      %v211 = vmul.f32 %v174, %v180
      %v212 = vmul.f32 %v175, %v180
      %v213 = vld [vmem:[%s1 + $0x1] sm:$0x1]
      %v214 = vlaneseq
      %v215 = vshrl.u32 %v214, 7
      %v216 = vsub.s32 0, %v215
      %v217 = vrot.slane %v213, %v216
      %v218 = vadd.f32 %v181, %v217
      %v219 = vadd.f32 %v182, %v217
      %v220 = vadd.f32 %v183, %v217
      %v221 = vadd.f32 %v184, %v217
      %v222 = vadd.f32 %v185, %v217
      %v223 = vadd.f32 %v186, %v217
      %v224 = vadd.f32 %v187, %v217
      %v225 = vadd.f32 %v188, %v217
      %v226 = vadd.f32 %v189, %v217
      %v227 = vadd.f32 %v190, %v217
      %v228 = vadd.f32 %v191, %v217
      %v229 = vadd.f32 %v192, %v217
      %v230 = vadd.f32 %v193, %v217
      %v231 = vadd.f32 %v194, %v217
      %v232 = vadd.f32 %v195, %v217
      %v233 = vadd.f32 %v196, %v217
      %v234 = vadd.f32 %v197, %v217
      %v235 = vadd.f32 %v198, %v217
      %v236 = vadd.f32 %v199, %v217
      %v237 = vadd.f32 %v200, %v217
      %v238 = vadd.f32 %v201, %v217
      %v239 = vadd.f32 %v202, %v217
      %v240 = vadd.f32 %v203, %v217
      %v241 = vadd.f32 %v204, %v217
      %v242 = vadd.f32 %v205, %v217
      %v243 = vadd.f32 %v206, %v217
      %v244 = vadd.f32 %v207, %v217
      %v245 = vadd.f32 %v208, %v217
      %v246 = vadd.f32 %v209, %v217
      %v247 = vadd.f32 %v210, %v217
      %v248 = vadd.f32 %v211, %v217
      %v249 = vadd.f32 %v212, %v217
      %v250 = vmax.f32 %v218, 0.0
      %v251 = vmax.f32 %v219, 0.0
      %v252 = vmax.f32 %v220, 0.0
      %v253 = vmax.f32 %v221, 0.0
      %v254 = vmax.f32 %v222, 0.0
      %v255 = vmax.f32 %v223, 0.0
      %v256 = vmax.f32 %v224, 0.0
      %v257 = vmax.f32 %v225, 0.0
      %v258 = vmax.f32 %v226, 0.0
      %v259 = vmax.f32 %v227, 0.0
      %v260 = vmax.f32 %v228, 0.0
      %v261 = vmax.f32 %v229, 0.0
      %v262 = vmax.f32 %v230, 0.0
      %v263 = vmax.f32 %v231, 0.0
      %v264 = vmax.f32 %v232, 0.0
      %v265 = vmax.f32 %v233, 0.0
      %v266 = vmax.f32 %v234, 0.0
      %v267 = vmax.f32 %v235, 0.0
      %v268 = vmax.f32 %v236, 0.0
      %v269 = vmax.f32 %v237, 0.0
      %v270 = vmax.f32 %v238, 0.0
      %v271 = vmax.f32 %v239, 0.0
      %v272 = vmax.f32 %v240, 0.0
      %v273 = vmax.f32 %v241, 0.0
      %v274 = vmax.f32 %v242, 0.0
      %v275 = vmax.f32 %v243, 0.0
      %v276 = vmax.f32 %v244, 0.0
      %v277 = vmax.f32 %v245, 0.0
      %v278 = vmax.f32 %v246, 0.0
      %v279 = vmax.f32 %v247, 0.0
      %v280 = vmax.f32 %v248, 0.0
      %v281 = vmax.f32 %v249, 0.0
      %vm282 = vcmask 64512
      %283 = vst.msk [vmem:[%s143] sm:$0xff] %vm282, %v250
      %284 = vst.msk [vmem:[%s143 + $0x8] sm:$0xff] %vm282, %v251
      %285 = vst.msk [vmem:[%s143 + $0x10] sm:$0xff] %vm282, %v252
      %286 = vst.msk [vmem:[%s143 + $0x18] sm:$0xff] %vm282, %v253
      %287 = vst.msk [vmem:[%s143 + $0x20] sm:$0xff] %vm282, %v254
      %288 = vst.msk [vmem:[%s143 + $0x28] sm:$0xff] %vm282, %v255
      %289 = vst.msk [vmem:[%s143 + $0x30] sm:$0xff] %vm282, %v256
      %290 = vst.msk [vmem:[%s143 + $0x38] sm:$0xff] %vm282, %v257
      %291 = vst.msk [vmem:[%s143 + $0x40] sm:$0xff] %vm282, %v258
      %292 = vst.msk [vmem:[%s143 + $0x48] sm:$0xff] %vm282, %v259
      %293 = vst.msk [vmem:[%s143 + $0x50] sm:$0xff] %vm282, %v260
      %294 = vst.msk [vmem:[%s143 + $0x58] sm:$0xff] %vm282, %v261
      %295 = vst.msk [vmem:[%s143 + $0x60] sm:$0xff] %vm282, %v262
      %296 = vst.msk [vmem:[%s143 + $0x68] sm:$0xff] %vm282, %v263
      %297 = vst.msk [vmem:[%s143 + $0x70] sm:$0xff] %vm282, %v264
      %298 = vst.msk [vmem:[%s143 + $0x78] sm:$0xff] %vm282, %v265
      %299 = vst.msk [vmem:[%s143 + $0x80] sm:$0xff] %vm282, %v266
      %300 = vst.msk [vmem:[%s143 + $0x88] sm:$0xff] %vm282, %v267
      %301 = vst.msk [vmem:[%s143 + $0x90] sm:$0xff] %vm282, %v268
      %302 = vst.msk [vmem:[%s143 + $0x98] sm:$0xff] %vm282, %v269
      %303 = vst.msk [vmem:[%s143 + $0xa0] sm:$0xff] %vm282, %v270
      %304 = vst.msk [vmem:[%s143 + $0xa8] sm:$0xff] %vm282, %v271
      %305 = vst.msk [vmem:[%s143 + $0xb0] sm:$0xff] %vm282, %v272
      %306 = vst.msk [vmem:[%s143 + $0xb8] sm:$0xff] %vm282, %v273
      %307 = vst.msk [vmem:[%s143 + $0xc0] sm:$0xff] %vm282, %v274
      %308 = vst.msk [vmem:[%s143 + $0xc8] sm:$0xff] %vm282, %v275
      %309 = vst.msk [vmem:[%s143 + $0xd0] sm:$0xff] %vm282, %v276
      %310 = vst.msk [vmem:[%s143 + $0xd8] sm:$0xff] %vm282, %v277
      %311 = vst.msk [vmem:[%s143 + $0xe0] sm:$0xff] %vm282, %v278
      %312 = vst.msk [vmem:[%s143 + $0xe8] sm:$0xff] %vm282, %v279
      %313 = vst.msk [vmem:[%s143 + $0xf0] sm:$0xff] %vm282, %v280
      %314 = vst.msk [vmem:[%s143 + $0xf8] sm:$0xff] %vm282, %v281
      %p315 = scmp.lt.s32.totalorder %s13, 1
      %s316 = scalar_select %p315, %s13, 1
      %s317 = smul.addr %s316, 32
      %s318 = smul.addr %s317, 8
      %s319 = scalar_lea.vmem %s2, %s318
      // Predicated region
      $region29: #{double_conv.5} parent=27 // pred_check
        %p320 = pneg %p78
      $region30: #{double_conv.5} parent=27 // pred_check_branch
        %322 = sbr.rel (%p320) target = $region32
      $region31: #{double_conv.5} parent=27 // pred_region
        _
      $region32: #{double_conv.5} parent=27 // pred_fallthru
        _
    $region28: #{double_conv.5} parent=5 // pred_fallthru
      _
    %p323 = scmp.le.s32.totalorder 2, %s8
    // Predicated region
    $region33: #{double_conv.5} parent=5 // pred_check
      %p324 = pneg %p323
    $region34: #{double_conv.5} parent=5 // pred_check_branch
      %326 = sbr.rel (%p324) target = $region36
    $region35: #{double_conv.5} parent=5 // pred_region
      %s327 = ssub.s32 %s8, 2
      // Predicated region
      $region37: #{double_conv.5} parent=35 // pred_check
        %p328 = pneg %p84
      $region38: #{double_conv.5} parent=35 // pred_check_branch
        %330 = sbr.rel (%p328) target = $region40
      $region39: #{double_conv.5} parent=35 // pred_region
        %p331 = scmp.lt.s32.totalorder %s14, 1
        %s332 = scalar_select %p331, %s14, 1
        %s333 = smul.addr %s332, 32
        %s334 = smul.addr %s333, 8
        %s335 = scalar_lea.vmem %s2, %s334
      $region40: #{double_conv.5} parent=35 // pred_fallthru
        _
    $region36: #{double_conv.5} parent=5 // pred_fallthru
      _
  $region6: #{double_conv.5} parent=0 // loop_footer
    %s12 = sadd.s32 1, %s8
  $region7: #{double_conv.5} parent=0 // loop_footer_branch
    %7 = sbr.rel target = $region3
  $region8: #{double_conv.5} parent=0 // loop_exit
    _

// kernel: double_conv.3
$region0: #{double_conv.3}
  #allocation0 [shape = 'u32[]', space=smem, size = 0x4, offset = 0x4, fixed_abs, tag = 'smem constant byte address 0x4 - core index']
  #allocation1 [shape = 'u32[144,128]{1,0:T(1,128)}', space=vmem, size = 0x12000, scoped, tag = 'internal scratch']
  #allocation2 [shape = 'f32[18,24,4]{2,1,0:T(8,128)}', space=vmem, size = 0x36000, scoped, tag = 'scratch operand']
  %s0 = inlined_call_operand.vmem [shape: f32[2,16,16,4], index: 0, kind: input, shape index: {}]
  %s1 = inlined_call_operand.vmem [shape: f32[9,4,8], index: 1, kind: input, shape index: {}]
  %s2 = inlined_call_operand.vmem [shape: f32[2,16,16,8], index: 2, kind: output, shape index: {0}]
  %s3 = inlined_call_operand.vmem [shape: f32[2,2,8], index: 3, kind: output, shape index: {1}]
  %4 = xla_tuple %s2, %s3
  %s5 = sld [smem:[#allocation0]]
  $region49: #{double_conv.3} parent=0
    _
  %s7 = ssub.s32 1, %s5
  %s8 = scalar_select 0, %s7, %s5
  loop: start=0, step=1, limit=4
  $region2: #{double_conv.3} parent=0 // loop_pre_header
    _
  $region3: #{double_conv.3} parent=0 // loop_header
    %s10 = sphi 0, %s14
    %p11 = scmp.ge.s32.totalorder %s10, 4
    %s20 = sphi 0, %s22
    %s23 = sphi 0, %s20
    %s24 = sphi 0, %s23
    %s40 = sphi 0, %s24
    %s44 = sphi 0, %s44
    %s46 = sphi 0, %s44
    %s47 = sphi 0, %s46
    %s61 = sphi 0, %s47
    %s67 = sphi 0, %s69
    %s70 = sphi 0, %s67
    %s71 = sphi 0, %s70
    %s87 = sphi 0, %s71
    %s93 = sphi 0, %s95
    %s96 = sphi 0, %s93
    %s97 = sphi 0, %s96
    %s113 = sphi 0, %s97
  $region4: #{double_conv.3} parent=0 // loop_header_branch
    %13 = sbr.rel (%p11) target = $region8
  $region5: #{double_conv.3} parent=0 // loop_body
    %s15 = ssub.s32 %s10, 1
    %s16 = ssub.s32 %s10, 2
    %s17 = sadd.s32 %s10, 1
    %s18 = ssub.s32 %s10, %s17
    %p19 = scmp.eq.s32.totalorder %s18, 0
    %s21 = sadd.s32 %s20, 1
    %s22 = scalar_select %p19, %s20, %s21
    %p25 = pneg %p19
    %p26 = scmp.eq.s32.totalorder %s10, 1
    %p27 = por %p25, %p26
    %p28 = scmp.ne.s32.totalorder %s20, %s23
    %p29 = scmp.eq.s32.totalorder %s10, 0
    %p30 = por %p28, %p29
    %p31 = scmp.ne.s32.totalorder %s20, %s23
    %p32 = scmp.eq.s32.totalorder %s15, 1
    %p33 = por %p31, %p32
    %p34 = scmp.ne.s32.totalorder %s23, %s24
    %p35 = scmp.eq.s32.totalorder %s15, 0
    %p36 = por %p34, %p35
    %p37 = scmp.ne.s32.totalorder %s23, %s24
    %p38 = scmp.eq.s32.totalorder %s16, 1
    %p39 = por %p37, %p38
    %p41 = scmp.ne.s32.totalorder %s24, %s40
    %p42 = scmp.eq.s32.totalorder %s16, 0
    %p43 = por %p41, %p42
    %s45 = sadd.s32 %s44, 1
    %p48 = scmp.eq.s32.totalorder %s10, 1
    %p49 = scmp.ne.s32.totalorder %s44, %s46
    %p50 = scmp.eq.s32.totalorder %s10, 0
    %p51 = por %p49, %p50
    %p52 = scmp.ne.s32.totalorder %s44, %s46
    %p53 = scmp.eq.s32.totalorder %s15, 1
    %p54 = por %p52, %p53
    %p55 = scmp.ne.s32.totalorder %s46, %s47
    %p56 = scmp.eq.s32.totalorder %s15, 0
    %p57 = por %p55, %p56
    %p58 = scmp.ne.s32.totalorder %s46, %s47
    %p59 = scmp.eq.s32.totalorder %s16, 1
    %p60 = por %p58, %p59
    %p62 = scmp.ne.s32.totalorder %s47, %s61
    %p63 = scmp.eq.s32.totalorder %s16, 0
    %p64 = por %p62, %p63
    %s65 = ssub.s32 %s10, %s17
    %p66 = scmp.eq.s32.totalorder %s65, 0
    %s68 = sadd.s32 %s67, 1
    %s69 = scalar_select %p66, %s67, %s68
    %p72 = pneg %p66
    %p73 = scmp.eq.s32.totalorder %s10, 1
    %p74 = por %p72, %p73
    %p75 = scmp.ne.s32.totalorder %s67, %s70
    %p76 = scmp.eq.s32.totalorder %s10, 0
    %p77 = por %p75, %p76
    %p78 = scmp.ne.s32.totalorder %s67, %s70
    %p79 = scmp.eq.s32.totalorder %s15, 1
    %p80 = por %p78, %p79
    %p81 = scmp.ne.s32.totalorder %s70, %s71
    %p82 = scmp.eq.s32.totalorder %s15, 0
    %p83 = por %p81, %p82
    %p84 = scmp.ne.s32.totalorder %s70, %s71
    %p85 = scmp.eq.s32.totalorder %s16, 1
    %p86 = por %p84, %p85
    %p88 = scmp.ne.s32.totalorder %s71, %s87
    %p89 = scmp.eq.s32.totalorder %s16, 0
    %p90 = por %p88, %p89
    %s91 = ssub.s32 %s10, %s17
    %p92 = scmp.eq.s32.totalorder %s91, 0
    %s94 = sadd.s32 %s93, 1
    %s95 = scalar_select %p92, %s93, %s94
    %p98 = pneg %p92
    %p99 = scmp.eq.s32.totalorder %s10, 1
    %p100 = por %p98, %p99
    %p101 = scmp.ne.s32.totalorder %s93, %s96
    %p102 = scmp.eq.s32.totalorder %s10, 0
    %p103 = por %p101, %p102
    %p104 = scmp.ne.s32.totalorder %s93, %s96
    %p105 = scmp.eq.s32.totalorder %s15, 1
    %p106 = por %p104, %p105
    %p107 = scmp.ne.s32.totalorder %s96, %s97
    %p108 = scmp.eq.s32.totalorder %s15, 0
    %p109 = por %p107, %p108
    %p110 = scmp.ne.s32.totalorder %s96, %s97
    %p111 = scmp.eq.s32.totalorder %s16, 1
    %p112 = por %p110, %p111
    %p114 = scmp.ne.s32.totalorder %s97, %s113
    %p115 = scmp.eq.s32.totalorder %s16, 0
    %p116 = por %p114, %p115
    %p117 = scmp.le.s32.totalorder 1, %s10
    %p118 = scmp.lt.s32.totalorder %s10, 3
    %p119 = pnand %p117, %p118
    %p120 = pneg %p119
    // Predicated region
    $region9: #{double_conv.3} parent=5 // pred_check
      _
    $region10: #{double_conv.3} parent=5 // pred_check_branch
      %122 = sbr.rel (%p119) target = $region12
    $region11: #{double_conv.3} parent=5 // pred_region
      %s123 = ssub.s32 %s10, 1
      // Predicated region
      $region13: #{double_conv.3} parent=11 // pred_check
        %p124 = pneg %p57
      $region14: #{double_conv.3} parent=11 // pred_check_branch
        %126 = sbr.rel (%p124) target = $region16
      $region15: #{double_conv.3} parent=11 // pred_region
        _
      $region16: #{double_conv.3} parent=11 // pred_fallthru
        _
    $region12: #{double_conv.3} parent=5 // pred_fallthru
      _
    %p127 = scmp.lt.s32.totalorder %s10, 2
    // Predicated region
    $region17: #{double_conv.3} parent=5 // pred_check
      %p128 = pneg %p127
    $region18: #{double_conv.3} parent=5 // pred_check_branch
      %130 = sbr.rel (%p128) target = $region20
    $region19: #{double_conv.3} parent=5 // pred_region
      // Predicated region
      $region21: #{double_conv.3} parent=19 // pred_check
        %p131 = pneg %p30
      $region22: #{double_conv.3} parent=19 // pred_check_branch
        %133 = sbr.rel (%p131) target = $region24
      $region23: #{double_conv.3} parent=19 // pred_region
        %p134 = scmp.lt.s32.totalorder %s10, 1
        %s135 = scalar_select %p134, %s10, 1
        %s136 = smul.addr %s135, 32
        %s137 = smul.addr %s136, 8
        %s138 = scalar_lea.vmem %s0, %s137
      $region24: #{double_conv.3} parent=19 // pred_fallthru
        _
    $region20: #{double_conv.3} parent=5 // pred_fallthru
      _
    %p139 = scmp.le.s32.totalorder 1, %s10
    %p140 = scmp.lt.s32.totalorder %s10, 3
    %p141 = pnand %p139, %p140
    %p142 = pneg %p141
    // Predicated region
    $region25: #{double_conv.3} parent=5 // pred_check
      _
    $region26: #{double_conv.3} parent=5 // pred_check_branch
      %144 = sbr.rel (%p141) target = $region28
    $region27: #{double_conv.3} parent=5 // pred_region
      %s145 = ssub.s32 %s10, 1
      %p146 = scmp.lt.s32.totalorder %s15, 1
      %s147 = scalar_select %p146, %s15, 1
      %s148 = smul.addr %s147, 32
      %s149 = smul.addr %s148, 8
      %s150 = scalar_lea.vmem %s0, %s149
      %p151 = pneg %p36
      %p152 = pneg %p33
      %p153 = pneg %p57
      %p154 = pneg %p54
      %p155 = pneg %p83
      %p156 = pneg %p80
      %p157 = scmp.lt.s32.totalorder %s15, 1
      %s158 = scalar_select %p157, %s15, 1
      %s159 = smul.addr %s158, 32
      %s160 = smul.addr %s159, 8
      %s161 = scalar_lea.vmem %s2, %s160
      %p162 = pneg %p109
      %p163 = pneg %p106
      %p164 = scmp.lt.s32.totalorder %s15, 1
      %s165 = scalar_select %p164, %s15, 1
      %s166 = smul.addr %s165, 2
      %s167 = scalar_lea.vmem %s3, %s166
      %p168 = scmp.lt.s32.totalorder %s15, 1
      %s169 = scalar_select %p168, %s15, 1
      %s170 = smul.addr %s169, 32
      %s171 = smul.addr %s170, 8
      %s172 = scalar_lea.vmem %s0, %s171
      %p173 = scmp.lt.s32.totalorder %s15, 1
      %s174 = scalar_select %p173, %s15, 1
      %s175 = smul.addr %s174, 32
      %s176 = smul.addr %s175, 8
      %s177 = scalar_lea.vmem %s2, %s176
      %p178 = scmp.lt.s32.totalorder %s15, 1
      %s179 = scalar_select %p178, %s15, 1
      %s180 = smul.addr %s179, 2
      %s181 = scalar_lea.vmem %s3, %s180
      %v182 = vld [vmem:[%s172] sm:$0xff]
      %v183 = vld [vmem:[%s172 + $0x8] sm:$0xff]
      %v184 = vld [vmem:[%s172 + $0x10] sm:$0xff]
      %v185 = vld [vmem:[%s172 + $0x18] sm:$0xff]
      %v186 = vld [vmem:[%s172 + $0x20] sm:$0xff]
      %v187 = vld [vmem:[%s172 + $0x28] sm:$0xff]
      %v188 = vld [vmem:[%s172 + $0x30] sm:$0xff]
      %v189 = vld [vmem:[%s172 + $0x38] sm:$0xff]
      %v190 = vld [vmem:[%s172 + $0x40] sm:$0xff]
      %v191 = vld [vmem:[%s172 + $0x48] sm:$0xff]
      %v192 = vld [vmem:[%s172 + $0x50] sm:$0xff]
      %v193 = vld [vmem:[%s172 + $0x58] sm:$0xff]
      %v194 = vld [vmem:[%s172 + $0x60] sm:$0xff]
      %v195 = vld [vmem:[%s172 + $0x68] sm:$0xff]
      %v196 = vld [vmem:[%s172 + $0x70] sm:$0xff]
      %v197 = vld [vmem:[%s172 + $0x78] sm:$0xff]
      %v198 = vld [vmem:[%s172 + $0x80] sm:$0xff]
      %v199 = vld [vmem:[%s172 + $0x88] sm:$0xff]
      %v200 = vld [vmem:[%s172 + $0x90] sm:$0xff]
      %v201 = vld [vmem:[%s172 + $0x98] sm:$0xff]
      %v202 = vld [vmem:[%s172 + $0xa0] sm:$0xff]
      %v203 = vld [vmem:[%s172 + $0xa8] sm:$0xff]
      %v204 = vld [vmem:[%s172 + $0xb0] sm:$0xff]
      %v205 = vld [vmem:[%s172 + $0xb8] sm:$0xff]
      %v206 = vld [vmem:[%s172 + $0xc0] sm:$0xff]
      %v207 = vld [vmem:[%s172 + $0xc8] sm:$0xff]
      %v208 = vld [vmem:[%s172 + $0xd0] sm:$0xff]
      %v209 = vld [vmem:[%s172 + $0xd8] sm:$0xff]
      %v210 = vld [vmem:[%s172 + $0xe0] sm:$0xff]
      %v211 = vld [vmem:[%s172 + $0xe8] sm:$0xff]
      %v212 = vld [vmem:[%s172 + $0xf0] sm:$0xff]
      %v213 = vld [vmem:[%s172 + $0xf8] sm:$0xff]
      %vm214 = vcmask 31744
      %215 = vst.msk [vmem:[#allocation2] sm:$0xff] %vm214, 0.0
      %216 = vst.msk [vmem:[#allocation2 + $0x8] sm:$0xff] %vm214, 0.0
      %217 = vst.msk [vmem:[#allocation2 + $0x10] sm:$0xff] %vm214, 0.0
      %s218 = scalar_lea.vmem [#allocation2], 408
      %219 = vst.msk [vmem:[%s218] sm:$0xff] %vm214, 0.0
      %220 = vst.msk [vmem:[%s218 + $0x8] sm:$0xff] %vm214, 0.0
      %221 = vst.msk [vmem:[%s218 + $0x10] sm:$0xff] %vm214, 0.0
      %s222 = scalar_lea.vmem [#allocation2], 24
      %vm223 = vcmask 24576
      %224 = vst.msk [vmem:[%s222] sm:$0x1] %vm223, 0.0
      %225 = vst.msk [vmem:[%s222 + $0x18] sm:$0x1] %vm223, 0.0
      %226 = vst.msk [vmem:[%s222 + $0x30] sm:$0x1] %vm223, 0.0
      %227 = vst.msk [vmem:[%s222 + $0x48] sm:$0x1] %vm223, 0.0
      %228 = vst.msk [vmem:[%s222 + $0x60] sm:$0x1] %vm223, 0.0
      %229 = vst.msk [vmem:[%s222 + $0x78] sm:$0x1] %vm223, 0.0
      %230 = vst.msk [vmem:[%s222 + $0x90] sm:$0x1] %vm223, 0.0
      %231 = vst.msk [vmem:[%s222 + $0xa8] sm:$0x1] %vm223, 0.0
      %232 = vst.msk [vmem:[%s222 + $0xc0] sm:$0x1] %vm223, 0.0
      %233 = vst.msk [vmem:[%s222 + $0xd8] sm:$0x1] %vm223, 0.0
      %234 = vst.msk [vmem:[%s222 + $0xf0] sm:$0x1] %vm223, 0.0
      %235 = vst.msk [vmem:[%s222 + $0x108] sm:$0x1] %vm223, 0.0
      %236 = vst.msk [vmem:[%s222 + $0x120] sm:$0x1] %vm223, 0.0
      %237 = vst.msk [vmem:[%s222 + $0x138] sm:$0x1] %vm223, 0.0
      %238 = vst.msk [vmem:[%s222 + $0x150] sm:$0x1] %vm223, 0.0
      %239 = vst.msk [vmem:[%s222 + $0x168] sm:$0x1] %vm223, 0.0
      %240 = vst.msk [vmem:[%s222 + $0x11] sm:$0x1] %vm223, 0.0
      %241 = vst.msk [vmem:[%s222 + $0x29] sm:$0x1] %vm223, 0.0
      %242 = vst.msk [vmem:[%s222 + $0x41] sm:$0x1] %vm223, 0.0
      %243 = vst.msk [vmem:[%s222 + $0x59] sm:$0x1] %vm223, 0.0
      %244 = vst.msk [vmem:[%s222 + $0x71] sm:$0x1] %vm223, 0.0
      %245 = vst.msk [vmem:[%s222 + $0x89] sm:$0x1] %vm223, 0.0
      %246 = vst.msk [vmem:[%s222 + $0xa1] sm:$0x1] %vm223, 0.0
      %247 = vst.msk [vmem:[%s222 + $0xb9] sm:$0x1] %vm223, 0.0
      %248 = vst.msk [vmem:[%s222 + $0xd1] sm:$0x1] %vm223, 0.0
      %249 = vst.msk [vmem:[%s222 + $0xe9] sm:$0x1] %vm223, 0.0
      %250 = vst.msk [vmem:[%s222 + $0x101] sm:$0x1] %vm223, 0.0
      %251 = vst.msk [vmem:[%s222 + $0x119] sm:$0x1] %vm223, 0.0
      %252 = vst.msk [vmem:[%s222 + $0x131] sm:$0x1] %vm223, 0.0
      %253 = vst.msk [vmem:[%s222 + $0x149] sm:$0x1] %vm223, 0.0
      %254 = vst.msk [vmem:[%s222 + $0x161] sm:$0x1] %vm223, 0.0
      %255 = vst.msk [vmem:[%s222 + $0x179] sm:$0x1] %vm223, 0.0
      %256 = vst.msk [vmem:[%s222 + $0x1] sm:$0xff] %vm214, %v182
      %257 = vst.msk [vmem:[%s222 + $0x9] sm:$0xff] %vm214, %v183
      %258 = vst.msk [vmem:[%s222 + $0x19] sm:$0xff] %vm214, %v184
      %259 = vst.msk [vmem:[%s222 + $0x21] sm:$0xff] %vm214, %v185
      %260 = vst.msk [vmem:[%s222 + $0x31] sm:$0xff] %vm214, %v186
      %261 = vst.msk [vmem:[%s222 + $0x39] sm:$0xff] %vm214, %v187
      %262 = vst.msk [vmem:[%s222 + $0x49] sm:$0xff] %vm214, %v188
      %263 = vst.msk [vmem:[%s222 + $0x51] sm:$0xff] %vm214, %v189
      %264 = vst.msk [vmem:[%s222 + $0x61] sm:$0xff] %vm214, %v190
      %265 = vst.msk [vmem:[%s222 + $0x69] sm:$0xff] %vm214, %v191
      %266 = vst.msk [vmem:[%s222 + $0x79] sm:$0xff] %vm214, %v192
      %267 = vst.msk [vmem:[%s222 + $0x81] sm:$0xff] %vm214, %v193
      %268 = vst.msk [vmem:[%s222 + $0x91] sm:$0xff] %vm214, %v194
      %269 = vst.msk [vmem:[%s222 + $0x99] sm:$0xff] %vm214, %v195
      %270 = vst.msk [vmem:[%s222 + $0xa9] sm:$0xff] %vm214, %v196
      %271 = vst.msk [vmem:[%s222 + $0xb1] sm:$0xff] %vm214, %v197
      %272 = vst.msk [vmem:[%s222 + $0xc1] sm:$0xff] %vm214, %v198
      %273 = vst.msk [vmem:[%s222 + $0xc9] sm:$0xff] %vm214, %v199
      %274 = vst.msk [vmem:[%s222 + $0xd9] sm:$0xff] %vm214, %v200
      %275 = vst.msk [vmem:[%s222 + $0xe1] sm:$0xff] %vm214, %v201
      %276 = vst.msk [vmem:[%s222 + $0xf1] sm:$0xff] %vm214, %v202
      %277 = vst.msk [vmem:[%s222 + $0xf9] sm:$0xff] %vm214, %v203
      %278 = vst.msk [vmem:[%s222 + $0x109] sm:$0xff] %vm214, %v204
      %279 = vst.msk [vmem:[%s222 + $0x111] sm:$0xff] %vm214, %v205
      %280 = vst.msk [vmem:[%s222 + $0x121] sm:$0xff] %vm214, %v206
      %281 = vst.msk [vmem:[%s222 + $0x129] sm:$0xff] %vm214, %v207
      %282 = vst.msk [vmem:[%s222 + $0x139] sm:$0xff] %vm214, %v208
      %283 = vst.msk [vmem:[%s222 + $0x141] sm:$0xff] %vm214, %v209
      %284 = vst.msk [vmem:[%s222 + $0x151] sm:$0xff] %vm214, %v210
      %285 = vst.msk [vmem:[%s222 + $0x159] sm:$0xff] %vm214, %v211
      %286 = vst.msk [vmem:[%s222 + $0x169] sm:$0xff] %vm214, %v212
      %287 = vst.msk [vmem:[%s222 + $0x171] sm:$0xff] %vm214, %v213
      %v288 = vld [vmem:[#allocation2] sm:$0xff]
      %v289 = vld [vmem:[#allocation2 + $0x8] sm:$0xff]
      %v290 = vld [vmem:[#allocation2 + $0x18] sm:$0xff]
      %v291 = vld [vmem:[#allocation2 + $0x20] sm:$0xff]
      %v292 = vld [vmem:[#allocation2 + $0x30] sm:$0xff]
      %v293 = vld [vmem:[#allocation2 + $0x38] sm:$0xff]
      %v294 = vld [vmem:[#allocation2 + $0x48] sm:$0xff]
      %v295 = vld [vmem:[#allocation2 + $0x50] sm:$0xff]
      %v296 = vld [vmem:[#allocation2 + $0x60] sm:$0xff]
      %v297 = vld [vmem:[#allocation2 + $0x68] sm:$0xff]
      %v298 = vld [vmem:[#allocation2 + $0x78] sm:$0xff]
      %v299 = vld [vmem:[#allocation2 + $0x80] sm:$0xff]
      %v300 = vld [vmem:[#allocation2 + $0x90] sm:$0xff]
      %v301 = vld [vmem:[#allocation2 + $0x98] sm:$0xff]
      %v302 = vld [vmem:[#allocation2 + $0xa8] sm:$0xff]
      %v303 = vld [vmem:[#allocation2 + $0xb0] sm:$0xff]
      %v304 = vld [vmem:[#allocation2 + $0xc0] sm:$0xff]
      %v305 = vld [vmem:[#allocation2 + $0xc8] sm:$0xff]
      %v306 = vld [vmem:[#allocation2 + $0xd8] sm:$0xff]
      %v307 = vld [vmem:[#allocation2 + $0xe0] sm:$0xff]
      %v308 = vld [vmem:[#allocation2 + $0xf0] sm:$0xff]
      %v309 = vld [vmem:[#allocation2 + $0xf8] sm:$0xff]
      %v310 = vld [vmem:[#allocation2 + $0x108] sm:$0xff]
      %v311 = vld [vmem:[#allocation2 + $0x110] sm:$0xff]
      %v312 = vld [vmem:[#allocation2 + $0x120] sm:$0xff]
      %v313 = vld [vmem:[#allocation2 + $0x128] sm:$0xff]
      %v314 = vld [vmem:[#allocation2 + $0x138] sm:$0xff]
      %v315 = vld [vmem:[#allocation2 + $0x140] sm:$0xff]
      %v316 = vld [vmem:[#allocation2 + $0x150] sm:$0xff]
      %v317 = vld [vmem:[#allocation2 + $0x158] sm:$0xff]
      %v318 = vld [vmem:[#allocation2 + $0x168] sm:$0xff]
      %v319 = vld [vmem:[#allocation2 + $0x170] sm:$0xff]
      %v320 = vld [vmem:[%s1] sm:$0xf]
      %v321 = vld [vmem:[#allocation2 + $0x1] sm:$0xff]
      %v322 = vld [vmem:[#allocation2 + $0x9] sm:$0xff]
      %v323 = vld [vmem:[#allocation2 + $0x19] sm:$0xff]
      %v324 = vld [vmem:[#allocation2 + $0x21] sm:$0xff]
      %v325 = vld [vmem:[#allocation2 + $0x31] sm:$0xff]
      %v326 = vld [vmem:[#allocation2 + $0x39] sm:$0xff]
      %v327 = vld [vmem:[#allocation2 + $0x49] sm:$0xff]
      %v328 = vld [vmem:[#allocation2 + $0x51] sm:$0xff]
      %v329 = vld [vmem:[#allocation2 + $0x61] sm:$0xff]
      %v330 = vld [vmem:[#allocation2 + $0x69] sm:$0xff]
      %v331 = vld [vmem:[#allocation2 + $0x79] sm:$0xff]
      %v332 = vld [vmem:[#allocation2 + $0x81] sm:$0xff]
      %v333 = vld [vmem:[#allocation2 + $0x91] sm:$0xff]
      %v334 = vld [vmem:[#allocation2 + $0x99] sm:$0xff]
      %v335 = vld [vmem:[#allocation2 + $0xa9] sm:$0xff]
      %v336 = vld [vmem:[#allocation2 + $0xb1] sm:$0xff]
      %v337 = vld [vmem:[#allocation2 + $0xc1] sm:$0xff]
      %v338 = vld [vmem:[#allocation2 + $0xc9] sm:$0xff]
      %v339 = vld [vmem:[#allocation2 + $0xd9] sm:$0xff]
      %v340 = vld [vmem:[#allocation2 + $0xe1] sm:$0xff]
      %v341 = vld [vmem:[#allocation2 + $0xf1] sm:$0xff]
      %v342 = vld [vmem:[#allocation2 + $0xf9] sm:$0xff]
      %v343 = vld [vmem:[#allocation2 + $0x109] sm:$0xff]
      %v344 = vld [vmem:[#allocation2 + $0x111] sm:$0xff]
      %v345 = vld [vmem:[#allocation2 + $0x121] sm:$0xff]
      %v346 = vld [vmem:[#allocation2 + $0x129] sm:$0xff]
      %v347 = vld [vmem:[#allocation2 + $0x139] sm:$0xff]
      %v348 = vld [vmem:[#allocation2 + $0x141] sm:$0xff]
      %v349 = vld [vmem:[#allocation2 + $0x151] sm:$0xff]
      %v350 = vld [vmem:[#allocation2 + $0x159] sm:$0xff]
      %v351 = vld [vmem:[#allocation2 + $0x169] sm:$0xff]
      %v352 = vld [vmem:[#allocation2 + $0x171] sm:$0xff]
      %s353 = scalar_lea.vmem %s1, 4
      %v354 = vld [vmem:[%s353] sm:$0xf]
      %v356 = vsel %vm214, %v321, 0
      %v359 = vsel %vm214, %v322, 0
      %v362 = vsel %vm214, %v323, 0
      %v365 = vsel %vm214, %v324, 0
      %v368 = vsel %vm214, %v325, 0
      %v371 = vsel %vm214, %v326, 0
      %v374 = vsel %vm214, %v327, 0
      %v377 = vsel %vm214, %v328, 0
      %v380 = vsel %vm214, %v329, 0
      %v383 = vsel %vm214, %v330, 0
      %v386 = vsel %vm214, %v331, 0
      %v389 = vsel %vm214, %v332, 0
      %v392 = vsel %vm214, %v333, 0
      %v395 = vsel %vm214, %v334, 0
      %v398 = vsel %vm214, %v335, 0
      %v401 = vsel %vm214, %v336, 0
      %v404 = vsel %vm214, %v337, 0
      %v407 = vsel %vm214, %v338, 0
      %v410 = vsel %vm214, %v339, 0
      %v413 = vsel %vm214, %v340, 0
      %v416 = vsel %vm214, %v341, 0
      %v419 = vsel %vm214, %v342, 0
      %v422 = vsel %vm214, %v343, 0
      %v425 = vsel %vm214, %v344, 0
      %v428 = vsel %vm214, %v345, 0
      %v431 = vsel %vm214, %v346, 0
      %v434 = vsel %vm214, %v347, 0
      %v437 = vsel %vm214, %v348, 0
      %v440 = vsel %vm214, %v349, 0
      %v443 = vsel %vm214, %v350, 0
      %v446 = vsel %vm214, %v351, 0
      %v449 = vsel %vm214, %v352, 0
      %vm451 = vcmask 1043456
      %v453 = vsel %vm451, %v354, 0
      %455 = vmatprep.subr.mxu0 0.0
      %456 = vmatpush1.msra.mxu0 %v453
      %457 = vmatprep.subr.mxu0 0.0
      %458 = vmatpush1.msra.mxu0 0.0
      %459 = vmatprep.subr.mxu0 0.0
      %460 = vmatpush1.msra.mxu0 0.0
      %461 = vmatprep.subr.mxu0 0.0
      %462 = vmatpush1.msra.mxu0 0.0
      %463 = vmatprep.subr.mxu0 0.0
      %464 = vmatpush1.msra.mxu0 0.0
      %465 = vmatprep.subr.mxu0 0.0
      %466 = vmatpush1.msra.mxu0 0.0
      %467 = vmatprep.subr.mxu0 0.0
      %468 = vmatpush1.msra.mxu0 0.0
      %469 = vmatprep.subr.mxu0 0.0
      %470 = vmatpush1.msra.mxu0 0.0
      %471 = vmatprep.subr.mxu0 0.0
      %472 = vmatpush1.msra.mxu0 0.0
      %473 = vmatprep.subr.mxu0 0.0
      %474 = vmatpush1.msra.mxu0 0.0
      %475 = vmatprep.subr.mxu0 0.0
      %476 = vmatpush1.msra.mxu0 0.0
      %477 = vmatprep.subr.mxu0 0.0
      %478 = vmatpush1.msra.mxu0 0.0
      %479 = vmatprep.subr.mxu0 0.0
      %480 = vmatpush1.msra.mxu0 0.0
      %481 = vmatprep.subr.mxu0 0.0
      %482 = vmatpush1.msra.mxu0 0.0
      %483 = vmatprep.subr.mxu0 0.0
      %484 = vmatpush1.msra.mxu0 0.0
      %485 = vmatprep.subr.mxu0 0.0
      %486 = vmatpush1.msra.mxu0 0.0
      %487 = vmatprep.subr.mxu0 0.0
      %488 = vmatpush1.msra.mxu0 0.0
      %489 = vmatprep.subr.mxu0 0.0
      %490 = vmatpush1.msra.mxu0 0.0
      %491 = vmatprep.subr.mxu0 0.0
      %492 = vmatpush1.msra.mxu0 0.0
      %493 = vmatprep.subr.mxu0 0.0
      %494 = vmatpush1.msra.mxu0 0.0
      %495 = vmatprep.subr.mxu0 0.0
      %496 = vmatpush1.msra.mxu0 0.0
      %497 = vmatprep.subr.mxu0 0.0
      %498 = vmatpush1.msra.mxu0 0.0
      %499 = vmatprep.subr.mxu0 0.0
      %500 = vmatpush1.msra.mxu0 0.0
      %501 = vmatprep.subr.mxu0 0.0
      %502 = vmatpush1.msra.mxu0 0.0
      %503 = vmatprep.subr.mxu0 0.0
      %504 = vmatpush1.msra.mxu0 0.0
      %505 = vmatprep.subr.mxu0 0.0
      %506 = vmatpush1.msra.mxu0 0.0
      %507 = vmatprep.subr.mxu0 0.0
      %508 = vmatpush1.msra.mxu0 0.0
      %509 = vmatprep.subr.mxu0 0.0
      %510 = vmatpush1.msra.mxu0 0.0
      %511 = vmatprep.subr.mxu0 0.0
      %512 = vmatpush1.msra.mxu0 0.0
      %513 = vmatprep.subr.mxu0 0.0
      %514 = vmatpush1.msra.mxu0 0.0
      %515 = vmatprep.subr.mxu0 0.0
      %516 = vmatpush1.msra.mxu0 0.0
      %517 = vmatprep.subr.mxu0 0.0
      %518 = vmatpush1.msra.mxu0 0.0
      %519 = vmatprep.mubr.f32.mxu0 0.0
      %520 = vmatmul.mubr.f32.gmra.mrb[0].mxu0 %v356
      %v521 = vpop.f32.mrb[0].mxu0
      %v522 = vadd.f32 0.0, %v521
      %v523 = vpop.f32.mrb[0].mxu0
      %524 = vmatprep.mubr.f32.mxu0 0.0
      %525 = vmatmul.mubr.f32.gmra.mrb[0].mxu0 %v359
      %v526 = vpop.f32.mrb[0].mxu0
      %v527 = vadd.f32 0.0, %v526
      %v528 = vpop.f32.mrb[0].mxu0
      %529 = vmatprep.mubr.f32.mxu0 0.0
      %530 = vmatmul.mubr.f32.gmra.mrb[0].mxu0 %v362
      %v531 = vpop.f32.mrb[0].mxu0
      %v532 = vadd.f32 0.0, %v531
      %v533 = vpop.f32.mrb[0].mxu0
      %534 = vmatprep.mubr.f32.mxu0 0.0
      %535 = vmatmul.mubr.f32.gmra.mrb[0].mxu0 %v365
      %v536 = vpop.f32.mrb[0].mxu0
      %v537 = vadd.f32 0.0, %v536
      %v538 = vpop.f32.mrb[0].mxu0
      %539 = vmatprep.mubr.f32.mxu0 0.0
      %540 = vmatmul.mubr.f32.gmra.mrb[0].mxu0 %v368
      %v541 = vpop.f32.mrb[0].mxu0
      %v542 = vadd.f32 0.0, %v541
      %v543 = vpop.f32.mrb[0].mxu0
      %544 = vmatprep.mubr.f32.mxu0 0.0
      %545 = vmatmul.mubr.f32.gmra.mrb[0].mxu0 %v371
      %v546 = vpop.f32.mrb[0].mxu0
      %v547 = vadd.f32 0.0, %v546
      %v548 = vpop.f32.mrb[0].mxu0
      %549 = vmatprep.mubr.f32.mxu0 0.0
      %550 = vmatmul.mubr.f32.gmra.mrb[0].mxu0 %v374
      %v551 = vpop.f32.mrb[0].mxu0
      %v552 = vadd.f32 0.0, %v551
      %v553 = vpop.f32.mrb[0].mxu0
      %554 = vmatprep.mubr.f32.mxu0 0.0
      %555 = vmatmul.mubr.f32.gmra.mrb[0].mxu0 %v377
      %v556 = vpop.f32.mrb[0].mxu0
      %v557 = vadd.f32 0.0, %v556
      %v558 = vpop.f32.mrb[0].mxu0
      %559 = vmatprep.mubr.f32.mxu0 0.0
      %560 = vmatmul.mubr.f32.gmra.mrb[0].mxu0 %v380
      %v561 = vpop.f32.mrb[0].mxu0
      %v562 = vadd.f32 0.0, %v561
      %v563 = vpop.f32.mrb[0].mxu0
      %564 = vmatprep.mubr.f32.mxu0 0.0
      %565 = vmatmul.mubr.f32.gmra.mrb[0].mxu0 %v383
      %v566 = vpop.f32.mrb[0].mxu0
      %v567 = vadd.f32 0.0, %v566
      %v568 = vpop.f32.mrb[0].mxu0
      %569 = vmatprep.mubr.f32.mxu0 0.0
      %570 = vmatmul.mubr.f32.gmra.mrb[0].mxu0 %v386
      %v571 = vpop.f32.mrb[0].mxu0
      %v572 = vadd.f32 0.0, %v571
      %v573 = vpop.f32.mrb[0].mxu0
      %574 = vmatprep.mubr.f32.mxu0 0.0
      %575 = vmatmul.mubr.f32.gmra.mrb[0].mxu0 %v389
      %v576 = vpop.f32.mrb[0].mxu0
      %v577 = vadd.f32 0.0, %v576
      %v578 = vpop.f32.mrb[0].mxu0
      %579 = vmatprep.mubr.f32.mxu0 0.0
      %580 = vmatmul.mubr.f32.gmra.mrb[0].mxu0 %v392
      %v581 = vpop.f32.mrb[0].mxu0
      %v582 = vadd.f32 0.0, %v581
      %v583 = vpop.f32.mrb[0].mxu0
      %584 = vmatprep.mubr.f32.mxu0 0.0
      %585 = vmatmul.mubr.f32.gmra.mrb[0].mxu0 %v395
      %v586 = vpop.f32.mrb[0].mxu0
      %v587 = vadd.f32 0.0, %v586
      %v588 = vpop.f32.mrb[0].mxu0
      %589 = vmatprep.mubr.f32.mxu0 0.0
      %590 = vmatmul.mubr.f32.gmra.mrb[0].mxu0 %v398
      %v591 = vpop.f32.mrb[0].mxu0
      %v592 = vadd.f32 0.0, %v591
      %v593 = vpop.f32.mrb[0].mxu0
      %594 = vmatprep.mubr.f32.mxu0 0.0
      %595 = vmatmul.mubr.f32.gmra.mrb[0].mxu0 %v401
      %v596 = vpop.f32.mrb[0].mxu0
      %v597 = vadd.f32 0.0, %v596
      %v598 = vpop.f32.mrb[0].mxu0
      %599 = vmatprep.mubr.f32.mxu0 0.0
      %600 = vmatmul.mubr.f32.gmra.mrb[0].mxu0 %v404
      %v601 = vpop.f32.mrb[0].mxu0
      %v602 = vadd.f32 0.0, %v601
      %v603 = vpop.f32.mrb[0].mxu0
      %604 = vmatprep.mubr.f32.mxu0 0.0
      %605 = vmatmul.mubr.f32.gmra.mrb[0].mxu0 %v407
      %v606 = vpop.f32.mrb[0].mxu0
      %v607 = vadd.f32 0.0, %v606
      %v608 = vpop.f32.mrb[0].mxu0
      %609 = vmatprep.mubr.f32.mxu0 0.0
      %610 = vmatmul.mubr.f32.gmra.mrb[0].mxu0 %v410
      %v611 = vpop.f32.mrb[0].mxu0
      %v612 = vadd.f32 0.0, %v611
      %v613 = vpop.f32.mrb[0].mxu0
      %614 = vmatprep.mubr.f32.mxu0 0.0
      %615 = vmatmul.mubr.f32.gmra.mrb[0].mxu0 %v413
      %v616 = vpop.f32.mrb[0].mxu0
      %v617 = vadd.f32 0.0, %v616
      %v618 = vpop.f32.mrb[0].mxu0
      %619 = vmatprep.mubr.f32.mxu0 0.0
      %620 = vmatmul.mubr.f32.gmra.mrb[0].mxu0 %v416
      %v621 = vpop.f32.mrb[0].mxu0
      %v622 = vadd.f32 0.0, %v621
      %v623 = vpop.f32.mrb[0].mxu0
      %624 = vmatprep.mubr.f32.mxu0 0.0
      %625 = vmatmul.mubr.f32.gmra.mrb[0].mxu0 %v419
      %v626 = vpop.f32.mrb[0].mxu0
      %v627 = vadd.f32 0.0, %v626
      %v628 = vpop.f32.mrb[0].mxu0
      %629 = vmatprep.mubr.f32.mxu0 0.0
      %630 = vmatmul.mubr.f32.gmra.mrb[0].mxu0 %v422
      %v631 = vpop.f32.mrb[0].mxu0
      %v632 = vadd.f32 0.0, %v631
      %v633 = vpop.f32.mrb[0].mxu0
      %634 = vmatprep.mubr.f32.mxu0 0.0
      %635 = vmatmul.mubr.f32.gmra.mrb[0].mxu0 %v425
      %v636 = vpop.f32.mrb[0].mxu0
      %v637 = vadd.f32 0.0, %v636
      %v638 = vpop.f32.mrb[0].mxu0
      %639 = vmatprep.mubr.f32.mxu0 0.0
      %640 = vmatmul.mubr.f32.gmra.mrb[0].mxu0 %v428
      %v641 = vpop.f32.mrb[0].mxu0
      %v642 = vadd.f32 0.0, %v641
      %v643 = vpop.f32.mrb[0].mxu0
      %644 = vmatprep.mubr.f32.mxu0 0.0
      %645 = vmatmul.mubr.f32.gmra.mrb[0].mxu0 %v431
      %v646 = vpop.f32.mrb[0].mxu0
      %v647 = vadd.f32 0.0, %v646
      %v648 = vpop.f32.mrb[0].mxu0
      %649 = vmatprep.mubr.f32.mxu0 0.0
      %650 = vmatmul.mubr.f32.gmra.mrb[0].mxu0 %v434
      %v651 = vpop.f32.mrb[0].mxu0
      %v652 = vadd.f32 0.0, %v651
      %v653 = vpop.f32.mrb[0].mxu0
      %654 = vmatprep.mubr.f32.mxu0 0.0
      %655 = vmatmul.mubr.f32.gmra.mrb[0].mxu0 %v437
      %v656 = vpop.f32.mrb[0].mxu0
      %v657 = vadd.f32 0.0, %v656
      %v658 = vpop.f32.mrb[0].mxu0
      %659 = vmatprep.mubr.f32.mxu0 0.0
      %660 = vmatmul.mubr.f32.gmra.mrb[0].mxu0 %v440
      %v661 = vpop.f32.mrb[0].mxu0
      %v662 = vadd.f32 0.0, %v661
      %v663 = vpop.f32.mrb[0].mxu0
      %664 = vmatprep.mubr.f32.mxu0 0.0
      %665 = vmatmul.mubr.f32.gmra.mrb[0].mxu0 %v443
      %v666 = vpop.f32.mrb[0].mxu0
      %v667 = vadd.f32 0.0, %v666
      %v668 = vpop.f32.mrb[0].mxu0
      %669 = vmatprep.mubr.f32.mxu0 0.0
      %670 = vmatmul.mubr.f32.gmra.mrb[0].mxu0 %v446
      %v671 = vpop.f32.mrb[0].mxu0
      %v672 = vadd.f32 0.0, %v671
      %v673 = vpop.f32.mrb[0].mxu0
      %674 = vmatprep.mubr.f32.mxu0 0.0
      %675 = vmatmul.mubr.f32.gmra.mrb[0].mxu0 %v449
      %v676 = vpop.f32.mrb[0].mxu0
      %v677 = vadd.f32 0.0, %v676
      %v678 = vpop.f32.mrb[0].mxu0
      %679 = vdwg.mxu0
      %v681 = vsel %vm214, %v288, 0
      %v684 = vsel %vm214, %v289, 0
      %v687 = vsel %vm214, %v290, 0
      %v690 = vsel %vm214, %v291, 0
      %v693 = vsel %vm214, %v292, 0
      %v696 = vsel %vm214, %v293, 0
      %v699 = vsel %vm214, %v294, 0
      %v702 = vsel %vm214, %v295, 0
      %v705 = vsel %vm214, %v296, 0
      %v708 = vsel %vm214, %v297, 0
      %v711 = vsel %vm214, %v298, 0
      %v714 = vsel %vm214, %v299, 0
      %v717 = vsel %vm214, %v300, 0
      %v720 = vsel %vm214, %v301, 0
      %v723 = vsel %vm214, %v302, 0
      %v726 = vsel %vm214, %v303, 0
      %v729 = vsel %vm214, %v304, 0
      %v732 = vsel %vm214, %v305, 0
      %v735 = vsel %vm214, %v306, 0
      %v738 = vsel %vm214, %v307, 0
      %v741 = vsel %vm214, %v308, 0
      %v744 = vsel %vm214, %v309, 0
      %v747 = vsel %vm214, %v310, 0
      %v750 = vsel %vm214, %v311, 0
      %v753 = vsel %vm214, %v312, 0
      %v756 = vsel %vm214, %v313, 0
      %v759 = vsel %vm214, %v314, 0
      %v762 = vsel %vm214, %v315, 0
      %v765 = vsel %vm214, %v316, 0
      %v768 = vsel %vm214, %v317, 0
      %v771 = vsel %vm214, %v318, 0
      %v774 = vsel %vm214, %v319, 0
      %v777 = vsel %vm451, %v320, 0
      %779 = vmatprep.subr.mxu0 0.0
      %780 = vmatpush1.msra.mxu0 %v777
      %781 = vmatprep.subr.mxu0 0.0
      %782 = vmatpush1.msra.mxu0 0.0
      %783 = vmatprep.subr.mxu0 0.0
      %784 = vmatpush1.msra.mxu0 0.0
      %785 = vmatprep.subr.mxu0 0.0
      %786 = vmatpush1.msra.mxu0 0.0
      %787 = vmatprep.subr.mxu0 0.0
      %788 = vmatpush1.msra.mxu0 0.0
      %789 = vmatprep.subr.mxu0 0.0
      %790 = vmatpush1.msra.mxu0 0.0
      %791 = vmatprep.subr.mxu0 0.0
      %792 = vmatpush1.msra.mxu0 0.0
      %793 = vmatprep.subr.mxu0 0.0
      %794 = vmatpush1.msra.mxu0 0.0
      %795 = vmatprep.subr.mxu0 0.0
      %796 = vmatpush1.msra.mxu0 0.0
      %797 = vmatprep.subr.mxu0 0.0
      %798 = vmatpush1.msra.mxu0 0.0
      %799 = vmatprep.subr.mxu0 0.0
      %800 = vmatpush1.msra.mxu0 0.0
      %801 = vmatprep.subr.mxu0 0.0
      %802 = vmatpush1.msra.mxu0 0.0
      %803 = vmatprep.subr.mxu0 0.0
      %804 = vmatpush1.msra.mxu0 0.0
      %805 = vmatprep.subr.mxu0 0.0
      %806 = vmatpush1.msra.mxu0 0.0
      %807 = vmatprep.subr.mxu0 0.0
      %808 = vmatpush1.msra.mxu0 0.0
      %809 = vmatprep.subr.mxu0 0.0
      %810 = vmatpush1.msra.mxu0 0.0
      %811 = vmatprep.subr.mxu0 0.0
      %812 = vmatpush1.msra.mxu0 0.0
      %813 = vmatprep.subr.mxu0 0.0
      %814 = vmatpush1.msra.mxu0 0.0
      %815 = vmatprep.subr.mxu0 0.0
      %816 = vmatpush1.msra.mxu0 0.0
      %817 = vmatprep.subr.mxu0 0.0
      %818 = vmatpush1.msra.mxu0 0.0
      %819 = vmatprep.subr.mxu0 0.0
      %820 = vmatpush1.msra.mxu0 0.0
      %821 = vmatprep.subr.mxu0 0.0
      %822 = vmatpush1.msra.mxu0 0.0
      %823 = vmatprep.subr.mxu0 0.0
      %824 = vmatpush1.msra.mxu0 0.0
      %825 = vmatprep.subr.mxu0 0.0
      %826 = vmatpush1.msra.mxu0 0.0
      %827 = vmatprep.subr.mxu0 0.0
      %828 = vmatpush1.msra.mxu0 0.0
      %829 = vmatprep.subr.mxu0 0.0
      %830 = vmatpush1.msra.mxu0 0.0
      %831 = vmatprep.subr.mxu0 0.0
      %832 = vmatpush1.msra.mxu0 0.0
      %833 = vmatprep.subr.mxu0 0.0
      %834 = vmatpush1.msra.mxu0 0.0
      %835 = vmatprep.subr.mxu0 0.0
      %836 = vmatpush1.msra.mxu0 0.0
      %837 = vmatprep.subr.mxu0 0.0
      %838 = vmatpush1.msra.mxu0 0.0
      %839 = vmatprep.subr.mxu0 0.0
      %840 = vmatpush1.msra.mxu0 0.0
      %841 = vmatprep.subr.mxu0 0.0
      %842 = vmatpush1.msra.mxu0 0.0
      %843 = vmatprep.mubr.f32.mxu0 0.0
      %844 = vmatmul.mubr.f32.gmra.mrb[0].mxu0 %v681
      %v845 = vpop.f32.mrb[0].mxu0
      %v846 = vadd.f32 %v522, %v845
      %v847 = vpop.f32.mrb[0].mxu0
      %848 = vmatprep.mubr.f32.mxu0 0.0
      %849 = vmatmul.mubr.f32.gmra.mrb[0].mxu0 %v684
      %v850 = vpop.f32.mrb[0].mxu0
      %v851 = vadd.f32 %v527, %v850
      %v852 = vpop.f32.mrb[0].mxu0
      %853 = vmatprep.mubr.f32.mxu0 0.0
      %854 = vmatmul.mubr.f32.gmra.mrb[0].mxu0 %v687
      %v855 = vpop.f32.mrb[0].mxu0
      %v856 = vadd.f32 %v532, %v855
      %v857 = vpop.f32.mrb[0].mxu0
      %858 = vmatprep.mubr.f32.mxu0 0.0
      %859 = vmatmul.mubr.f32.gmra.mrb[0].mxu0 %v690
      %v860 = vpop.f32.mrb[0].mxu0
      %v861 = vadd.f32 %v537, %v860
      %v862 = vpop.f32.mrb[0].mxu0
      %863 = vmatprep.mubr.f32.mxu0 0.0
      %864 = vmatmul.mubr.f32.gmra.mrb[0].mxu0 %v693
      %v865 = vpop.f32.mrb[0].mxu0
      %v866 = vadd.f32 %v542, %v865
      %v867 = vpop.f32.mrb[0].mxu0
      %868 = vmatprep.mubr.f32.mxu0 0.0
      %869 = vmatmul.mubr.f32.gmra.mrb[0].mxu0 %v696
      %v870 = vpop.f32.mrb[0].mxu0
      %v871 = vadd.f32 %v547, %v870
      %v872 = vpop.f32.mrb[0].mxu0
      %873 = vmatprep.mubr.f32.mxu0 0.0
      %874 = vmatmul.mubr.f32.gmra.mrb[0].mxu0 %v699
      %v875 = vpop.f32.mrb[0].mxu0
      %v876 = vadd.f32 %v552, %v875
      %v877 = vpop.f32.mrb[0].mxu0
      %878 = vmatprep.mubr.f32.mxu0 0.0
      %879 = vmatmul.mubr.f32.gmra.mrb[0].mxu0 %v702
      %v880 = vpop.f32.mrb[0].mxu0
      %v881 = vadd.f32 %v557, %v880
      %v882 = vpop.f32.mrb[0].mxu0
      %883 = vmatprep.mubr.f32.mxu0 0.0
      %884 = vmatmul.mubr.f32.gmra.mrb[0].mxu0 %v705
      %v885 = vpop.f32.mrb[0].mxu0
      %v886 = vadd.f32 %v562, %v885
      %v887 = vpop.f32.mrb[0].mxu0
      %888 = vmatprep.mubr.f32.mxu0 0.0
      %889 = vmatmul.mubr.f32.gmra.mrb[0].mxu0 %v708
      %v890 = vpop.f32.mrb[0].mxu0
      %v891 = vadd.f32 %v567, %v890
      %v892 = vpop.f32.mrb[0].mxu0
      %893 = vmatprep.mubr.f32.mxu0 0.0
      %894 = vmatmul.mubr.f32.gmra.mrb[0].mxu0 %v711
      %v895 = vpop.f32.mrb[0].mxu0
      %v896 = vadd.f32 %v572, %v895
      %v897 = vpop.f32.mrb[0].mxu0
      %898 = vmatprep.mubr.f32.mxu0 0.0
      %899 = vmatmul.mubr.f32.gmra.mrb[0].mxu0 %v714
      %v900 = vpop.f32.mrb[0].mxu0
      %v901 = vadd.f32 %v577, %v900
      %v902 = vpop.f32.mrb[0].mxu0
      %903 = vmatprep.mubr.f32.mxu0 0.0
      %904 = vmatmul.mubr.f32.gmra.mrb[0].mxu0 %v717
      %v905 = vpop.f32.mrb[0].mxu0
      %v906 = vadd.f32 %v582, %v905
      %v907 = vpop.f32.mrb[0].mxu0
      %908 = vmatprep.mubr.f32.mxu0 0.0
      %909 = vmatmul.mubr.f32.gmra.mrb[0].mxu0 %v720
      %v910 = vpop.f32.mrb[0].mxu0
      %v911 = vadd.f32 %v587, %v910
      %v912 = vpop.f32.mrb[0].mxu0
      %913 = vmatprep.mubr.f32.mxu0 0.0
      %914 = vmatmul.mubr.f32.gmra.mrb[0].mxu0 %v723
      %v915 = vpop.f32.mrb[0].mxu0
      %v916 = vadd.f32 %v592, %v915
      %v917 = vpop.f32.mrb[0].mxu0
      %918 = vmatprep.mubr.f32.mxu0 0.0
      %919 = vmatmul.mubr.f32.gmra.mrb[0].mxu0 %v726
      %v920 = vpop.f32.mrb[0].mxu0
      %v921 = vadd.f32 %v597, %v920
      %v922 = vpop.f32.mrb[0].mxu0
      %923 = vmatprep.mubr.f32.mxu0 0.0
      %924 = vmatmul.mubr.f32.gmra.mrb[0].mxu0 %v729
      %v925 = vpop.f32.mrb[0].mxu0
      %v926 = vadd.f32 %v602, %v925
      %v927 = vpop.f32.mrb[0].mxu0
      %928 = vmatprep.mubr.f32.mxu0 0.0
      %929 = vmatmul.mubr.f32.gmra.mrb[0].mxu0 %v732
      %v930 = vpop.f32.mrb[0].mxu0
      %v931 = vadd.f32 %v607, %v930
      %v932 = vpop.f32.mrb[0].mxu0
      %933 = vmatprep.mubr.f32.mxu0 0.0
      %934 = vmatmul.mubr.f32.gmra.mrb[0].mxu0 %v735
      %v935 = vpop.f32.mrb[0].mxu0
      %v936 = vadd.f32 %v612, %v935
      %v937 = vpop.f32.mrb[0].mxu0
      %938 = vmatprep.mubr.f32.mxu0 0.0
      %939 = vmatmul.mubr.f32.gmra.mrb[0].mxu0 %v738
      %v940 = vpop.f32.mrb[0].mxu0
      %v941 = vadd.f32 %v617, %v940
      %v942 = vpop.f32.mrb[0].mxu0
      %943 = vmatprep.mubr.f32.mxu0 0.0
      %944 = vmatmul.mubr.f32.gmra.mrb[0].mxu0 %v741
      %v945 = vpop.f32.mrb[0].mxu0
      %v946 = vadd.f32 %v622, %v945
      %v947 = vpop.f32.mrb[0].mxu0
      %948 = vmatprep.mubr.f32.mxu0 0.0
      %949 = vmatmul.mubr.f32.gmra.mrb[0].mxu0 %v744
      %v950 = vpop.f32.mrb[0].mxu0
      %v951 = vadd.f32 %v627, %v950
      %v952 = vpop.f32.mrb[0].mxu0
      %953 = vmatprep.mubr.f32.mxu0 0.0
      %954 = vmatmul.mubr.f32.gmra.mrb[0].mxu0 %v747
      %v955 = vpop.f32.mrb[0].mxu0
      %v956 = vadd.f32 %v632, %v955
      %v957 = vpop.f32.mrb[0].mxu0
      %958 = vmatprep.mubr.f32.mxu0 0.0
      %959 = vmatmul.mubr.f32.gmra.mrb[0].mxu0 %v750
      %v960 = vpop.f32.mrb[0].mxu0
      %v961 = vadd.f32 %v637, %v960
      %v962 = vpop.f32.mrb[0].mxu0
      %963 = vmatprep.mubr.f32.mxu0 0.0
      %964 = vmatmul.mubr.f32.gmra.mrb[0].mxu0 %v753
      %v965 = vpop.f32.mrb[0].mxu0
      %v966 = vadd.f32 %v642, %v965
      %v967 = vpop.f32.mrb[0].mxu0
      %968 = vmatprep.mubr.f32.mxu0 0.0
      %969 = vmatmul.mubr.f32.gmra.mrb[0].mxu0 %v756
      %v970 = vpop.f32.mrb[0].mxu0
      %v971 = vadd.f32 %v647, %v970
      %v972 = vpop.f32.mrb[0].mxu0
      %973 = vmatprep.mubr.f32.mxu0 0.0
      %974 = vmatmul.mubr.f32.gmra.mrb[0].mxu0 %v759
      %v975 = vpop.f32.mrb[0].mxu0
      %v976 = vadd.f32 %v652, %v975
      %v977 = vpop.f32.mrb[0].mxu0
      %978 = vmatprep.mubr.f32.mxu0 0.0
      %979 = vmatmul.mubr.f32.gmra.mrb[0].mxu0 %v762
      %v980 = vpop.f32.mrb[0].mxu0
      %v981 = vadd.f32 %v657, %v980
      %v982 = vpop.f32.mrb[0].mxu0
      %983 = vmatprep.mubr.f32.mxu0 0.0
      %984 = vmatmul.mubr.f32.gmra.mrb[0].mxu0 %v765
      %v985 = vpop.f32.mrb[0].mxu0
      %v986 = vadd.f32 %v662, %v985
      %v987 = vpop.f32.mrb[0].mxu0
      %988 = vmatprep.mubr.f32.mxu0 0.0
      %989 = vmatmul.mubr.f32.gmra.mrb[0].mxu0 %v768
      %v990 = vpop.f32.mrb[0].mxu0
      %v991 = vadd.f32 %v667, %v990
      %v992 = vpop.f32.mrb[0].mxu0
      %993 = vmatprep.mubr.f32.mxu0 0.0
      %994 = vmatmul.mubr.f32.gmra.mrb[0].mxu0 %v771
      %v995 = vpop.f32.mrb[0].mxu0
      %v996 = vadd.f32 %v672, %v995
      %v997 = vpop.f32.mrb[0].mxu0
      %998 = vmatprep.mubr.f32.mxu0 0.0
      %999 = vmatmul.mubr.f32.gmra.mrb[0].mxu0 %v774
      %v1000 = vpop.f32.mrb[0].mxu0
      %v1001 = vadd.f32 %v677, %v1000
      %v1002 = vpop.f32.mrb[0].mxu0
      %1003 = vdwg.mxu0
      %v1004 = vld [vmem:[#allocation2 + $0x2] sm:$0xff]
      %v1005 = vld [vmem:[#allocation2 + $0xa] sm:$0xff]
      %v1006 = vld [vmem:[#allocation2 + $0x1a] sm:$0xff]
      %v1007 = vld [vmem:[#allocation2 + $0x22] sm:$0xff]
      %v1008 = vld [vmem:[#allocation2 + $0x32] sm:$0xff]
      %v1009 = vld [vmem:[#allocation2 + $0x3a] sm:$0xff]
      %v1010 = vld [vmem:[#allocation2 + $0x4a] sm:$0xff]
      %v1011 = vld [vmem:[#allocation2 + $0x52] sm:$0xff]
      %v1012 = vld [vmem:[#allocation2 + $0x62] sm:$0xff]
      %v1013 = vld [vmem:[#allocation2 + $0x6a] sm:$0xff]
      %v1014 = vld [vmem:[#allocation2 + $0x7a] sm:$0xff]
      %v1015 = vld [vmem:[#allocation2 + $0x82] sm:$0xff]
      %v1016 = vld [vmem:[#allocation2 + $0x92] sm:$0xff]
      %v1017 = vld [vmem:[#allocation2 + $0x9a] sm:$0xff]
      %v1018 = vld [vmem:[#allocation2 + $0xaa] sm:$0xff]
      %v1019 = vld [vmem:[#allocation2 + $0xb2] sm:$0xff]
      %v1020 = vld [vmem:[#allocation2 + $0xc2] sm:$0xff]
      %v1021 = vld [vmem:[#allocation2 + $0xca] sm:$0xff]
      %v1022 = vld [vmem:[#allocation2 + $0xda] sm:$0xff]
      %v1023 = vld [vmem:[#allocation2 + $0xe2] sm:$0xff]
      %v1024 = vld [vmem:[#allocation2 + $0xf2] sm:$0xff]
      %v1025 = vld [vmem:[#allocation2 + $0xfa] sm:$0xff]
      %v1026 = vld [vmem:[#allocation2 + $0x10a] sm:$0xff]
      %v1027 = vld [vmem:[#allocation2 + $0x112] sm:$0xff]
      %v1028 = vld [vmem:[#allocation2 + $0x122] sm:$0xff]
      %v1029 = vld [vmem:[#allocation2 + $0x12a] sm:$0xff]
      %v1030 = vld [vmem:[#allocation2 + $0x13a] sm:$0xff]
      %v1031 = vld [vmem:[#allocation2 + $0x142] sm:$0xff]
      %v1032 = vld [vmem:[#allocation2 + $0x152] sm:$0xff]
      %v1033 = vld [vmem:[#allocation2 + $0x15a] sm:$0xff]
      %v1034 = vld [vmem:[#allocation2 + $0x16a] sm:$0xff]
      %v1035 = vld [vmem:[#allocation2 + $0x172] sm:$0xff]
      %s1036 = scalar_lea.vmem %s1, 8
      %v1037 = vld [vmem:[%s1036] sm:$0xf]
      %v1039 = vsel %vm214, %v1004, 0
      %v1042 = vsel %vm214, %v1005, 0
      %v1045 = vsel %vm214, %v1006, 0
      %v1048 = vsel %vm214, %v1007, 0
      %v1051 = vsel %vm214, %v1008, 0
      %v1054 = vsel %vm214, %v1009, 0
      %v1057 = vsel %vm214, %v1010, 0
      %v1060 = vsel %vm214, %v1011, 0
      %v1063 = vsel %vm214, %v1012, 0
      %v1066 = vsel %vm214, %v1013, 0
      %v1069 = vsel %vm214, %v1014, 0
      %v1072 = vsel %vm214, %v1015, 0
      %v1075 = vsel %vm214, %v1016, 0
      %v1078 = vsel %vm214, %v1017, 0
      %v1081 = vsel %vm214, %v1018, 0
      %v1084 = vsel %vm214, %v1019, 0
      %v1087 = vsel %vm214, %v1020, 0
      %v1090 = vsel %vm214, %v1021, 0
      %v1093 = vsel %vm214, %v1022, 0
      %v1096 = vsel %vm214, %v1023, 0
      %v1099 = vsel %vm214, %v1024, 0
      %v1102 = vsel %vm214, %v1025, 0
      %v1105 = vsel %vm214, %v1026, 0
      %v1108 = vsel %vm214, %v1027, 0
      %v1111 = vsel %vm214, %v1028, 0
      %v1114 = vsel %vm214, %v1029, 0
      %v1117 = vsel %vm214, %v1030, 0
      %v1120 = vsel %vm214, %v1031, 0
      %v1123 = vsel %vm214, %v1032, 0
      %v1126 = vsel %vm214, %v1033, 0
      %v1129 = vsel %vm214, %v1034, 0
      %v1132 = vsel %vm214, %v1035, 0
      %v1135 = vsel %vm451, %v1037, 0
      %1137 = vmatprep.subr.mxu0 0.0
      %1138 = vmatpush1.msra.mxu0 %v1135
      %1139 = vmatprep.subr.mxu0 0.0
      %1140 = vmatpush1.msra.mxu0 0.0
      %1141 = vmatprep.subr.mxu0 0.0
      %1142 = vmatpush1.msra.mxu0 0.0
      %1143 = vmatprep.subr.mxu0 0.0
      %1144 = vmatpush1.msra.mxu0 0.0
      %1145 = vmatprep.subr.mxu0 0.0
      %1146 = vmatpush1.msra.mxu0 0.0
      %1147 = vmatprep.subr.mxu0 0.0
      %1148 = vmatpush1.msra.mxu0 0.0
      %1149 = vmatprep.subr.mxu0 0.0
      %1150 = vmatpush1.msra.mxu0 0.0
      %1151 = vmatprep.subr.mxu0 0.0
      %1152 = vmatpush1.msra.mxu0 0.0
      %1153 = vmatprep.subr.mxu0 0.0
      %1154 = vmatpush1.msra.mxu0 0.0
      %1155 = vmatprep.subr.mxu0 0.0
      %1156 = vmatpush1.msra.mxu0 0.0
      %1157 = vmatprep.subr.mxu0 0.0
      %1158 = vmatpush1.msra.mxu0 0.0
      %1159 = vmatprep.subr.mxu0 0.0
      %1160 = vmatpush1.msra.mxu0 0.0
      %1161 = vmatprep.subr.mxu0 0.0
      %1162 = vmatpush1.msra.mxu0 0.0
      %1163 = vmatprep.subr.mxu0 0.0
      %1164 = vmatpush1.msra.mxu0 0.0
      %1165 = vmatprep.subr.mxu0 0.0
      %1166 = vmatpush1.msra.mxu0 0.0
      %1167 = vmatprep.subr.mxu0 0.0
      %1168 = vmatpush1.msra.mxu0 0.0
      %1169 = vmatprep.subr.mxu0 0.0
      %1170 = vmatpush1.msra.mxu0 0.0
      %1171 = vmatprep.subr.mxu0 0.0
      %1172 = vmatpush1.msra.mxu0 0.0
      %1173 = vmatprep.subr.mxu0 0.0
      %1174 = vmatpush1.msra.mxu0 0.0
      %1175 = vmatprep.subr.mxu0 0.0
      %1176 = vmatpush1.msra.mxu0 0.0
      %1177 = vmatprep.subr.mxu0 0.0
      %1178 = vmatpush1.msra.mxu0 0.0
      %1179 = vmatprep.subr.mxu0 0.0
      %1180 = vmatpush1.msra.mxu0 0.0
      %1181 = vmatprep.subr.mxu0 0.0
      %1182 = vmatpush1.msra.mxu0 0.0
      %1183 = vmatprep.subr.mxu0 0.0
      %1184 = vmatpush1.msra.mxu0 0.0
      %1185 = vmatprep.subr.mxu0 0.0
      %1186 = vmatpush1.msra.mxu0 0.0
      %1187 = vmatprep.subr.mxu0 0.0
      %1188 = vmatpush1.msra.mxu0 0.0
      %1189 = vmatprep.subr.mxu0 0.0
      %1190 = vmatpush1.msra.mxu0 0.0
      %1191 = vmatprep.subr.mxu0 0.0
      %1192 = vmatpush1.msra.mxu0 0.0
      %1193 = vmatprep.subr.mxu0 0.0
      %1194 = vmatpush1.msra.mxu0 0.0
      %1195 = vmatprep.subr.mxu0 0.0
      %1196 = vmatpush1.msra.mxu0 0.0
      %1197 = vmatprep.subr.mxu0 0.0
      %1198 = vmatpush1.msra.mxu0 0.0
      %1199 = vmatprep.subr.mxu0 0.0
      %1200 = vmatpush1.msra.mxu0 0.0
      %1201 = vmatprep.mubr.f32.mxu0 0.0
      %1202 = vmatmul.mubr.f32.gmra.mrb[0].mxu0 %v1039
      %v1203 = vpop.f32.mrb[0].mxu0
      %v1204 = vadd.f32 0.0, %v1203
      %v1205 = vpop.f32.mrb[0].mxu0
      %1206 = vmatprep.mubr.f32.mxu0 0.0
      %1207 = vmatmul.mubr.f32.gmra.mrb[0].mxu0 %v1042
      %v1208 = vpop.f32.mrb[0].mxu0
      %v1209 = vadd.f32 0.0, %v1208
      %v1210 = vpop.f32.mrb[0].mxu0
      %1211 = vmatprep.mubr.f32.mxu0 0.0
      %1212 = vmatmul.mubr.f32.gmra.mrb[0].mxu0 %v1045
      %v1213 = vpop.f32.mrb[0].mxu0
      %v1214 = vadd.f32 0.0, %v1213
      %v1215 = vpop.f32.mrb[0].mxu0
      %1216 = vmatprep.mubr.f32.mxu0 0.0
      %1217 = vmatmul.mubr.f32.gmra.mrb[0].mxu0 %v1048
      %v1218 = vpop.f32.mrb[0].mxu0
      %v1219 = vadd.f32 0.0, %v1218
      %v1220 = vpop.f32.mrb[0].mxu0
      %1221 = vmatprep.mubr.f32.mxu0 0.0
      %1222 = vmatmul.mubr.f32.gmra.mrb[0].mxu0 %v1051
      %v1223 = vpop.f32.mrb[0].mxu0
      %v1224 = vadd.f32 0.0, %v1223
      %v1225 = vpop.f32.mrb[0].mxu0
      %1226 = vmatprep.mubr.f32.mxu0 0.0
      %1227 = vmatmul.mubr.f32.gmra.mrb[0].mxu0 %v1054
      %v1228 = vpop.f32.mrb[0].mxu0
      %v1229 = vadd.f32 0.0, %v1228
      %v1230 = vpop.f32.mrb[0].mxu0
      %1231 = vmatprep.mubr.f32.mxu0 0.0
      %1232 = vmatmul.mubr.f32.gmra.mrb[0].mxu0 %v1057
      %v1233 = vpop.f32.mrb[0].mxu0
      %v1234 = vadd.f32 0.0, %v1233
      %v1235 = vpop.f32.mrb[0].mxu0
      %1236 = vmatprep.mubr.f32.mxu0 0.0
      %1237 = vmatmul.mubr.f32.gmra.mrb[0].mxu0 %v1060
      %v1238 = vpop.f32.mrb[0].mxu0
      %v1239 = vadd.f32 0.0, %v1238
      %v1240 = vpop.f32.mrb[0].mxu0
      %1241 = vmatprep.mubr.f32.mxu0 0.0
      %1242 = vmatmul.mubr.f32.gmra.mrb[0].mxu0 %v1063
      %v1243 = vpop.f32.mrb[0].mxu0
      %v1244 = vadd.f32 0.0, %v1243
      %v1245 = vpop.f32.mrb[0].mxu0
      %1246 = vmatprep.mubr.f32.mxu0 0.0
      %1247 = vmatmul.mubr.f32.gmra.mrb[0].mxu0 %v1066
      %v1248 = vpop.f32.mrb[0].mxu0
      %v1249 = vadd.f32 0.0, %v1248
      %v1250 = vpop.f32.mrb[0].mxu0
      %1251 = vmatprep.mubr.f32.mxu0 0.0
      %1252 = vmatmul.mubr.f32.gmra.mrb[0].mxu0 %v1069
      %v1253 = vpop.f32.mrb[0].mxu0
      %v1254 = vadd.f32 0.0, %v1253
      %v1255 = vpop.f32.mrb[0].mxu0
      %1256 = vmatprep.mubr.f32.mxu0 0.0
      %1257 = vmatmul.mubr.f32.gmra.mrb[0].mxu0 %v1072
      %v1258 = vpop.f32.mrb[0].mxu0
      %v1259 = vadd.f32 0.0, %v1258
      %v1260 = vpop.f32.mrb[0].mxu0
      %1261 = vmatprep.mubr.f32.mxu0 0.0
      %1262 = vmatmul.mubr.f32.gmra.mrb[0].mxu0 %v1075
      %v1263 = vpop.f32.mrb[0].mxu0
      %v1264 = vadd.f32 0.0, %v1263
      %v1265 = vpop.f32.mrb[0].mxu0
      %1266 = vmatprep.mubr.f32.mxu0 0.0
      %1267 = vmatmul.mubr.f32.gmra.mrb[0].mxu0 %v1078
      %v1268 = vpop.f32.mrb[0].mxu0
      %v1269 = vadd.f32 0.0, %v1268
      %v1270 = vpop.f32.mrb[0].mxu0
      %1271 = vmatprep.mubr.f32.mxu0 0.0
      %1272 = vmatmul.mubr.f32.gmra.mrb[0].mxu0 %v1081
      %v1273 = vpop.f32.mrb[0].mxu0
      %v1274 = vadd.f32 0.0, %v1273
      %v1275 = vpop.f32.mrb[0].mxu0
      %1276 = vmatprep.mubr.f32.mxu0 0.0
      %1277 = vmatmul.mubr.f32.gmra.mrb[0].mxu0 %v1084
      %v1278 = vpop.f32.mrb[0].mxu0
      %v1279 = vadd.f32 0.0, %v1278
      %v1280 = vpop.f32.mrb[0].mxu0
      %1281 = vmatprep.mubr.f32.mxu0 0.0
      %1282 = vmatmul.mubr.f32.gmra.mrb[0].mxu0 %v1087
      %v1283 = vpop.f32.mrb[0].mxu0
      %v1284 = vadd.f32 0.0, %v1283
      %v1285 = vpop.f32.mrb[0].mxu0
      %1286 = vmatprep.mubr.f32.mxu0 0.0
      %1287 = vmatmul.mubr.f32.gmra.mrb[0].mxu0 %v1090
      %v1288 = vpop.f32.mrb[0].mxu0
      %v1289 = vadd.f32 0.0, %v1288
      %v1290 = vpop.f32.mrb[0].mxu0
      %1291 = vmatprep.mubr.f32.mxu0 0.0
      %1292 = vmatmul.mubr.f32.gmra.mrb[0].mxu0 %v1093
      %v1293 = vpop.f32.mrb[0].mxu0
      %v1294 = vadd.f32 0.0, %v1293
      %v1295 = vpop.f32.mrb[0].mxu0
      %1296 = vmatprep.mubr.f32.mxu0 0.0
      %1297 = vmatmul.mubr.f32.gmra.mrb[0].mxu0 %v1096
      %v1298 = vpop.f32.mrb[0].mxu0
      %v1299 = vadd.f32 0.0, %v1298
      %v1300 = vpop.f32.mrb[0].mxu0
      %1301 = vmatprep.mubr.f32.mxu0 0.0
      %1302 = vmatmul.mubr.f32.gmra.mrb[0].mxu0 %v1099
      %v1303 = vpop.f32.mrb[0].mxu0
      %v1304 = vadd.f32 0.0, %v1303
      %v1305 = vpop.f32.mrb[0].mxu0
      %1306 = vmatprep.mubr.f32.mxu0 0.0
      %1307 = vmatmul.mubr.f32.gmra.mrb[0].mxu0 %v1102
      %v1308 = vpop.f32.mrb[0].mxu0
      %v1309 = vadd.f32 0.0, %v1308
      %v1310 = vpop.f32.mrb[0].mxu0
      %1311 = vmatprep.mubr.f32.mxu0 0.0
      %1312 = vmatmul.mubr.f32.gmra.mrb[0].mxu0 %v1105
      %v1313 = vpop.f32.mrb[0].mxu0
      %v1314 = vadd.f32 0.0, %v1313
      %v1315 = vpop.f32.mrb[0].mxu0
      %1316 = vmatprep.mubr.f32.mxu0 0.0
      %1317 = vmatmul.mubr.f32.gmra.mrb[0].mxu0 %v1108
      %v1318 = vpop.f32.mrb[0].mxu0
      %v1319 = vadd.f32 0.0, %v1318
      %v1320 = vpop.f32.mrb[0].mxu0
      %1321 = vmatprep.mubr.f32.mxu0 0.0
      %1322 = vmatmul.mubr.f32.gmra.mrb[0].mxu0 %v1111
      %v1323 = vpop.f32.mrb[0].mxu0
      %v1324 = vadd.f32 0.0, %v1323
      %v1325 = vpop.f32.mrb[0].mxu0
      %1326 = vmatprep.mubr.f32.mxu0 0.0
      %1327 = vmatmul.mubr.f32.gmra.mrb[0].mxu0 %v1114
      %v1328 = vpop.f32.mrb[0].mxu0
      %v1329 = vadd.f32 0.0, %v1328
      %v1330 = vpop.f32.mrb[0].mxu0
      %1331 = vmatprep.mubr.f32.mxu0 0.0
      %1332 = vmatmul.mubr.f32.gmra.mrb[0].mxu0 %v1117
      %v1333 = vpop.f32.mrb[0].mxu0
      %v1334 = vadd.f32 0.0, %v1333
      %v1335 = vpop.f32.mrb[0].mxu0
      %1336 = vmatprep.mubr.f32.mxu0 0.0
      %1337 = vmatmul.mubr.f32.gmra.mrb[0].mxu0 %v1120
      %v1338 = vpop.f32.mrb[0].mxu0
      %v1339 = vadd.f32 0.0, %v1338
      %v1340 = vpop.f32.mrb[0].mxu0
      %1341 = vmatprep.mubr.f32.mxu0 0.0
      %1342 = vmatmul.mubr.f32.gmra.mrb[0].mxu0 %v1123
      %v1343 = vpop.f32.mrb[0].mxu0
      %v1344 = vadd.f32 0.0, %v1343
      %v1345 = vpop.f32.mrb[0].mxu0
      %1346 = vmatprep.mubr.f32.mxu0 0.0
      %1347 = vmatmul.mubr.f32.gmra.mrb[0].mxu0 %v1126
      %v1348 = vpop.f32.mrb[0].mxu0
      %v1349 = vadd.f32 0.0, %v1348
      %v1350 = vpop.f32.mrb[0].mxu0
      %1351 = vmatprep.mubr.f32.mxu0 0.0
      %1352 = vmatmul.mubr.f32.gmra.mrb[0].mxu0 %v1129
      %v1353 = vpop.f32.mrb[0].mxu0
      %v1354 = vadd.f32 0.0, %v1353
      %v1355 = vpop.f32.mrb[0].mxu0
      %1356 = vmatprep.mubr.f32.mxu0 0.0
      %1357 = vmatmul.mubr.f32.gmra.mrb[0].mxu0 %v1132
      %v1358 = vpop.f32.mrb[0].mxu0
      %v1359 = vadd.f32 0.0, %v1358
      %v1360 = vpop.f32.mrb[0].mxu0
      %1361 = vdwg.mxu0
      %v1362 = vadd.f32 %v846, %v1204
      %v1363 = vadd.f32 %v851, %v1209
      %v1364 = vadd.f32 %v856, %v1214
      %v1365 = vadd.f32 %v861, %v1219
      %v1366 = vadd.f32 %v866, %v1224
      %v1367 = vadd.f32 %v871, %v1229
      %v1368 = vadd.f32 %v876, %v1234
      %v1369 = vadd.f32 %v881, %v1239
      %v1370 = vadd.f32 %v886, %v1244
      %v1371 = vadd.f32 %v891, %v1249
      %v1372 = vadd.f32 %v896, %v1254
      %v1373 = vadd.f32 %v901, %v1259
      %v1374 = vadd.f32 %v906, %v1264
      %v1375 = vadd.f32 %v911, %v1269
      %v1376 = vadd.f32 %v916, %v1274
      %v1377 = vadd.f32 %v921, %v1279
      %v1378 = vadd.f32 %v926, %v1284
      %v1379 = vadd.f32 %v931, %v1289
      %v1380 = vadd.f32 %v936, %v1294
      %v1381 = vadd.f32 %v941, %v1299
      %v1382 = vadd.f32 %v946, %v1304
      %v1383 = vadd.f32 %v951, %v1309
      %v1384 = vadd.f32 %v956, %v1314
      %v1385 = vadd.f32 %v961, %v1319
      %v1386 = vadd.f32 %v966, %v1324
      %v1387 = vadd.f32 %v971, %v1329
      %v1388 = vadd.f32 %v976, %v1334
      %v1389 = vadd.f32 %v981, %v1339
      %v1390 = vadd.f32 %v986, %v1344
      %v1391 = vadd.f32 %v991, %v1349
      %v1392 = vadd.f32 %v996, %v1354
      %v1393 = vadd.f32 %v1001, %v1359
      %v1394 = vld [vmem:[%s222] sm:$0xff]
      %v1395 = vld [vmem:[%s222 + $0x8] sm:$0xff]
      %v1396 = vld [vmem:[%s222 + $0x18] sm:$0xff]
      %v1397 = vld [vmem:[%s222 + $0x20] sm:$0xff]
      %v1398 = vld [vmem:[%s222 + $0x30] sm:$0xff]
      %v1399 = vld [vmem:[%s222 + $0x38] sm:$0xff]
      %v1400 = vld [vmem:[%s222 + $0x48] sm:$0xff]
      %v1401 = vld [vmem:[%s222 + $0x50] sm:$0xff]
      %v1402 = vld [vmem:[%s222 + $0x60] sm:$0xff]
      %v1403 = vld [vmem:[%s222 + $0x68] sm:$0xff]
      %v1404 = vld [vmem:[%s222 + $0x78] sm:$0xff]
      %v1405 = vld [vmem:[%s222 + $0x80] sm:$0xff]
      %v1406 = vld [vmem:[%s222 + $0x90] sm:$0xff]
      %v1407 = vld [vmem:[%s222 + $0x98] sm:$0xff]
      %v1408 = vld [vmem:[%s222 + $0xa8] sm:$0xff]
      %v1409 = vld [vmem:[%s222 + $0xb0] sm:$0xff]
      %v1410 = vld [vmem:[%s222 + $0xc0] sm:$0xff]
      %v1411 = vld [vmem:[%s222 + $0xc8] sm:$0xff]
      %v1412 = vld [vmem:[%s222 + $0xd8] sm:$0xff]
      %v1413 = vld [vmem:[%s222 + $0xe0] sm:$0xff]
      %v1414 = vld [vmem:[%s222 + $0xf0] sm:$0xff]
      %v1415 = vld [vmem:[%s222 + $0xf8] sm:$0xff]
      %v1416 = vld [vmem:[%s222 + $0x108] sm:$0xff]
      %v1417 = vld [vmem:[%s222 + $0x110] sm:$0xff]
      %v1418 = vld [vmem:[%s222 + $0x120] sm:$0xff]
      %v1419 = vld [vmem:[%s222 + $0x128] sm:$0xff]
      %v1420 = vld [vmem:[%s222 + $0x138] sm:$0xff]
      %v1421 = vld [vmem:[%s222 + $0x140] sm:$0xff]
      %v1422 = vld [vmem:[%s222 + $0x150] sm:$0xff]
      %v1423 = vld [vmem:[%s222 + $0x158] sm:$0xff]
      %v1424 = vld [vmem:[%s222 + $0x168] sm:$0xff]
      %v1425 = vld [vmem:[%s222 + $0x170] sm:$0xff]
      %s1426 = scalar_lea.vmem %s1, 12
      %v1427 = vld [vmem:[%s1426] sm:$0xf]
      %v1429 = vsel %vm214, %v1394, 0
      %v1432 = vsel %vm214, %v1395, 0
      %v1435 = vsel %vm214, %v1396, 0
      %v1438 = vsel %vm214, %v1397, 0
      %v1441 = vsel %vm214, %v1398, 0
      %v1444 = vsel %vm214, %v1399, 0
      %v1447 = vsel %vm214, %v1400, 0
      %v1450 = vsel %vm214, %v1401, 0
      %v1453 = vsel %vm214, %v1402, 0
      %v1456 = vsel %vm214, %v1403, 0
      %v1459 = vsel %vm214, %v1404, 0
      %v1462 = vsel %vm214, %v1405, 0
      %v1465 = vsel %vm214, %v1406, 0
      %v1468 = vsel %vm214, %v1407, 0
      %v1471 = vsel %vm214, %v1408, 0
      %v1474 = vsel %vm214, %v1409, 0
      %v1477 = vsel %vm214, %v1410, 0
      %v1480 = vsel %vm214, %v1411, 0
      %v1483 = vsel %vm214, %v1412, 0
      %v1486 = vsel %vm214, %v1413, 0
      %v1489 = vsel %vm214, %v1414, 0
      %v1492 = vsel %vm214, %v1415, 0
      %v1495 = vsel %vm214, %v1416, 0
      %v1498 = vsel %vm214, %v1417, 0
      %v1501 = vsel %vm214, %v1418, 0
      %v1504 = vsel %vm214, %v1419, 0
      %v1507 = vsel %vm214, %v1420, 0
      %v1510 = vsel %vm214, %v1421, 0
      %v1513 = vsel %vm214, %v1422, 0
      %v1516 = vsel %vm214, %v1423, 0
      %v1519 = vsel %vm214, %v1424, 0
      %v1522 = vsel %vm214, %v1425, 0
      %v1525 = vsel %vm451, %v1427, 0
      %1527 = vmatprep.subr.mxu0 0.0
      %1528 = vmatpush1.msra.mxu0 %v1525
      %1529 = vmatprep.subr.mxu0 0.0
      %1530 = vmatpush1.msra.mxu0 0.0
      %1531 = vmatprep.subr.mxu0 0.0
      %1532 = vmatpush1.msra.mxu0 0.0
      %1533 = vmatprep.subr.mxu0 0.0
      %1534 = vmatpush1.msra.mxu0 0.0
      %1535 = vmatprep.subr.mxu0 0.0
      %1536 = vmatpush1.msra.mxu0 0.0
      %1537 = vmatprep.subr.mxu0 0.0
      %1538 = vmatpush1.msra.mxu0 0.0
      %1539 = vmatprep.subr.mxu0 0.0
      %1540 = vmatpush1.msra.mxu0 0.0
      %1541 = vmatprep.subr.mxu0 0.0
      %1542 = vmatpush1.msra.mxu0 0.0
      %1543 = vmatprep.subr.mxu0 0.0
      %1544 = vmatpush1.msra.mxu0 0.0
      %1545 = vmatprep.subr.mxu0 0.0
      %1546 = vmatpush1.msra.mxu0 0.0
      %1547 = vmatprep.subr.mxu0 0.0
      %1548 = vmatpush1.msra.mxu0 0.0
      %1549 = vmatprep.subr.mxu0 0.0
      %1550 = vmatpush1.msra.mxu0 0.0
      %1551 = vmatprep.subr.mxu0 0.0
      %1552 = vmatpush1.msra.mxu0 0.0
      %1553 = vmatprep.subr.mxu0 0.0
      %1554 = vmatpush1.msra.mxu0 0.0
      %1555 = vmatprep.subr.mxu0 0.0
      %1556 = vmatpush1.msra.mxu0 0.0
      %1557 = vmatprep.subr.mxu0 0.0
      %1558 = vmatpush1.msra.mxu0 0.0
      %1559 = vmatprep.subr.mxu0 0.0
      %1560 = vmatpush1.msra.mxu0 0.0
      %1561 = vmatprep.subr.mxu0 0.0
      %1562 = vmatpush1.msra.mxu0 0.0
      %1563 = vmatprep.subr.mxu0 0.0
      %1564 = vmatpush1.msra.mxu0 0.0
      %1565 = vmatprep.subr.mxu0 0.0
      %1566 = vmatpush1.msra.mxu0 0.0
      %1567 = vmatprep.subr.mxu0 0.0
      %1568 = vmatpush1.msra.mxu0 0.0
      %1569 = vmatprep.subr.mxu0 0.0
      %1570 = vmatpush1.msra.mxu0 0.0
      %1571 = vmatprep.subr.mxu0 0.0
      %1572 = vmatpush1.msra.mxu0 0.0
      %1573 = vmatprep.subr.mxu0 0.0
      %1574 = vmatpush1.msra.mxu0 0.0
      %1575 = vmatprep.subr.mxu0 0.0
      %1576 = vmatpush1.msra.mxu0 0.0
      %1577 = vmatprep.subr.mxu0 0.0
      %1578 = vmatpush1.msra.mxu0 0.0
      %1579 = vmatprep.subr.mxu0 0.0
      %1580 = vmatpush1.msra.mxu0 0.0
      %1581 = vmatprep.subr.mxu0 0.0
      %1582 = vmatpush1.msra.mxu0 0.0
      %1583 = vmatprep.subr.mxu0 0.0
      %1584 = vmatpush1.msra.mxu0 0.0
      %1585 = vmatprep.subr.mxu0 0.0
      %1586 = vmatpush1.msra.mxu0 0.0
      %1587 = vmatprep.subr.mxu0 0.0
      %1588 = vmatpush1.msra.mxu0 0.0
      %1589 = vmatprep.subr.mxu0 0.0
      %1590 = vmatpush1.msra.mxu0 0.0
      %1591 = vmatprep.mubr.f32.mxu0 0.0
      %1592 = vmatmul.mubr.f32.gmra.mrb[0].mxu0 %v1429
      %v1593 = vpop.f32.mrb[0].mxu0
      %v1594 = vadd.f32 0.0, %v1593
      %v1595 = vpop.f32.mrb[0].mxu0
      %1596 = vmatprep.mubr.f32.mxu0 0.0
      %1597 = vmatmul.mubr.f32.gmra.mrb[0].mxu0 %v1432
      %v1598 = vpop.f32.mrb[0].mxu0
      %v1599 = vadd.f32 0.0, %v1598
      %v1600 = vpop.f32.mrb[0].mxu0
      %1601 = vmatprep.mubr.f32.mxu0 0.0
      %1602 = vmatmul.mubr.f32.gmra.mrb[0].mxu0 %v1435
      %v1603 = vpop.f32.mrb[0].mxu0
      %v1604 = vadd.f32 0.0, %v1603
      %v1605 = vpop.f32.mrb[0].mxu0
      %1606 = vmatprep.mubr.f32.mxu0 0.0
      %1607 = vmatmul.mubr.f32.gmra.mrb[0].mxu0 %v1438
      %v1608 = vpop.f32.mrb[0].mxu0
      %v1609 = vadd.f32 0.0, %v1608
      %v1610 = vpop.f32.mrb[0].mxu0
      %1611 = vmatprep.mubr.f32.mxu0 0.0
      %1612 = vmatmul.mubr.f32.gmra.mrb[0].mxu0 %v1441
      %v1613 = vpop.f32.mrb[0].mxu0
      %v1614 = vadd.f32 0.0, %v1613
      %v1615 = vpop.f32.mrb[0].mxu0
      %1616 = vmatprep.mubr.f32.mxu0 0.0
      %1617 = vmatmul.mubr.f32.gmra.mrb[0].mxu0 %v1444
      %v1618 = vpop.f32.mrb[0].mxu0
      %v1619 = vadd.f32 0.0, %v1618
      %v1620 = vpop.f32.mrb[0].mxu0
      %1621 = vmatprep.mubr.f32.mxu0 0.0
      %1622 = vmatmul.mubr.f32.gmra.mrb[0].mxu0 %v1447
      %v1623 = vpop.f32.mrb[0].mxu0
      %v1624 = vadd.f32 0.0, %v1623
      %v1625 = vpop.f32.mrb[0].mxu0
      %1626 = vmatprep.mubr.f32.mxu0 0.0
      %1627 = vmatmul.mubr.f32.gmra.mrb[0].mxu0 %v1450
      %v1628 = vpop.f32.mrb[0].mxu0
      %v1629 = vadd.f32 0.0, %v1628
      %v1630 = vpop.f32.mrb[0].mxu0
      %1631 = vmatprep.mubr.f32.mxu0 0.0
      %1632 = vmatmul.mubr.f32.gmra.mrb[0].mxu0 %v1453
      %v1633 = vpop.f32.mrb[0].mxu0
      %v1634 = vadd.f32 0.0, %v1633
      %v1635 = vpop.f32.mrb[0].mxu0
      %1636 = vmatprep.mubr.f32.mxu0 0.0
      %1637 = vmatmul.mubr.f32.gmra.mrb[0].mxu0 %v1456
      %v1638 = vpop.f32.mrb[0].mxu0
      %v1639 = vadd.f32 0.0, %v1638
      %v1640 = vpop.f32.mrb[0].mxu0
      %1641 = vmatprep.mubr.f32.mxu0 0.0
      %1642 = vmatmul.mubr.f32.gmra.mrb[0].mxu0 %v1459
      %v1643 = vpop.f32.mrb[0].mxu0
      %v1644 = vadd.f32 0.0, %v1643
      %v1645 = vpop.f32.mrb[0].mxu0
      %1646 = vmatprep.mubr.f32.mxu0 0.0
      %1647 = vmatmul.mubr.f32.gmra.mrb[0].mxu0 %v1462
      %v1648 = vpop.f32.mrb[0].mxu0
      %v1649 = vadd.f32 0.0, %v1648
      %v1650 = vpop.f32.mrb[0].mxu0
      %1651 = vmatprep.mubr.f32.mxu0 0.0
      %1652 = vmatmul.mubr.f32.gmra.mrb[0].mxu0 %v1465
      %v1653 = vpop.f32.mrb[0].mxu0
      %v1654 = vadd.f32 0.0, %v1653
      %v1655 = vpop.f32.mrb[0].mxu0
      %1656 = vmatprep.mubr.f32.mxu0 0.0
      %1657 = vmatmul.mubr.f32.gmra.mrb[0].mxu0 %v1468
      %v1658 = vpop.f32.mrb[0].mxu0
      %v1659 = vadd.f32 0.0, %v1658
      %v1660 = vpop.f32.mrb[0].mxu0
      %1661 = vmatprep.mubr.f32.mxu0 0.0
      %1662 = vmatmul.mubr.f32.gmra.mrb[0].mxu0 %v1471
      %v1663 = vpop.f32.mrb[0].mxu0
      %v1664 = vadd.f32 0.0, %v1663
      %v1665 = vpop.f32.mrb[0].mxu0
      %1666 = vmatprep.mubr.f32.mxu0 0.0
      %1667 = vmatmul.mubr.f32.gmra.mrb[0].mxu0 %v1474
      %v1668 = vpop.f32.mrb[0].mxu0
      %v1669 = vadd.f32 0.0, %v1668
      %v1670 = vpop.f32.mrb[0].mxu0
      %1671 = vmatprep.mubr.f32.mxu0 0.0
      %1672 = vmatmul.mubr.f32.gmra.mrb[0].mxu0 %v1477
      %v1673 = vpop.f32.mrb[0].mxu0
      %v1674 = vadd.f32 0.0, %v1673
      %v1675 = vpop.f32.mrb[0].mxu0
      %1676 = vmatprep.mubr.f32.mxu0 0.0
      %1677 = vmatmul.mubr.f32.gmra.mrb[0].mxu0 %v1480
      %v1678 = vpop.f32.mrb[0].mxu0
      %v1679 = vadd.f32 0.0, %v1678
      %v1680 = vpop.f32.mrb[0].mxu0
      %1681 = vmatprep.mubr.f32.mxu0 0.0
      %1682 = vmatmul.mubr.f32.gmra.mrb[0].mxu0 %v1483
      %v1683 = vpop.f32.mrb[0].mxu0
      %v1684 = vadd.f32 0.0, %v1683
      %v1685 = vpop.f32.mrb[0].mxu0
      %1686 = vmatprep.mubr.f32.mxu0 0.0
      %1687 = vmatmul.mubr.f32.gmra.mrb[0].mxu0 %v1486
      %v1688 = vpop.f32.mrb[0].mxu0
      %v1689 = vadd.f32 0.0, %v1688
      %v1690 = vpop.f32.mrb[0].mxu0
      %1691 = vmatprep.mubr.f32.mxu0 0.0
      %1692 = vmatmul.mubr.f32.gmra.mrb[0].mxu0 %v1489
      %v1693 = vpop.f32.mrb[0].mxu0
      %v1694 = vadd.f32 0.0, %v1693
      %v1695 = vpop.f32.mrb[0].mxu0
      %1696 = vmatprep.mubr.f32.mxu0 0.0
      %1697 = vmatmul.mubr.f32.gmra.mrb[0].mxu0 %v1492
      %v1698 = vpop.f32.mrb[0].mxu0
      %v1699 = vadd.f32 0.0, %v1698
      %v1700 = vpop.f32.mrb[0].mxu0
      %1701 = vmatprep.mubr.f32.mxu0 0.0
      %1702 = vmatmul.mubr.f32.gmra.mrb[0].mxu0 %v1495
      %v1703 = vpop.f32.mrb[0].mxu0
      %v1704 = vadd.f32 0.0, %v1703
      %v1705 = vpop.f32.mrb[0].mxu0
      %1706 = vmatprep.mubr.f32.mxu0 0.0
      %1707 = vmatmul.mubr.f32.gmra.mrb[0].mxu0 %v1498
      %v1708 = vpop.f32.mrb[0].mxu0
      %v1709 = vadd.f32 0.0, %v1708
      %v1710 = vpop.f32.mrb[0].mxu0
      %1711 = vmatprep.mubr.f32.mxu0 0.0
      %1712 = vmatmul.mubr.f32.gmra.mrb[0].mxu0 %v1501
      %v1713 = vpop.f32.mrb[0].mxu0
      %v1714 = vadd.f32 0.0, %v1713
      %v1715 = vpop.f32.mrb[0].mxu0
      %1716 = vmatprep.mubr.f32.mxu0 0.0
      %1717 = vmatmul.mubr.f32.gmra.mrb[0].mxu0 %v1504
      %v1718 = vpop.f32.mrb[0].mxu0
      %v1719 = vadd.f32 0.0, %v1718
      %v1720 = vpop.f32.mrb[0].mxu0
      %1721 = vmatprep.mubr.f32.mxu0 0.0
      %1722 = vmatmul.mubr.f32.gmra.mrb[0].mxu0 %v1507
      %v1723 = vpop.f32.mrb[0].mxu0
      %v1724 = vadd.f32 0.0, %v1723
      %v1725 = vpop.f32.mrb[0].mxu0
      %1726 = vmatprep.mubr.f32.mxu0 0.0
      %1727 = vmatmul.mubr.f32.gmra.mrb[0].mxu0 %v1510
      %v1728 = vpop.f32.mrb[0].mxu0
      %v1729 = vadd.f32 0.0, %v1728
      %v1730 = vpop.f32.mrb[0].mxu0
      %1731 = vmatprep.mubr.f32.mxu0 0.0
      %1732 = vmatmul.mubr.f32.gmra.mrb[0].mxu0 %v1513
      %v1733 = vpop.f32.mrb[0].mxu0
      %v1734 = vadd.f32 0.0, %v1733
      %v1735 = vpop.f32.mrb[0].mxu0
      %1736 = vmatprep.mubr.f32.mxu0 0.0
      %1737 = vmatmul.mubr.f32.gmra.mrb[0].mxu0 %v1516
      %v1738 = vpop.f32.mrb[0].mxu0
      %v1739 = vadd.f32 0.0, %v1738
      %v1740 = vpop.f32.mrb[0].mxu0
      %1741 = vmatprep.mubr.f32.mxu0 0.0
      %1742 = vmatmul.mubr.f32.gmra.mrb[0].mxu0 %v1519
      %v1743 = vpop.f32.mrb[0].mxu0
      %v1744 = vadd.f32 0.0, %v1743
      %v1745 = vpop.f32.mrb[0].mxu0
      %1746 = vmatprep.mubr.f32.mxu0 0.0
      %1747 = vmatmul.mubr.f32.gmra.mrb[0].mxu0 %v1522
      %v1748 = vpop.f32.mrb[0].mxu0
      %v1749 = vadd.f32 0.0, %v1748
      %v1750 = vpop.f32.mrb[0].mxu0
      %1751 = vdwg.mxu0
      %v1752 = vadd.f32 %v1362, %v1594
      %v1753 = vadd.f32 %v1363, %v1599
      %v1754 = vadd.f32 %v1364, %v1604
      %v1755 = vadd.f32 %v1365, %v1609
      %v1756 = vadd.f32 %v1366, %v1614
      %v1757 = vadd.f32 %v1367, %v1619
      %v1758 = vadd.f32 %v1368, %v1624
      %v1759 = vadd.f32 %v1369, %v1629
      %v1760 = vadd.f32 %v1370, %v1634
      %v1761 = vadd.f32 %v1371, %v1639
      %v1762 = vadd.f32 %v1372, %v1644
      %v1763 = vadd.f32 %v1373, %v1649
      %v1764 = vadd.f32 %v1374, %v1654
      %v1765 = vadd.f32 %v1375, %v1659
      %v1766 = vadd.f32 %v1376, %v1664
      %v1767 = vadd.f32 %v1377, %v1669
      %v1768 = vadd.f32 %v1378, %v1674
      %v1769 = vadd.f32 %v1379, %v1679
      %v1770 = vadd.f32 %v1380, %v1684
      %v1771 = vadd.f32 %v1381, %v1689
      %v1772 = vadd.f32 %v1382, %v1694
      %v1773 = vadd.f32 %v1383, %v1699
      %v1774 = vadd.f32 %v1384, %v1704
      %v1775 = vadd.f32 %v1385, %v1709
      %v1776 = vadd.f32 %v1386, %v1714
      %v1777 = vadd.f32 %v1387, %v1719
      %v1778 = vadd.f32 %v1388, %v1724
      %v1779 = vadd.f32 %v1389, %v1729
      %v1780 = vadd.f32 %v1390, %v1734
      %v1781 = vadd.f32 %v1391, %v1739
      %v1782 = vadd.f32 %v1392, %v1744
      %v1783 = vadd.f32 %v1393, %v1749
      %v1784 = vld [vmem:[%s222 + $0x1] sm:$0xff]
      %v1785 = vld [vmem:[%s222 + $0x9] sm:$0xff]
      %v1786 = vld [vmem:[%s222 + $0x19] sm:$0xff]
      %v1787 = vld [vmem:[%s222 + $0x21] sm:$0xff]
      %v1788 = vld [vmem:[%s222 + $0x31] sm:$0xff]
      %v1789 = vld [vmem:[%s222 + $0x39] sm:$0xff]
      %v1790 = vld [vmem:[%s222 + $0x49] sm:$0xff]
      %v1791 = vld [vmem:[%s222 + $0x51] sm:$0xff]
      %v1792 = vld [vmem:[%s222 + $0x61] sm:$0xff]
      %v1793 = vld [vmem:[%s222 + $0x69] sm:$0xff]
      %v1794 = vld [vmem:[%s222 + $0x79] sm:$0xff]
      %v1795 = vld [vmem:[%s222 + $0x81] sm:$0xff]
      %v1796 = vld [vmem:[%s222 + $0x91] sm:$0xff]
      %v1797 = vld [vmem:[%s222 + $0x99] sm:$0xff]
      %v1798 = vld [vmem:[%s222 + $0xa9] sm:$0xff]
      %v1799 = vld [vmem:[%s222 + $0xb1] sm:$0xff]
      %v1800 = vld [vmem:[%s222 + $0xc1] sm:$0xff]
      %v1801 = vld [vmem:[%s222 + $0xc9] sm:$0xff]
      %v1802 = vld [vmem:[%s222 + $0xd9] sm:$0xff]
      %v1803 = vld [vmem:[%s222 + $0xe1] sm:$0xff]
      %v1804 = vld [vmem:[%s222 + $0xf1] sm:$0xff]
      %v1805 = vld [vmem:[%s222 + $0xf9] sm:$0xff]
      %v1806 = vld [vmem:[%s222 + $0x109] sm:$0xff]
      %v1807 = vld [vmem:[%s222 + $0x111] sm:$0xff]
      %v1808 = vld [vmem:[%s222 + $0x121] sm:$0xff]
      %v1809 = vld [vmem:[%s222 + $0x129] sm:$0xff]
      %v1810 = vld [vmem:[%s222 + $0x139] sm:$0xff]
      %v1811 = vld [vmem:[%s222 + $0x141] sm:$0xff]
      %v1812 = vld [vmem:[%s222 + $0x151] sm:$0xff]
      %v1813 = vld [vmem:[%s222 + $0x159] sm:$0xff]
      %v1814 = vld [vmem:[%s222 + $0x169] sm:$0xff]
      %v1815 = vld [vmem:[%s222 + $0x171] sm:$0xff]
      %s1816 = scalar_lea.vmem %s1, 16
      %v1817 = vld [vmem:[%s1816] sm:$0xf]
      %v1819 = vsel %vm214, %v1784, 0
      %v1822 = vsel %vm214, %v1785, 0
      %v1825 = vsel %vm214, %v1786, 0
      %v1828 = vsel %vm214, %v1787, 0
      %v1831 = vsel %vm214, %v1788, 0
      %v1834 = vsel %vm214, %v1789, 0
      %v1837 = vsel %vm214, %v1790, 0
      %v1840 = vsel %vm214, %v1791, 0
      %v1843 = vsel %vm214, %v1792, 0
      %v1846 = vsel %vm214, %v1793, 0
      %v1849 = vsel %vm214, %v1794, 0
      %v1852 = vsel %vm214, %v1795, 0
      %v1855 = vsel %vm214, %v1796, 0
      %v1858 = vsel %vm214, %v1797, 0
      %v1861 = vsel %vm214, %v1798, 0
      %v1864 = vsel %vm214, %v1799, 0
      %v1867 = vsel %vm214, %v1800, 0
      %v1870 = vsel %vm214, %v1801, 0
      %v1873 = vsel %vm214, %v1802, 0
      %v1876 = vsel %vm214, %v1803, 0
      %v1879 = vsel %vm214, %v1804, 0
      %v1882 = vsel %vm214, %v1805, 0
      %v1885 = vsel %vm214, %v1806, 0
      %v1888 = vsel %vm214, %v1807, 0
      %v1891 = vsel %vm214, %v1808, 0
      %v1894 = vsel %vm214, %v1809, 0
      %v1897 = vsel %vm214, %v1810, 0
      %v1900 = vsel %vm214, %v1811, 0
      %v1903 = vsel %vm214, %v1812, 0
      %v1906 = vsel %vm214, %v1813, 0
      %v1909 = vsel %vm214, %v1814, 0
      %v1912 = vsel %vm214, %v1815, 0
      %v1915 = vsel %vm451, %v1817, 0
      %1917 = vmatprep.subr.mxu0 0.0
      %1918 = vmatpush1.msra.mxu0 %v1915
      %1919 = vmatprep.subr.mxu0 0.0
      %1920 = vmatpush1.msra.mxu0 0.0
      %1921 = vmatprep.subr.mxu0 0.0
      %1922 = vmatpush1.msra.mxu0 0.0
      %1923 = vmatprep.subr.mxu0 0.0
      %1924 = vmatpush1.msra.mxu0 0.0
      %1925 = vmatprep.subr.mxu0 0.0
      %1926 = vmatpush1.msra.mxu0 0.0
      %1927 = vmatprep.subr.mxu0 0.0
      %1928 = vmatpush1.msra.mxu0 0.0
      %1929 = vmatprep.subr.mxu0 0.0
      %1930 = vmatpush1.msra.mxu0 0.0
      %1931 = vmatprep.subr.mxu0 0.0
      %1932 = vmatpush1.msra.mxu0 0.0
      %1933 = vmatprep.subr.mxu0 0.0
      %1934 = vmatpush1.msra.mxu0 0.0
      %1935 = vmatprep.subr.mxu0 0.0
      %1936 = vmatpush1.msra.mxu0 0.0
      %1937 = vmatprep.subr.mxu0 0.0
      %1938 = vmatpush1.msra.mxu0 0.0
      %1939 = vmatprep.subr.mxu0 0.0
      %1940 = vmatpush1.msra.mxu0 0.0
      %1941 = vmatprep.subr.mxu0 0.0
      %1942 = vmatpush1.msra.mxu0 0.0
      %1943 = vmatprep.subr.mxu0 0.0
      %1944 = vmatpush1.msra.mxu0 0.0
      %1945 = vmatprep.subr.mxu0 0.0
      %1946 = vmatpush1.msra.mxu0 0.0
      %1947 = vmatprep.subr.mxu0 0.0
      %1948 = vmatpush1.msra.mxu0 0.0
      %1949 = vmatprep.subr.mxu0 0.0
      %1950 = vmatpush1.msra.mxu0 0.0
      %1951 = vmatprep.subr.mxu0 0.0
      %1952 = vmatpush1.msra.mxu0 0.0
      %1953 = vmatprep.subr.mxu0 0.0
      %1954 = vmatpush1.msra.mxu0 0.0
      %1955 = vmatprep.subr.mxu0 0.0
      %1956 = vmatpush1.msra.mxu0 0.0
      %1957 = vmatprep.subr.mxu0 0.0
      %1958 = vmatpush1.msra.mxu0 0.0
      %1959 = vmatprep.subr.mxu0 0.0
      %1960 = vmatpush1.msra.mxu0 0.0
      %1961 = vmatprep.subr.mxu0 0.0
      %1962 = vmatpush1.msra.mxu0 0.0
      %1963 = vmatprep.subr.mxu0 0.0
      %1964 = vmatpush1.msra.mxu0 0.0
      %1965 = vmatprep.subr.mxu0 0.0
      %1966 = vmatpush1.msra.mxu0 0.0
      %1967 = vmatprep.subr.mxu0 0.0
      %1968 = vmatpush1.msra.mxu0 0.0
      %1969 = vmatprep.subr.mxu0 0.0
      %1970 = vmatpush1.msra.mxu0 0.0
      %1971 = vmatprep.subr.mxu0 0.0
      %1972 = vmatpush1.msra.mxu0 0.0
      %1973 = vmatprep.subr.mxu0 0.0
      %1974 = vmatpush1.msra.mxu0 0.0
      %1975 = vmatprep.subr.mxu0 0.0
      %1976 = vmatpush1.msra.mxu0 0.0
      %1977 = vmatprep.subr.mxu0 0.0
      %1978 = vmatpush1.msra.mxu0 0.0
      %1979 = vmatprep.subr.mxu0 0.0
      %1980 = vmatpush1.msra.mxu0 0.0
      %1981 = vmatprep.mubr.f32.mxu0 0.0
      %1982 = vmatmul.mubr.f32.gmra.mrb[0].mxu0 %v1819
      %v1983 = vpop.f32.mrb[0].mxu0
      %v1984 = vadd.f32 0.0, %v1983
      %v1985 = vpop.f32.mrb[0].mxu0
      %1986 = vmatprep.mubr.f32.mxu0 0.0
      %1987 = vmatmul.mubr.f32.gmra.mrb[0].mxu0 %v1822
      %v1988 = vpop.f32.mrb[0].mxu0
      %v1989 = vadd.f32 0.0, %v1988
      %v1990 = vpop.f32.mrb[0].mxu0
      %1991 = vmatprep.mubr.f32.mxu0 0.0
      %1992 = vmatmul.mubr.f32.gmra.mrb[0].mxu0 %v1825
      %v1993 = vpop.f32.mrb[0].mxu0
      %v1994 = vadd.f32 0.0, %v1993
      %v1995 = vpop.f32.mrb[0].mxu0
      %1996 = vmatprep.mubr.f32.mxu0 0.0
      %1997 = vmatmul.mubr.f32.gmra.mrb[0].mxu0 %v1828
      %v1998 = vpop.f32.mrb[0].mxu0
      %v1999 = vadd.f32 0.0, %v1998
      %v2000 = vpop.f32.mrb[0].mxu0
      %2001 = vmatprep.mubr.f32.mxu0 0.0
      %2002 = vmatmul.mubr.f32.gmra.mrb[0].mxu0 %v1831
      %v2003 = vpop.f32.mrb[0].mxu0
      %v2004 = vadd.f32 0.0, %v2003
      %v2005 = vpop.f32.mrb[0].mxu0
      %2006 = vmatprep.mubr.f32.mxu0 0.0
      %2007 = vmatmul.mubr.f32.gmra.mrb[0].mxu0 %v1834
      %v2008 = vpop.f32.mrb[0].mxu0
      %v2009 = vadd.f32 0.0, %v2008
      %v2010 = vpop.f32.mrb[0].mxu0
      %2011 = vmatprep.mubr.f32.mxu0 0.0
      %2012 = vmatmul.mubr.f32.gmra.mrb[0].mxu0 %v1837
      %v2013 = vpop.f32.mrb[0].mxu0
      %v2014 = vadd.f32 0.0, %v2013
      %v2015 = vpop.f32.mrb[0].mxu0
      %2016 = vmatprep.mubr.f32.mxu0 0.0
      %2017 = vmatmul.mubr.f32.gmra.mrb[0].mxu0 %v1840
      %v2018 = vpop.f32.mrb[0].mxu0
      %v2019 = vadd.f32 0.0, %v2018
      %v2020 = vpop.f32.mrb[0].mxu0
      %2021 = vmatprep.mubr.f32.mxu0 0.0
      %2022 = vmatmul.mubr.f32.gmra.mrb[0].mxu0 %v1843
      %v2023 = vpop.f32.mrb[0].mxu0
      %v2024 = vadd.f32 0.0, %v2023
      %v2025 = vpop.f32.mrb[0].mxu0
      %2026 = vmatprep.mubr.f32.mxu0 0.0
      %2027 = vmatmul.mubr.f32.gmra.mrb[0].mxu0 %v1846
      %v2028 = vpop.f32.mrb[0].mxu0
      %v2029 = vadd.f32 0.0, %v2028
      %v2030 = vpop.f32.mrb[0].mxu0
      %2031 = vmatprep.mubr.f32.mxu0 0.0
      %2032 = vmatmul.mubr.f32.gmra.mrb[0].mxu0 %v1849
      %v2033 = vpop.f32.mrb[0].mxu0
      %v2034 = vadd.f32 0.0, %v2033
      %v2035 = vpop.f32.mrb[0].mxu0
      %2036 = vmatprep.mubr.f32.mxu0 0.0
      %2037 = vmatmul.mubr.f32.gmra.mrb[0].mxu0 %v1852
      %v2038 = vpop.f32.mrb[0].mxu0
      %v2039 = vadd.f32 0.0, %v2038
      %v2040 = vpop.f32.mrb[0].mxu0
      %2041 = vmatprep.mubr.f32.mxu0 0.0
      %2042 = vmatmul.mubr.f32.gmra.mrb[0].mxu0 %v1855
      %v2043 = vpop.f32.mrb[0].mxu0
      %v2044 = vadd.f32 0.0, %v2043
      %v2045 = vpop.f32.mrb[0].mxu0
      %2046 = vmatprep.mubr.f32.mxu0 0.0
      %2047 = vmatmul.mubr.f32.gmra.mrb[0].mxu0 %v1858
      %v2048 = vpop.f32.mrb[0].mxu0
      %v2049 = vadd.f32 0.0, %v2048
      %v2050 = vpop.f32.mrb[0].mxu0
      %2051 = vmatprep.mubr.f32.mxu0 0.0
      %2052 = vmatmul.mubr.f32.gmra.mrb[0].mxu0 %v1861
      %v2053 = vpop.f32.mrb[0].mxu0
      %v2054 = vadd.f32 0.0, %v2053
      %v2055 = vpop.f32.mrb[0].mxu0
      %2056 = vmatprep.mubr.f32.mxu0 0.0
      %2057 = vmatmul.mubr.f32.gmra.mrb[0].mxu0 %v1864
      %v2058 = vpop.f32.mrb[0].mxu0
      %v2059 = vadd.f32 0.0, %v2058
      %v2060 = vpop.f32.mrb[0].mxu0
      %2061 = vmatprep.mubr.f32.mxu0 0.0
      %2062 = vmatmul.mubr.f32.gmra.mrb[0].mxu0 %v1867
      %v2063 = vpop.f32.mrb[0].mxu0
      %v2064 = vadd.f32 0.0, %v2063
      %v2065 = vpop.f32.mrb[0].mxu0
      %2066 = vmatprep.mubr.f32.mxu0 0.0
      %2067 = vmatmul.mubr.f32.gmra.mrb[0].mxu0 %v1870
      %v2068 = vpop.f32.mrb[0].mxu0
      %v2069 = vadd.f32 0.0, %v2068
      %v2070 = vpop.f32.mrb[0].mxu0
      %2071 = vmatprep.mubr.f32.mxu0 0.0
      %2072 = vmatmul.mubr.f32.gmra.mrb[0].mxu0 %v1873
      %v2073 = vpop.f32.mrb[0].mxu0
      %v2074 = vadd.f32 0.0, %v2073
      %v2075 = vpop.f32.mrb[0].mxu0
      %2076 = vmatprep.mubr.f32.mxu0 0.0
      %2077 = vmatmul.mubr.f32.gmra.mrb[0].mxu0 %v1876
      %v2078 = vpop.f32.mrb[0].mxu0
      %v2079 = vadd.f32 0.0, %v2078
      %v2080 = vpop.f32.mrb[0].mxu0
      %2081 = vmatprep.mubr.f32.mxu0 0.0
      %2082 = vmatmul.mubr.f32.gmra.mrb[0].mxu0 %v1879
      %v2083 = vpop.f32.mrb[0].mxu0
      %v2084 = vadd.f32 0.0, %v2083
      %v2085 = vpop.f32.mrb[0].mxu0
      %2086 = vmatprep.mubr.f32.mxu0 0.0
      %2087 = vmatmul.mubr.f32.gmra.mrb[0].mxu0 %v1882
      %v2088 = vpop.f32.mrb[0].mxu0
      %v2089 = vadd.f32 0.0, %v2088
      %v2090 = vpop.f32.mrb[0].mxu0
      %2091 = vmatprep.mubr.f32.mxu0 0.0
      %2092 = vmatmul.mubr.f32.gmra.mrb[0].mxu0 %v1885
      %v2093 = vpop.f32.mrb[0].mxu0
      %v2094 = vadd.f32 0.0, %v2093
      %v2095 = vpop.f32.mrb[0].mxu0
      %2096 = vmatprep.mubr.f32.mxu0 0.0
      %2097 = vmatmul.mubr.f32.gmra.mrb[0].mxu0 %v1888
      %v2098 = vpop.f32.mrb[0].mxu0
      %v2099 = vadd.f32 0.0, %v2098
      %v2100 = vpop.f32.mrb[0].mxu0
      %2101 = vmatprep.mubr.f32.mxu0 0.0
      %2102 = vmatmul.mubr.f32.gmra.mrb[0].mxu0 %v1891
      %v2103 = vpop.f32.mrb[0].mxu0
      %v2104 = vadd.f32 0.0, %v2103
      %v2105 = vpop.f32.mrb[0].mxu0
      %2106 = vmatprep.mubr.f32.mxu0 0.0
      %2107 = vmatmul.mubr.f32.gmra.mrb[0].mxu0 %v1894
      %v2108 = vpop.f32.mrb[0].mxu0
      %v2109 = vadd.f32 0.0, %v2108
      %v2110 = vpop.f32.mrb[0].mxu0
      %2111 = vmatprep.mubr.f32.mxu0 0.0
      %2112 = vmatmul.mubr.f32.gmra.mrb[0].mxu0 %v1897
      %v2113 = vpop.f32.mrb[0].mxu0
      %v2114 = vadd.f32 0.0, %v2113
      %v2115 = vpop.f32.mrb[0].mxu0
      %2116 = vmatprep.mubr.f32.mxu0 0.0
      %2117 = vmatmul.mubr.f32.gmra.mrb[0].mxu0 %v1900
      %v2118 = vpop.f32.mrb[0].mxu0
      %v2119 = vadd.f32 0.0, %v2118
      %v2120 = vpop.f32.mrb[0].mxu0
      %2121 = vmatprep.mubr.f32.mxu0 0.0
      %2122 = vmatmul.mubr.f32.gmra.mrb[0].mxu0 %v1903
      %v2123 = vpop.f32.mrb[0].mxu0
      %v2124 = vadd.f32 0.0, %v2123
      %v2125 = vpop.f32.mrb[0].mxu0
      %2126 = vmatprep.mubr.f32.mxu0 0.0
      %2127 = vmatmul.mubr.f32.gmra.mrb[0].mxu0 %v1906
      %v2128 = vpop.f32.mrb[0].mxu0
      %v2129 = vadd.f32 0.0, %v2128
      %v2130 = vpop.f32.mrb[0].mxu0
      %2131 = vmatprep.mubr.f32.mxu0 0.0
      %2132 = vmatmul.mubr.f32.gmra.mrb[0].mxu0 %v1909
      %v2133 = vpop.f32.mrb[0].mxu0
      %v2134 = vadd.f32 0.0, %v2133
      %v2135 = vpop.f32.mrb[0].mxu0
      %2136 = vmatprep.mubr.f32.mxu0 0.0
      %2137 = vmatmul.mubr.f32.gmra.mrb[0].mxu0 %v1912
      %v2138 = vpop.f32.mrb[0].mxu0
      %v2139 = vadd.f32 0.0, %v2138
      %v2140 = vpop.f32.mrb[0].mxu0
      %2141 = vdwg.mxu0
      %v2142 = vadd.f32 %v1752, %v1984
      %v2143 = vadd.f32 %v1753, %v1989
      %v2144 = vadd.f32 %v1754, %v1994
      %v2145 = vadd.f32 %v1755, %v1999
      %v2146 = vadd.f32 %v1756, %v2004
      %v2147 = vadd.f32 %v1757, %v2009
      %v2148 = vadd.f32 %v1758, %v2014
      %v2149 = vadd.f32 %v1759, %v2019
      %v2150 = vadd.f32 %v1760, %v2024
      %v2151 = vadd.f32 %v1761, %v2029
      %v2152 = vadd.f32 %v1762, %v2034
      %v2153 = vadd.f32 %v1763, %v2039
      %v2154 = vadd.f32 %v1764, %v2044
      %v2155 = vadd.f32 %v1765, %v2049
      %v2156 = vadd.f32 %v1766, %v2054
      %v2157 = vadd.f32 %v1767, %v2059
      %v2158 = vadd.f32 %v1768, %v2064
      %v2159 = vadd.f32 %v1769, %v2069
      %v2160 = vadd.f32 %v1770, %v2074
      %v2161 = vadd.f32 %v1771, %v2079
      %v2162 = vadd.f32 %v1772, %v2084
      %v2163 = vadd.f32 %v1773, %v2089
      %v2164 = vadd.f32 %v1774, %v2094
      %v2165 = vadd.f32 %v1775, %v2099
      %v2166 = vadd.f32 %v1776, %v2104
      %v2167 = vadd.f32 %v1777, %v2109
      %v2168 = vadd.f32 %v1778, %v2114
      %v2169 = vadd.f32 %v1779, %v2119
      %v2170 = vadd.f32 %v1780, %v2124
      %v2171 = vadd.f32 %v1781, %v2129
      %v2172 = vadd.f32 %v1782, %v2134
      %v2173 = vadd.f32 %v1783, %v2139
      %v2174 = vld [vmem:[%s222 + $0x2] sm:$0xff]
      %v2175 = vld [vmem:[%s222 + $0xa] sm:$0xff]
      %v2176 = vld [vmem:[%s222 + $0x1a] sm:$0xff]
      %v2177 = vld [vmem:[%s222 + $0x22] sm:$0xff]
      %v2178 = vld [vmem:[%s222 + $0x32] sm:$0xff]
      %v2179 = vld [vmem:[%s222 + $0x3a] sm:$0xff]
      %v2180 = vld [vmem:[%s222 + $0x4a] sm:$0xff]
      %v2181 = vld [vmem:[%s222 + $0x52] sm:$0xff]
      %v2182 = vld [vmem:[%s222 + $0x62] sm:$0xff]
      %v2183 = vld [vmem:[%s222 + $0x6a] sm:$0xff]
      %v2184 = vld [vmem:[%s222 + $0x7a] sm:$0xff]
      %v2185 = vld [vmem:[%s222 + $0x82] sm:$0xff]
      %v2186 = vld [vmem:[%s222 + $0x92] sm:$0xff]
      %v2187 = vld [vmem:[%s222 + $0x9a] sm:$0xff]
      %v2188 = vld [vmem:[%s222 + $0xaa] sm:$0xff]
      %v2189 = vld [vmem:[%s222 + $0xb2] sm:$0xff]
      %v2190 = vld [vmem:[%s222 + $0xc2] sm:$0xff]
      %v2191 = vld [vmem:[%s222 + $0xca] sm:$0xff]
      %v2192 = vld [vmem:[%s222 + $0xda] sm:$0xff]
      %v2193 = vld [vmem:[%s222 + $0xe2] sm:$0xff]
      %v2194 = vld [vmem:[%s222 + $0xf2] sm:$0xff]
      %v2195 = vld [vmem:[%s222 + $0xfa] sm:$0xff]
      %v2196 = vld [vmem:[%s222 + $0x10a] sm:$0xff]
      %v2197 = vld [vmem:[%s222 + $0x112] sm:$0xff]
      %v2198 = vld [vmem:[%s222 + $0x122] sm:$0xff]
      %v2199 = vld [vmem:[%s222 + $0x12a] sm:$0xff]
      %v2200 = vld [vmem:[%s222 + $0x13a] sm:$0xff]
      %v2201 = vld [vmem:[%s222 + $0x142] sm:$0xff]
      %v2202 = vld [vmem:[%s222 + $0x152] sm:$0xff]
      %v2203 = vld [vmem:[%s222 + $0x15a] sm:$0xff]
      %v2204 = vld [vmem:[%s222 + $0x16a] sm:$0xff]
      %v2205 = vld [vmem:[%s222 + $0x172] sm:$0xff]
      %s2206 = scalar_lea.vmem %s1, 20
      %v2207 = vld [vmem:[%s2206] sm:$0xf]
      %v2209 = vsel %vm214, %v2174, 0
      %v2212 = vsel %vm214, %v2175, 0
      %v2215 = vsel %vm214, %v2176, 0
      %v2218 = vsel %vm214, %v2177, 0
      %v2221 = vsel %vm214, %v2178, 0
      %v2224 = vsel %vm214, %v2179, 0
      %v2227 = vsel %vm214, %v2180, 0
      %v2230 = vsel %vm214, %v2181, 0
      %v2233 = vsel %vm214, %v2182, 0
      %v2236 = vsel %vm214, %v2183, 0
      %v2239 = vsel %vm214, %v2184, 0
      %v2242 = vsel %vm214, %v2185, 0
      %v2245 = vsel %vm214, %v2186, 0
      %v2248 = vsel %vm214, %v2187, 0
      %v2251 = vsel %vm214, %v2188, 0
      %v2254 = vsel %vm214, %v2189, 0
      %v2257 = vsel %vm214, %v2190, 0
      %v2260 = vsel %vm214, %v2191, 0
      %v2263 = vsel %vm214, %v2192, 0
      %v2266 = vsel %vm214, %v2193, 0
      %v2269 = vsel %vm214, %v2194, 0
      %v2272 = vsel %vm214, %v2195, 0
      %v2275 = vsel %vm214, %v2196, 0
      %v2278 = vsel %vm214, %v2197, 0
      %v2281 = vsel %vm214, %v2198, 0
      %v2284 = vsel %vm214, %v2199, 0
      %v2287 = vsel %vm214, %v2200, 0
      %v2290 = vsel %vm214, %v2201, 0
      %v2293 = vsel %vm214, %v2202, 0
      %v2296 = vsel %vm214, %v2203, 0
      %v2299 = vsel %vm214, %v2204, 0
      %v2302 = vsel %vm214, %v2205, 0
      %v2305 = vsel %vm451, %v2207, 0
      %2307 = vmatprep.subr.mxu0 0.0
      %2308 = vmatpush1.msra.mxu0 %v2305
      %2309 = vmatprep.subr.mxu0 0.0
      %2310 = vmatpush1.msra.mxu0 0.0
      %2311 = vmatprep.subr.mxu0 0.0
      %2312 = vmatpush1.msra.mxu0 0.0
      %2313 = vmatprep.subr.mxu0 0.0
      %2314 = vmatpush1.msra.mxu0 0.0
      %2315 = vmatprep.subr.mxu0 0.0
      %2316 = vmatpush1.msra.mxu0 0.0
      %2317 = vmatprep.subr.mxu0 0.0
      %2318 = vmatpush1.msra.mxu0 0.0
      %2319 = vmatprep.subr.mxu0 0.0
      %2320 = vmatpush1.msra.mxu0 0.0
      %2321 = vmatprep.subr.mxu0 0.0
      %2322 = vmatpush1.msra.mxu0 0.0
      %2323 = vmatprep.subr.mxu0 0.0
      %2324 = vmatpush1.msra.mxu0 0.0
      %2325 = vmatprep.subr.mxu0 0.0
      %2326 = vmatpush1.msra.mxu0 0.0
      %2327 = vmatprep.subr.mxu0 0.0
      %2328 = vmatpush1.msra.mxu0 0.0
      %2329 = vmatprep.subr.mxu0 0.0
      %2330 = vmatpush1.msra.mxu0 0.0
      %2331 = vmatprep.subr.mxu0 0.0
      %2332 = vmatpush1.msra.mxu0 0.0
      %2333 = vmatprep.subr.mxu0 0.0
      %2334 = vmatpush1.msra.mxu0 0.0
      %2335 = vmatprep.subr.mxu0 0.0
      %2336 = vmatpush1.msra.mxu0 0.0
      %2337 = vmatprep.subr.mxu0 0.0
      %2338 = vmatpush1.msra.mxu0 0.0
      %2339 = vmatprep.subr.mxu0 0.0
      %2340 = vmatpush1.msra.mxu0 0.0
      %2341 = vmatprep.subr.mxu0 0.0
      %2342 = vmatpush1.msra.mxu0 0.0
      %2343 = vmatprep.subr.mxu0 0.0
      %2344 = vmatpush1.msra.mxu0 0.0
      %2345 = vmatprep.subr.mxu0 0.0
      %2346 = vmatpush1.msra.mxu0 0.0
      %2347 = vmatprep.subr.mxu0 0.0
      %2348 = vmatpush1.msra.mxu0 0.0
      %2349 = vmatprep.subr.mxu0 0.0
      %2350 = vmatpush1.msra.mxu0 0.0
      %2351 = vmatprep.subr.mxu0 0.0
      %2352 = vmatpush1.msra.mxu0 0.0
      %2353 = vmatprep.subr.mxu0 0.0
      %2354 = vmatpush1.msra.mxu0 0.0
      %2355 = vmatprep.subr.mxu0 0.0
      %2356 = vmatpush1.msra.mxu0 0.0
      %2357 = vmatprep.subr.mxu0 0.0
      %2358 = vmatpush1.msra.mxu0 0.0
      %2359 = vmatprep.subr.mxu0 0.0
      %2360 = vmatpush1.msra.mxu0 0.0
      %2361 = vmatprep.subr.mxu0 0.0
      %2362 = vmatpush1.msra.mxu0 0.0
      %2363 = vmatprep.subr.mxu0 0.0
      %2364 = vmatpush1.msra.mxu0 0.0
      %2365 = vmatprep.subr.mxu0 0.0
      %2366 = vmatpush1.msra.mxu0 0.0
      %2367 = vmatprep.subr.mxu0 0.0
      %2368 = vmatpush1.msra.mxu0 0.0
      %2369 = vmatprep.subr.mxu0 0.0
      %2370 = vmatpush1.msra.mxu0 0.0
      %2371 = vmatprep.mubr.f32.mxu0 0.0
      %2372 = vmatmul.mubr.f32.gmra.mrb[0].mxu0 %v2209
      %v2373 = vpop.f32.mrb[0].mxu0
      %v2374 = vadd.f32 0.0, %v2373
      %v2375 = vpop.f32.mrb[0].mxu0
      %2376 = vmatprep.mubr.f32.mxu0 0.0
      %2377 = vmatmul.mubr.f32.gmra.mrb[0].mxu0 %v2212
      %v2378 = vpop.f32.mrb[0].mxu0
      %v2379 = vadd.f32 0.0, %v2378
      %v2380 = vpop.f32.mrb[0].mxu0
      %2381 = vmatprep.mubr.f32.mxu0 0.0
      %2382 = vmatmul.mubr.f32.gmra.mrb[0].mxu0 %v2215
      %v2383 = vpop.f32.mrb[0].mxu0
      %v2384 = vadd.f32 0.0, %v2383
      %v2385 = vpop.f32.mrb[0].mxu0
      %2386 = vmatprep.mubr.f32.mxu0 0.0
      %2387 = vmatmul.mubr.f32.gmra.mrb[0].mxu0 %v2218
      %v2388 = vpop.f32.mrb[0].mxu0
      %v2389 = vadd.f32 0.0, %v2388
      %v2390 = vpop.f32.mrb[0].mxu0
      %2391 = vmatprep.mubr.f32.mxu0 0.0
      %2392 = vmatmul.mubr.f32.gmra.mrb[0].mxu0 %v2221
      %v2393 = vpop.f32.mrb[0].mxu0
      %v2394 = vadd.f32 0.0, %v2393
      %v2395 = vpop.f32.mrb[0].mxu0
      %2396 = vmatprep.mubr.f32.mxu0 0.0
      %2397 = vmatmul.mubr.f32.gmra.mrb[0].mxu0 %v2224
      %v2398 = vpop.f32.mrb[0].mxu0
      %v2399 = vadd.f32 0.0, %v2398
      %v2400 = vpop.f32.mrb[0].mxu0
      %2401 = vmatprep.mubr.f32.mxu0 0.0
      %2402 = vmatmul.mubr.f32.gmra.mrb[0].mxu0 %v2227
      %v2403 = vpop.f32.mrb[0].mxu0
      %v2404 = vadd.f32 0.0, %v2403
      %v2405 = vpop.f32.mrb[0].mxu0
      %2406 = vmatprep.mubr.f32.mxu0 0.0
      %2407 = vmatmul.mubr.f32.gmra.mrb[0].mxu0 %v2230
      %v2408 = vpop.f32.mrb[0].mxu0
      %v2409 = vadd.f32 0.0, %v2408
      %v2410 = vpop.f32.mrb[0].mxu0
      %2411 = vmatprep.mubr.f32.mxu0 0.0
      %2412 = vmatmul.mubr.f32.gmra.mrb[0].mxu0 %v2233
      %v2413 = vpop.f32.mrb[0].mxu0
      %v2414 = vadd.f32 0.0, %v2413
      %v2415 = vpop.f32.mrb[0].mxu0
      %2416 = vmatprep.mubr.f32.mxu0 0.0
      %2417 = vmatmul.mubr.f32.gmra.mrb[0].mxu0 %v2236
      %v2418 = vpop.f32.mrb[0].mxu0
      %v2419 = vadd.f32 0.0, %v2418
      %v2420 = vpop.f32.mrb[0].mxu0
      %2421 = vmatprep.mubr.f32.mxu0 0.0
      %2422 = vmatmul.mubr.f32.gmra.mrb[0].mxu0 %v2239
      %v2423 = vpop.f32.mrb[0].mxu0
      %v2424 = vadd.f32 0.0, %v2423
      %v2425 = vpop.f32.mrb[0].mxu0
      %2426 = vmatprep.mubr.f32.mxu0 0.0
      %2427 = vmatmul.mubr.f32.gmra.mrb[0].mxu0 %v2242
      %v2428 = vpop.f32.mrb[0].mxu0
      %v2429 = vadd.f32 0.0, %v2428
      %v2430 = vpop.f32.mrb[0].mxu0
      %2431 = vmatprep.mubr.f32.mxu0 0.0
      %2432 = vmatmul.mubr.f32.gmra.mrb[0].mxu0 %v2245
      %v2433 = vpop.f32.mrb[0].mxu0
      %v2434 = vadd.f32 0.0, %v2433
      %v2435 = vpop.f32.mrb[0].mxu0
      %2436 = vmatprep.mubr.f32.mxu0 0.0
      %2437 = vmatmul.mubr.f32.gmra.mrb[0].mxu0 %v2248
      %v2438 = vpop.f32.mrb[0].mxu0
      %v2439 = vadd.f32 0.0, %v2438
      %v2440 = vpop.f32.mrb[0].mxu0
      %2441 = vmatprep.mubr.f32.mxu0 0.0
      %2442 = vmatmul.mubr.f32.gmra.mrb[0].mxu0 %v2251
      %v2443 = vpop.f32.mrb[0].mxu0
      %v2444 = vadd.f32 0.0, %v2443
      %v2445 = vpop.f32.mrb[0].mxu0
      %2446 = vmatprep.mubr.f32.mxu0 0.0
      %2447 = vmatmul.mubr.f32.gmra.mrb[0].mxu0 %v2254
      %v2448 = vpop.f32.mrb[0].mxu0
      %v2449 = vadd.f32 0.0, %v2448
      %v2450 = vpop.f32.mrb[0].mxu0
      %2451 = vmatprep.mubr.f32.mxu0 0.0
      %2452 = vmatmul.mubr.f32.gmra.mrb[0].mxu0 %v2257
      %v2453 = vpop.f32.mrb[0].mxu0
      %v2454 = vadd.f32 0.0, %v2453
      %v2455 = vpop.f32.mrb[0].mxu0
      %2456 = vmatprep.mubr.f32.mxu0 0.0
      %2457 = vmatmul.mubr.f32.gmra.mrb[0].mxu0 %v2260
      %v2458 = vpop.f32.mrb[0].mxu0
      %v2459 = vadd.f32 0.0, %v2458
      %v2460 = vpop.f32.mrb[0].mxu0
      %2461 = vmatprep.mubr.f32.mxu0 0.0
      %2462 = vmatmul.mubr.f32.gmra.mrb[0].mxu0 %v2263
      %v2463 = vpop.f32.mrb[0].mxu0
      %v2464 = vadd.f32 0.0, %v2463
      %v2465 = vpop.f32.mrb[0].mxu0
      %2466 = vmatprep.mubr.f32.mxu0 0.0
      %2467 = vmatmul.mubr.f32.gmra.mrb[0].mxu0 %v2266
      %v2468 = vpop.f32.mrb[0].mxu0
      %v2469 = vadd.f32 0.0, %v2468
      %v2470 = vpop.f32.mrb[0].mxu0
      %2471 = vmatprep.mubr.f32.mxu0 0.0
      %2472 = vmatmul.mubr.f32.gmra.mrb[0].mxu0 %v2269
      %v2473 = vpop.f32.mrb[0].mxu0
      %v2474 = vadd.f32 0.0, %v2473
      %v2475 = vpop.f32.mrb[0].mxu0
      %2476 = vmatprep.mubr.f32.mxu0 0.0
      %2477 = vmatmul.mubr.f32.gmra.mrb[0].mxu0 %v2272
      %v2478 = vpop.f32.mrb[0].mxu0
      %v2479 = vadd.f32 0.0, %v2478
      %v2480 = vpop.f32.mrb[0].mxu0
      %2481 = vmatprep.mubr.f32.mxu0 0.0
      %2482 = vmatmul.mubr.f32.gmra.mrb[0].mxu0 %v2275
      %v2483 = vpop.f32.mrb[0].mxu0
      %v2484 = vadd.f32 0.0, %v2483
      %v2485 = vpop.f32.mrb[0].mxu0
      %2486 = vmatprep.mubr.f32.mxu0 0.0
      %2487 = vmatmul.mubr.f32.gmra.mrb[0].mxu0 %v2278
      %v2488 = vpop.f32.mrb[0].mxu0
      %v2489 = vadd.f32 0.0, %v2488
      %v2490 = vpop.f32.mrb[0].mxu0
      %2491 = vmatprep.mubr.f32.mxu0 0.0
      %2492 = vmatmul.mubr.f32.gmra.mrb[0].mxu0 %v2281
      %v2493 = vpop.f32.mrb[0].mxu0
      %v2494 = vadd.f32 0.0, %v2493
      %v2495 = vpop.f32.mrb[0].mxu0
      %2496 = vmatprep.mubr.f32.mxu0 0.0
      %2497 = vmatmul.mubr.f32.gmra.mrb[0].mxu0 %v2284
      %v2498 = vpop.f32.mrb[0].mxu0
      %v2499 = vadd.f32 0.0, %v2498
      %v2500 = vpop.f32.mrb[0].mxu0
      %2501 = vmatprep.mubr.f32.mxu0 0.0
      %2502 = vmatmul.mubr.f32.gmra.mrb[0].mxu0 %v2287
      %v2503 = vpop.f32.mrb[0].mxu0
      %v2504 = vadd.f32 0.0, %v2503
      %v2505 = vpop.f32.mrb[0].mxu0
      %2506 = vmatprep.mubr.f32.mxu0 0.0
      %2507 = vmatmul.mubr.f32.gmra.mrb[0].mxu0 %v2290
      %v2508 = vpop.f32.mrb[0].mxu0
      %v2509 = vadd.f32 0.0, %v2508
      %v2510 = vpop.f32.mrb[0].mxu0
      %2511 = vmatprep.mubr.f32.mxu0 0.0
      %2512 = vmatmul.mubr.f32.gmra.mrb[0].mxu0 %v2293
      %v2513 = vpop.f32.mrb[0].mxu0
      %v2514 = vadd.f32 0.0, %v2513
      %v2515 = vpop.f32.mrb[0].mxu0
      %2516 = vmatprep.mubr.f32.mxu0 0.0
      %2517 = vmatmul.mubr.f32.gmra.mrb[0].mxu0 %v2296
      %v2518 = vpop.f32.mrb[0].mxu0
      %v2519 = vadd.f32 0.0, %v2518
      %v2520 = vpop.f32.mrb[0].mxu0
      %2521 = vmatprep.mubr.f32.mxu0 0.0
      %2522 = vmatmul.mubr.f32.gmra.mrb[0].mxu0 %v2299
      %v2523 = vpop.f32.mrb[0].mxu0
      %v2524 = vadd.f32 0.0, %v2523
      %v2525 = vpop.f32.mrb[0].mxu0
      %2526 = vmatprep.mubr.f32.mxu0 0.0
      %2527 = vmatmul.mubr.f32.gmra.mrb[0].mxu0 %v2302
      %v2528 = vpop.f32.mrb[0].mxu0
      %v2529 = vadd.f32 0.0, %v2528
      %v2530 = vpop.f32.mrb[0].mxu0
      %2531 = vdwg.mxu0
      %v2532 = vadd.f32 %v2142, %v2374
      %v2533 = vadd.f32 %v2143, %v2379
      %v2534 = vadd.f32 %v2144, %v2384
      %v2535 = vadd.f32 %v2145, %v2389
      %v2536 = vadd.f32 %v2146, %v2394
      %v2537 = vadd.f32 %v2147, %v2399
      %v2538 = vadd.f32 %v2148, %v2404
      %v2539 = vadd.f32 %v2149, %v2409
      %v2540 = vadd.f32 %v2150, %v2414
      %v2541 = vadd.f32 %v2151, %v2419
      %v2542 = vadd.f32 %v2152, %v2424
      %v2543 = vadd.f32 %v2153, %v2429
      %v2544 = vadd.f32 %v2154, %v2434
      %v2545 = vadd.f32 %v2155, %v2439
      %v2546 = vadd.f32 %v2156, %v2444
      %v2547 = vadd.f32 %v2157, %v2449
      %v2548 = vadd.f32 %v2158, %v2454
      %v2549 = vadd.f32 %v2159, %v2459
      %v2550 = vadd.f32 %v2160, %v2464
      %v2551 = vadd.f32 %v2161, %v2469
      %v2552 = vadd.f32 %v2162, %v2474
      %v2553 = vadd.f32 %v2163, %v2479
      %v2554 = vadd.f32 %v2164, %v2484
      %v2555 = vadd.f32 %v2165, %v2489
      %v2556 = vadd.f32 %v2166, %v2494
      %v2557 = vadd.f32 %v2167, %v2499
      %v2558 = vadd.f32 %v2168, %v2504
      %v2559 = vadd.f32 %v2169, %v2509
      %v2560 = vadd.f32 %v2170, %v2514
      %v2561 = vadd.f32 %v2171, %v2519
      %v2562 = vadd.f32 %v2172, %v2524
      %v2563 = vadd.f32 %v2173, %v2529
      %s2564 = scalar_lea.vmem [#allocation2], 48
      %v2565 = vld [vmem:[%s2564] sm:$0xff]
      %v2566 = vld [vmem:[%s2564 + $0x8] sm:$0xff]
      %v2567 = vld [vmem:[%s2564 + $0x18] sm:$0xff]
      %v2568 = vld [vmem:[%s2564 + $0x20] sm:$0xff]
      %v2569 = vld [vmem:[%s2564 + $0x30] sm:$0xff]
      %v2570 = vld [vmem:[%s2564 + $0x38] sm:$0xff]
      %v2571 = vld [vmem:[%s2564 + $0x48] sm:$0xff]
      %v2572 = vld [vmem:[%s2564 + $0x50] sm:$0xff]
      %v2573 = vld [vmem:[%s2564 + $0x60] sm:$0xff]
      %v2574 = vld [vmem:[%s2564 + $0x68] sm:$0xff]
      %v2575 = vld [vmem:[%s2564 + $0x78] sm:$0xff]
      %v2576 = vld [vmem:[%s2564 + $0x80] sm:$0xff]
      %v2577 = vld [vmem:[%s2564 + $0x90] sm:$0xff]
      %v2578 = vld [vmem:[%s2564 + $0x98] sm:$0xff]
      %v2579 = vld [vmem:[%s2564 + $0xa8] sm:$0xff]
      %v2580 = vld [vmem:[%s2564 + $0xb0] sm:$0xff]
      %v2581 = vld [vmem:[%s2564 + $0xc0] sm:$0xff]
      %v2582 = vld [vmem:[%s2564 + $0xc8] sm:$0xff]
      %v2583 = vld [vmem:[%s2564 + $0xd8] sm:$0xff]
      %v2584 = vld [vmem:[%s2564 + $0xe0] sm:$0xff]
      %v2585 = vld [vmem:[%s2564 + $0xf0] sm:$0xff]
      %v2586 = vld [vmem:[%s2564 + $0xf8] sm:$0xff]
      %v2587 = vld [vmem:[%s2564 + $0x108] sm:$0xff]
      %v2588 = vld [vmem:[%s2564 + $0x110] sm:$0xff]
      %v2589 = vld [vmem:[%s2564 + $0x120] sm:$0xff]
      %v2590 = vld [vmem:[%s2564 + $0x128] sm:$0xff]
      %v2591 = vld [vmem:[%s2564 + $0x138] sm:$0xff]
      %v2592 = vld [vmem:[%s2564 + $0x140] sm:$0xff]
      %v2593 = vld [vmem:[%s2564 + $0x150] sm:$0xff]
      %v2594 = vld [vmem:[%s2564 + $0x158] sm:$0xff]
      %v2595 = vld [vmem:[%s2564 + $0x168] sm:$0xff]
      %v2596 = vld [vmem:[%s2564 + $0x170] sm:$0xff]
      %s2597 = scalar_lea.vmem %s1, 24
      %v2598 = vld [vmem:[%s2597] sm:$0xf]
      %v2600 = vsel %vm214, %v2565, 0
      %v2603 = vsel %vm214, %v2566, 0
      %v2606 = vsel %vm214, %v2567, 0
      %v2609 = vsel %vm214, %v2568, 0
      %v2612 = vsel %vm214, %v2569, 0
      %v2615 = vsel %vm214, %v2570, 0
      %v2618 = vsel %vm214, %v2571, 0
      %v2621 = vsel %vm214, %v2572, 0
      %v2624 = vsel %vm214, %v2573, 0
      %v2627 = vsel %vm214, %v2574, 0
      %v2630 = vsel %vm214, %v2575, 0
      %v2633 = vsel %vm214, %v2576, 0
      %v2636 = vsel %vm214, %v2577, 0
      %v2639 = vsel %vm214, %v2578, 0
      %v2642 = vsel %vm214, %v2579, 0
      %v2645 = vsel %vm214, %v2580, 0
      %v2648 = vsel %vm214, %v2581, 0
      %v2651 = vsel %vm214, %v2582, 0
      %v2654 = vsel %vm214, %v2583, 0
      %v2657 = vsel %vm214, %v2584, 0
      %v2660 = vsel %vm214, %v2585, 0
      %v2663 = vsel %vm214, %v2586, 0
      %v2666 = vsel %vm214, %v2587, 0
      %v2669 = vsel %vm214, %v2588, 0
      %v2672 = vsel %vm214, %v2589, 0
      %v2675 = vsel %vm214, %v2590, 0
      %v2678 = vsel %vm214, %v2591, 0
      %v2681 = vsel %vm214, %v2592, 0
      %v2684 = vsel %vm214, %v2593, 0
      %v2687 = vsel %vm214, %v2594, 0
      %v2690 = vsel %vm214, %v2595, 0
      %v2693 = vsel %vm214, %v2596, 0
      %v2696 = vsel %vm451, %v2598, 0
      %2698 = vmatprep.subr.mxu0 0.0
      %2699 = vmatpush1.msra.mxu0 %v2696
      %2700 = vmatprep.subr.mxu0 0.0
      %2701 = vmatpush1.msra.mxu0 0.0
      %2702 = vmatprep.subr.mxu0 0.0
      %2703 = vmatpush1.msra.mxu0 0.0
      %2704 = vmatprep.subr.mxu0 0.0
      %2705 = vmatpush1.msra.mxu0 0.0
      %2706 = vmatprep.subr.mxu0 0.0
      %2707 = vmatpush1.msra.mxu0 0.0
      %2708 = vmatprep.subr.mxu0 0.0
      %2709 = vmatpush1.msra.mxu0 0.0
      %2710 = vmatprep.subr.mxu0 0.0
      %2711 = vmatpush1.msra.mxu0 0.0
      %2712 = vmatprep.subr.mxu0 0.0
      %2713 = vmatpush1.msra.mxu0 0.0
      %2714 = vmatprep.subr.mxu0 0.0
      %2715 = vmatpush1.msra.mxu0 0.0
      %2716 = vmatprep.subr.mxu0 0.0
      %2717 = vmatpush1.msra.mxu0 0.0
      %2718 = vmatprep.subr.mxu0 0.0
      %2719 = vmatpush1.msra.mxu0 0.0
      %2720 = vmatprep.subr.mxu0 0.0
      %2721 = vmatpush1.msra.mxu0 0.0
      %2722 = vmatprep.subr.mxu0 0.0
      %2723 = vmatpush1.msra.mxu0 0.0
      %2724 = vmatprep.subr.mxu0 0.0
      %2725 = vmatpush1.msra.mxu0 0.0
      %2726 = vmatprep.subr.mxu0 0.0
      %2727 = vmatpush1.msra.mxu0 0.0
      %2728 = vmatprep.subr.mxu0 0.0
      %2729 = vmatpush1.msra.mxu0 0.0
      %2730 = vmatprep.subr.mxu0 0.0
      %2731 = vmatpush1.msra.mxu0 0.0
      %2732 = vmatprep.subr.mxu0 0.0
      %2733 = vmatpush1.msra.mxu0 0.0
      %2734 = vmatprep.subr.mxu0 0.0
      %2735 = vmatpush1.msra.mxu0 0.0
      %2736 = vmatprep.subr.mxu0 0.0
      %2737 = vmatpush1.msra.mxu0 0.0
      %2738 = vmatprep.subr.mxu0 0.0
      %2739 = vmatpush1.msra.mxu0 0.0
      %2740 = vmatprep.subr.mxu0 0.0
      %2741 = vmatpush1.msra.mxu0 0.0
      %2742 = vmatprep.subr.mxu0 0.0
      %2743 = vmatpush1.msra.mxu0 0.0
      %2744 = vmatprep.subr.mxu0 0.0
      %2745 = vmatpush1.msra.mxu0 0.0
      %2746 = vmatprep.subr.mxu0 0.0
      %2747 = vmatpush1.msra.mxu0 0.0
      %2748 = vmatprep.subr.mxu0 0.0
      %2749 = vmatpush1.msra.mxu0 0.0
      %2750 = vmatprep.subr.mxu0 0.0
      %2751 = vmatpush1.msra.mxu0 0.0
      %2752 = vmatprep.subr.mxu0 0.0
      %2753 = vmatpush1.msra.mxu0 0.0
      %2754 = vmatprep.subr.mxu0 0.0
      %2755 = vmatpush1.msra.mxu0 0.0
      %2756 = vmatprep.subr.mxu0 0.0
      %2757 = vmatpush1.msra.mxu0 0.0
      %2758 = vmatprep.subr.mxu0 0.0
      %2759 = vmatpush1.msra.mxu0 0.0
      %2760 = vmatprep.subr.mxu0 0.0
      %2761 = vmatpush1.msra.mxu0 0.0
      %2762 = vmatprep.mubr.f32.mxu0 0.0
      %2763 = vmatmul.mubr.f32.gmra.mrb[0].mxu0 %v2600
      %v2764 = vpop.f32.mrb[0].mxu0
      %v2765 = vadd.f32 0.0, %v2764
      %v2766 = vpop.f32.mrb[0].mxu0
      %2767 = vmatprep.mubr.f32.mxu0 0.0
      %2768 = vmatmul.mubr.f32.gmra.mrb[0].mxu0 %v2603
      %v2769 = vpop.f32.mrb[0].mxu0
      %v2770 = vadd.f32 0.0, %v2769
      %v2771 = vpop.f32.mrb[0].mxu0
      %2772 = vmatprep.mubr.f32.mxu0 0.0
      %2773 = vmatmul.mubr.f32.gmra.mrb[0].mxu0 %v2606
      %v2774 = vpop.f32.mrb[0].mxu0
      %v2775 = vadd.f32 0.0, %v2774
      %v2776 = vpop.f32.mrb[0].mxu0
      %2777 = vmatprep.mubr.f32.mxu0 0.0
      %2778 = vmatmul.mubr.f32.gmra.mrb[0].mxu0 %v2609
      %v2779 = vpop.f32.mrb[0].mxu0
      %v2780 = vadd.f32 0.0, %v2779
      %v2781 = vpop.f32.mrb[0].mxu0
      %2782 = vmatprep.mubr.f32.mxu0 0.0
      %2783 = vmatmul.mubr.f32.gmra.mrb[0].mxu0 %v2612
      %v2784 = vpop.f32.mrb[0].mxu0
      %v2785 = vadd.f32 0.0, %v2784
      %v2786 = vpop.f32.mrb[0].mxu0
      %2787 = vmatprep.mubr.f32.mxu0 0.0
      %2788 = vmatmul.mubr.f32.gmra.mrb[0].mxu0 %v2615
      %v2789 = vpop.f32.mrb[0].mxu0
      %v2790 = vadd.f32 0.0, %v2789
      %v2791 = vpop.f32.mrb[0].mxu0
      %2792 = vmatprep.mubr.f32.mxu0 0.0
      %2793 = vmatmul.mubr.f32.gmra.mrb[0].mxu0 %v2618
      %v2794 = vpop.f32.mrb[0].mxu0
      %v2795 = vadd.f32 0.0, %v2794
      %v2796 = vpop.f32.mrb[0].mxu0
      %2797 = vmatprep.mubr.f32.mxu0 0.0
      %2798 = vmatmul.mubr.f32.gmra.mrb[0].mxu0 %v2621
      %v2799 = vpop.f32.mrb[0].mxu0
      %v2800 = vadd.f32 0.0, %v2799
      %v2801 = vpop.f32.mrb[0].mxu0
      %2802 = vmatprep.mubr.f32.mxu0 0.0
      %2803 = vmatmul.mubr.f32.gmra.mrb[0].mxu0 %v2624
      %v2804 = vpop.f32.mrb[0].mxu0
      %v2805 = vadd.f32 0.0, %v2804
      %v2806 = vpop.f32.mrb[0].mxu0
      %2807 = vmatprep.mubr.f32.mxu0 0.0
      %2808 = vmatmul.mubr.f32.gmra.mrb[0].mxu0 %v2627
      %v2809 = vpop.f32.mrb[0].mxu0
      %v2810 = vadd.f32 0.0, %v2809
      %v2811 = vpop.f32.mrb[0].mxu0
      %2812 = vmatprep.mubr.f32.mxu0 0.0
      %2813 = vmatmul.mubr.f32.gmra.mrb[0].mxu0 %v2630
      %v2814 = vpop.f32.mrb[0].mxu0
      %v2815 = vadd.f32 0.0, %v2814
      %v2816 = vpop.f32.mrb[0].mxu0
      %2817 = vmatprep.mubr.f32.mxu0 0.0
      %2818 = vmatmul.mubr.f32.gmra.mrb[0].mxu0 %v2633
      %v2819 = vpop.f32.mrb[0].mxu0
      %v2820 = vadd.f32 0.0, %v2819
      %v2821 = vpop.f32.mrb[0].mxu0
      %2822 = vmatprep.mubr.f32.mxu0 0.0
      %2823 = vmatmul.mubr.f32.gmra.mrb[0].mxu0 %v2636
      %v2824 = vpop.f32.mrb[0].mxu0
      %v2825 = vadd.f32 0.0, %v2824
      %v2826 = vpop.f32.mrb[0].mxu0
      %2827 = vmatprep.mubr.f32.mxu0 0.0
      %2828 = vmatmul.mubr.f32.gmra.mrb[0].mxu0 %v2639
      %v2829 = vpop.f32.mrb[0].mxu0
      %v2830 = vadd.f32 0.0, %v2829
      %v2831 = vpop.f32.mrb[0].mxu0
      %2832 = vmatprep.mubr.f32.mxu0 0.0
      %2833 = vmatmul.mubr.f32.gmra.mrb[0].mxu0 %v2642
      %v2834 = vpop.f32.mrb[0].mxu0
      %v2835 = vadd.f32 0.0, %v2834
      %v2836 = vpop.f32.mrb[0].mxu0
      %2837 = vmatprep.mubr.f32.mxu0 0.0
      %2838 = vmatmul.mubr.f32.gmra.mrb[0].mxu0 %v2645
      %v2839 = vpop.f32.mrb[0].mxu0
      %v2840 = vadd.f32 0.0, %v2839
      %v2841 = vpop.f32.mrb[0].mxu0
      %2842 = vmatprep.mubr.f32.mxu0 0.0
      %2843 = vmatmul.mubr.f32.gmra.mrb[0].mxu0 %v2648
      %v2844 = vpop.f32.mrb[0].mxu0
      %v2845 = vadd.f32 0.0, %v2844
      %v2846 = vpop.f32.mrb[0].mxu0
      %2847 = vmatprep.mubr.f32.mxu0 0.0
      %2848 = vmatmul.mubr.f32.gmra.mrb[0].mxu0 %v2651
      %v2849 = vpop.f32.mrb[0].mxu0
      %v2850 = vadd.f32 0.0, %v2849
      %v2851 = vpop.f32.mrb[0].mxu0
      %2852 = vmatprep.mubr.f32.mxu0 0.0
      %2853 = vmatmul.mubr.f32.gmra.mrb[0].mxu0 %v2654
      %v2854 = vpop.f32.mrb[0].mxu0
      %v2855 = vadd.f32 0.0, %v2854
      %v2856 = vpop.f32.mrb[0].mxu0
      %2857 = vmatprep.mubr.f32.mxu0 0.0
      %2858 = vmatmul.mubr.f32.gmra.mrb[0].mxu0 %v2657
      %v2859 = vpop.f32.mrb[0].mxu0
      %v2860 = vadd.f32 0.0, %v2859
      %v2861 = vpop.f32.mrb[0].mxu0
      %2862 = vmatprep.mubr.f32.mxu0 0.0
      %2863 = vmatmul.mubr.f32.gmra.mrb[0].mxu0 %v2660
      %v2864 = vpop.f32.mrb[0].mxu0
      %v2865 = vadd.f32 0.0, %v2864
      %v2866 = vpop.f32.mrb[0].mxu0
      %2867 = vmatprep.mubr.f32.mxu0 0.0
      %2868 = vmatmul.mubr.f32.gmra.mrb[0].mxu0 %v2663
      %v2869 = vpop.f32.mrb[0].mxu0
      %v2870 = vadd.f32 0.0, %v2869
      %v2871 = vpop.f32.mrb[0].mxu0
      %2872 = vmatprep.mubr.f32.mxu0 0.0
      %2873 = vmatmul.mubr.f32.gmra.mrb[0].mxu0 %v2666
      %v2874 = vpop.f32.mrb[0].mxu0
      %v2875 = vadd.f32 0.0, %v2874
      %v2876 = vpop.f32.mrb[0].mxu0
      %2877 = vmatprep.mubr.f32.mxu0 0.0
      %2878 = vmatmul.mubr.f32.gmra.mrb[0].mxu0 %v2669
      %v2879 = vpop.f32.mrb[0].mxu0
      %v2880 = vadd.f32 0.0, %v2879
      %v2881 = vpop.f32.mrb[0].mxu0
      %2882 = vmatprep.mubr.f32.mxu0 0.0
      %2883 = vmatmul.mubr.f32.gmra.mrb[0].mxu0 %v2672
      %v2884 = vpop.f32.mrb[0].mxu0
      %v2885 = vadd.f32 0.0, %v2884
      %v2886 = vpop.f32.mrb[0].mxu0
      %2887 = vmatprep.mubr.f32.mxu0 0.0
      %2888 = vmatmul.mubr.f32.gmra.mrb[0].mxu0 %v2675
      %v2889 = vpop.f32.mrb[0].mxu0
      %v2890 = vadd.f32 0.0, %v2889
      %v2891 = vpop.f32.mrb[0].mxu0
      %2892 = vmatprep.mubr.f32.mxu0 0.0
      %2893 = vmatmul.mubr.f32.gmra.mrb[0].mxu0 %v2678
      %v2894 = vpop.f32.mrb[0].mxu0
      %v2895 = vadd.f32 0.0, %v2894
      %v2896 = vpop.f32.mrb[0].mxu0
      %2897 = vmatprep.mubr.f32.mxu0 0.0
      %2898 = vmatmul.mubr.f32.gmra.mrb[0].mxu0 %v2681
      %v2899 = vpop.f32.mrb[0].mxu0
      %v2900 = vadd.f32 0.0, %v2899
      %v2901 = vpop.f32.mrb[0].mxu0
      %2902 = vmatprep.mubr.f32.mxu0 0.0
      %2903 = vmatmul.mubr.f32.gmra.mrb[0].mxu0 %v2684
      %v2904 = vpop.f32.mrb[0].mxu0
      %v2905 = vadd.f32 0.0, %v2904
      %v2906 = vpop.f32.mrb[0].mxu0
      %2907 = vmatprep.mubr.f32.mxu0 0.0
      %2908 = vmatmul.mubr.f32.gmra.mrb[0].mxu0 %v2687
      %v2909 = vpop.f32.mrb[0].mxu0
      %v2910 = vadd.f32 0.0, %v2909
      %v2911 = vpop.f32.mrb[0].mxu0
      %2912 = vmatprep.mubr.f32.mxu0 0.0
      %2913 = vmatmul.mubr.f32.gmra.mrb[0].mxu0 %v2690
      %v2914 = vpop.f32.mrb[0].mxu0
      %v2915 = vadd.f32 0.0, %v2914
      %v2916 = vpop.f32.mrb[0].mxu0
      %2917 = vmatprep.mubr.f32.mxu0 0.0
      %2918 = vmatmul.mubr.f32.gmra.mrb[0].mxu0 %v2693
      %v2919 = vpop.f32.mrb[0].mxu0
      %v2920 = vadd.f32 0.0, %v2919
      %v2921 = vpop.f32.mrb[0].mxu0
      %2922 = vdwg.mxu0
      %v2923 = vadd.f32 %v2532, %v2765
      %v2924 = vadd.f32 %v2533, %v2770
      %v2925 = vadd.f32 %v2534, %v2775
      %v2926 = vadd.f32 %v2535, %v2780
      %v2927 = vadd.f32 %v2536, %v2785
      %v2928 = vadd.f32 %v2537, %v2790
      %v2929 = vadd.f32 %v2538, %v2795
      %v2930 = vadd.f32 %v2539, %v2800
      %v2931 = vadd.f32 %v2540, %v2805
      %v2932 = vadd.f32 %v2541, %v2810
      %v2933 = vadd.f32 %v2542, %v2815
      %v2934 = vadd.f32 %v2543, %v2820
      %v2935 = vadd.f32 %v2544, %v2825
      %v2936 = vadd.f32 %v2545, %v2830
      %v2937 = vadd.f32 %v2546, %v2835
      %v2938 = vadd.f32 %v2547, %v2840
      %v2939 = vadd.f32 %v2548, %v2845
      %v2940 = vadd.f32 %v2549, %v2850
      %v2941 = vadd.f32 %v2550, %v2855
      %v2942 = vadd.f32 %v2551, %v2860
      %v2943 = vadd.f32 %v2552, %v2865
      %v2944 = vadd.f32 %v2553, %v2870
      %v2945 = vadd.f32 %v2554, %v2875
      %v2946 = vadd.f32 %v2555, %v2880
      %v2947 = vadd.f32 %v2556, %v2885
      %v2948 = vadd.f32 %v2557, %v2890
      %v2949 = vadd.f32 %v2558, %v2895
      %v2950 = vadd.f32 %v2559, %v2900
      %v2951 = vadd.f32 %v2560, %v2905
      %v2952 = vadd.f32 %v2561, %v2910
      %v2953 = vadd.f32 %v2562, %v2915
      %v2954 = vadd.f32 %v2563, %v2920
      %v2955 = vld [vmem:[%s2564 + $0x1] sm:$0xff]
      %v2956 = vld [vmem:[%s2564 + $0x9] sm:$0xff]
      %v2957 = vld [vmem:[%s2564 + $0x19] sm:$0xff]
      %v2958 = vld [vmem:[%s2564 + $0x21] sm:$0xff]
      %v2959 = vld [vmem:[%s2564 + $0x31] sm:$0xff]
      %v2960 = vld [vmem:[%s2564 + $0x39] sm:$0xff]
      %v2961 = vld [vmem:[%s2564 + $0x49] sm:$0xff]
      %v2962 = vld [vmem:[%s2564 + $0x51] sm:$0xff]
      %v2963 = vld [vmem:[%s2564 + $0x61] sm:$0xff]
      %v2964 = vld [vmem:[%s2564 + $0x69] sm:$0xff]
      %v2965 = vld [vmem:[%s2564 + $0x79] sm:$0xff]
      %v2966 = vld [vmem:[%s2564 + $0x81] sm:$0xff]
      %v2967 = vld [vmem:[%s2564 + $0x91] sm:$0xff]
      %v2968 = vld [vmem:[%s2564 + $0x99] sm:$0xff]
      %v2969 = vld [vmem:[%s2564 + $0xa9] sm:$0xff]
      %v2970 = vld [vmem:[%s2564 + $0xb1] sm:$0xff]
      %v2971 = vld [vmem:[%s2564 + $0xc1] sm:$0xff]
      %v2972 = vld [vmem:[%s2564 + $0xc9] sm:$0xff]
      %v2973 = vld [vmem:[%s2564 + $0xd9] sm:$0xff]
      %v2974 = vld [vmem:[%s2564 + $0xe1] sm:$0xff]
      %v2975 = vld [vmem:[%s2564 + $0xf1] sm:$0xff]
      %v2976 = vld [vmem:[%s2564 + $0xf9] sm:$0xff]
      %v2977 = vld [vmem:[%s2564 + $0x109] sm:$0xff]
      %v2978 = vld [vmem:[%s2564 + $0x111] sm:$0xff]
      %v2979 = vld [vmem:[%s2564 + $0x121] sm:$0xff]
      %v2980 = vld [vmem:[%s2564 + $0x129] sm:$0xff]
      %v2981 = vld [vmem:[%s2564 + $0x139] sm:$0xff]
      %v2982 = vld [vmem:[%s2564 + $0x141] sm:$0xff]
      %v2983 = vld [vmem:[%s2564 + $0x151] sm:$0xff]
      %v2984 = vld [vmem:[%s2564 + $0x159] sm:$0xff]
      %v2985 = vld [vmem:[%s2564 + $0x169] sm:$0xff]
      %v2986 = vld [vmem:[%s2564 + $0x171] sm:$0xff]
      %s2987 = scalar_lea.vmem %s1, 28
      %v2988 = vld [vmem:[%s2987] sm:$0xf]
      %v2990 = vsel %vm214, %v2955, 0
      %v2993 = vsel %vm214, %v2956, 0
      %v2996 = vsel %vm214, %v2957, 0
      %v2999 = vsel %vm214, %v2958, 0
      %v3002 = vsel %vm214, %v2959, 0
      %v3005 = vsel %vm214, %v2960, 0
      %v3008 = vsel %vm214, %v2961, 0
      %v3011 = vsel %vm214, %v2962, 0
      %v3014 = vsel %vm214, %v2963, 0
      %v3017 = vsel %vm214, %v2964, 0
      %v3020 = vsel %vm214, %v2965, 0
      %v3023 = vsel %vm214, %v2966, 0
      %v3026 = vsel %vm214, %v2967, 0
      %v3029 = vsel %vm214, %v2968, 0
      %v3032 = vsel %vm214, %v2969, 0
      %v3035 = vsel %vm214, %v2970, 0
      %v3038 = vsel %vm214, %v2971, 0
      %v3041 = vsel %vm214, %v2972, 0
      %v3044 = vsel %vm214, %v2973, 0
      %v3047 = vsel %vm214, %v2974, 0
      %v3050 = vsel %vm214, %v2975, 0
      %v3053 = vsel %vm214, %v2976, 0
      %v3056 = vsel %vm214, %v2977, 0
      %v3059 = vsel %vm214, %v2978, 0
      %v3062 = vsel %vm214, %v2979, 0
      %v3065 = vsel %vm214, %v2980, 0
      %v3068 = vsel %vm214, %v2981, 0
      %v3071 = vsel %vm214, %v2982, 0
      %v3074 = vsel %vm214, %v2983, 0
      %v3077 = vsel %vm214, %v2984, 0
      %v3080 = vsel %vm214, %v2985, 0
      %v3083 = vsel %vm214, %v2986, 0
      %v3086 = vsel %vm451, %v2988, 0
      %3088 = vmatprep.subr.mxu0 0.0
      %3089 = vmatpush1.msra.mxu0 %v3086
      %3090 = vmatprep.subr.mxu0 0.0
      %3091 = vmatpush1.msra.mxu0 0.0
      %3092 = vmatprep.subr.mxu0 0.0
      %3093 = vmatpush1.msra.mxu0 0.0
      %3094 = vmatprep.subr.mxu0 0.0
      %3095 = vmatpush1.msra.mxu0 0.0
      %3096 = vmatprep.subr.mxu0 0.0
      %3097 = vmatpush1.msra.mxu0 0.0
      %3098 = vmatprep.subr.mxu0 0.0
      %3099 = vmatpush1.msra.mxu0 0.0
      %3100 = vmatprep.subr.mxu0 0.0
      %3101 = vmatpush1.msra.mxu0 0.0
      %3102 = vmatprep.subr.mxu0 0.0
      %3103 = vmatpush1.msra.mxu0 0.0
      %3104 = vmatprep.subr.mxu0 0.0
      %3105 = vmatpush1.msra.mxu0 0.0
      %3106 = vmatprep.subr.mxu0 0.0
      %3107 = vmatpush1.msra.mxu0 0.0
      %3108 = vmatprep.subr.mxu0 0.0
      %3109 = vmatpush1.msra.mxu0 0.0
      %3110 = vmatprep.subr.mxu0 0.0
      %3111 = vmatpush1.msra.mxu0 0.0
      %3112 = vmatprep.subr.mxu0 0.0
      %3113 = vmatpush1.msra.mxu0 0.0
      %3114 = vmatprep.subr.mxu0 0.0
      %3115 = vmatpush1.msra.mxu0 0.0
      %3116 = vmatprep.subr.mxu0 0.0
      %3117 = vmatpush1.msra.mxu0 0.0
      %3118 = vmatprep.subr.mxu0 0.0
      %3119 = vmatpush1.msra.mxu0 0.0
      %3120 = vmatprep.subr.mxu0 0.0
      %3121 = vmatpush1.msra.mxu0 0.0
      %3122 = vmatprep.subr.mxu0 0.0
      %3123 = vmatpush1.msra.mxu0 0.0
      %3124 = vmatprep.subr.mxu0 0.0
      %3125 = vmatpush1.msra.mxu0 0.0
      %3126 = vmatprep.subr.mxu0 0.0
      %3127 = vmatpush1.msra.mxu0 0.0
      %3128 = vmatprep.subr.mxu0 0.0
      %3129 = vmatpush1.msra.mxu0 0.0
      %3130 = vmatprep.subr.mxu0 0.0
      %3131 = vmatpush1.msra.mxu0 0.0
      %3132 = vmatprep.subr.mxu0 0.0
      %3133 = vmatpush1.msra.mxu0 0.0
      %3134 = vmatprep.subr.mxu0 0.0
      %3135 = vmatpush1.msra.mxu0 0.0
      %3136 = vmatprep.subr.mxu0 0.0
      %3137 = vmatpush1.msra.mxu0 0.0
      %3138 = vmatprep.subr.mxu0 0.0
      %3139 = vmatpush1.msra.mxu0 0.0
      %3140 = vmatprep.subr.mxu0 0.0
      %3141 = vmatpush1.msra.mxu0 0.0
      %3142 = vmatprep.subr.mxu0 0.0
      %3143 = vmatpush1.msra.mxu0 0.0
      %3144 = vmatprep.subr.mxu0 0.0
      %3145 = vmatpush1.msra.mxu0 0.0
      %3146 = vmatprep.subr.mxu0 0.0
      %3147 = vmatpush1.msra.mxu0 0.0
      %3148 = vmatprep.subr.mxu0 0.0
      %3149 = vmatpush1.msra.mxu0 0.0
      %3150 = vmatprep.subr.mxu0 0.0
      %3151 = vmatpush1.msra.mxu0 0.0
      %3152 = vmatprep.mubr.f32.mxu0 0.0
      %3153 = vmatmul.mubr.f32.gmra.mrb[0].mxu0 %v2990
      %v3154 = vpop.f32.mrb[0].mxu0
      %v3155 = vadd.f32 0.0, %v3154
      %v3156 = vpop.f32.mrb[0].mxu0
      %3157 = vmatprep.mubr.f32.mxu0 0.0
      %3158 = vmatmul.mubr.f32.gmra.mrb[0].mxu0 %v2993
      %v3159 = vpop.f32.mrb[0].mxu0
      %v3160 = vadd.f32 0.0, %v3159
      %v3161 = vpop.f32.mrb[0].mxu0
      %3162 = vmatprep.mubr.f32.mxu0 0.0
      %3163 = vmatmul.mubr.f32.gmra.mrb[0].mxu0 %v2996
      %v3164 = vpop.f32.mrb[0].mxu0
      %v3165 = vadd.f32 0.0, %v3164
      %v3166 = vpop.f32.mrb[0].mxu0
      %3167 = vmatprep.mubr.f32.mxu0 0.0
      %3168 = vmatmul.mubr.f32.gmra.mrb[0].mxu0 %v2999
      %v3169 = vpop.f32.mrb[0].mxu0
      %v3170 = vadd.f32 0.0, %v3169
      %v3171 = vpop.f32.mrb[0].mxu0
      %3172 = vmatprep.mubr.f32.mxu0 0.0
      %3173 = vmatmul.mubr.f32.gmra.mrb[0].mxu0 %v3002
      %v3174 = vpop.f32.mrb[0].mxu0
      %v3175 = vadd.f32 0.0, %v3174
      %v3176 = vpop.f32.mrb[0].mxu0
      %3177 = vmatprep.mubr.f32.mxu0 0.0
      %3178 = vmatmul.mubr.f32.gmra.mrb[0].mxu0 %v3005
      %v3179 = vpop.f32.mrb[0].mxu0
      %v3180 = vadd.f32 0.0, %v3179
      %v3181 = vpop.f32.mrb[0].mxu0
      %3182 = vmatprep.mubr.f32.mxu0 0.0
      %3183 = vmatmul.mubr.f32.gmra.mrb[0].mxu0 %v3008
      %v3184 = vpop.f32.mrb[0].mxu0
      %v3185 = vadd.f32 0.0, %v3184
      %v3186 = vpop.f32.mrb[0].mxu0
      %3187 = vmatprep.mubr.f32.mxu0 0.0
      %3188 = vmatmul.mubr.f32.gmra.mrb[0].mxu0 %v3011
      %v3189 = vpop.f32.mrb[0].mxu0
      %v3190 = vadd.f32 0.0, %v3189
      %v3191 = vpop.f32.mrb[0].mxu0
      %3192 = vmatprep.mubr.f32.mxu0 0.0
      %3193 = vmatmul.mubr.f32.gmra.mrb[0].mxu0 %v3014
      %v3194 = vpop.f32.mrb[0].mxu0
      %v3195 = vadd.f32 0.0, %v3194
      %v3196 = vpop.f32.mrb[0].mxu0
      %3197 = vmatprep.mubr.f32.mxu0 0.0
      %3198 = vmatmul.mubr.f32.gmra.mrb[0].mxu0 %v3017
      %v3199 = vpop.f32.mrb[0].mxu0
      %v3200 = vadd.f32 0.0, %v3199
      %v3201 = vpop.f32.mrb[0].mxu0
      %3202 = vmatprep.mubr.f32.mxu0 0.0
      %3203 = vmatmul.mubr.f32.gmra.mrb[0].mxu0 %v3020
      %v3204 = vpop.f32.mrb[0].mxu0
      %v3205 = vadd.f32 0.0, %v3204
      %v3206 = vpop.f32.mrb[0].mxu0
      %3207 = vmatprep.mubr.f32.mxu0 0.0
      %3208 = vmatmul.mubr.f32.gmra.mrb[0].mxu0 %v3023
      %v3209 = vpop.f32.mrb[0].mxu0
      %v3210 = vadd.f32 0.0, %v3209
      %v3211 = vpop.f32.mrb[0].mxu0
      %3212 = vmatprep.mubr.f32.mxu0 0.0
      %3213 = vmatmul.mubr.f32.gmra.mrb[0].mxu0 %v3026
      %v3214 = vpop.f32.mrb[0].mxu0
      %v3215 = vadd.f32 0.0, %v3214
      %v3216 = vpop.f32.mrb[0].mxu0
      %3217 = vmatprep.mubr.f32.mxu0 0.0
      %3218 = vmatmul.mubr.f32.gmra.mrb[0].mxu0 %v3029
      %v3219 = vpop.f32.mrb[0].mxu0
      %v3220 = vadd.f32 0.0, %v3219
      %v3221 = vpop.f32.mrb[0].mxu0
      %3222 = vmatprep.mubr.f32.mxu0 0.0
      %3223 = vmatmul.mubr.f32.gmra.mrb[0].mxu0 %v3032
      %v3224 = vpop.f32.mrb[0].mxu0
      %v3225 = vadd.f32 0.0, %v3224
      %v3226 = vpop.f32.mrb[0].mxu0
      %3227 = vmatprep.mubr.f32.mxu0 0.0
      %3228 = vmatmul.mubr.f32.gmra.mrb[0].mxu0 %v3035
      %v3229 = vpop.f32.mrb[0].mxu0
      %v3230 = vadd.f32 0.0, %v3229
      %v3231 = vpop.f32.mrb[0].mxu0
      %3232 = vmatprep.mubr.f32.mxu0 0.0
      %3233 = vmatmul.mubr.f32.gmra.mrb[0].mxu0 %v3038
      %v3234 = vpop.f32.mrb[0].mxu0
      %v3235 = vadd.f32 0.0, %v3234
      %v3236 = vpop.f32.mrb[0].mxu0
      %3237 = vmatprep.mubr.f32.mxu0 0.0
      %3238 = vmatmul.mubr.f32.gmra.mrb[0].mxu0 %v3041
      %v3239 = vpop.f32.mrb[0].mxu0
      %v3240 = vadd.f32 0.0, %v3239
      %v3241 = vpop.f32.mrb[0].mxu0
      %3242 = vmatprep.mubr.f32.mxu0 0.0
      %3243 = vmatmul.mubr.f32.gmra.mrb[0].mxu0 %v3044
      %v3244 = vpop.f32.mrb[0].mxu0
      %v3245 = vadd.f32 0.0, %v3244
      %v3246 = vpop.f32.mrb[0].mxu0
      %3247 = vmatprep.mubr.f32.mxu0 0.0
      %3248 = vmatmul.mubr.f32.gmra.mrb[0].mxu0 %v3047
      %v3249 = vpop.f32.mrb[0].mxu0
      %v3250 = vadd.f32 0.0, %v3249
      %v3251 = vpop.f32.mrb[0].mxu0
      %3252 = vmatprep.mubr.f32.mxu0 0.0
      %3253 = vmatmul.mubr.f32.gmra.mrb[0].mxu0 %v3050
      %v3254 = vpop.f32.mrb[0].mxu0
      %v3255 = vadd.f32 0.0, %v3254
      %v3256 = vpop.f32.mrb[0].mxu0
      %3257 = vmatprep.mubr.f32.mxu0 0.0
      %3258 = vmatmul.mubr.f32.gmra.mrb[0].mxu0 %v3053
      %v3259 = vpop.f32.mrb[0].mxu0
      %v3260 = vadd.f32 0.0, %v3259
      %v3261 = vpop.f32.mrb[0].mxu0
      %3262 = vmatprep.mubr.f32.mxu0 0.0
      %3263 = vmatmul.mubr.f32.gmra.mrb[0].mxu0 %v3056
      %v3264 = vpop.f32.mrb[0].mxu0
      %v3265 = vadd.f32 0.0, %v3264
      %v3266 = vpop.f32.mrb[0].mxu0
      %3267 = vmatprep.mubr.f32.mxu0 0.0
      %3268 = vmatmul.mubr.f32.gmra.mrb[0].mxu0 %v3059
      %v3269 = vpop.f32.mrb[0].mxu0
      %v3270 = vadd.f32 0.0, %v3269
      %v3271 = vpop.f32.mrb[0].mxu0
      %3272 = vmatprep.mubr.f32.mxu0 0.0
      %3273 = vmatmul.mubr.f32.gmra.mrb[0].mxu0 %v3062
      %v3274 = vpop.f32.mrb[0].mxu0
      %v3275 = vadd.f32 0.0, %v3274
      %v3276 = vpop.f32.mrb[0].mxu0
      %3277 = vmatprep.mubr.f32.mxu0 0.0
      %3278 = vmatmul.mubr.f32.gmra.mrb[0].mxu0 %v3065
      %v3279 = vpop.f32.mrb[0].mxu0
      %v3280 = vadd.f32 0.0, %v3279
      %v3281 = vpop.f32.mrb[0].mxu0
      %3282 = vmatprep.mubr.f32.mxu0 0.0
      %3283 = vmatmul.mubr.f32.gmra.mrb[0].mxu0 %v3068
      %v3284 = vpop.f32.mrb[0].mxu0
      %v3285 = vadd.f32 0.0, %v3284
      %v3286 = vpop.f32.mrb[0].mxu0
      %3287 = vmatprep.mubr.f32.mxu0 0.0
      %3288 = vmatmul.mubr.f32.gmra.mrb[0].mxu0 %v3071
      %v3289 = vpop.f32.mrb[0].mxu0
      %v3290 = vadd.f32 0.0, %v3289
      %v3291 = vpop.f32.mrb[0].mxu0
      %3292 = vmatprep.mubr.f32.mxu0 0.0
      %3293 = vmatmul.mubr.f32.gmra.mrb[0].mxu0 %v3074
      %v3294 = vpop.f32.mrb[0].mxu0
      %v3295 = vadd.f32 0.0, %v3294
      %v3296 = vpop.f32.mrb[0].mxu0
      %3297 = vmatprep.mubr.f32.mxu0 0.0
      %3298 = vmatmul.mubr.f32.gmra.mrb[0].mxu0 %v3077
      %v3299 = vpop.f32.mrb[0].mxu0
      %v3300 = vadd.f32 0.0, %v3299
      %v3301 = vpop.f32.mrb[0].mxu0
      %3302 = vmatprep.mubr.f32.mxu0 0.0
      %3303 = vmatmul.mubr.f32.gmra.mrb[0].mxu0 %v3080
      %v3304 = vpop.f32.mrb[0].mxu0
      %v3305 = vadd.f32 0.0, %v3304
      %v3306 = vpop.f32.mrb[0].mxu0
      %3307 = vmatprep.mubr.f32.mxu0 0.0
      %3308 = vmatmul.mubr.f32.gmra.mrb[0].mxu0 %v3083
      %v3309 = vpop.f32.mrb[0].mxu0
      %v3310 = vadd.f32 0.0, %v3309
      %v3311 = vpop.f32.mrb[0].mxu0
      %3312 = vdwg.mxu0
      %v3313 = vadd.f32 %v2923, %v3155
      %v3314 = vadd.f32 %v2924, %v3160
      %v3315 = vadd.f32 %v2925, %v3165
      %v3316 = vadd.f32 %v2926, %v3170
      %v3317 = vadd.f32 %v2927, %v3175
      %v3318 = vadd.f32 %v2928, %v3180
      %v3319 = vadd.f32 %v2929, %v3185
      %v3320 = vadd.f32 %v2930, %v3190
      %v3321 = vadd.f32 %v2931, %v3195
      %v3322 = vadd.f32 %v2932, %v3200
      %v3323 = vadd.f32 %v2933, %v3205
      %v3324 = vadd.f32 %v2934, %v3210
      %v3325 = vadd.f32 %v2935, %v3215
      %v3326 = vadd.f32 %v2936, %v3220
      %v3327 = vadd.f32 %v2937, %v3225
      %v3328 = vadd.f32 %v2938, %v3230
      %v3329 = vadd.f32 %v2939, %v3235
      %v3330 = vadd.f32 %v2940, %v3240
      %v3331 = vadd.f32 %v2941, %v3245
      %v3332 = vadd.f32 %v2942, %v3250
      %v3333 = vadd.f32 %v2943, %v3255
      %v3334 = vadd.f32 %v2944, %v3260
      %v3335 = vadd.f32 %v2945, %v3265
      %v3336 = vadd.f32 %v2946, %v3270
      %v3337 = vadd.f32 %v2947, %v3275
      %v3338 = vadd.f32 %v2948, %v3280
      %v3339 = vadd.f32 %v2949, %v3285
      %v3340 = vadd.f32 %v2950, %v3290
      %v3341 = vadd.f32 %v2951, %v3295
      %v3342 = vadd.f32 %v2952, %v3300
      %v3343 = vadd.f32 %v2953, %v3305
      %v3344 = vadd.f32 %v2954, %v3310
      %v3345 = vld [vmem:[%s2564 + $0x2] sm:$0xff]
      %v3346 = vld [vmem:[%s2564 + $0xa] sm:$0xff]
      %v3347 = vld [vmem:[%s2564 + $0x1a] sm:$0xff]
      %v3348 = vld [vmem:[%s2564 + $0x22] sm:$0xff]
      %v3349 = vld [vmem:[%s2564 + $0x32] sm:$0xff]
      %v3350 = vld [vmem:[%s2564 + $0x3a] sm:$0xff]
      %v3351 = vld [vmem:[%s2564 + $0x4a] sm:$0xff]
      %v3352 = vld [vmem:[%s2564 + $0x52] sm:$0xff]
      %v3353 = vld [vmem:[%s2564 + $0x62] sm:$0xff]
      %v3354 = vld [vmem:[%s2564 + $0x6a] sm:$0xff]
      %v3355 = vld [vmem:[%s2564 + $0x7a] sm:$0xff]
      %v3356 = vld [vmem:[%s2564 + $0x82] sm:$0xff]
      %v3357 = vld [vmem:[%s2564 + $0x92] sm:$0xff]
      %v3358 = vld [vmem:[%s2564 + $0x9a] sm:$0xff]
      %v3359 = vld [vmem:[%s2564 + $0xaa] sm:$0xff]
      %v3360 = vld [vmem:[%s2564 + $0xb2] sm:$0xff]
      %v3361 = vld [vmem:[%s2564 + $0xc2] sm:$0xff]
      %v3362 = vld [vmem:[%s2564 + $0xca] sm:$0xff]
      %v3363 = vld [vmem:[%s2564 + $0xda] sm:$0xff]
      %v3364 = vld [vmem:[%s2564 + $0xe2] sm:$0xff]
      %v3365 = vld [vmem:[%s2564 + $0xf2] sm:$0xff]
      %v3366 = vld [vmem:[%s2564 + $0xfa] sm:$0xff]
      %v3367 = vld [vmem:[%s2564 + $0x10a] sm:$0xff]
      %v3368 = vld [vmem:[%s2564 + $0x112] sm:$0xff]
      %v3369 = vld [vmem:[%s2564 + $0x122] sm:$0xff]
      %v3370 = vld [vmem:[%s2564 + $0x12a] sm:$0xff]
      %v3371 = vld [vmem:[%s2564 + $0x13a] sm:$0xff]
      %v3372 = vld [vmem:[%s2564 + $0x142] sm:$0xff]
      %v3373 = vld [vmem:[%s2564 + $0x152] sm:$0xff]
      %v3374 = vld [vmem:[%s2564 + $0x15a] sm:$0xff]
      %v3375 = vld [vmem:[%s2564 + $0x16a] sm:$0xff]
      %v3376 = vld [vmem:[%s2564 + $0x172] sm:$0xff]
      %s3377 = scalar_lea.vmem %s1, 32
      %v3378 = vld [vmem:[%s3377] sm:$0xf]
      %v3380 = vsel %vm214, %v3345, 0
      %v3383 = vsel %vm214, %v3346, 0
      %v3386 = vsel %vm214, %v3347, 0
      %v3389 = vsel %vm214, %v3348, 0
      %v3392 = vsel %vm214, %v3349, 0
      %v3395 = vsel %vm214, %v3350, 0
      %v3398 = vsel %vm214, %v3351, 0
      %v3401 = vsel %vm214, %v3352, 0
      %v3404 = vsel %vm214, %v3353, 0
      %v3407 = vsel %vm214, %v3354, 0
      %v3410 = vsel %vm214, %v3355, 0
      %v3413 = vsel %vm214, %v3356, 0
      %v3416 = vsel %vm214, %v3357, 0
      %v3419 = vsel %vm214, %v3358, 0
      %v3422 = vsel %vm214, %v3359, 0
      %v3425 = vsel %vm214, %v3360, 0
      %v3428 = vsel %vm214, %v3361, 0
      %v3431 = vsel %vm214, %v3362, 0
      %v3434 = vsel %vm214, %v3363, 0
      %v3437 = vsel %vm214, %v3364, 0
      %v3440 = vsel %vm214, %v3365, 0
      %v3443 = vsel %vm214, %v3366, 0
      %v3446 = vsel %vm214, %v3367, 0
      %v3449 = vsel %vm214, %v3368, 0
      %v3452 = vsel %vm214, %v3369, 0
      %v3455 = vsel %vm214, %v3370, 0
      %v3458 = vsel %vm214, %v3371, 0
      %v3461 = vsel %vm214, %v3372, 0
      %v3464 = vsel %vm214, %v3373, 0
      %v3467 = vsel %vm214, %v3374, 0
      %v3470 = vsel %vm214, %v3375, 0
      %v3473 = vsel %vm214, %v3376, 0
      %v3476 = vsel %vm451, %v3378, 0
      %3478 = vmatprep.subr.mxu0 0.0
      %3479 = vmatpush1.msra.mxu0 %v3476
      %3480 = vmatprep.subr.mxu0 0.0
      %3481 = vmatpush1.msra.mxu0 0.0
      %3482 = vmatprep.subr.mxu0 0.0
      %3483 = vmatpush1.msra.mxu0 0.0
      %3484 = vmatprep.subr.mxu0 0.0
      %3485 = vmatpush1.msra.mxu0 0.0
      %3486 = vmatprep.subr.mxu0 0.0
      %3487 = vmatpush1.msra.mxu0 0.0
      %3488 = vmatprep.subr.mxu0 0.0
      %3489 = vmatpush1.msra.mxu0 0.0
      %3490 = vmatprep.subr.mxu0 0.0
      %3491 = vmatpush1.msra.mxu0 0.0
      %3492 = vmatprep.subr.mxu0 0.0
      %3493 = vmatpush1.msra.mxu0 0.0
      %3494 = vmatprep.subr.mxu0 0.0
      %3495 = vmatpush1.msra.mxu0 0.0
      %3496 = vmatprep.subr.mxu0 0.0
      %3497 = vmatpush1.msra.mxu0 0.0
      %3498 = vmatprep.subr.mxu0 0.0
      %3499 = vmatpush1.msra.mxu0 0.0
      %3500 = vmatprep.subr.mxu0 0.0
      %3501 = vmatpush1.msra.mxu0 0.0
      %3502 = vmatprep.subr.mxu0 0.0
      %3503 = vmatpush1.msra.mxu0 0.0
      %3504 = vmatprep.subr.mxu0 0.0
      %3505 = vmatpush1.msra.mxu0 0.0
      %3506 = vmatprep.subr.mxu0 0.0
      %3507 = vmatpush1.msra.mxu0 0.0
      %3508 = vmatprep.subr.mxu0 0.0
      %3509 = vmatpush1.msra.mxu0 0.0
      %3510 = vmatprep.subr.mxu0 0.0
      %3511 = vmatpush1.msra.mxu0 0.0
      %3512 = vmatprep.subr.mxu0 0.0
      %3513 = vmatpush1.msra.mxu0 0.0
      %3514 = vmatprep.subr.mxu0 0.0
      %3515 = vmatpush1.msra.mxu0 0.0
      %3516 = vmatprep.subr.mxu0 0.0
      %3517 = vmatpush1.msra.mxu0 0.0
      %3518 = vmatprep.subr.mxu0 0.0
      %3519 = vmatpush1.msra.mxu0 0.0
      %3520 = vmatprep.subr.mxu0 0.0
      %3521 = vmatpush1.msra.mxu0 0.0
      %3522 = vmatprep.subr.mxu0 0.0
      %3523 = vmatpush1.msra.mxu0 0.0
      %3524 = vmatprep.subr.mxu0 0.0
      %3525 = vmatpush1.msra.mxu0 0.0
      %3526 = vmatprep.subr.mxu0 0.0
      %3527 = vmatpush1.msra.mxu0 0.0
      %3528 = vmatprep.subr.mxu0 0.0
      %3529 = vmatpush1.msra.mxu0 0.0
      %3530 = vmatprep.subr.mxu0 0.0
      %3531 = vmatpush1.msra.mxu0 0.0
      %3532 = vmatprep.subr.mxu0 0.0
      %3533 = vmatpush1.msra.mxu0 0.0
      %3534 = vmatprep.subr.mxu0 0.0
      %3535 = vmatpush1.msra.mxu0 0.0
      %3536 = vmatprep.subr.mxu0 0.0
      %3537 = vmatpush1.msra.mxu0 0.0
      %3538 = vmatprep.subr.mxu0 0.0
      %3539 = vmatpush1.msra.mxu0 0.0
      %3540 = vmatprep.subr.mxu0 0.0
      %3541 = vmatpush1.msra.mxu0 0.0
      %3542 = vmatprep.mubr.f32.mxu0 0.0
      %3543 = vmatmul.mubr.f32.gmra.mrb[0].mxu0 %v3380
      %v3544 = vpop.f32.mrb[0].mxu0
      %v3545 = vadd.f32 0.0, %v3544
      %v3546 = vpop.f32.mrb[0].mxu0
      %3547 = vmatprep.mubr.f32.mxu0 0.0
      %3548 = vmatmul.mubr.f32.gmra.mrb[0].mxu0 %v3383
      %v3549 = vpop.f32.mrb[0].mxu0
      %v3550 = vadd.f32 0.0, %v3549
      %v3551 = vpop.f32.mrb[0].mxu0
      %3552 = vmatprep.mubr.f32.mxu0 0.0
      %3553 = vmatmul.mubr.f32.gmra.mrb[0].mxu0 %v3386
      %v3554 = vpop.f32.mrb[0].mxu0
      %v3555 = vadd.f32 0.0, %v3554
      %v3556 = vpop.f32.mrb[0].mxu0
      %3557 = vmatprep.mubr.f32.mxu0 0.0
      %3558 = vmatmul.mubr.f32.gmra.mrb[0].mxu0 %v3389
      %v3559 = vpop.f32.mrb[0].mxu0
      %v3560 = vadd.f32 0.0, %v3559
      %v3561 = vpop.f32.mrb[0].mxu0
      %3562 = vmatprep.mubr.f32.mxu0 0.0
      %3563 = vmatmul.mubr.f32.gmra.mrb[0].mxu0 %v3392
      %v3564 = vpop.f32.mrb[0].mxu0
      %v3565 = vadd.f32 0.0, %v3564
      %v3566 = vpop.f32.mrb[0].mxu0
      %3567 = vmatprep.mubr.f32.mxu0 0.0
      %3568 = vmatmul.mubr.f32.gmra.mrb[0].mxu0 %v3395
      %v3569 = vpop.f32.mrb[0].mxu0
      %v3570 = vadd.f32 0.0, %v3569
      %v3571 = vpop.f32.mrb[0].mxu0
      %3572 = vmatprep.mubr.f32.mxu0 0.0
      %3573 = vmatmul.mubr.f32.gmra.mrb[0].mxu0 %v3398
      %v3574 = vpop.f32.mrb[0].mxu0
      %v3575 = vadd.f32 0.0, %v3574
      %v3576 = vpop.f32.mrb[0].mxu0
      %3577 = vmatprep.mubr.f32.mxu0 0.0
      %3578 = vmatmul.mubr.f32.gmra.mrb[0].mxu0 %v3401
      %v3579 = vpop.f32.mrb[0].mxu0
      %v3580 = vadd.f32 0.0, %v3579
      %v3581 = vpop.f32.mrb[0].mxu0
      %3582 = vmatprep.mubr.f32.mxu0 0.0
      %3583 = vmatmul.mubr.f32.gmra.mrb[0].mxu0 %v3404
      %v3584 = vpop.f32.mrb[0].mxu0
      %v3585 = vadd.f32 0.0, %v3584
      %v3586 = vpop.f32.mrb[0].mxu0
      %3587 = vmatprep.mubr.f32.mxu0 0.0
      %3588 = vmatmul.mubr.f32.gmra.mrb[0].mxu0 %v3407
      %v3589 = vpop.f32.mrb[0].mxu0
      %v3590 = vadd.f32 0.0, %v3589
      %v3591 = vpop.f32.mrb[0].mxu0
      %3592 = vmatprep.mubr.f32.mxu0 0.0
      %3593 = vmatmul.mubr.f32.gmra.mrb[0].mxu0 %v3410
      %v3594 = vpop.f32.mrb[0].mxu0
      %v3595 = vadd.f32 0.0, %v3594
      %v3596 = vpop.f32.mrb[0].mxu0
      %3597 = vmatprep.mubr.f32.mxu0 0.0
      %3598 = vmatmul.mubr.f32.gmra.mrb[0].mxu0 %v3413
      %v3599 = vpop.f32.mrb[0].mxu0
      %v3600 = vadd.f32 0.0, %v3599
      %v3601 = vpop.f32.mrb[0].mxu0
      %3602 = vmatprep.mubr.f32.mxu0 0.0
      %3603 = vmatmul.mubr.f32.gmra.mrb[0].mxu0 %v3416
      %v3604 = vpop.f32.mrb[0].mxu0
      %v3605 = vadd.f32 0.0, %v3604
      %v3606 = vpop.f32.mrb[0].mxu0
      %3607 = vmatprep.mubr.f32.mxu0 0.0
      %3608 = vmatmul.mubr.f32.gmra.mrb[0].mxu0 %v3419
      %v3609 = vpop.f32.mrb[0].mxu0
      %v3610 = vadd.f32 0.0, %v3609
      %v3611 = vpop.f32.mrb[0].mxu0
      %3612 = vmatprep.mubr.f32.mxu0 0.0
      %3613 = vmatmul.mubr.f32.gmra.mrb[0].mxu0 %v3422
      %v3614 = vpop.f32.mrb[0].mxu0
      %v3615 = vadd.f32 0.0, %v3614
      %v3616 = vpop.f32.mrb[0].mxu0
      %3617 = vmatprep.mubr.f32.mxu0 0.0
      %3618 = vmatmul.mubr.f32.gmra.mrb[0].mxu0 %v3425
      %v3619 = vpop.f32.mrb[0].mxu0
      %v3620 = vadd.f32 0.0, %v3619
      %v3621 = vpop.f32.mrb[0].mxu0
      %3622 = vmatprep.mubr.f32.mxu0 0.0
      %3623 = vmatmul.mubr.f32.gmra.mrb[0].mxu0 %v3428
      %v3624 = vpop.f32.mrb[0].mxu0
      %v3625 = vadd.f32 0.0, %v3624
      %v3626 = vpop.f32.mrb[0].mxu0
      %3627 = vmatprep.mubr.f32.mxu0 0.0
      %3628 = vmatmul.mubr.f32.gmra.mrb[0].mxu0 %v3431
      %v3629 = vpop.f32.mrb[0].mxu0
      %v3630 = vadd.f32 0.0, %v3629
      %v3631 = vpop.f32.mrb[0].mxu0
      %3632 = vmatprep.mubr.f32.mxu0 0.0
      %3633 = vmatmul.mubr.f32.gmra.mrb[0].mxu0 %v3434
      %v3634 = vpop.f32.mrb[0].mxu0
      %v3635 = vadd.f32 0.0, %v3634
      %v3636 = vpop.f32.mrb[0].mxu0
      %3637 = vmatprep.mubr.f32.mxu0 0.0
      %3638 = vmatmul.mubr.f32.gmra.mrb[0].mxu0 %v3437
      %v3639 = vpop.f32.mrb[0].mxu0
      %v3640 = vadd.f32 0.0, %v3639
      %v3641 = vpop.f32.mrb[0].mxu0
      %3642 = vmatprep.mubr.f32.mxu0 0.0
      %3643 = vmatmul.mubr.f32.gmra.mrb[0].mxu0 %v3440
      %v3644 = vpop.f32.mrb[0].mxu0
      %v3645 = vadd.f32 0.0, %v3644
      %v3646 = vpop.f32.mrb[0].mxu0
      %3647 = vmatprep.mubr.f32.mxu0 0.0
      %3648 = vmatmul.mubr.f32.gmra.mrb[0].mxu0 %v3443
      %v3649 = vpop.f32.mrb[0].mxu0
      %v3650 = vadd.f32 0.0, %v3649
      %v3651 = vpop.f32.mrb[0].mxu0
      %3652 = vmatprep.mubr.f32.mxu0 0.0
      %3653 = vmatmul.mubr.f32.gmra.mrb[0].mxu0 %v3446
      %v3654 = vpop.f32.mrb[0].mxu0
      %v3655 = vadd.f32 0.0, %v3654
      %v3656 = vpop.f32.mrb[0].mxu0
      %3657 = vmatprep.mubr.f32.mxu0 0.0
      %3658 = vmatmul.mubr.f32.gmra.mrb[0].mxu0 %v3449
      %v3659 = vpop.f32.mrb[0].mxu0
      %v3660 = vadd.f32 0.0, %v3659
      %v3661 = vpop.f32.mrb[0].mxu0
      %3662 = vmatprep.mubr.f32.mxu0 0.0
      %3663 = vmatmul.mubr.f32.gmra.mrb[0].mxu0 %v3452
      %v3664 = vpop.f32.mrb[0].mxu0
      %v3665 = vadd.f32 0.0, %v3664
      %v3666 = vpop.f32.mrb[0].mxu0
      %3667 = vmatprep.mubr.f32.mxu0 0.0
      %3668 = vmatmul.mubr.f32.gmra.mrb[0].mxu0 %v3455
      %v3669 = vpop.f32.mrb[0].mxu0
      %v3670 = vadd.f32 0.0, %v3669
      %v3671 = vpop.f32.mrb[0].mxu0
      %3672 = vmatprep.mubr.f32.mxu0 0.0
      %3673 = vmatmul.mubr.f32.gmra.mrb[0].mxu0 %v3458
      %v3674 = vpop.f32.mrb[0].mxu0
      %v3675 = vadd.f32 0.0, %v3674
      %v3676 = vpop.f32.mrb[0].mxu0
      %3677 = vmatprep.mubr.f32.mxu0 0.0
      %3678 = vmatmul.mubr.f32.gmra.mrb[0].mxu0 %v3461
      %v3679 = vpop.f32.mrb[0].mxu0
      %v3680 = vadd.f32 0.0, %v3679
      %v3681 = vpop.f32.mrb[0].mxu0
      %3682 = vmatprep.mubr.f32.mxu0 0.0
      %3683 = vmatmul.mubr.f32.gmra.mrb[0].mxu0 %v3464
      %v3684 = vpop.f32.mrb[0].mxu0
      %v3685 = vadd.f32 0.0, %v3684
      %v3686 = vpop.f32.mrb[0].mxu0
      %3687 = vmatprep.mubr.f32.mxu0 0.0
      %3688 = vmatmul.mubr.f32.gmra.mrb[0].mxu0 %v3467
      %v3689 = vpop.f32.mrb[0].mxu0
      %v3690 = vadd.f32 0.0, %v3689
      %v3691 = vpop.f32.mrb[0].mxu0
      %3692 = vmatprep.mubr.f32.mxu0 0.0
      %3693 = vmatmul.mubr.f32.gmra.mrb[0].mxu0 %v3470
      %v3694 = vpop.f32.mrb[0].mxu0
      %v3695 = vadd.f32 0.0, %v3694
      %v3696 = vpop.f32.mrb[0].mxu0
      %3697 = vmatprep.mubr.f32.mxu0 0.0
      %3698 = vmatmul.mubr.f32.gmra.mrb[0].mxu0 %v3473
      %v3699 = vpop.f32.mrb[0].mxu0
      %v3700 = vadd.f32 0.0, %v3699
      %v3701 = vpop.f32.mrb[0].mxu0
      %3702 = vdwg.mxu0
      %v3703 = vadd.f32 %v3313, %v3545
      %v3704 = vadd.f32 %v3314, %v3550
      %v3705 = vadd.f32 %v3315, %v3555
      %v3706 = vadd.f32 %v3316, %v3560
      %v3707 = vadd.f32 %v3317, %v3565
      %v3708 = vadd.f32 %v3318, %v3570
      %v3709 = vadd.f32 %v3319, %v3575
      %v3710 = vadd.f32 %v3320, %v3580
      %v3711 = vadd.f32 %v3321, %v3585
      %v3712 = vadd.f32 %v3322, %v3590
      %v3713 = vadd.f32 %v3323, %v3595
      %v3714 = vadd.f32 %v3324, %v3600
      %v3715 = vadd.f32 %v3325, %v3605
      %v3716 = vadd.f32 %v3326, %v3610
      %v3717 = vadd.f32 %v3327, %v3615
      %v3718 = vadd.f32 %v3328, %v3620
      %v3719 = vadd.f32 %v3329, %v3625
      %v3720 = vadd.f32 %v3330, %v3630
      %v3721 = vadd.f32 %v3331, %v3635
      %v3722 = vadd.f32 %v3332, %v3640
      %v3723 = vadd.f32 %v3333, %v3645
      %v3724 = vadd.f32 %v3334, %v3650
      %v3725 = vadd.f32 %v3335, %v3655
      %v3726 = vadd.f32 %v3336, %v3660
      %v3727 = vadd.f32 %v3337, %v3665
      %v3728 = vadd.f32 %v3338, %v3670
      %v3729 = vadd.f32 %v3339, %v3675
      %v3730 = vadd.f32 %v3340, %v3680
      %v3731 = vadd.f32 %v3341, %v3685
      %v3732 = vadd.f32 %v3342, %v3690
      %v3733 = vadd.f32 %v3343, %v3695
      %v3734 = vadd.f32 %v3344, %v3700
      %vm3735 = vcmask 64512
      %v3736 = vsel %vm3735, %v3703, 0.0
      %v3737 = vsel %vm3735, %v3704, 0.0
      %v3738 = vadd.f32 %v3736, %v3737
      %v3739 = vsel %vm3735, %v3705, 0.0
      %v3740 = vadd.f32 %v3738, %v3739
      %v3741 = vsel %vm3735, %v3706, 0.0
      %v3742 = vadd.f32 %v3740, %v3741
      %v3743 = vsel %vm3735, %v3707, 0.0
      %v3744 = vadd.f32 %v3742, %v3743
      %v3745 = vsel %vm3735, %v3708, 0.0
      %v3746 = vadd.f32 %v3744, %v3745
      %v3747 = vsel %vm3735, %v3709, 0.0
      %v3748 = vadd.f32 %v3746, %v3747
      %v3749 = vsel %vm3735, %v3710, 0.0
      %v3750 = vadd.f32 %v3748, %v3749
      %v3751 = vsel %vm3735, %v3711, 0.0
      %v3752 = vadd.f32 %v3750, %v3751
      %v3753 = vsel %vm3735, %v3712, 0.0
      %v3754 = vadd.f32 %v3752, %v3753
      %v3755 = vsel %vm3735, %v3713, 0.0
      %v3756 = vadd.f32 %v3754, %v3755
      %v3757 = vsel %vm3735, %v3714, 0.0
      %v3758 = vadd.f32 %v3756, %v3757
      %v3759 = vsel %vm3735, %v3715, 0.0
      %v3760 = vadd.f32 %v3758, %v3759
      %v3761 = vsel %vm3735, %v3716, 0.0
      %v3762 = vadd.f32 %v3760, %v3761
      %v3763 = vsel %vm3735, %v3717, 0.0
      %v3764 = vadd.f32 %v3762, %v3763
      %v3765 = vsel %vm3735, %v3718, 0.0
      %v3766 = vadd.f32 %v3764, %v3765
      %v3767 = vsel %vm3735, %v3719, 0.0
      %v3768 = vadd.f32 %v3766, %v3767
      %v3769 = vsel %vm3735, %v3720, 0.0
      %v3770 = vadd.f32 %v3768, %v3769
      %v3771 = vsel %vm3735, %v3721, 0.0
      %v3772 = vadd.f32 %v3770, %v3771
      %v3773 = vsel %vm3735, %v3722, 0.0
      %v3774 = vadd.f32 %v3772, %v3773
      %v3775 = vsel %vm3735, %v3723, 0.0
      %v3776 = vadd.f32 %v3774, %v3775
      %v3777 = vsel %vm3735, %v3724, 0.0
      %v3778 = vadd.f32 %v3776, %v3777
      %v3779 = vsel %vm3735, %v3725, 0.0
      %v3780 = vadd.f32 %v3778, %v3779
      %v3781 = vsel %vm3735, %v3726, 0.0
      %v3782 = vadd.f32 %v3780, %v3781
      %v3783 = vsel %vm3735, %v3727, 0.0
      %v3784 = vadd.f32 %v3782, %v3783
      %v3785 = vsel %vm3735, %v3728, 0.0
      %v3786 = vadd.f32 %v3784, %v3785
      %v3787 = vsel %vm3735, %v3729, 0.0
      %v3788 = vadd.f32 %v3786, %v3787
      %v3789 = vsel %vm3735, %v3730, 0.0
      %v3790 = vadd.f32 %v3788, %v3789
      %v3791 = vsel %vm3735, %v3731, 0.0
      %v3792 = vadd.f32 %v3790, %v3791
      %v3793 = vsel %vm3735, %v3732, 0.0
      %v3794 = vadd.f32 %v3792, %v3793
      %v3795 = vsel %vm3735, %v3733, 0.0
      %v3796 = vadd.f32 %v3794, %v3795
      %v3797 = vsel %vm3735, %v3734, 0.0
      %v3798 = vadd.f32 %v3796, %v3797
      %v3799 = vrot.slane %v3798, 4
      %v3800 = vadd.f32 %v3798, %v3799
      %v3801 = vrot.slane %v3800, 2
      %v3802 = vadd.f32 %v3800, %v3801
      %v3803 = vrot.slane %v3802, 1
      %v3804 = vadd.f32 %v3802, %v3803
      %v3805 = vmul.f32 %v3804, 0.00390625
      %v3806 = vsub.f32 %v3703, %v3805
      %v3807 = vsub.f32 %v3704, %v3805
      %v3808 = vsub.f32 %v3705, %v3805
      %v3809 = vsub.f32 %v3706, %v3805
      %v3810 = vsub.f32 %v3707, %v3805
      %v3811 = vsub.f32 %v3708, %v3805
      %v3812 = vsub.f32 %v3709, %v3805
      %v3813 = vsub.f32 %v3710, %v3805
      %v3814 = vsub.f32 %v3711, %v3805
      %v3815 = vsub.f32 %v3712, %v3805
      %v3816 = vsub.f32 %v3713, %v3805
      %v3817 = vsub.f32 %v3714, %v3805
      %v3818 = vsub.f32 %v3715, %v3805
      %v3819 = vsub.f32 %v3716, %v3805
      %v3820 = vsub.f32 %v3717, %v3805
      %v3821 = vsub.f32 %v3718, %v3805
      %v3822 = vsub.f32 %v3719, %v3805
      %v3823 = vsub.f32 %v3720, %v3805
      %v3824 = vsub.f32 %v3721, %v3805
      %v3825 = vsub.f32 %v3722, %v3805
      %v3826 = vsub.f32 %v3723, %v3805
      %v3827 = vsub.f32 %v3724, %v3805
      %v3828 = vsub.f32 %v3725, %v3805
      %v3829 = vsub.f32 %v3726, %v3805
      %v3830 = vsub.f32 %v3727, %v3805
      %v3831 = vsub.f32 %v3728, %v3805
      %v3832 = vsub.f32 %v3729, %v3805
      %v3833 = vsub.f32 %v3730, %v3805
      %v3834 = vsub.f32 %v3731, %v3805
      %v3835 = vsub.f32 %v3732, %v3805
      %v3836 = vsub.f32 %v3733, %v3805
      %v3837 = vsub.f32 %v3734, %v3805
      %v3838 = vmul.f32 %v3806, %v3806
      %v3839 = vmul.f32 %v3807, %v3807
      %v3840 = vmul.f32 %v3808, %v3808
      %v3841 = vmul.f32 %v3809, %v3809
      %v3842 = vmul.f32 %v3810, %v3810
      %v3843 = vmul.f32 %v3811, %v3811
      %v3844 = vmul.f32 %v3812, %v3812
      %v3845 = vmul.f32 %v3813, %v3813
      %v3846 = vmul.f32 %v3814, %v3814
      %v3847 = vmul.f32 %v3815, %v3815
      %v3848 = vmul.f32 %v3816, %v3816
      %v3849 = vmul.f32 %v3817, %v3817
      %v3850 = vmul.f32 %v3818, %v3818
      %v3851 = vmul.f32 %v3819, %v3819
      %v3852 = vmul.f32 %v3820, %v3820
      %v3853 = vmul.f32 %v3821, %v3821
      %v3854 = vmul.f32 %v3822, %v3822
      %v3855 = vmul.f32 %v3823, %v3823
      %v3856 = vmul.f32 %v3824, %v3824
      %v3857 = vmul.f32 %v3825, %v3825
      %v3858 = vmul.f32 %v3826, %v3826
      %v3859 = vmul.f32 %v3827, %v3827
      %v3860 = vmul.f32 %v3828, %v3828
      %v3861 = vmul.f32 %v3829, %v3829
      %v3862 = vmul.f32 %v3830, %v3830
      %v3863 = vmul.f32 %v3831, %v3831
      %v3864 = vmul.f32 %v3832, %v3832
      %v3865 = vmul.f32 %v3833, %v3833
      %v3866 = vmul.f32 %v3834, %v3834
      %v3867 = vmul.f32 %v3835, %v3835
      %v3868 = vmul.f32 %v3836, %v3836
      %v3869 = vmul.f32 %v3837, %v3837
      %v3870 = vsel %vm3735, %v3838, 0.0
      %v3871 = vsel %vm3735, %v3839, 0.0
      %v3872 = vadd.f32 %v3870, %v3871
      %v3873 = vsel %vm3735, %v3840, 0.0
      %v3874 = vadd.f32 %v3872, %v3873
      %v3875 = vsel %vm3735, %v3841, 0.0
      %v3876 = vadd.f32 %v3874, %v3875
      %v3877 = vsel %vm3735, %v3842, 0.0
      %v3878 = vadd.f32 %v3876, %v3877
      %v3879 = vsel %vm3735, %v3843, 0.0
      %v3880 = vadd.f32 %v3878, %v3879
      %v3881 = vsel %vm3735, %v3844, 0.0
      %v3882 = vadd.f32 %v3880, %v3881
      %v3883 = vsel %vm3735, %v3845, 0.0
      %v3884 = vadd.f32 %v3882, %v3883
      %v3885 = vsel %vm3735, %v3846, 0.0
      %v3886 = vadd.f32 %v3884, %v3885
      %v3887 = vsel %vm3735, %v3847, 0.0
      %v3888 = vadd.f32 %v3886, %v3887
      %v3889 = vsel %vm3735, %v3848, 0.0
      %v3890 = vadd.f32 %v3888, %v3889
      %v3891 = vsel %vm3735, %v3849, 0.0
      %v3892 = vadd.f32 %v3890, %v3891
      %v3893 = vsel %vm3735, %v3850, 0.0
      %v3894 = vadd.f32 %v3892, %v3893
      %v3895 = vsel %vm3735, %v3851, 0.0
      %v3896 = vadd.f32 %v3894, %v3895
      %v3897 = vsel %vm3735, %v3852, 0.0
      %v3898 = vadd.f32 %v3896, %v3897
      %v3899 = vsel %vm3735, %v3853, 0.0
      %v3900 = vadd.f32 %v3898, %v3899
      %v3901 = vsel %vm3735, %v3854, 0.0
      %v3902 = vadd.f32 %v3900, %v3901
      %v3903 = vsel %vm3735, %v3855, 0.0
      %v3904 = vadd.f32 %v3902, %v3903
      %v3905 = vsel %vm3735, %v3856, 0.0
      %v3906 = vadd.f32 %v3904, %v3905
      %v3907 = vsel %vm3735, %v3857, 0.0
      %v3908 = vadd.f32 %v3906, %v3907
      %v3909 = vsel %vm3735, %v3858, 0.0
      %v3910 = vadd.f32 %v3908, %v3909
      %v3911 = vsel %vm3735, %v3859, 0.0
      %v3912 = vadd.f32 %v3910, %v3911
      %v3913 = vsel %vm3735, %v3860, 0.0
      %v3914 = vadd.f32 %v3912, %v3913
      %v3915 = vsel %vm3735, %v3861, 0.0
      %v3916 = vadd.f32 %v3914, %v3915
      %v3917 = vsel %vm3735, %v3862, 0.0
      %v3918 = vadd.f32 %v3916, %v3917
      %v3919 = vsel %vm3735, %v3863, 0.0
      %v3920 = vadd.f32 %v3918, %v3919
      %v3921 = vsel %vm3735, %v3864, 0.0
      %v3922 = vadd.f32 %v3920, %v3921
      %v3923 = vsel %vm3735, %v3865, 0.0
      %v3924 = vadd.f32 %v3922, %v3923
      %v3925 = vsel %vm3735, %v3866, 0.0
      %v3926 = vadd.f32 %v3924, %v3925
      %v3927 = vsel %vm3735, %v3867, 0.0
      %v3928 = vadd.f32 %v3926, %v3927
      %v3929 = vsel %vm3735, %v3868, 0.0
      %v3930 = vadd.f32 %v3928, %v3929
      %v3931 = vsel %vm3735, %v3869, 0.0
      %v3932 = vadd.f32 %v3930, %v3931
      %v3933 = vrot.slane %v3932, 4
      %v3934 = vadd.f32 %v3932, %v3933
      %v3935 = vrot.slane %v3934, 2
      %v3936 = vadd.f32 %v3934, %v3935
      %v3937 = vrot.slane %v3936, 1
      %v3938 = vadd.f32 %v3936, %v3937
      %vm3939 = vcmask 1040384
      %v3940 = vsel %vm3939, %v3804, %v3938
      %vm3941 = vcmask 58368
      %3942 = vst.msk [vmem:[%s181] sm:$0x3] %vm3941, %v3940
      %3943 = vst.msk [vmem:[%s177] sm:$0xff] %vm3735, %v3703
      %3944 = vst.msk [vmem:[%s177 + $0x8] sm:$0xff] %vm3735, %v3704
      %3945 = vst.msk [vmem:[%s177 + $0x10] sm:$0xff] %vm3735, %v3705
      %3946 = vst.msk [vmem:[%s177 + $0x18] sm:$0xff] %vm3735, %v3706
      %3947 = vst.msk [vmem:[%s177 + $0x20] sm:$0xff] %vm3735, %v3707
      %3948 = vst.msk [vmem:[%s177 + $0x28] sm:$0xff] %vm3735, %v3708
      %3949 = vst.msk [vmem:[%s177 + $0x30] sm:$0xff] %vm3735, %v3709
      %3950 = vst.msk [vmem:[%s177 + $0x38] sm:$0xff] %vm3735, %v3710
      %3951 = vst.msk [vmem:[%s177 + $0x40] sm:$0xff] %vm3735, %v3711
      %3952 = vst.msk [vmem:[%s177 + $0x48] sm:$0xff] %vm3735, %v3712
      %3953 = vst.msk [vmem:[%s177 + $0x50] sm:$0xff] %vm3735, %v3713
      %3954 = vst.msk [vmem:[%s177 + $0x58] sm:$0xff] %vm3735, %v3714
      %3955 = vst.msk [vmem:[%s177 + $0x60] sm:$0xff] %vm3735, %v3715
      %3956 = vst.msk [vmem:[%s177 + $0x68] sm:$0xff] %vm3735, %v3716
      %3957 = vst.msk [vmem:[%s177 + $0x70] sm:$0xff] %vm3735, %v3717
      %3958 = vst.msk [vmem:[%s177 + $0x78] sm:$0xff] %vm3735, %v3718
      %3959 = vst.msk [vmem:[%s177 + $0x80] sm:$0xff] %vm3735, %v3719
      %3960 = vst.msk [vmem:[%s177 + $0x88] sm:$0xff] %vm3735, %v3720
      %3961 = vst.msk [vmem:[%s177 + $0x90] sm:$0xff] %vm3735, %v3721
      %3962 = vst.msk [vmem:[%s177 + $0x98] sm:$0xff] %vm3735, %v3722
      %3963 = vst.msk [vmem:[%s177 + $0xa0] sm:$0xff] %vm3735, %v3723
      %3964 = vst.msk [vmem:[%s177 + $0xa8] sm:$0xff] %vm3735, %v3724
      %3965 = vst.msk [vmem:[%s177 + $0xb0] sm:$0xff] %vm3735, %v3725
      %3966 = vst.msk [vmem:[%s177 + $0xb8] sm:$0xff] %vm3735, %v3726
      %3967 = vst.msk [vmem:[%s177 + $0xc0] sm:$0xff] %vm3735, %v3727
      %3968 = vst.msk [vmem:[%s177 + $0xc8] sm:$0xff] %vm3735, %v3728
      %3969 = vst.msk [vmem:[%s177 + $0xd0] sm:$0xff] %vm3735, %v3729
      %3970 = vst.msk [vmem:[%s177 + $0xd8] sm:$0xff] %vm3735, %v3730
      %3971 = vst.msk [vmem:[%s177 + $0xe0] sm:$0xff] %vm3735, %v3731
      %3972 = vst.msk [vmem:[%s177 + $0xe8] sm:$0xff] %vm3735, %v3732
      %3973 = vst.msk [vmem:[%s177 + $0xf0] sm:$0xff] %vm3735, %v3733
      %3974 = vst.msk [vmem:[%s177 + $0xf8] sm:$0xff] %vm3735, %v3734
      %p3975 = scmp.lt.s32.totalorder %s15, 1
      %s3976 = scalar_select %p3975, %s15, 1
      %s3977 = smul.addr %s3976, 32
      %s3978 = smul.addr %s3977, 8
      %s3979 = scalar_lea.vmem %s2, %s3978
      %p3980 = scmp.lt.s32.totalorder %s15, 1
      %s3981 = scalar_select %p3980, %s15, 1
      %s3982 = smul.addr %s3981, 2
      %s3983 = scalar_lea.vmem %s3, %s3982
      // Predicated region
      $region29: #{double_conv.3} parent=27 // pred_check
        %p3984 = pneg %p80
      $region30: #{double_conv.3} parent=27 // pred_check_branch
        %3986 = sbr.rel (%p3984) target = $region32
      $region31: #{double_conv.3} parent=27 // pred_region
        _
      $region32: #{double_conv.3} parent=27 // pred_fallthru
        _
      // Predicated region
      $region33: #{double_conv.3} parent=27 // pred_check
        %p3987 = pneg %p106
      $region34: #{double_conv.3} parent=27 // pred_check_branch
        %3989 = sbr.rel (%p3987) target = $region36
      $region35: #{double_conv.3} parent=27 // pred_region
        _
      $region36: #{double_conv.3} parent=27 // pred_fallthru
        _
    $region28: #{double_conv.3} parent=5 // pred_fallthru
      _
    %p3990 = scmp.le.s32.totalorder 2, %s10
    // Predicated region
    $region37: #{double_conv.3} parent=5 // pred_check
      %p3991 = pneg %p3990
    $region38: #{double_conv.3} parent=5 // pred_check_branch
      %3993 = sbr.rel (%p3991) target = $region40
    $region39: #{double_conv.3} parent=5 // pred_region
      %s3994 = ssub.s32 %s10, 2
      // Predicated region
      $region41: #{double_conv.3} parent=39 // pred_check
        %p3995 = pneg %p86
      $region42: #{double_conv.3} parent=39 // pred_check_branch
        %3997 = sbr.rel (%p3995) target = $region44
      $region43: #{double_conv.3} parent=39 // pred_region
        %p3998 = scmp.lt.s32.totalorder %s16, 1
        %s3999 = scalar_select %p3998, %s16, 1
        %s4000 = smul.addr %s3999, 32
        %s4001 = smul.addr %s4000, 8
        %s4002 = scalar_lea.vmem %s2, %s4001
      $region44: #{double_conv.3} parent=39 // pred_fallthru
        _
      // Predicated region
      $region45: #{double_conv.3} parent=39 // pred_check
        %p4003 = pneg %p112
      $region46: #{double_conv.3} parent=39 // pred_check_branch
        %4005 = sbr.rel (%p4003) target = $region48
      $region47: #{double_conv.3} parent=39 // pred_region
        %p4006 = scmp.lt.s32.totalorder %s16, 1
        %s4007 = scalar_select %p4006, %s16, 1
        %s4008 = smul.addr %s4007, 2
        %s4009 = scalar_lea.vmem %s3, %s4008
      $region48: #{double_conv.3} parent=39 // pred_fallthru
        _
    $region40: #{double_conv.3} parent=5 // pred_fallthru
      _
  $region6: #{double_conv.3} parent=0 // loop_footer
    %s14 = sadd.s32 1, %s10
  $region7: #{double_conv.3} parent=0 // loop_footer_branch
    %9 = sbr.rel target = $region3
  $region8: #{double_conv.3} parent=0 // loop_exit
    _

// kernel: double_conv.4
$region0: #{double_conv.4}
  #allocation0 [shape = 'u32[]', space=smem, size = 0x4, offset = 0x4, fixed_abs, tag = 'smem constant byte address 0x4 - core index']
  #allocation1 [shape = 'u32[144,128]{1,0:T(1,128)}', space=vmem, size = 0x12000, scoped, tag = 'internal scratch']
  #allocation2 [shape = 'f32[18,24,8]{2,1,0:T(8,128)}', space=vmem, size = 0x36000, scoped, tag = 'scratch operand']
  %s0 = inlined_call_operand.vmem [shape: f32[2,16,16,8], index: 0, kind: input, shape index: {}]
  %s1 = inlined_call_operand.vmem [shape: f32[2,8], index: 1, kind: input, shape index: {}]
  %s2 = inlined_call_operand.vmem [shape: f32[9,8,8], index: 2, kind: input, shape index: {}]
  %s3 = inlined_call_operand.vmem [shape: f32[2,16,16,8], index: 3, kind: output, shape index: {0}]
  %s4 = inlined_call_operand.vmem [shape: f32[2,2,8], index: 4, kind: output, shape index: {1}]
  %5 = xla_tuple %s3, %s4
  %s6 = sld [smem:[#allocation0]]
  $region53: #{double_conv.4} parent=0
    _
  %s8 = ssub.s32 1, %s6
  %s9 = scalar_select 0, %s8, %s6
  loop: start=0, step=1, limit=4
  $region2: #{double_conv.4} parent=0 // loop_pre_header
    _
  $region3: #{double_conv.4} parent=0 // loop_header
    %s11 = sphi 0, %s15
    %p12 = scmp.ge.s32.totalorder %s11, 4
    %s21 = sphi 0, %s23
    %s24 = sphi 0, %s21
    %s25 = sphi 0, %s24
    %s41 = sphi 0, %s25
    %s45 = sphi 0, %s45
    %s47 = sphi 0, %s45
    %s48 = sphi 0, %s47
    %s62 = sphi 0, %s48
    %s66 = sphi 0, %s66
    %s68 = sphi 0, %s66
    %s69 = sphi 0, %s68
    %s83 = sphi 0, %s69
    %s89 = sphi 0, %s91
    %s92 = sphi 0, %s89
    %s93 = sphi 0, %s92
    %s109 = sphi 0, %s93
    %s115 = sphi 0, %s117
    %s118 = sphi 0, %s115
    %s119 = sphi 0, %s118
    %s135 = sphi 0, %s119
  $region4: #{double_conv.4} parent=0 // loop_header_branch
    %14 = sbr.rel (%p12) target = $region8
  $region5: #{double_conv.4} parent=0 // loop_body
    %s16 = ssub.s32 %s11, 1
    %s17 = ssub.s32 %s11, 2
    %s18 = sadd.s32 %s11, 1
    %s19 = ssub.s32 %s11, %s18
    %p20 = scmp.eq.s32.totalorder %s19, 0
    %s22 = sadd.s32 %s21, 1
    %s23 = scalar_select %p20, %s21, %s22
    %p26 = pneg %p20
    %p27 = scmp.eq.s32.totalorder %s11, 1
    %p28 = por %p26, %p27
    %p29 = scmp.ne.s32.totalorder %s21, %s24
    %p30 = scmp.eq.s32.totalorder %s11, 0
    %p31 = por %p29, %p30
    %p32 = scmp.ne.s32.totalorder %s21, %s24
    %p33 = scmp.eq.s32.totalorder %s16, 1
    %p34 = por %p32, %p33
    %p35 = scmp.ne.s32.totalorder %s24, %s25
    %p36 = scmp.eq.s32.totalorder %s16, 0
    %p37 = por %p35, %p36
    %p38 = scmp.ne.s32.totalorder %s24, %s25
    %p39 = scmp.eq.s32.totalorder %s17, 1
    %p40 = por %p38, %p39
    %p42 = scmp.ne.s32.totalorder %s25, %s41
    %p43 = scmp.eq.s32.totalorder %s17, 0
    %p44 = por %p42, %p43
    %s46 = sadd.s32 %s45, 1
    %p49 = scmp.eq.s32.totalorder %s11, 1
    %p50 = scmp.ne.s32.totalorder %s45, %s47
    %p51 = scmp.eq.s32.totalorder %s11, 0
    %p52 = por %p50, %p51
    %p53 = scmp.ne.s32.totalorder %s45, %s47
    %p54 = scmp.eq.s32.totalorder %s16, 1
    %p55 = por %p53, %p54
    %p56 = scmp.ne.s32.totalorder %s47, %s48
    %p57 = scmp.eq.s32.totalorder %s16, 0
    %p58 = por %p56, %p57
    %p59 = scmp.ne.s32.totalorder %s47, %s48
    %p60 = scmp.eq.s32.totalorder %s17, 1
    %p61 = por %p59, %p60
    %p63 = scmp.ne.s32.totalorder %s48, %s62
    %p64 = scmp.eq.s32.totalorder %s17, 0
    %p65 = por %p63, %p64
    %s67 = sadd.s32 %s66, 1
    %p70 = scmp.eq.s32.totalorder %s11, 1
    %p71 = scmp.ne.s32.totalorder %s66, %s68
    %p72 = scmp.eq.s32.totalorder %s11, 0
    %p73 = por %p71, %p72
    %p74 = scmp.ne.s32.totalorder %s66, %s68
    %p75 = scmp.eq.s32.totalorder %s16, 1
    %p76 = por %p74, %p75
    %p77 = scmp.ne.s32.totalorder %s68, %s69
    %p78 = scmp.eq.s32.totalorder %s16, 0
    %p79 = por %p77, %p78
    %p80 = scmp.ne.s32.totalorder %s68, %s69
    %p81 = scmp.eq.s32.totalorder %s17, 1
    %p82 = por %p80, %p81
    %p84 = scmp.ne.s32.totalorder %s69, %s83
    %p85 = scmp.eq.s32.totalorder %s17, 0
    %p86 = por %p84, %p85
    %s87 = ssub.s32 %s11, %s18
    %p88 = scmp.eq.s32.totalorder %s87, 0
    %s90 = sadd.s32 %s89, 1
    %s91 = scalar_select %p88, %s89, %s90
    %p94 = pneg %p88
    %p95 = scmp.eq.s32.totalorder %s11, 1
    %p96 = por %p94, %p95
    %p97 = scmp.ne.s32.totalorder %s89, %s92
    %p98 = scmp.eq.s32.totalorder %s11, 0
    %p99 = por %p97, %p98
    %p100 = scmp.ne.s32.totalorder %s89, %s92
    %p101 = scmp.eq.s32.totalorder %s16, 1
    %p102 = por %p100, %p101
    %p103 = scmp.ne.s32.totalorder %s92, %s93
    %p104 = scmp.eq.s32.totalorder %s16, 0
    %p105 = por %p103, %p104
    %p106 = scmp.ne.s32.totalorder %s92, %s93
    %p107 = scmp.eq.s32.totalorder %s17, 1
    %p108 = por %p106, %p107
    %p110 = scmp.ne.s32.totalorder %s93, %s109
    %p111 = scmp.eq.s32.totalorder %s17, 0
    %p112 = por %p110, %p111
    %s113 = ssub.s32 %s11, %s18
    %p114 = scmp.eq.s32.totalorder %s113, 0
    %s116 = sadd.s32 %s115, 1
    %s117 = scalar_select %p114, %s115, %s116
    %p120 = pneg %p114
    %p121 = scmp.eq.s32.totalorder %s11, 1
    %p122 = por %p120, %p121
    %p123 = scmp.ne.s32.totalorder %s115, %s118
    %p124 = scmp.eq.s32.totalorder %s11, 0
    %p125 = por %p123, %p124
    %p126 = scmp.ne.s32.totalorder %s115, %s118
    %p127 = scmp.eq.s32.totalorder %s16, 1
    %p128 = por %p126, %p127
    %p129 = scmp.ne.s32.totalorder %s118, %s119
    %p130 = scmp.eq.s32.totalorder %s16, 0
    %p131 = por %p129, %p130
    %p132 = scmp.ne.s32.totalorder %s118, %s119
    %p133 = scmp.eq.s32.totalorder %s17, 1
    %p134 = por %p132, %p133
    %p136 = scmp.ne.s32.totalorder %s119, %s135
    %p137 = scmp.eq.s32.totalorder %s17, 0
    %p138 = por %p136, %p137
    %p139 = scmp.le.s32.totalorder 1, %s11
    %p140 = scmp.lt.s32.totalorder %s11, 3
    %p141 = pnand %p139, %p140
    %p142 = pneg %p141
    // Predicated region
    $region9: #{double_conv.4} parent=5 // pred_check
      _
    $region10: #{double_conv.4} parent=5 // pred_check_branch
      %144 = sbr.rel (%p141) target = $region12
    $region11: #{double_conv.4} parent=5 // pred_region
      %s145 = ssub.s32 %s11, 1
      // Predicated region
      $region13: #{double_conv.4} parent=11 // pred_check
        %p146 = pneg %p58
      $region14: #{double_conv.4} parent=11 // pred_check_branch
        %148 = sbr.rel (%p146) target = $region16
      $region15: #{double_conv.4} parent=11 // pred_region
        _
      $region16: #{double_conv.4} parent=11 // pred_fallthru
        _
      // Predicated region
      $region17: #{double_conv.4} parent=11 // pred_check
        %p149 = pneg %p79
      $region18: #{double_conv.4} parent=11 // pred_check_branch
        %151 = sbr.rel (%p149) target = $region20
      $region19: #{double_conv.4} parent=11 // pred_region
        _
      $region20: #{double_conv.4} parent=11 // pred_fallthru
        _
    $region12: #{double_conv.4} parent=5 // pred_fallthru
      _
    %p152 = scmp.lt.s32.totalorder %s11, 2
    // Predicated region
    $region21: #{double_conv.4} parent=5 // pred_check
      %p153 = pneg %p152
    $region22: #{double_conv.4} parent=5 // pred_check_branch
      %155 = sbr.rel (%p153) target = $region24
    $region23: #{double_conv.4} parent=5 // pred_region
      // Predicated region
      $region25: #{double_conv.4} parent=23 // pred_check
        %p156 = pneg %p31
      $region26: #{double_conv.4} parent=23 // pred_check_branch
        %158 = sbr.rel (%p156) target = $region28
      $region27: #{double_conv.4} parent=23 // pred_region
        %p159 = scmp.lt.s32.totalorder %s11, 1
        %s160 = scalar_select %p159, %s11, 1
        %s161 = smul.addr %s160, 32
        %s162 = smul.addr %s161, 8
        %s163 = scalar_lea.vmem %s0, %s162
      $region28: #{double_conv.4} parent=23 // pred_fallthru
        _
    $region24: #{double_conv.4} parent=5 // pred_fallthru
      _
    %p164 = scmp.le.s32.totalorder 1, %s11
    %p165 = scmp.lt.s32.totalorder %s11, 3
    %p166 = pnand %p164, %p165
    %p167 = pneg %p166
    // Predicated region
    $region29: #{double_conv.4} parent=5 // pred_check
      _
    $region30: #{double_conv.4} parent=5 // pred_check_branch
      %169 = sbr.rel (%p166) target = $region32
    $region31: #{double_conv.4} parent=5 // pred_region
      %s170 = ssub.s32 %s11, 1
      %p171 = scmp.lt.s32.totalorder %s16, 1
      %s172 = scalar_select %p171, %s16, 1
      %s173 = smul.addr %s172, 32
      %s174 = smul.addr %s173, 8
      %s175 = scalar_lea.vmem %s0, %s174
      %p176 = pneg %p37
      %p177 = pneg %p34
      %p178 = pneg %p58
      %p179 = pneg %p55
      %p180 = pneg %p79
      %p181 = pneg %p76
      %p182 = pneg %p105
      %p183 = pneg %p102
      %p184 = scmp.lt.s32.totalorder %s16, 1
      %s185 = scalar_select %p184, %s16, 1
      %s186 = smul.addr %s185, 32
      %s187 = smul.addr %s186, 8
      %s188 = scalar_lea.vmem %s3, %s187
      %p189 = pneg %p131
      %p190 = pneg %p128
      %p191 = scmp.lt.s32.totalorder %s16, 1
      %s192 = scalar_select %p191, %s16, 1
      %s193 = smul.addr %s192, 2
      %s194 = scalar_lea.vmem %s4, %s193
      %p195 = scmp.lt.s32.totalorder %s16, 1
      %s196 = scalar_select %p195, %s16, 1
      %s197 = smul.addr %s196, 32
      %s198 = smul.addr %s197, 8
      %s199 = scalar_lea.vmem %s0, %s198
      %p200 = scmp.lt.s32.totalorder %s16, 1
      %s201 = scalar_select %p200, %s16, 1
      %s202 = smul.addr %s201, 32
      %s203 = smul.addr %s202, 8
      %s204 = scalar_lea.vmem %s3, %s203
      %p205 = scmp.lt.s32.totalorder %s16, 1
      %s206 = scalar_select %p205, %s16, 1
      %s207 = smul.addr %s206, 2
      %s208 = scalar_lea.vmem %s4, %s207
      %v209 = vld [vmem:[%s199] sm:$0xff]
      %v210 = vld [vmem:[%s199 + $0x8] sm:$0xff]
      %v211 = vld [vmem:[%s199 + $0x10] sm:$0xff]
      %v212 = vld [vmem:[%s199 + $0x18] sm:$0xff]
      %v213 = vld [vmem:[%s199 + $0x20] sm:$0xff]
      %v214 = vld [vmem:[%s199 + $0x28] sm:$0xff]
      %v215 = vld [vmem:[%s199 + $0x30] sm:$0xff]
      %v216 = vld [vmem:[%s199 + $0x38] sm:$0xff]
      %v217 = vld [vmem:[%s199 + $0x40] sm:$0xff]
      %v218 = vld [vmem:[%s199 + $0x48] sm:$0xff]
      %v219 = vld [vmem:[%s199 + $0x50] sm:$0xff]
      %v220 = vld [vmem:[%s199 + $0x58] sm:$0xff]
      %v221 = vld [vmem:[%s199 + $0x60] sm:$0xff]
      %v222 = vld [vmem:[%s199 + $0x68] sm:$0xff]
      %v223 = vld [vmem:[%s199 + $0x70] sm:$0xff]
      %v224 = vld [vmem:[%s199 + $0x78] sm:$0xff]
      %v225 = vld [vmem:[%s199 + $0x80] sm:$0xff]
      %v226 = vld [vmem:[%s199 + $0x88] sm:$0xff]
      %v227 = vld [vmem:[%s199 + $0x90] sm:$0xff]
      %v228 = vld [vmem:[%s199 + $0x98] sm:$0xff]
      %v229 = vld [vmem:[%s199 + $0xa0] sm:$0xff]
      %v230 = vld [vmem:[%s199 + $0xa8] sm:$0xff]
      %v231 = vld [vmem:[%s199 + $0xb0] sm:$0xff]
      %v232 = vld [vmem:[%s199 + $0xb8] sm:$0xff]
      %v233 = vld [vmem:[%s199 + $0xc0] sm:$0xff]
      %v234 = vld [vmem:[%s199 + $0xc8] sm:$0xff]
      %v235 = vld [vmem:[%s199 + $0xd0] sm:$0xff]
      %v236 = vld [vmem:[%s199 + $0xd8] sm:$0xff]
      %v237 = vld [vmem:[%s199 + $0xe0] sm:$0xff]
      %v238 = vld [vmem:[%s199 + $0xe8] sm:$0xff]
      %v239 = vld [vmem:[%s199 + $0xf0] sm:$0xff]
      %v240 = vld [vmem:[%s199 + $0xf8] sm:$0xff]
      %v241 = vld [vmem:[%s1] sm:$0x1]
      %v242 = vlaneseq
      %v243 = vshrl.u32 %v242, 7
      %v244 = vsub.s32 0, %v243
      %v245 = vrot.slane %v241, %v244
      %v246 = vmul.f32 %v209, %v245
      %v247 = vmul.f32 %v210, %v245
      %v248 = vmul.f32 %v211, %v245
      %v249 = vmul.f32 %v212, %v245
      %v250 = vmul.f32 %v213, %v245
      %v251 = vmul.f32 %v214, %v245
      %v252 = vmul.f32 %v215, %v245
      %v253 = vmul.f32 %v216, %v245
      %v254 = vmul.f32 %v217, %v245
      %v255 = vmul.f32 %v218, %v245
      %v256 = vmul.f32 %v219, %v245
      %v257 = vmul.f32 %v220, %v245
      %v258 = vmul.f32 %v221, %v245
      %v259 = vmul.f32 %v222, %v245
      %v260 = vmul.f32 %v223, %v245
      %v261 = vmul.f32 %v224, %v245
      %v262 = vmul.f32 %v225, %v245
      %v263 = vmul.f32 %v226, %v245
      %v264 = vmul.f32 %v227, %v245
      %v265 = vmul.f32 %v228, %v245
      %v266 = vmul.f32 %v229, %v245
      %v267 = vmul.f32 %v230, %v245
      %v268 = vmul.f32 %v231, %v245
      %v269 = vmul.f32 %v232, %v245
      %v270 = vmul.f32 %v233, %v245
      %v271 = vmul.f32 %v234, %v245
      %v272 = vmul.f32 %v235, %v245
      %v273 = vmul.f32 %v236, %v245
      %v274 = vmul.f32 %v237, %v245
      %v275 = vmul.f32 %v238, %v245
      %v276 = vmul.f32 %v239, %v245
      %v277 = vmul.f32 %v240, %v245
      %v278 = vld [vmem:[%s1 + $0x1] sm:$0x1]
      %v279 = vlaneseq
      %v280 = vshrl.u32 %v279, 7
      %v281 = vsub.s32 0, %v280
      %v282 = vrot.slane %v278, %v281
      %v283 = vadd.f32 %v246, %v282
      %v284 = vadd.f32 %v247, %v282
      %v285 = vadd.f32 %v248, %v282
      %v286 = vadd.f32 %v249, %v282
      %v287 = vadd.f32 %v250, %v282
      %v288 = vadd.f32 %v251, %v282
      %v289 = vadd.f32 %v252, %v282
      %v290 = vadd.f32 %v253, %v282
      %v291 = vadd.f32 %v254, %v282
      %v292 = vadd.f32 %v255, %v282
      %v293 = vadd.f32 %v256, %v282
      %v294 = vadd.f32 %v257, %v282
      %v295 = vadd.f32 %v258, %v282
      %v296 = vadd.f32 %v259, %v282
      %v297 = vadd.f32 %v260, %v282
      %v298 = vadd.f32 %v261, %v282
      %v299 = vadd.f32 %v262, %v282
      %v300 = vadd.f32 %v263, %v282
      %v301 = vadd.f32 %v264, %v282
      %v302 = vadd.f32 %v265, %v282
      %v303 = vadd.f32 %v266, %v282
      %v304 = vadd.f32 %v267, %v282
      %v305 = vadd.f32 %v268, %v282
      %v306 = vadd.f32 %v269, %v282
      %v307 = vadd.f32 %v270, %v282
      %v308 = vadd.f32 %v271, %v282
      %v309 = vadd.f32 %v272, %v282
      %v310 = vadd.f32 %v273, %v282
      %v311 = vadd.f32 %v274, %v282
      %v312 = vadd.f32 %v275, %v282
      %v313 = vadd.f32 %v276, %v282
      %v314 = vadd.f32 %v277, %v282
      %v315 = vmax.f32 %v283, 0.0
      %v316 = vmax.f32 %v284, 0.0
      %v317 = vmax.f32 %v285, 0.0
      %v318 = vmax.f32 %v286, 0.0
      %v319 = vmax.f32 %v287, 0.0
      %v320 = vmax.f32 %v288, 0.0
      %v321 = vmax.f32 %v289, 0.0
      %v322 = vmax.f32 %v290, 0.0
      %v323 = vmax.f32 %v291, 0.0
      %v324 = vmax.f32 %v292, 0.0
      %v325 = vmax.f32 %v293, 0.0
      %v326 = vmax.f32 %v294, 0.0
      %v327 = vmax.f32 %v295, 0.0
      %v328 = vmax.f32 %v296, 0.0
      %v329 = vmax.f32 %v297, 0.0
      %v330 = vmax.f32 %v298, 0.0
      %v331 = vmax.f32 %v299, 0.0
      %v332 = vmax.f32 %v300, 0.0
      %v333 = vmax.f32 %v301, 0.0
      %v334 = vmax.f32 %v302, 0.0
      %v335 = vmax.f32 %v303, 0.0
      %v336 = vmax.f32 %v304, 0.0
      %v337 = vmax.f32 %v305, 0.0
      %v338 = vmax.f32 %v306, 0.0
      %v339 = vmax.f32 %v307, 0.0
      %v340 = vmax.f32 %v308, 0.0
      %v341 = vmax.f32 %v309, 0.0
      %v342 = vmax.f32 %v310, 0.0
      %v343 = vmax.f32 %v311, 0.0
      %v344 = vmax.f32 %v312, 0.0
      %v345 = vmax.f32 %v313, 0.0
      %v346 = vmax.f32 %v314, 0.0
      %vm347 = vcmask 64512
      %348 = vst.msk [vmem:[#allocation2] sm:$0xff] %vm347, 0.0
      %349 = vst.msk [vmem:[#allocation2 + $0x8] sm:$0xff] %vm347, 0.0
      %350 = vst.msk [vmem:[#allocation2 + $0x10] sm:$0xff] %vm347, 0.0
      %s351 = scalar_lea.vmem [#allocation2], 408
      %352 = vst.msk [vmem:[%s351] sm:$0xff] %vm347, 0.0
      %353 = vst.msk [vmem:[%s351 + $0x8] sm:$0xff] %vm347, 0.0
      %354 = vst.msk [vmem:[%s351 + $0x10] sm:$0xff] %vm347, 0.0
      %s355 = scalar_lea.vmem [#allocation2], 24
      %vm356 = vcmask 57344
      %357 = vst.msk [vmem:[%s355] sm:$0x1] %vm356, 0.0
      %358 = vst.msk [vmem:[%s355 + $0x18] sm:$0x1] %vm356, 0.0
      %359 = vst.msk [vmem:[%s355 + $0x30] sm:$0x1] %vm356, 0.0
      %360 = vst.msk [vmem:[%s355 + $0x48] sm:$0x1] %vm356, 0.0
      %361 = vst.msk [vmem:[%s355 + $0x60] sm:$0x1] %vm356, 0.0
      %362 = vst.msk [vmem:[%s355 + $0x78] sm:$0x1] %vm356, 0.0
      %363 = vst.msk [vmem:[%s355 + $0x90] sm:$0x1] %vm356, 0.0
      %364 = vst.msk [vmem:[%s355 + $0xa8] sm:$0x1] %vm356, 0.0
      %365 = vst.msk [vmem:[%s355 + $0xc0] sm:$0x1] %vm356, 0.0
      %366 = vst.msk [vmem:[%s355 + $0xd8] sm:$0x1] %vm356, 0.0
      %367 = vst.msk [vmem:[%s355 + $0xf0] sm:$0x1] %vm356, 0.0
      %368 = vst.msk [vmem:[%s355 + $0x108] sm:$0x1] %vm356, 0.0
      %369 = vst.msk [vmem:[%s355 + $0x120] sm:$0x1] %vm356, 0.0
      %370 = vst.msk [vmem:[%s355 + $0x138] sm:$0x1] %vm356, 0.0
      %371 = vst.msk [vmem:[%s355 + $0x150] sm:$0x1] %vm356, 0.0
      %372 = vst.msk [vmem:[%s355 + $0x168] sm:$0x1] %vm356, 0.0
      %373 = vst.msk [vmem:[%s355 + $0x11] sm:$0x1] %vm356, 0.0
      %374 = vst.msk [vmem:[%s355 + $0x29] sm:$0x1] %vm356, 0.0
      %375 = vst.msk [vmem:[%s355 + $0x41] sm:$0x1] %vm356, 0.0
      %376 = vst.msk [vmem:[%s355 + $0x59] sm:$0x1] %vm356, 0.0
      %377 = vst.msk [vmem:[%s355 + $0x71] sm:$0x1] %vm356, 0.0
      %378 = vst.msk [vmem:[%s355 + $0x89] sm:$0x1] %vm356, 0.0
      %379 = vst.msk [vmem:[%s355 + $0xa1] sm:$0x1] %vm356, 0.0
      %380 = vst.msk [vmem:[%s355 + $0xb9] sm:$0x1] %vm356, 0.0
      %381 = vst.msk [vmem:[%s355 + $0xd1] sm:$0x1] %vm356, 0.0
      %382 = vst.msk [vmem:[%s355 + $0xe9] sm:$0x1] %vm356, 0.0
      %383 = vst.msk [vmem:[%s355 + $0x101] sm:$0x1] %vm356, 0.0
      %384 = vst.msk [vmem:[%s355 + $0x119] sm:$0x1] %vm356, 0.0
      %385 = vst.msk [vmem:[%s355 + $0x131] sm:$0x1] %vm356, 0.0
      %386 = vst.msk [vmem:[%s355 + $0x149] sm:$0x1] %vm356, 0.0
      %387 = vst.msk [vmem:[%s355 + $0x161] sm:$0x1] %vm356, 0.0
      %388 = vst.msk [vmem:[%s355 + $0x179] sm:$0x1] %vm356, 0.0
      %389 = vst.msk [vmem:[%s355 + $0x1] sm:$0xff] %vm347, %v315
      %390 = vst.msk [vmem:[%s355 + $0x9] sm:$0xff] %vm347, %v316
      %391 = vst.msk [vmem:[%s355 + $0x19] sm:$0xff] %vm347, %v317
      %392 = vst.msk [vmem:[%s355 + $0x21] sm:$0xff] %vm347, %v318
      %393 = vst.msk [vmem:[%s355 + $0x31] sm:$0xff] %vm347, %v319
      %394 = vst.msk [vmem:[%s355 + $0x39] sm:$0xff] %vm347, %v320
      %395 = vst.msk [vmem:[%s355 + $0x49] sm:$0xff] %vm347, %v321
      %396 = vst.msk [vmem:[%s355 + $0x51] sm:$0xff] %vm347, %v322
      %397 = vst.msk [vmem:[%s355 + $0x61] sm:$0xff] %vm347, %v323
      %398 = vst.msk [vmem:[%s355 + $0x69] sm:$0xff] %vm347, %v324
      %399 = vst.msk [vmem:[%s355 + $0x79] sm:$0xff] %vm347, %v325
      %400 = vst.msk [vmem:[%s355 + $0x81] sm:$0xff] %vm347, %v326
      %401 = vst.msk [vmem:[%s355 + $0x91] sm:$0xff] %vm347, %v327
      %402 = vst.msk [vmem:[%s355 + $0x99] sm:$0xff] %vm347, %v328
      %403 = vst.msk [vmem:[%s355 + $0xa9] sm:$0xff] %vm347, %v329
      %404 = vst.msk [vmem:[%s355 + $0xb1] sm:$0xff] %vm347, %v330
      %405 = vst.msk [vmem:[%s355 + $0xc1] sm:$0xff] %vm347, %v331
      %406 = vst.msk [vmem:[%s355 + $0xc9] sm:$0xff] %vm347, %v332
      %407 = vst.msk [vmem:[%s355 + $0xd9] sm:$0xff] %vm347, %v333
      %408 = vst.msk [vmem:[%s355 + $0xe1] sm:$0xff] %vm347, %v334
      %409 = vst.msk [vmem:[%s355 + $0xf1] sm:$0xff] %vm347, %v335
      %410 = vst.msk [vmem:[%s355 + $0xf9] sm:$0xff] %vm347, %v336
      %411 = vst.msk [vmem:[%s355 + $0x109] sm:$0xff] %vm347, %v337
      %412 = vst.msk [vmem:[%s355 + $0x111] sm:$0xff] %vm347, %v338
      %413 = vst.msk [vmem:[%s355 + $0x121] sm:$0xff] %vm347, %v339
      %414 = vst.msk [vmem:[%s355 + $0x129] sm:$0xff] %vm347, %v340
      %415 = vst.msk [vmem:[%s355 + $0x139] sm:$0xff] %vm347, %v341
      %416 = vst.msk [vmem:[%s355 + $0x141] sm:$0xff] %vm347, %v342
      %417 = vst.msk [vmem:[%s355 + $0x151] sm:$0xff] %vm347, %v343
      %418 = vst.msk [vmem:[%s355 + $0x159] sm:$0xff] %vm347, %v344
      %419 = vst.msk [vmem:[%s355 + $0x169] sm:$0xff] %vm347, %v345
      %420 = vst.msk [vmem:[%s355 + $0x171] sm:$0xff] %vm347, %v346
      %v421 = vld [vmem:[#allocation2] sm:$0xff]
      %v422 = vld [vmem:[#allocation2 + $0x8] sm:$0xff]
      %v423 = vld [vmem:[#allocation2 + $0x18] sm:$0xff]
      %v424 = vld [vmem:[#allocation2 + $0x20] sm:$0xff]
      %v425 = vld [vmem:[#allocation2 + $0x30] sm:$0xff]
      %v426 = vld [vmem:[#allocation2 + $0x38] sm:$0xff]
      %v427 = vld [vmem:[#allocation2 + $0x48] sm:$0xff]
      %v428 = vld [vmem:[#allocation2 + $0x50] sm:$0xff]
      %v429 = vld [vmem:[#allocation2 + $0x60] sm:$0xff]
      %v430 = vld [vmem:[#allocation2 + $0x68] sm:$0xff]
      %v431 = vld [vmem:[#allocation2 + $0x78] sm:$0xff]
      %v432 = vld [vmem:[#allocation2 + $0x80] sm:$0xff]
      %v433 = vld [vmem:[#allocation2 + $0x90] sm:$0xff]
      %v434 = vld [vmem:[#allocation2 + $0x98] sm:$0xff]
      %v435 = vld [vmem:[#allocation2 + $0xa8] sm:$0xff]
      %v436 = vld [vmem:[#allocation2 + $0xb0] sm:$0xff]
      %v437 = vld [vmem:[#allocation2 + $0xc0] sm:$0xff]
      %v438 = vld [vmem:[#allocation2 + $0xc8] sm:$0xff]
      %v439 = vld [vmem:[#allocation2 + $0xd8] sm:$0xff]
      %v440 = vld [vmem:[#allocation2 + $0xe0] sm:$0xff]
      %v441 = vld [vmem:[#allocation2 + $0xf0] sm:$0xff]
      %v442 = vld [vmem:[#allocation2 + $0xf8] sm:$0xff]
      %v443 = vld [vmem:[#allocation2 + $0x108] sm:$0xff]
      %v444 = vld [vmem:[#allocation2 + $0x110] sm:$0xff]
      %v445 = vld [vmem:[#allocation2 + $0x120] sm:$0xff]
      %v446 = vld [vmem:[#allocation2 + $0x128] sm:$0xff]
      %v447 = vld [vmem:[#allocation2 + $0x138] sm:$0xff]
      %v448 = vld [vmem:[#allocation2 + $0x140] sm:$0xff]
      %v449 = vld [vmem:[#allocation2 + $0x150] sm:$0xff]
      %v450 = vld [vmem:[#allocation2 + $0x158] sm:$0xff]
      %v451 = vld [vmem:[#allocation2 + $0x168] sm:$0xff]
      %v452 = vld [vmem:[#allocation2 + $0x170] sm:$0xff]
      %v453 = vld [vmem:[%s2] sm:$0xff]
      %v454 = vld [vmem:[#allocation2 + $0x1] sm:$0xff]
      %v455 = vld [vmem:[#allocation2 + $0x9] sm:$0xff]
      %v456 = vld [vmem:[#allocation2 + $0x19] sm:$0xff]
      %v457 = vld [vmem:[#allocation2 + $0x21] sm:$0xff]
      %v458 = vld [vmem:[#allocation2 + $0x31] sm:$0xff]
      %v459 = vld [vmem:[#allocation2 + $0x39] sm:$0xff]
      %v460 = vld [vmem:[#allocation2 + $0x49] sm:$0xff]
      %v461 = vld [vmem:[#allocation2 + $0x51] sm:$0xff]
      %v462 = vld [vmem:[#allocation2 + $0x61] sm:$0xff]
      %v463 = vld [vmem:[#allocation2 + $0x69] sm:$0xff]
      %v464 = vld [vmem:[#allocation2 + $0x79] sm:$0xff]
      %v465 = vld [vmem:[#allocation2 + $0x81] sm:$0xff]
      %v466 = vld [vmem:[#allocation2 + $0x91] sm:$0xff]
      %v467 = vld [vmem:[#allocation2 + $0x99] sm:$0xff]
      %v468 = vld [vmem:[#allocation2 + $0xa9] sm:$0xff]
      %v469 = vld [vmem:[#allocation2 + $0xb1] sm:$0xff]
      %v470 = vld [vmem:[#allocation2 + $0xc1] sm:$0xff]
      %v471 = vld [vmem:[#allocation2 + $0xc9] sm:$0xff]
      %v472 = vld [vmem:[#allocation2 + $0xd9] sm:$0xff]
      %v473 = vld [vmem:[#allocation2 + $0xe1] sm:$0xff]
      %v474 = vld [vmem:[#allocation2 + $0xf1] sm:$0xff]
      %v475 = vld [vmem:[#allocation2 + $0xf9] sm:$0xff]
      %v476 = vld [vmem:[#allocation2 + $0x109] sm:$0xff]
      %v477 = vld [vmem:[#allocation2 + $0x111] sm:$0xff]
      %v478 = vld [vmem:[#allocation2 + $0x121] sm:$0xff]
      %v479 = vld [vmem:[#allocation2 + $0x129] sm:$0xff]
      %v480 = vld [vmem:[#allocation2 + $0x139] sm:$0xff]
      %v481 = vld [vmem:[#allocation2 + $0x141] sm:$0xff]
      %v482 = vld [vmem:[#allocation2 + $0x151] sm:$0xff]
      %v483 = vld [vmem:[#allocation2 + $0x159] sm:$0xff]
      %v484 = vld [vmem:[#allocation2 + $0x169] sm:$0xff]
      %v485 = vld [vmem:[#allocation2 + $0x171] sm:$0xff]
      %s486 = scalar_lea.vmem %s2, 8
      %v487 = vld [vmem:[%s486] sm:$0xff]
      %v489 = vsel %vm347, %v454, 0
      %v492 = vsel %vm347, %v455, 0
      %v495 = vsel %vm347, %v456, 0
      %v498 = vsel %vm347, %v457, 0
      %v501 = vsel %vm347, %v458, 0
      %v504 = vsel %vm347, %v459, 0
      %v507 = vsel %vm347, %v460, 0
      %v510 = vsel %vm347, %v461, 0
      %v513 = vsel %vm347, %v462, 0
      %v516 = vsel %vm347, %v463, 0
      %v519 = vsel %vm347, %v464, 0
      %v522 = vsel %vm347, %v465, 0
      %v525 = vsel %vm347, %v466, 0
      %v528 = vsel %vm347, %v467, 0
      %v531 = vsel %vm347, %v468, 0
      %v534 = vsel %vm347, %v469, 0
      %v537 = vsel %vm347, %v470, 0
      %v540 = vsel %vm347, %v471, 0
      %v543 = vsel %vm347, %v472, 0
      %v546 = vsel %vm347, %v473, 0
      %v549 = vsel %vm347, %v474, 0
      %v552 = vsel %vm347, %v475, 0
      %v555 = vsel %vm347, %v476, 0
      %v558 = vsel %vm347, %v477, 0
      %v561 = vsel %vm347, %v478, 0
      %v564 = vsel %vm347, %v479, 0
      %v567 = vsel %vm347, %v480, 0
      %v570 = vsel %vm347, %v481, 0
      %v573 = vsel %vm347, %v482, 0
      %v576 = vsel %vm347, %v483, 0
      %v579 = vsel %vm347, %v484, 0
      %v582 = vsel %vm347, %v485, 0
      %584 = vmatprep.subr.mxu0 0.0
      %585 = vmatpush1.msra.mxu0 %v487
      %586 = vmatprep.subr.mxu0 0.0
      %587 = vmatpush1.msra.mxu0 0.0
      %588 = vmatprep.subr.mxu0 0.0
      %589 = vmatpush1.msra.mxu0 0.0
      %590 = vmatprep.subr.mxu0 0.0
      %591 = vmatpush1.msra.mxu0 0.0
      %592 = vmatprep.subr.mxu0 0.0
      %593 = vmatpush1.msra.mxu0 0.0
      %594 = vmatprep.subr.mxu0 0.0
      %595 = vmatpush1.msra.mxu0 0.0
      %596 = vmatprep.subr.mxu0 0.0
      %597 = vmatpush1.msra.mxu0 0.0
      %598 = vmatprep.subr.mxu0 0.0
      %599 = vmatpush1.msra.mxu0 0.0
      %600 = vmatprep.subr.mxu0 0.0
      %601 = vmatpush1.msra.mxu0 0.0
      %602 = vmatprep.subr.mxu0 0.0
      %603 = vmatpush1.msra.mxu0 0.0
      %604 = vmatprep.subr.mxu0 0.0
      %605 = vmatpush1.msra.mxu0 0.0
      %606 = vmatprep.subr.mxu0 0.0
      %607 = vmatpush1.msra.mxu0 0.0
      %608 = vmatprep.subr.mxu0 0.0
      %609 = vmatpush1.msra.mxu0 0.0
      %610 = vmatprep.subr.mxu0 0.0
      %611 = vmatpush1.msra.mxu0 0.0
      %612 = vmatprep.subr.mxu0 0.0
      %613 = vmatpush1.msra.mxu0 0.0
      %614 = vmatprep.subr.mxu0 0.0
      %615 = vmatpush1.msra.mxu0 0.0
      %616 = vmatprep.subr.mxu0 0.0
      %617 = vmatpush1.msra.mxu0 0.0
      %618 = vmatprep.subr.mxu0 0.0
      %619 = vmatpush1.msra.mxu0 0.0
      %620 = vmatprep.subr.mxu0 0.0
      %621 = vmatpush1.msra.mxu0 0.0
      %622 = vmatprep.subr.mxu0 0.0
      %623 = vmatpush1.msra.mxu0 0.0
      %624 = vmatprep.subr.mxu0 0.0
      %625 = vmatpush1.msra.mxu0 0.0
      %626 = vmatprep.subr.mxu0 0.0
      %627 = vmatpush1.msra.mxu0 0.0
      %628 = vmatprep.subr.mxu0 0.0
      %629 = vmatpush1.msra.mxu0 0.0
      %630 = vmatprep.subr.mxu0 0.0
      %631 = vmatpush1.msra.mxu0 0.0
      %632 = vmatprep.subr.mxu0 0.0
      %633 = vmatpush1.msra.mxu0 0.0
      %634 = vmatprep.subr.mxu0 0.0
      %635 = vmatpush1.msra.mxu0 0.0
      %636 = vmatprep.subr.mxu0 0.0
      %637 = vmatpush1.msra.mxu0 0.0
      %638 = vmatprep.subr.mxu0 0.0
      %639 = vmatpush1.msra.mxu0 0.0
      %640 = vmatprep.subr.mxu0 0.0
      %641 = vmatpush1.msra.mxu0 0.0
      %642 = vmatprep.subr.mxu0 0.0
      %643 = vmatpush1.msra.mxu0 0.0
      %644 = vmatprep.subr.mxu0 0.0
      %645 = vmatpush1.msra.mxu0 0.0
      %646 = vmatprep.subr.mxu0 0.0
      %647 = vmatpush1.msra.mxu0 0.0
      %648 = vmatprep.mubr.f32.mxu0 0.0
      %649 = vmatmul.mubr.f32.gmra.mrb[0].mxu0 %v489
      %v650 = vpop.f32.mrb[0].mxu0
      %v651 = vadd.f32 0.0, %v650
      %v652 = vpop.f32.mrb[0].mxu0
      %653 = vmatprep.mubr.f32.mxu0 0.0
      %654 = vmatmul.mubr.f32.gmra.mrb[0].mxu0 %v492
      %v655 = vpop.f32.mrb[0].mxu0
      %v656 = vadd.f32 0.0, %v655
      %v657 = vpop.f32.mrb[0].mxu0
      %658 = vmatprep.mubr.f32.mxu0 0.0
      %659 = vmatmul.mubr.f32.gmra.mrb[0].mxu0 %v495
      %v660 = vpop.f32.mrb[0].mxu0
      %v661 = vadd.f32 0.0, %v660
      %v662 = vpop.f32.mrb[0].mxu0
      %663 = vmatprep.mubr.f32.mxu0 0.0
      %664 = vmatmul.mubr.f32.gmra.mrb[0].mxu0 %v498
      %v665 = vpop.f32.mrb[0].mxu0
      %v666 = vadd.f32 0.0, %v665
      %v667 = vpop.f32.mrb[0].mxu0
      %668 = vmatprep.mubr.f32.mxu0 0.0
      %669 = vmatmul.mubr.f32.gmra.mrb[0].mxu0 %v501
      %v670 = vpop.f32.mrb[0].mxu0
      %v671 = vadd.f32 0.0, %v670
      %v672 = vpop.f32.mrb[0].mxu0
      %673 = vmatprep.mubr.f32.mxu0 0.0
      %674 = vmatmul.mubr.f32.gmra.mrb[0].mxu0 %v504
      %v675 = vpop.f32.mrb[0].mxu0
      %v676 = vadd.f32 0.0, %v675
      %v677 = vpop.f32.mrb[0].mxu0
      %678 = vmatprep.mubr.f32.mxu0 0.0
      %679 = vmatmul.mubr.f32.gmra.mrb[0].mxu0 %v507
      %v680 = vpop.f32.mrb[0].mxu0
      %v681 = vadd.f32 0.0, %v680
      %v682 = vpop.f32.mrb[0].mxu0
      %683 = vmatprep.mubr.f32.mxu0 0.0
      %684 = vmatmul.mubr.f32.gmra.mrb[0].mxu0 %v510
      %v685 = vpop.f32.mrb[0].mxu0
      %v686 = vadd.f32 0.0, %v685
      %v687 = vpop.f32.mrb[0].mxu0
      %688 = vmatprep.mubr.f32.mxu0 0.0
      %689 = vmatmul.mubr.f32.gmra.mrb[0].mxu0 %v513
      %v690 = vpop.f32.mrb[0].mxu0
      %v691 = vadd.f32 0.0, %v690
      %v692 = vpop.f32.mrb[0].mxu0
      %693 = vmatprep.mubr.f32.mxu0 0.0
      %694 = vmatmul.mubr.f32.gmra.mrb[0].mxu0 %v516
      %v695 = vpop.f32.mrb[0].mxu0
      %v696 = vadd.f32 0.0, %v695
      %v697 = vpop.f32.mrb[0].mxu0
      %698 = vmatprep.mubr.f32.mxu0 0.0
      %699 = vmatmul.mubr.f32.gmra.mrb[0].mxu0 %v519
      %v700 = vpop.f32.mrb[0].mxu0
      %v701 = vadd.f32 0.0, %v700
      %v702 = vpop.f32.mrb[0].mxu0
      %703 = vmatprep.mubr.f32.mxu0 0.0
      %704 = vmatmul.mubr.f32.gmra.mrb[0].mxu0 %v522
      %v705 = vpop.f32.mrb[0].mxu0
      %v706 = vadd.f32 0.0, %v705
      %v707 = vpop.f32.mrb[0].mxu0
      %708 = vmatprep.mubr.f32.mxu0 0.0
      %709 = vmatmul.mubr.f32.gmra.mrb[0].mxu0 %v525
      %v710 = vpop.f32.mrb[0].mxu0
      %v711 = vadd.f32 0.0, %v710
      %v712 = vpop.f32.mrb[0].mxu0
      %713 = vmatprep.mubr.f32.mxu0 0.0
      %714 = vmatmul.mubr.f32.gmra.mrb[0].mxu0 %v528
      %v715 = vpop.f32.mrb[0].mxu0
      %v716 = vadd.f32 0.0, %v715
      %v717 = vpop.f32.mrb[0].mxu0
      %718 = vmatprep.mubr.f32.mxu0 0.0
      %719 = vmatmul.mubr.f32.gmra.mrb[0].mxu0 %v531
      %v720 = vpop.f32.mrb[0].mxu0
      %v721 = vadd.f32 0.0, %v720
      %v722 = vpop.f32.mrb[0].mxu0
      %723 = vmatprep.mubr.f32.mxu0 0.0
      %724 = vmatmul.mubr.f32.gmra.mrb[0].mxu0 %v534
      %v725 = vpop.f32.mrb[0].mxu0
      %v726 = vadd.f32 0.0, %v725
      %v727 = vpop.f32.mrb[0].mxu0
      %728 = vmatprep.mubr.f32.mxu0 0.0
      %729 = vmatmul.mubr.f32.gmra.mrb[0].mxu0 %v537
      %v730 = vpop.f32.mrb[0].mxu0
      %v731 = vadd.f32 0.0, %v730
      %v732 = vpop.f32.mrb[0].mxu0
      %733 = vmatprep.mubr.f32.mxu0 0.0
      %734 = vmatmul.mubr.f32.gmra.mrb[0].mxu0 %v540
      %v735 = vpop.f32.mrb[0].mxu0
      %v736 = vadd.f32 0.0, %v735
      %v737 = vpop.f32.mrb[0].mxu0
      %738 = vmatprep.mubr.f32.mxu0 0.0
      %739 = vmatmul.mubr.f32.gmra.mrb[0].mxu0 %v543
      %v740 = vpop.f32.mrb[0].mxu0
      %v741 = vadd.f32 0.0, %v740
      %v742 = vpop.f32.mrb[0].mxu0
      %743 = vmatprep.mubr.f32.mxu0 0.0
      %744 = vmatmul.mubr.f32.gmra.mrb[0].mxu0 %v546
      %v745 = vpop.f32.mrb[0].mxu0
      %v746 = vadd.f32 0.0, %v745
      %v747 = vpop.f32.mrb[0].mxu0
      %748 = vmatprep.mubr.f32.mxu0 0.0
      %749 = vmatmul.mubr.f32.gmra.mrb[0].mxu0 %v549
      %v750 = vpop.f32.mrb[0].mxu0
      %v751 = vadd.f32 0.0, %v750
      %v752 = vpop.f32.mrb[0].mxu0
      %753 = vmatprep.mubr.f32.mxu0 0.0
      %754 = vmatmul.mubr.f32.gmra.mrb[0].mxu0 %v552
      %v755 = vpop.f32.mrb[0].mxu0
      %v756 = vadd.f32 0.0, %v755
      %v757 = vpop.f32.mrb[0].mxu0
      %758 = vmatprep.mubr.f32.mxu0 0.0
      %759 = vmatmul.mubr.f32.gmra.mrb[0].mxu0 %v555
      %v760 = vpop.f32.mrb[0].mxu0
      %v761 = vadd.f32 0.0, %v760
      %v762 = vpop.f32.mrb[0].mxu0
      %763 = vmatprep.mubr.f32.mxu0 0.0
      %764 = vmatmul.mubr.f32.gmra.mrb[0].mxu0 %v558
      %v765 = vpop.f32.mrb[0].mxu0
      %v766 = vadd.f32 0.0, %v765
      %v767 = vpop.f32.mrb[0].mxu0
      %768 = vmatprep.mubr.f32.mxu0 0.0
      %769 = vmatmul.mubr.f32.gmra.mrb[0].mxu0 %v561
      %v770 = vpop.f32.mrb[0].mxu0
      %v771 = vadd.f32 0.0, %v770
      %v772 = vpop.f32.mrb[0].mxu0
      %773 = vmatprep.mubr.f32.mxu0 0.0
      %774 = vmatmul.mubr.f32.gmra.mrb[0].mxu0 %v564
      %v775 = vpop.f32.mrb[0].mxu0
      %v776 = vadd.f32 0.0, %v775
      %v777 = vpop.f32.mrb[0].mxu0
      %778 = vmatprep.mubr.f32.mxu0 0.0
      %779 = vmatmul.mubr.f32.gmra.mrb[0].mxu0 %v567
      %v780 = vpop.f32.mrb[0].mxu0
      %v781 = vadd.f32 0.0, %v780
      %v782 = vpop.f32.mrb[0].mxu0
      %783 = vmatprep.mubr.f32.mxu0 0.0
      %784 = vmatmul.mubr.f32.gmra.mrb[0].mxu0 %v570
      %v785 = vpop.f32.mrb[0].mxu0
      %v786 = vadd.f32 0.0, %v785
      %v787 = vpop.f32.mrb[0].mxu0
      %788 = vmatprep.mubr.f32.mxu0 0.0
      %789 = vmatmul.mubr.f32.gmra.mrb[0].mxu0 %v573
      %v790 = vpop.f32.mrb[0].mxu0
      %v791 = vadd.f32 0.0, %v790
      %v792 = vpop.f32.mrb[0].mxu0
      %793 = vmatprep.mubr.f32.mxu0 0.0
      %794 = vmatmul.mubr.f32.gmra.mrb[0].mxu0 %v576
      %v795 = vpop.f32.mrb[0].mxu0
      %v796 = vadd.f32 0.0, %v795
      %v797 = vpop.f32.mrb[0].mxu0
      %798 = vmatprep.mubr.f32.mxu0 0.0
      %799 = vmatmul.mubr.f32.gmra.mrb[0].mxu0 %v579
      %v800 = vpop.f32.mrb[0].mxu0
      %v801 = vadd.f32 0.0, %v800
      %v802 = vpop.f32.mrb[0].mxu0
      %803 = vmatprep.mubr.f32.mxu0 0.0
      %804 = vmatmul.mubr.f32.gmra.mrb[0].mxu0 %v582
      %v805 = vpop.f32.mrb[0].mxu0
      %v806 = vadd.f32 0.0, %v805
      %v807 = vpop.f32.mrb[0].mxu0
      %808 = vdwg.mxu0
      %v810 = vsel %vm347, %v421, 0
      %v813 = vsel %vm347, %v422, 0
      %v816 = vsel %vm347, %v423, 0
      %v819 = vsel %vm347, %v424, 0
      %v822 = vsel %vm347, %v425, 0
      %v825 = vsel %vm347, %v426, 0
      %v828 = vsel %vm347, %v427, 0
      %v831 = vsel %vm347, %v428, 0
      %v834 = vsel %vm347, %v429, 0
      %v837 = vsel %vm347, %v430, 0
      %v840 = vsel %vm347, %v431, 0
      %v843 = vsel %vm347, %v432, 0
      %v846 = vsel %vm347, %v433, 0
      %v849 = vsel %vm347, %v434, 0
      %v852 = vsel %vm347, %v435, 0
      %v855 = vsel %vm347, %v436, 0
      %v858 = vsel %vm347, %v437, 0
      %v861 = vsel %vm347, %v438, 0
      %v864 = vsel %vm347, %v439, 0
      %v867 = vsel %vm347, %v440, 0
      %v870 = vsel %vm347, %v441, 0
      %v873 = vsel %vm347, %v442, 0
      %v876 = vsel %vm347, %v443, 0
      %v879 = vsel %vm347, %v444, 0
      %v882 = vsel %vm347, %v445, 0
      %v885 = vsel %vm347, %v446, 0
      %v888 = vsel %vm347, %v447, 0
      %v891 = vsel %vm347, %v448, 0
      %v894 = vsel %vm347, %v449, 0
      %v897 = vsel %vm347, %v450, 0
      %v900 = vsel %vm347, %v451, 0
      %v903 = vsel %vm347, %v452, 0
      %905 = vmatprep.subr.mxu0 0.0
      %906 = vmatpush1.msra.mxu0 %v453
      %907 = vmatprep.subr.mxu0 0.0
      %908 = vmatpush1.msra.mxu0 0.0
      %909 = vmatprep.subr.mxu0 0.0
      %910 = vmatpush1.msra.mxu0 0.0
      %911 = vmatprep.subr.mxu0 0.0
      %912 = vmatpush1.msra.mxu0 0.0
      %913 = vmatprep.subr.mxu0 0.0
      %914 = vmatpush1.msra.mxu0 0.0
      %915 = vmatprep.subr.mxu0 0.0
      %916 = vmatpush1.msra.mxu0 0.0
      %917 = vmatprep.subr.mxu0 0.0
      %918 = vmatpush1.msra.mxu0 0.0
      %919 = vmatprep.subr.mxu0 0.0
      %920 = vmatpush1.msra.mxu0 0.0
      %921 = vmatprep.subr.mxu0 0.0
      %922 = vmatpush1.msra.mxu0 0.0
      %923 = vmatprep.subr.mxu0 0.0
      %924 = vmatpush1.msra.mxu0 0.0
      %925 = vmatprep.subr.mxu0 0.0
      %926 = vmatpush1.msra.mxu0 0.0
      %927 = vmatprep.subr.mxu0 0.0
      %928 = vmatpush1.msra.mxu0 0.0
      %929 = vmatprep.subr.mxu0 0.0
      %930 = vmatpush1.msra.mxu0 0.0
      %931 = vmatprep.subr.mxu0 0.0
      %932 = vmatpush1.msra.mxu0 0.0
      %933 = vmatprep.subr.mxu0 0.0
      %934 = vmatpush1.msra.mxu0 0.0
      %935 = vmatprep.subr.mxu0 0.0
      %936 = vmatpush1.msra.mxu0 0.0
      %937 = vmatprep.subr.mxu0 0.0
      %938 = vmatpush1.msra.mxu0 0.0
      %939 = vmatprep.subr.mxu0 0.0
      %940 = vmatpush1.msra.mxu0 0.0
      %941 = vmatprep.subr.mxu0 0.0
      %942 = vmatpush1.msra.mxu0 0.0
      %943 = vmatprep.subr.mxu0 0.0
      %944 = vmatpush1.msra.mxu0 0.0
      %945 = vmatprep.subr.mxu0 0.0
      %946 = vmatpush1.msra.mxu0 0.0
      %947 = vmatprep.subr.mxu0 0.0
      %948 = vmatpush1.msra.mxu0 0.0
      %949 = vmatprep.subr.mxu0 0.0
      %950 = vmatpush1.msra.mxu0 0.0
      %951 = vmatprep.subr.mxu0 0.0
      %952 = vmatpush1.msra.mxu0 0.0
      %953 = vmatprep.subr.mxu0 0.0
      %954 = vmatpush1.msra.mxu0 0.0
      %955 = vmatprep.subr.mxu0 0.0
      %956 = vmatpush1.msra.mxu0 0.0
      %957 = vmatprep.subr.mxu0 0.0
      %958 = vmatpush1.msra.mxu0 0.0
      %959 = vmatprep.subr.mxu0 0.0
      %960 = vmatpush1.msra.mxu0 0.0
      %961 = vmatprep.subr.mxu0 0.0
      %962 = vmatpush1.msra.mxu0 0.0
      %963 = vmatprep.subr.mxu0 0.0
      %964 = vmatpush1.msra.mxu0 0.0
      %965 = vmatprep.subr.mxu0 0.0
      %966 = vmatpush1.msra.mxu0 0.0
      %967 = vmatprep.subr.mxu0 0.0
      %968 = vmatpush1.msra.mxu0 0.0
      %969 = vmatprep.mubr.f32.mxu0 0.0
      %970 = vmatmul.mubr.f32.gmra.mrb[0].mxu0 %v810
      %v971 = vpop.f32.mrb[0].mxu0
      %v972 = vadd.f32 %v651, %v971
      %v973 = vpop.f32.mrb[0].mxu0
      %974 = vmatprep.mubr.f32.mxu0 0.0
      %975 = vmatmul.mubr.f32.gmra.mrb[0].mxu0 %v813
      %v976 = vpop.f32.mrb[0].mxu0
      %v977 = vadd.f32 %v656, %v976
      %v978 = vpop.f32.mrb[0].mxu0
      %979 = vmatprep.mubr.f32.mxu0 0.0
      %980 = vmatmul.mubr.f32.gmra.mrb[0].mxu0 %v816
      %v981 = vpop.f32.mrb[0].mxu0
      %v982 = vadd.f32 %v661, %v981
      %v983 = vpop.f32.mrb[0].mxu0
      %984 = vmatprep.mubr.f32.mxu0 0.0
      %985 = vmatmul.mubr.f32.gmra.mrb[0].mxu0 %v819
      %v986 = vpop.f32.mrb[0].mxu0
      %v987 = vadd.f32 %v666, %v986
      %v988 = vpop.f32.mrb[0].mxu0
      %989 = vmatprep.mubr.f32.mxu0 0.0
      %990 = vmatmul.mubr.f32.gmra.mrb[0].mxu0 %v822
      %v991 = vpop.f32.mrb[0].mxu0
      %v992 = vadd.f32 %v671, %v991
      %v993 = vpop.f32.mrb[0].mxu0
      %994 = vmatprep.mubr.f32.mxu0 0.0
      %995 = vmatmul.mubr.f32.gmra.mrb[0].mxu0 %v825
      %v996 = vpop.f32.mrb[0].mxu0
      %v997 = vadd.f32 %v676, %v996
      %v998 = vpop.f32.mrb[0].mxu0
      %999 = vmatprep.mubr.f32.mxu0 0.0
      %1000 = vmatmul.mubr.f32.gmra.mrb[0].mxu0 %v828
      %v1001 = vpop.f32.mrb[0].mxu0
      %v1002 = vadd.f32 %v681, %v1001
      %v1003 = vpop.f32.mrb[0].mxu0
      %1004 = vmatprep.mubr.f32.mxu0 0.0
      %1005 = vmatmul.mubr.f32.gmra.mrb[0].mxu0 %v831
      %v1006 = vpop.f32.mrb[0].mxu0
      %v1007 = vadd.f32 %v686, %v1006
      %v1008 = vpop.f32.mrb[0].mxu0
      %1009 = vmatprep.mubr.f32.mxu0 0.0
      %1010 = vmatmul.mubr.f32.gmra.mrb[0].mxu0 %v834
      %v1011 = vpop.f32.mrb[0].mxu0
      %v1012 = vadd.f32 %v691, %v1011
      %v1013 = vpop.f32.mrb[0].mxu0
      %1014 = vmatprep.mubr.f32.mxu0 0.0
      %1015 = vmatmul.mubr.f32.gmra.mrb[0].mxu0 %v837
      %v1016 = vpop.f32.mrb[0].mxu0
      %v1017 = vadd.f32 %v696, %v1016
      %v1018 = vpop.f32.mrb[0].mxu0
      %1019 = vmatprep.mubr.f32.mxu0 0.0
      %1020 = vmatmul.mubr.f32.gmra.mrb[0].mxu0 %v840
      %v1021 = vpop.f32.mrb[0].mxu0
      %v1022 = vadd.f32 %v701, %v1021
      %v1023 = vpop.f32.mrb[0].mxu0
      %1024 = vmatprep.mubr.f32.mxu0 0.0
      %1025 = vmatmul.mubr.f32.gmra.mrb[0].mxu0 %v843
      %v1026 = vpop.f32.mrb[0].mxu0
      %v1027 = vadd.f32 %v706, %v1026
      %v1028 = vpop.f32.mrb[0].mxu0
      %1029 = vmatprep.mubr.f32.mxu0 0.0
      %1030 = vmatmul.mubr.f32.gmra.mrb[0].mxu0 %v846
      %v1031 = vpop.f32.mrb[0].mxu0
      %v1032 = vadd.f32 %v711, %v1031
      %v1033 = vpop.f32.mrb[0].mxu0
      %1034 = vmatprep.mubr.f32.mxu0 0.0
      %1035 = vmatmul.mubr.f32.gmra.mrb[0].mxu0 %v849
      %v1036 = vpop.f32.mrb[0].mxu0
      %v1037 = vadd.f32 %v716, %v1036
      %v1038 = vpop.f32.mrb[0].mxu0
      %1039 = vmatprep.mubr.f32.mxu0 0.0
      %1040 = vmatmul.mubr.f32.gmra.mrb[0].mxu0 %v852
      %v1041 = vpop.f32.mrb[0].mxu0
      %v1042 = vadd.f32 %v721, %v1041
      %v1043 = vpop.f32.mrb[0].mxu0
      %1044 = vmatprep.mubr.f32.mxu0 0.0
      %1045 = vmatmul.mubr.f32.gmra.mrb[0].mxu0 %v855
      %v1046 = vpop.f32.mrb[0].mxu0
      %v1047 = vadd.f32 %v726, %v1046
      %v1048 = vpop.f32.mrb[0].mxu0
      %1049 = vmatprep.mubr.f32.mxu0 0.0
      %1050 = vmatmul.mubr.f32.gmra.mrb[0].mxu0 %v858
      %v1051 = vpop.f32.mrb[0].mxu0
      %v1052 = vadd.f32 %v731, %v1051
      %v1053 = vpop.f32.mrb[0].mxu0
      %1054 = vmatprep.mubr.f32.mxu0 0.0
      %1055 = vmatmul.mubr.f32.gmra.mrb[0].mxu0 %v861
      %v1056 = vpop.f32.mrb[0].mxu0
      %v1057 = vadd.f32 %v736, %v1056
      %v1058 = vpop.f32.mrb[0].mxu0
      %1059 = vmatprep.mubr.f32.mxu0 0.0
      %1060 = vmatmul.mubr.f32.gmra.mrb[0].mxu0 %v864
      %v1061 = vpop.f32.mrb[0].mxu0
      %v1062 = vadd.f32 %v741, %v1061
      %v1063 = vpop.f32.mrb[0].mxu0
      %1064 = vmatprep.mubr.f32.mxu0 0.0
      %1065 = vmatmul.mubr.f32.gmra.mrb[0].mxu0 %v867
      %v1066 = vpop.f32.mrb[0].mxu0
      %v1067 = vadd.f32 %v746, %v1066
      %v1068 = vpop.f32.mrb[0].mxu0
      %1069 = vmatprep.mubr.f32.mxu0 0.0
      %1070 = vmatmul.mubr.f32.gmra.mrb[0].mxu0 %v870
      %v1071 = vpop.f32.mrb[0].mxu0
      %v1072 = vadd.f32 %v751, %v1071
      %v1073 = vpop.f32.mrb[0].mxu0
      %1074 = vmatprep.mubr.f32.mxu0 0.0
      %1075 = vmatmul.mubr.f32.gmra.mrb[0].mxu0 %v873
      %v1076 = vpop.f32.mrb[0].mxu0
      %v1077 = vadd.f32 %v756, %v1076
      %v1078 = vpop.f32.mrb[0].mxu0
      %1079 = vmatprep.mubr.f32.mxu0 0.0
      %1080 = vmatmul.mubr.f32.gmra.mrb[0].mxu0 %v876
      %v1081 = vpop.f32.mrb[0].mxu0
      %v1082 = vadd.f32 %v761, %v1081
      %v1083 = vpop.f32.mrb[0].mxu0
      %1084 = vmatprep.mubr.f32.mxu0 0.0
      %1085 = vmatmul.mubr.f32.gmra.mrb[0].mxu0 %v879
      %v1086 = vpop.f32.mrb[0].mxu0
      %v1087 = vadd.f32 %v766, %v1086
      %v1088 = vpop.f32.mrb[0].mxu0
      %1089 = vmatprep.mubr.f32.mxu0 0.0
      %1090 = vmatmul.mubr.f32.gmra.mrb[0].mxu0 %v882
      %v1091 = vpop.f32.mrb[0].mxu0
      %v1092 = vadd.f32 %v771, %v1091
      %v1093 = vpop.f32.mrb[0].mxu0
      %1094 = vmatprep.mubr.f32.mxu0 0.0
      %1095 = vmatmul.mubr.f32.gmra.mrb[0].mxu0 %v885
      %v1096 = vpop.f32.mrb[0].mxu0
      %v1097 = vadd.f32 %v776, %v1096
      %v1098 = vpop.f32.mrb[0].mxu0
      %1099 = vmatprep.mubr.f32.mxu0 0.0
      %1100 = vmatmul.mubr.f32.gmra.mrb[0].mxu0 %v888
      %v1101 = vpop.f32.mrb[0].mxu0
      %v1102 = vadd.f32 %v781, %v1101
      %v1103 = vpop.f32.mrb[0].mxu0
      %1104 = vmatprep.mubr.f32.mxu0 0.0
      %1105 = vmatmul.mubr.f32.gmra.mrb[0].mxu0 %v891
      %v1106 = vpop.f32.mrb[0].mxu0
      %v1107 = vadd.f32 %v786, %v1106
      %v1108 = vpop.f32.mrb[0].mxu0
      %1109 = vmatprep.mubr.f32.mxu0 0.0
      %1110 = vmatmul.mubr.f32.gmra.mrb[0].mxu0 %v894
      %v1111 = vpop.f32.mrb[0].mxu0
      %v1112 = vadd.f32 %v791, %v1111
      %v1113 = vpop.f32.mrb[0].mxu0
      %1114 = vmatprep.mubr.f32.mxu0 0.0
      %1115 = vmatmul.mubr.f32.gmra.mrb[0].mxu0 %v897
      %v1116 = vpop.f32.mrb[0].mxu0
      %v1117 = vadd.f32 %v796, %v1116
      %v1118 = vpop.f32.mrb[0].mxu0
      %1119 = vmatprep.mubr.f32.mxu0 0.0
      %1120 = vmatmul.mubr.f32.gmra.mrb[0].mxu0 %v900
      %v1121 = vpop.f32.mrb[0].mxu0
      %v1122 = vadd.f32 %v801, %v1121
      %v1123 = vpop.f32.mrb[0].mxu0
      %1124 = vmatprep.mubr.f32.mxu0 0.0
      %1125 = vmatmul.mubr.f32.gmra.mrb[0].mxu0 %v903
      %v1126 = vpop.f32.mrb[0].mxu0
      %v1127 = vadd.f32 %v806, %v1126
      %v1128 = vpop.f32.mrb[0].mxu0
      %1129 = vdwg.mxu0
      %v1130 = vld [vmem:[#allocation2 + $0x2] sm:$0xff]
      %v1131 = vld [vmem:[#allocation2 + $0xa] sm:$0xff]
      %v1132 = vld [vmem:[#allocation2 + $0x1a] sm:$0xff]
      %v1133 = vld [vmem:[#allocation2 + $0x22] sm:$0xff]
      %v1134 = vld [vmem:[#allocation2 + $0x32] sm:$0xff]
      %v1135 = vld [vmem:[#allocation2 + $0x3a] sm:$0xff]
      %v1136 = vld [vmem:[#allocation2 + $0x4a] sm:$0xff]
      %v1137 = vld [vmem:[#allocation2 + $0x52] sm:$0xff]
      %v1138 = vld [vmem:[#allocation2 + $0x62] sm:$0xff]
      %v1139 = vld [vmem:[#allocation2 + $0x6a] sm:$0xff]
      %v1140 = vld [vmem:[#allocation2 + $0x7a] sm:$0xff]
      %v1141 = vld [vmem:[#allocation2 + $0x82] sm:$0xff]
      %v1142 = vld [vmem:[#allocation2 + $0x92] sm:$0xff]
      %v1143 = vld [vmem:[#allocation2 + $0x9a] sm:$0xff]
      %v1144 = vld [vmem:[#allocation2 + $0xaa] sm:$0xff]
      %v1145 = vld [vmem:[#allocation2 + $0xb2] sm:$0xff]
      %v1146 = vld [vmem:[#allocation2 + $0xc2] sm:$0xff]
      %v1147 = vld [vmem:[#allocation2 + $0xca] sm:$0xff]
      %v1148 = vld [vmem:[#allocation2 + $0xda] sm:$0xff]
      %v1149 = vld [vmem:[#allocation2 + $0xe2] sm:$0xff]
      %v1150 = vld [vmem:[#allocation2 + $0xf2] sm:$0xff]
      %v1151 = vld [vmem:[#allocation2 + $0xfa] sm:$0xff]
      %v1152 = vld [vmem:[#allocation2 + $0x10a] sm:$0xff]
      %v1153 = vld [vmem:[#allocation2 + $0x112] sm:$0xff]
      %v1154 = vld [vmem:[#allocation2 + $0x122] sm:$0xff]
      %v1155 = vld [vmem:[#allocation2 + $0x12a] sm:$0xff]
      %v1156 = vld [vmem:[#allocation2 + $0x13a] sm:$0xff]
      %v1157 = vld [vmem:[#allocation2 + $0x142] sm:$0xff]
      %v1158 = vld [vmem:[#allocation2 + $0x152] sm:$0xff]
      %v1159 = vld [vmem:[#allocation2 + $0x15a] sm:$0xff]
      %v1160 = vld [vmem:[#allocation2 + $0x16a] sm:$0xff]
      %v1161 = vld [vmem:[#allocation2 + $0x172] sm:$0xff]
      %s1162 = scalar_lea.vmem %s2, 16
      %v1163 = vld [vmem:[%s1162] sm:$0xff]
      %v1165 = vsel %vm347, %v1130, 0
      %v1168 = vsel %vm347, %v1131, 0
      %v1171 = vsel %vm347, %v1132, 0
      %v1174 = vsel %vm347, %v1133, 0
      %v1177 = vsel %vm347, %v1134, 0
      %v1180 = vsel %vm347, %v1135, 0
      %v1183 = vsel %vm347, %v1136, 0
      %v1186 = vsel %vm347, %v1137, 0
      %v1189 = vsel %vm347, %v1138, 0
      %v1192 = vsel %vm347, %v1139, 0
      %v1195 = vsel %vm347, %v1140, 0
      %v1198 = vsel %vm347, %v1141, 0
      %v1201 = vsel %vm347, %v1142, 0
      %v1204 = vsel %vm347, %v1143, 0
      %v1207 = vsel %vm347, %v1144, 0
      %v1210 = vsel %vm347, %v1145, 0
      %v1213 = vsel %vm347, %v1146, 0
      %v1216 = vsel %vm347, %v1147, 0
      %v1219 = vsel %vm347, %v1148, 0
      %v1222 = vsel %vm347, %v1149, 0
      %v1225 = vsel %vm347, %v1150, 0
      %v1228 = vsel %vm347, %v1151, 0
      %v1231 = vsel %vm347, %v1152, 0
      %v1234 = vsel %vm347, %v1153, 0
      %v1237 = vsel %vm347, %v1154, 0
      %v1240 = vsel %vm347, %v1155, 0
      %v1243 = vsel %vm347, %v1156, 0
      %v1246 = vsel %vm347, %v1157, 0
      %v1249 = vsel %vm347, %v1158, 0
      %v1252 = vsel %vm347, %v1159, 0
      %v1255 = vsel %vm347, %v1160, 0
      %v1258 = vsel %vm347, %v1161, 0
      %1260 = vmatprep.subr.mxu0 0.0
      %1261 = vmatpush1.msra.mxu0 %v1163
      %1262 = vmatprep.subr.mxu0 0.0
      %1263 = vmatpush1.msra.mxu0 0.0
      %1264 = vmatprep.subr.mxu0 0.0
      %1265 = vmatpush1.msra.mxu0 0.0
      %1266 = vmatprep.subr.mxu0 0.0
      %1267 = vmatpush1.msra.mxu0 0.0
      %1268 = vmatprep.subr.mxu0 0.0
      %1269 = vmatpush1.msra.mxu0 0.0
      %1270 = vmatprep.subr.mxu0 0.0
      %1271 = vmatpush1.msra.mxu0 0.0
      %1272 = vmatprep.subr.mxu0 0.0
      %1273 = vmatpush1.msra.mxu0 0.0
      %1274 = vmatprep.subr.mxu0 0.0
      %1275 = vmatpush1.msra.mxu0 0.0
      %1276 = vmatprep.subr.mxu0 0.0
      %1277 = vmatpush1.msra.mxu0 0.0
      %1278 = vmatprep.subr.mxu0 0.0
      %1279 = vmatpush1.msra.mxu0 0.0
      %1280 = vmatprep.subr.mxu0 0.0
      %1281 = vmatpush1.msra.mxu0 0.0
      %1282 = vmatprep.subr.mxu0 0.0
      %1283 = vmatpush1.msra.mxu0 0.0
      %1284 = vmatprep.subr.mxu0 0.0
      %1285 = vmatpush1.msra.mxu0 0.0
      %1286 = vmatprep.subr.mxu0 0.0
      %1287 = vmatpush1.msra.mxu0 0.0
      %1288 = vmatprep.subr.mxu0 0.0
      %1289 = vmatpush1.msra.mxu0 0.0
      %1290 = vmatprep.subr.mxu0 0.0
      %1291 = vmatpush1.msra.mxu0 0.0
      %1292 = vmatprep.subr.mxu0 0.0
      %1293 = vmatpush1.msra.mxu0 0.0
      %1294 = vmatprep.subr.mxu0 0.0
      %1295 = vmatpush1.msra.mxu0 0.0
      %1296 = vmatprep.subr.mxu0 0.0
      %1297 = vmatpush1.msra.mxu0 0.0
      %1298 = vmatprep.subr.mxu0 0.0
      %1299 = vmatpush1.msra.mxu0 0.0
      %1300 = vmatprep.subr.mxu0 0.0
      %1301 = vmatpush1.msra.mxu0 0.0
      %1302 = vmatprep.subr.mxu0 0.0
      %1303 = vmatpush1.msra.mxu0 0.0
      %1304 = vmatprep.subr.mxu0 0.0
      %1305 = vmatpush1.msra.mxu0 0.0
      %1306 = vmatprep.subr.mxu0 0.0
      %1307 = vmatpush1.msra.mxu0 0.0
      %1308 = vmatprep.subr.mxu0 0.0
      %1309 = vmatpush1.msra.mxu0 0.0
      %1310 = vmatprep.subr.mxu0 0.0
      %1311 = vmatpush1.msra.mxu0 0.0
      %1312 = vmatprep.subr.mxu0 0.0
      %1313 = vmatpush1.msra.mxu0 0.0
      %1314 = vmatprep.subr.mxu0 0.0
      %1315 = vmatpush1.msra.mxu0 0.0
      %1316 = vmatprep.subr.mxu0 0.0
      %1317 = vmatpush1.msra.mxu0 0.0
      %1318 = vmatprep.subr.mxu0 0.0
      %1319 = vmatpush1.msra.mxu0 0.0
      %1320 = vmatprep.subr.mxu0 0.0
      %1321 = vmatpush1.msra.mxu0 0.0
      %1322 = vmatprep.subr.mxu0 0.0
      %1323 = vmatpush1.msra.mxu0 0.0
      %1324 = vmatprep.mubr.f32.mxu0 0.0
      %1325 = vmatmul.mubr.f32.gmra.mrb[0].mxu0 %v1165
      %v1326 = vpop.f32.mrb[0].mxu0
      %v1327 = vadd.f32 0.0, %v1326
      %v1328 = vpop.f32.mrb[0].mxu0
      %1329 = vmatprep.mubr.f32.mxu0 0.0
      %1330 = vmatmul.mubr.f32.gmra.mrb[0].mxu0 %v1168
      %v1331 = vpop.f32.mrb[0].mxu0
      %v1332 = vadd.f32 0.0, %v1331
      %v1333 = vpop.f32.mrb[0].mxu0
      %1334 = vmatprep.mubr.f32.mxu0 0.0
      %1335 = vmatmul.mubr.f32.gmra.mrb[0].mxu0 %v1171
      %v1336 = vpop.f32.mrb[0].mxu0
      %v1337 = vadd.f32 0.0, %v1336
      %v1338 = vpop.f32.mrb[0].mxu0
      %1339 = vmatprep.mubr.f32.mxu0 0.0
      %1340 = vmatmul.mubr.f32.gmra.mrb[0].mxu0 %v1174
      %v1341 = vpop.f32.mrb[0].mxu0
      %v1342 = vadd.f32 0.0, %v1341
      %v1343 = vpop.f32.mrb[0].mxu0
      %1344 = vmatprep.mubr.f32.mxu0 0.0
      %1345 = vmatmul.mubr.f32.gmra.mrb[0].mxu0 %v1177
      %v1346 = vpop.f32.mrb[0].mxu0
      %v1347 = vadd.f32 0.0, %v1346
      %v1348 = vpop.f32.mrb[0].mxu0
      %1349 = vmatprep.mubr.f32.mxu0 0.0
      %1350 = vmatmul.mubr.f32.gmra.mrb[0].mxu0 %v1180
      %v1351 = vpop.f32.mrb[0].mxu0
      %v1352 = vadd.f32 0.0, %v1351
      %v1353 = vpop.f32.mrb[0].mxu0
      %1354 = vmatprep.mubr.f32.mxu0 0.0
      %1355 = vmatmul.mubr.f32.gmra.mrb[0].mxu0 %v1183
      %v1356 = vpop.f32.mrb[0].mxu0
      %v1357 = vadd.f32 0.0, %v1356
      %v1358 = vpop.f32.mrb[0].mxu0
      %1359 = vmatprep.mubr.f32.mxu0 0.0
      %1360 = vmatmul.mubr.f32.gmra.mrb[0].mxu0 %v1186
      %v1361 = vpop.f32.mrb[0].mxu0
      %v1362 = vadd.f32 0.0, %v1361
      %v1363 = vpop.f32.mrb[0].mxu0
      %1364 = vmatprep.mubr.f32.mxu0 0.0
      %1365 = vmatmul.mubr.f32.gmra.mrb[0].mxu0 %v1189
      %v1366 = vpop.f32.mrb[0].mxu0
      %v1367 = vadd.f32 0.0, %v1366
      %v1368 = vpop.f32.mrb[0].mxu0
      %1369 = vmatprep.mubr.f32.mxu0 0.0
      %1370 = vmatmul.mubr.f32.gmra.mrb[0].mxu0 %v1192
      %v1371 = vpop.f32.mrb[0].mxu0
      %v1372 = vadd.f32 0.0, %v1371
      %v1373 = vpop.f32.mrb[0].mxu0
      %1374 = vmatprep.mubr.f32.mxu0 0.0
      %1375 = vmatmul.mubr.f32.gmra.mrb[0].mxu0 %v1195
      %v1376 = vpop.f32.mrb[0].mxu0
      %v1377 = vadd.f32 0.0, %v1376
      %v1378 = vpop.f32.mrb[0].mxu0
      %1379 = vmatprep.mubr.f32.mxu0 0.0
      %1380 = vmatmul.mubr.f32.gmra.mrb[0].mxu0 %v1198
      %v1381 = vpop.f32.mrb[0].mxu0
      %v1382 = vadd.f32 0.0, %v1381
      %v1383 = vpop.f32.mrb[0].mxu0
      %1384 = vmatprep.mubr.f32.mxu0 0.0
      %1385 = vmatmul.mubr.f32.gmra.mrb[0].mxu0 %v1201
      %v1386 = vpop.f32.mrb[0].mxu0
      %v1387 = vadd.f32 0.0, %v1386
      %v1388 = vpop.f32.mrb[0].mxu0
      %1389 = vmatprep.mubr.f32.mxu0 0.0
      %1390 = vmatmul.mubr.f32.gmra.mrb[0].mxu0 %v1204
      %v1391 = vpop.f32.mrb[0].mxu0
      %v1392 = vadd.f32 0.0, %v1391
      %v1393 = vpop.f32.mrb[0].mxu0
      %1394 = vmatprep.mubr.f32.mxu0 0.0
      %1395 = vmatmul.mubr.f32.gmra.mrb[0].mxu0 %v1207
      %v1396 = vpop.f32.mrb[0].mxu0
      %v1397 = vadd.f32 0.0, %v1396
      %v1398 = vpop.f32.mrb[0].mxu0
      %1399 = vmatprep.mubr.f32.mxu0 0.0
      %1400 = vmatmul.mubr.f32.gmra.mrb[0].mxu0 %v1210
      %v1401 = vpop.f32.mrb[0].mxu0
      %v1402 = vadd.f32 0.0, %v1401
      %v1403 = vpop.f32.mrb[0].mxu0
      %1404 = vmatprep.mubr.f32.mxu0 0.0
      %1405 = vmatmul.mubr.f32.gmra.mrb[0].mxu0 %v1213
      %v1406 = vpop.f32.mrb[0].mxu0
      %v1407 = vadd.f32 0.0, %v1406
      %v1408 = vpop.f32.mrb[0].mxu0
      %1409 = vmatprep.mubr.f32.mxu0 0.0
      %1410 = vmatmul.mubr.f32.gmra.mrb[0].mxu0 %v1216
      %v1411 = vpop.f32.mrb[0].mxu0
      %v1412 = vadd.f32 0.0, %v1411
      %v1413 = vpop.f32.mrb[0].mxu0
      %1414 = vmatprep.mubr.f32.mxu0 0.0
      %1415 = vmatmul.mubr.f32.gmra.mrb[0].mxu0 %v1219
      %v1416 = vpop.f32.mrb[0].mxu0
      %v1417 = vadd.f32 0.0, %v1416
      %v1418 = vpop.f32.mrb[0].mxu0
      %1419 = vmatprep.mubr.f32.mxu0 0.0
      %1420 = vmatmul.mubr.f32.gmra.mrb[0].mxu0 %v1222
      %v1421 = vpop.f32.mrb[0].mxu0
      %v1422 = vadd.f32 0.0, %v1421
      %v1423 = vpop.f32.mrb[0].mxu0
      %1424 = vmatprep.mubr.f32.mxu0 0.0
      %1425 = vmatmul.mubr.f32.gmra.mrb[0].mxu0 %v1225
      %v1426 = vpop.f32.mrb[0].mxu0
      %v1427 = vadd.f32 0.0, %v1426
      %v1428 = vpop.f32.mrb[0].mxu0
      %1429 = vmatprep.mubr.f32.mxu0 0.0
      %1430 = vmatmul.mubr.f32.gmra.mrb[0].mxu0 %v1228
      %v1431 = vpop.f32.mrb[0].mxu0
      %v1432 = vadd.f32 0.0, %v1431
      %v1433 = vpop.f32.mrb[0].mxu0
      %1434 = vmatprep.mubr.f32.mxu0 0.0
      %1435 = vmatmul.mubr.f32.gmra.mrb[0].mxu0 %v1231
      %v1436 = vpop.f32.mrb[0].mxu0
      %v1437 = vadd.f32 0.0, %v1436
      %v1438 = vpop.f32.mrb[0].mxu0
      %1439 = vmatprep.mubr.f32.mxu0 0.0
      %1440 = vmatmul.mubr.f32.gmra.mrb[0].mxu0 %v1234
      %v1441 = vpop.f32.mrb[0].mxu0
      %v1442 = vadd.f32 0.0, %v1441
      %v1443 = vpop.f32.mrb[0].mxu0
      %1444 = vmatprep.mubr.f32.mxu0 0.0
      %1445 = vmatmul.mubr.f32.gmra.mrb[0].mxu0 %v1237
      %v1446 = vpop.f32.mrb[0].mxu0
      %v1447 = vadd.f32 0.0, %v1446
      %v1448 = vpop.f32.mrb[0].mxu0
      %1449 = vmatprep.mubr.f32.mxu0 0.0
      %1450 = vmatmul.mubr.f32.gmra.mrb[0].mxu0 %v1240
      %v1451 = vpop.f32.mrb[0].mxu0
      %v1452 = vadd.f32 0.0, %v1451
      %v1453 = vpop.f32.mrb[0].mxu0
      %1454 = vmatprep.mubr.f32.mxu0 0.0
      %1455 = vmatmul.mubr.f32.gmra.mrb[0].mxu0 %v1243
      %v1456 = vpop.f32.mrb[0].mxu0
      %v1457 = vadd.f32 0.0, %v1456
      %v1458 = vpop.f32.mrb[0].mxu0
      %1459 = vmatprep.mubr.f32.mxu0 0.0
      %1460 = vmatmul.mubr.f32.gmra.mrb[0].mxu0 %v1246
      %v1461 = vpop.f32.mrb[0].mxu0
      %v1462 = vadd.f32 0.0, %v1461
      %v1463 = vpop.f32.mrb[0].mxu0
      %1464 = vmatprep.mubr.f32.mxu0 0.0
      %1465 = vmatmul.mubr.f32.gmra.mrb[0].mxu0 %v1249
      %v1466 = vpop.f32.mrb[0].mxu0
      %v1467 = vadd.f32 0.0, %v1466
      %v1468 = vpop.f32.mrb[0].mxu0
      %1469 = vmatprep.mubr.f32.mxu0 0.0
      %1470 = vmatmul.mubr.f32.gmra.mrb[0].mxu0 %v1252
      %v1471 = vpop.f32.mrb[0].mxu0
      %v1472 = vadd.f32 0.0, %v1471
      %v1473 = vpop.f32.mrb[0].mxu0
      %1474 = vmatprep.mubr.f32.mxu0 0.0
      %1475 = vmatmul.mubr.f32.gmra.mrb[0].mxu0 %v1255
      %v1476 = vpop.f32.mrb[0].mxu0
      %v1477 = vadd.f32 0.0, %v1476
      %v1478 = vpop.f32.mrb[0].mxu0
      %1479 = vmatprep.mubr.f32.mxu0 0.0
      %1480 = vmatmul.mubr.f32.gmra.mrb[0].mxu0 %v1258
      %v1481 = vpop.f32.mrb[0].mxu0
      %v1482 = vadd.f32 0.0, %v1481
      %v1483 = vpop.f32.mrb[0].mxu0
      %1484 = vdwg.mxu0
      %v1485 = vadd.f32 %v972, %v1327
      %v1486 = vadd.f32 %v977, %v1332
      %v1487 = vadd.f32 %v982, %v1337
      %v1488 = vadd.f32 %v987, %v1342
      %v1489 = vadd.f32 %v992, %v1347
      %v1490 = vadd.f32 %v997, %v1352
      %v1491 = vadd.f32 %v1002, %v1357
      %v1492 = vadd.f32 %v1007, %v1362
      %v1493 = vadd.f32 %v1012, %v1367
      %v1494 = vadd.f32 %v1017, %v1372
      %v1495 = vadd.f32 %v1022, %v1377
      %v1496 = vadd.f32 %v1027, %v1382
      %v1497 = vadd.f32 %v1032, %v1387
      %v1498 = vadd.f32 %v1037, %v1392
      %v1499 = vadd.f32 %v1042, %v1397
      %v1500 = vadd.f32 %v1047, %v1402
      %v1501 = vadd.f32 %v1052, %v1407
      %v1502 = vadd.f32 %v1057, %v1412
      %v1503 = vadd.f32 %v1062, %v1417
      %v1504 = vadd.f32 %v1067, %v1422
      %v1505 = vadd.f32 %v1072, %v1427
      %v1506 = vadd.f32 %v1077, %v1432
      %v1507 = vadd.f32 %v1082, %v1437
      %v1508 = vadd.f32 %v1087, %v1442
      %v1509 = vadd.f32 %v1092, %v1447
      %v1510 = vadd.f32 %v1097, %v1452
      %v1511 = vadd.f32 %v1102, %v1457
      %v1512 = vadd.f32 %v1107, %v1462
      %v1513 = vadd.f32 %v1112, %v1467
      %v1514 = vadd.f32 %v1117, %v1472
      %v1515 = vadd.f32 %v1122, %v1477
      %v1516 = vadd.f32 %v1127, %v1482
      %v1517 = vld [vmem:[%s355] sm:$0xff]
      %v1518 = vld [vmem:[%s355 + $0x8] sm:$0xff]
      %v1519 = vld [vmem:[%s355 + $0x18] sm:$0xff]
      %v1520 = vld [vmem:[%s355 + $0x20] sm:$0xff]
      %v1521 = vld [vmem:[%s355 + $0x30] sm:$0xff]
      %v1522 = vld [vmem:[%s355 + $0x38] sm:$0xff]
      %v1523 = vld [vmem:[%s355 + $0x48] sm:$0xff]
      %v1524 = vld [vmem:[%s355 + $0x50] sm:$0xff]
      %v1525 = vld [vmem:[%s355 + $0x60] sm:$0xff]
      %v1526 = vld [vmem:[%s355 + $0x68] sm:$0xff]
      %v1527 = vld [vmem:[%s355 + $0x78] sm:$0xff]
      %v1528 = vld [vmem:[%s355 + $0x80] sm:$0xff]
      %v1529 = vld [vmem:[%s355 + $0x90] sm:$0xff]
      %v1530 = vld [vmem:[%s355 + $0x98] sm:$0xff]
      %v1531 = vld [vmem:[%s355 + $0xa8] sm:$0xff]
      %v1532 = vld [vmem:[%s355 + $0xb0] sm:$0xff]
      %v1533 = vld [vmem:[%s355 + $0xc0] sm:$0xff]
      %v1534 = vld [vmem:[%s355 + $0xc8] sm:$0xff]
      %v1535 = vld [vmem:[%s355 + $0xd8] sm:$0xff]
      %v1536 = vld [vmem:[%s355 + $0xe0] sm:$0xff]
      %v1537 = vld [vmem:[%s355 + $0xf0] sm:$0xff]
      %v1538 = vld [vmem:[%s355 + $0xf8] sm:$0xff]
      %v1539 = vld [vmem:[%s355 + $0x108] sm:$0xff]
      %v1540 = vld [vmem:[%s355 + $0x110] sm:$0xff]
      %v1541 = vld [vmem:[%s355 + $0x120] sm:$0xff]
      %v1542 = vld [vmem:[%s355 + $0x128] sm:$0xff]
      %v1543 = vld [vmem:[%s355 + $0x138] sm:$0xff]
      %v1544 = vld [vmem:[%s355 + $0x140] sm:$0xff]
      %v1545 = vld [vmem:[%s355 + $0x150] sm:$0xff]
      %v1546 = vld [vmem:[%s355 + $0x158] sm:$0xff]
      %v1547 = vld [vmem:[%s355 + $0x168] sm:$0xff]
      %v1548 = vld [vmem:[%s355 + $0x170] sm:$0xff]
      %s1549 = scalar_lea.vmem %s2, 24
      %v1550 = vld [vmem:[%s1549] sm:$0xff]
      %v1552 = vsel %vm347, %v1517, 0
      %v1555 = vsel %vm347, %v1518, 0
      %v1558 = vsel %vm347, %v1519, 0
      %v1561 = vsel %vm347, %v1520, 0
      %v1564 = vsel %vm347, %v1521, 0
      %v1567 = vsel %vm347, %v1522, 0
      %v1570 = vsel %vm347, %v1523, 0
      %v1573 = vsel %vm347, %v1524, 0
      %v1576 = vsel %vm347, %v1525, 0
      %v1579 = vsel %vm347, %v1526, 0
      %v1582 = vsel %vm347, %v1527, 0
      %v1585 = vsel %vm347, %v1528, 0
      %v1588 = vsel %vm347, %v1529, 0
      %v1591 = vsel %vm347, %v1530, 0
      %v1594 = vsel %vm347, %v1531, 0
      %v1597 = vsel %vm347, %v1532, 0
      %v1600 = vsel %vm347, %v1533, 0
      %v1603 = vsel %vm347, %v1534, 0
      %v1606 = vsel %vm347, %v1535, 0
      %v1609 = vsel %vm347, %v1536, 0
      %v1612 = vsel %vm347, %v1537, 0
      %v1615 = vsel %vm347, %v1538, 0
      %v1618 = vsel %vm347, %v1539, 0
      %v1621 = vsel %vm347, %v1540, 0
      %v1624 = vsel %vm347, %v1541, 0
      %v1627 = vsel %vm347, %v1542, 0
      %v1630 = vsel %vm347, %v1543, 0
      %v1633 = vsel %vm347, %v1544, 0
      %v1636 = vsel %vm347, %v1545, 0
      %v1639 = vsel %vm347, %v1546, 0
      %v1642 = vsel %vm347, %v1547, 0
      %v1645 = vsel %vm347, %v1548, 0
      %1647 = vmatprep.subr.mxu0 0.0
      %1648 = vmatpush1.msra.mxu0 %v1550
      %1649 = vmatprep.subr.mxu0 0.0
      %1650 = vmatpush1.msra.mxu0 0.0
      %1651 = vmatprep.subr.mxu0 0.0
      %1652 = vmatpush1.msra.mxu0 0.0
      %1653 = vmatprep.subr.mxu0 0.0
      %1654 = vmatpush1.msra.mxu0 0.0
      %1655 = vmatprep.subr.mxu0 0.0
      %1656 = vmatpush1.msra.mxu0 0.0
      %1657 = vmatprep.subr.mxu0 0.0
      %1658 = vmatpush1.msra.mxu0 0.0
      %1659 = vmatprep.subr.mxu0 0.0
      %1660 = vmatpush1.msra.mxu0 0.0
      %1661 = vmatprep.subr.mxu0 0.0
      %1662 = vmatpush1.msra.mxu0 0.0
      %1663 = vmatprep.subr.mxu0 0.0
      %1664 = vmatpush1.msra.mxu0 0.0
      %1665 = vmatprep.subr.mxu0 0.0
      %1666 = vmatpush1.msra.mxu0 0.0
      %1667 = vmatprep.subr.mxu0 0.0
      %1668 = vmatpush1.msra.mxu0 0.0
      %1669 = vmatprep.subr.mxu0 0.0
      %1670 = vmatpush1.msra.mxu0 0.0
      %1671 = vmatprep.subr.mxu0 0.0
      %1672 = vmatpush1.msra.mxu0 0.0
      %1673 = vmatprep.subr.mxu0 0.0
      %1674 = vmatpush1.msra.mxu0 0.0
      %1675 = vmatprep.subr.mxu0 0.0
      %1676 = vmatpush1.msra.mxu0 0.0
      %1677 = vmatprep.subr.mxu0 0.0
      %1678 = vmatpush1.msra.mxu0 0.0
      %1679 = vmatprep.subr.mxu0 0.0
      %1680 = vmatpush1.msra.mxu0 0.0
      %1681 = vmatprep.subr.mxu0 0.0
      %1682 = vmatpush1.msra.mxu0 0.0
      %1683 = vmatprep.subr.mxu0 0.0
      %1684 = vmatpush1.msra.mxu0 0.0
      %1685 = vmatprep.subr.mxu0 0.0
      %1686 = vmatpush1.msra.mxu0 0.0
      %1687 = vmatprep.subr.mxu0 0.0
      %1688 = vmatpush1.msra.mxu0 0.0
      %1689 = vmatprep.subr.mxu0 0.0
      %1690 = vmatpush1.msra.mxu0 0.0
      %1691 = vmatprep.subr.mxu0 0.0
      %1692 = vmatpush1.msra.mxu0 0.0
      %1693 = vmatprep.subr.mxu0 0.0
      %1694 = vmatpush1.msra.mxu0 0.0
      %1695 = vmatprep.subr.mxu0 0.0
      %1696 = vmatpush1.msra.mxu0 0.0
      %1697 = vmatprep.subr.mxu0 0.0
      %1698 = vmatpush1.msra.mxu0 0.0
      %1699 = vmatprep.subr.mxu0 0.0
      %1700 = vmatpush1.msra.mxu0 0.0
      %1701 = vmatprep.subr.mxu0 0.0
      %1702 = vmatpush1.msra.mxu0 0.0
      %1703 = vmatprep.subr.mxu0 0.0
      %1704 = vmatpush1.msra.mxu0 0.0
      %1705 = vmatprep.subr.mxu0 0.0
      %1706 = vmatpush1.msra.mxu0 0.0
      %1707 = vmatprep.subr.mxu0 0.0
      %1708 = vmatpush1.msra.mxu0 0.0
      %1709 = vmatprep.subr.mxu0 0.0
      %1710 = vmatpush1.msra.mxu0 0.0
      %1711 = vmatprep.mubr.f32.mxu0 0.0
      %1712 = vmatmul.mubr.f32.gmra.mrb[0].mxu0 %v1552
      %v1713 = vpop.f32.mrb[0].mxu0
      %v1714 = vadd.f32 0.0, %v1713
      %v1715 = vpop.f32.mrb[0].mxu0
      %1716 = vmatprep.mubr.f32.mxu0 0.0
      %1717 = vmatmul.mubr.f32.gmra.mrb[0].mxu0 %v1555
      %v1718 = vpop.f32.mrb[0].mxu0
      %v1719 = vadd.f32 0.0, %v1718
      %v1720 = vpop.f32.mrb[0].mxu0
      %1721 = vmatprep.mubr.f32.mxu0 0.0
      %1722 = vmatmul.mubr.f32.gmra.mrb[0].mxu0 %v1558
      %v1723 = vpop.f32.mrb[0].mxu0
      %v1724 = vadd.f32 0.0, %v1723
      %v1725 = vpop.f32.mrb[0].mxu0
      %1726 = vmatprep.mubr.f32.mxu0 0.0
      %1727 = vmatmul.mubr.f32.gmra.mrb[0].mxu0 %v1561
      %v1728 = vpop.f32.mrb[0].mxu0
      %v1729 = vadd.f32 0.0, %v1728
      %v1730 = vpop.f32.mrb[0].mxu0
      %1731 = vmatprep.mubr.f32.mxu0 0.0
      %1732 = vmatmul.mubr.f32.gmra.mrb[0].mxu0 %v1564
      %v1733 = vpop.f32.mrb[0].mxu0
      %v1734 = vadd.f32 0.0, %v1733
      %v1735 = vpop.f32.mrb[0].mxu0
      %1736 = vmatprep.mubr.f32.mxu0 0.0
      %1737 = vmatmul.mubr.f32.gmra.mrb[0].mxu0 %v1567
      %v1738 = vpop.f32.mrb[0].mxu0
      %v1739 = vadd.f32 0.0, %v1738
      %v1740 = vpop.f32.mrb[0].mxu0
      %1741 = vmatprep.mubr.f32.mxu0 0.0
      %1742 = vmatmul.mubr.f32.gmra.mrb[0].mxu0 %v1570
      %v1743 = vpop.f32.mrb[0].mxu0
      %v1744 = vadd.f32 0.0, %v1743
      %v1745 = vpop.f32.mrb[0].mxu0
      %1746 = vmatprep.mubr.f32.mxu0 0.0
      %1747 = vmatmul.mubr.f32.gmra.mrb[0].mxu0 %v1573
      %v1748 = vpop.f32.mrb[0].mxu0
      %v1749 = vadd.f32 0.0, %v1748
      %v1750 = vpop.f32.mrb[0].mxu0
      %1751 = vmatprep.mubr.f32.mxu0 0.0
      %1752 = vmatmul.mubr.f32.gmra.mrb[0].mxu0 %v1576
      %v1753 = vpop.f32.mrb[0].mxu0
      %v1754 = vadd.f32 0.0, %v1753
      %v1755 = vpop.f32.mrb[0].mxu0
      %1756 = vmatprep.mubr.f32.mxu0 0.0
      %1757 = vmatmul.mubr.f32.gmra.mrb[0].mxu0 %v1579
      %v1758 = vpop.f32.mrb[0].mxu0
      %v1759 = vadd.f32 0.0, %v1758
      %v1760 = vpop.f32.mrb[0].mxu0
      %1761 = vmatprep.mubr.f32.mxu0 0.0
      %1762 = vmatmul.mubr.f32.gmra.mrb[0].mxu0 %v1582
      %v1763 = vpop.f32.mrb[0].mxu0
      %v1764 = vadd.f32 0.0, %v1763
      %v1765 = vpop.f32.mrb[0].mxu0
      %1766 = vmatprep.mubr.f32.mxu0 0.0
      %1767 = vmatmul.mubr.f32.gmra.mrb[0].mxu0 %v1585
      %v1768 = vpop.f32.mrb[0].mxu0
      %v1769 = vadd.f32 0.0, %v1768
      %v1770 = vpop.f32.mrb[0].mxu0
      %1771 = vmatprep.mubr.f32.mxu0 0.0
      %1772 = vmatmul.mubr.f32.gmra.mrb[0].mxu0 %v1588
      %v1773 = vpop.f32.mrb[0].mxu0
      %v1774 = vadd.f32 0.0, %v1773
      %v1775 = vpop.f32.mrb[0].mxu0
      %1776 = vmatprep.mubr.f32.mxu0 0.0
      %1777 = vmatmul.mubr.f32.gmra.mrb[0].mxu0 %v1591
      %v1778 = vpop.f32.mrb[0].mxu0
      %v1779 = vadd.f32 0.0, %v1778
      %v1780 = vpop.f32.mrb[0].mxu0
      %1781 = vmatprep.mubr.f32.mxu0 0.0
      %1782 = vmatmul.mubr.f32.gmra.mrb[0].mxu0 %v1594
      %v1783 = vpop.f32.mrb[0].mxu0
      %v1784 = vadd.f32 0.0, %v1783
      %v1785 = vpop.f32.mrb[0].mxu0
      %1786 = vmatprep.mubr.f32.mxu0 0.0
      %1787 = vmatmul.mubr.f32.gmra.mrb[0].mxu0 %v1597
      %v1788 = vpop.f32.mrb[0].mxu0
      %v1789 = vadd.f32 0.0, %v1788
      %v1790 = vpop.f32.mrb[0].mxu0
      %1791 = vmatprep.mubr.f32.mxu0 0.0
      %1792 = vmatmul.mubr.f32.gmra.mrb[0].mxu0 %v1600
      %v1793 = vpop.f32.mrb[0].mxu0
      %v1794 = vadd.f32 0.0, %v1793
      %v1795 = vpop.f32.mrb[0].mxu0
      %1796 = vmatprep.mubr.f32.mxu0 0.0
      %1797 = vmatmul.mubr.f32.gmra.mrb[0].mxu0 %v1603
      %v1798 = vpop.f32.mrb[0].mxu0
      %v1799 = vadd.f32 0.0, %v1798
      %v1800 = vpop.f32.mrb[0].mxu0
      %1801 = vmatprep.mubr.f32.mxu0 0.0
      %1802 = vmatmul.mubr.f32.gmra.mrb[0].mxu0 %v1606
      %v1803 = vpop.f32.mrb[0].mxu0
      %v1804 = vadd.f32 0.0, %v1803
      %v1805 = vpop.f32.mrb[0].mxu0
      %1806 = vmatprep.mubr.f32.mxu0 0.0
      %1807 = vmatmul.mubr.f32.gmra.mrb[0].mxu0 %v1609
      %v1808 = vpop.f32.mrb[0].mxu0
      %v1809 = vadd.f32 0.0, %v1808
      %v1810 = vpop.f32.mrb[0].mxu0
      %1811 = vmatprep.mubr.f32.mxu0 0.0
      %1812 = vmatmul.mubr.f32.gmra.mrb[0].mxu0 %v1612
      %v1813 = vpop.f32.mrb[0].mxu0
      %v1814 = vadd.f32 0.0, %v1813
      %v1815 = vpop.f32.mrb[0].mxu0
      %1816 = vmatprep.mubr.f32.mxu0 0.0
      %1817 = vmatmul.mubr.f32.gmra.mrb[0].mxu0 %v1615
      %v1818 = vpop.f32.mrb[0].mxu0
      %v1819 = vadd.f32 0.0, %v1818
      %v1820 = vpop.f32.mrb[0].mxu0
      %1821 = vmatprep.mubr.f32.mxu0 0.0
      %1822 = vmatmul.mubr.f32.gmra.mrb[0].mxu0 %v1618
      %v1823 = vpop.f32.mrb[0].mxu0
      %v1824 = vadd.f32 0.0, %v1823
      %v1825 = vpop.f32.mrb[0].mxu0
      %1826 = vmatprep.mubr.f32.mxu0 0.0
      %1827 = vmatmul.mubr.f32.gmra.mrb[0].mxu0 %v1621
      %v1828 = vpop.f32.mrb[0].mxu0
      %v1829 = vadd.f32 0.0, %v1828
      %v1830 = vpop.f32.mrb[0].mxu0
      %1831 = vmatprep.mubr.f32.mxu0 0.0
      %1832 = vmatmul.mubr.f32.gmra.mrb[0].mxu0 %v1624
      %v1833 = vpop.f32.mrb[0].mxu0
      %v1834 = vadd.f32 0.0, %v1833
      %v1835 = vpop.f32.mrb[0].mxu0
      %1836 = vmatprep.mubr.f32.mxu0 0.0
      %1837 = vmatmul.mubr.f32.gmra.mrb[0].mxu0 %v1627
      %v1838 = vpop.f32.mrb[0].mxu0
      %v1839 = vadd.f32 0.0, %v1838
      %v1840 = vpop.f32.mrb[0].mxu0
      %1841 = vmatprep.mubr.f32.mxu0 0.0
      %1842 = vmatmul.mubr.f32.gmra.mrb[0].mxu0 %v1630
      %v1843 = vpop.f32.mrb[0].mxu0
      %v1844 = vadd.f32 0.0, %v1843
      %v1845 = vpop.f32.mrb[0].mxu0
      %1846 = vmatprep.mubr.f32.mxu0 0.0
      %1847 = vmatmul.mubr.f32.gmra.mrb[0].mxu0 %v1633
      %v1848 = vpop.f32.mrb[0].mxu0
      %v1849 = vadd.f32 0.0, %v1848
      %v1850 = vpop.f32.mrb[0].mxu0
      %1851 = vmatprep.mubr.f32.mxu0 0.0
      %1852 = vmatmul.mubr.f32.gmra.mrb[0].mxu0 %v1636
      %v1853 = vpop.f32.mrb[0].mxu0
      %v1854 = vadd.f32 0.0, %v1853
      %v1855 = vpop.f32.mrb[0].mxu0
      %1856 = vmatprep.mubr.f32.mxu0 0.0
      %1857 = vmatmul.mubr.f32.gmra.mrb[0].mxu0 %v1639
      %v1858 = vpop.f32.mrb[0].mxu0
      %v1859 = vadd.f32 0.0, %v1858
      %v1860 = vpop.f32.mrb[0].mxu0
      %1861 = vmatprep.mubr.f32.mxu0 0.0
      %1862 = vmatmul.mubr.f32.gmra.mrb[0].mxu0 %v1642
      %v1863 = vpop.f32.mrb[0].mxu0
      %v1864 = vadd.f32 0.0, %v1863
      %v1865 = vpop.f32.mrb[0].mxu0
      %1866 = vmatprep.mubr.f32.mxu0 0.0
      %1867 = vmatmul.mubr.f32.gmra.mrb[0].mxu0 %v1645
      %v1868 = vpop.f32.mrb[0].mxu0
      %v1869 = vadd.f32 0.0, %v1868
      %v1870 = vpop.f32.mrb[0].mxu0
      %1871 = vdwg.mxu0
      %v1872 = vadd.f32 %v1485, %v1714
      %v1873 = vadd.f32 %v1486, %v1719
      %v1874 = vadd.f32 %v1487, %v1724
      %v1875 = vadd.f32 %v1488, %v1729
      %v1876 = vadd.f32 %v1489, %v1734
      %v1877 = vadd.f32 %v1490, %v1739
      %v1878 = vadd.f32 %v1491, %v1744
      %v1879 = vadd.f32 %v1492, %v1749
      %v1880 = vadd.f32 %v1493, %v1754
      %v1881 = vadd.f32 %v1494, %v1759
      %v1882 = vadd.f32 %v1495, %v1764
      %v1883 = vadd.f32 %v1496, %v1769
      %v1884 = vadd.f32 %v1497, %v1774
      %v1885 = vadd.f32 %v1498, %v1779
      %v1886 = vadd.f32 %v1499, %v1784
      %v1887 = vadd.f32 %v1500, %v1789
      %v1888 = vadd.f32 %v1501, %v1794
      %v1889 = vadd.f32 %v1502, %v1799
      %v1890 = vadd.f32 %v1503, %v1804
      %v1891 = vadd.f32 %v1504, %v1809
      %v1892 = vadd.f32 %v1505, %v1814
      %v1893 = vadd.f32 %v1506, %v1819
      %v1894 = vadd.f32 %v1507, %v1824
      %v1895 = vadd.f32 %v1508, %v1829
      %v1896 = vadd.f32 %v1509, %v1834
      %v1897 = vadd.f32 %v1510, %v1839
      %v1898 = vadd.f32 %v1511, %v1844
      %v1899 = vadd.f32 %v1512, %v1849
      %v1900 = vadd.f32 %v1513, %v1854
      %v1901 = vadd.f32 %v1514, %v1859
      %v1902 = vadd.f32 %v1515, %v1864
      %v1903 = vadd.f32 %v1516, %v1869
      %v1904 = vld [vmem:[%s355 + $0x1] sm:$0xff]
      %v1905 = vld [vmem:[%s355 + $0x9] sm:$0xff]
      %v1906 = vld [vmem:[%s355 + $0x19] sm:$0xff]
      %v1907 = vld [vmem:[%s355 + $0x21] sm:$0xff]
      %v1908 = vld [vmem:[%s355 + $0x31] sm:$0xff]
      %v1909 = vld [vmem:[%s355 + $0x39] sm:$0xff]
      %v1910 = vld [vmem:[%s355 + $0x49] sm:$0xff]
      %v1911 = vld [vmem:[%s355 + $0x51] sm:$0xff]
      %v1912 = vld [vmem:[%s355 + $0x61] sm:$0xff]
      %v1913 = vld [vmem:[%s355 + $0x69] sm:$0xff]
      %v1914 = vld [vmem:[%s355 + $0x79] sm:$0xff]
      %v1915 = vld [vmem:[%s355 + $0x81] sm:$0xff]
      %v1916 = vld [vmem:[%s355 + $0x91] sm:$0xff]
      %v1917 = vld [vmem:[%s355 + $0x99] sm:$0xff]
      %v1918 = vld [vmem:[%s355 + $0xa9] sm:$0xff]
      %v1919 = vld [vmem:[%s355 + $0xb1] sm:$0xff]
      %v1920 = vld [vmem:[%s355 + $0xc1] sm:$0xff]
      %v1921 = vld [vmem:[%s355 + $0xc9] sm:$0xff]
      %v1922 = vld [vmem:[%s355 + $0xd9] sm:$0xff]
      %v1923 = vld [vmem:[%s355 + $0xe1] sm:$0xff]
      %v1924 = vld [vmem:[%s355 + $0xf1] sm:$0xff]
      %v1925 = vld [vmem:[%s355 + $0xf9] sm:$0xff]
      %v1926 = vld [vmem:[%s355 + $0x109] sm:$0xff]
      %v1927 = vld [vmem:[%s355 + $0x111] sm:$0xff]
      %v1928 = vld [vmem:[%s355 + $0x121] sm:$0xff]
      %v1929 = vld [vmem:[%s355 + $0x129] sm:$0xff]
      %v1930 = vld [vmem:[%s355 + $0x139] sm:$0xff]
      %v1931 = vld [vmem:[%s355 + $0x141] sm:$0xff]
      %v1932 = vld [vmem:[%s355 + $0x151] sm:$0xff]
      %v1933 = vld [vmem:[%s355 + $0x159] sm:$0xff]
      %v1934 = vld [vmem:[%s355 + $0x169] sm:$0xff]
      %v1935 = vld [vmem:[%s355 + $0x171] sm:$0xff]
      %s1936 = scalar_lea.vmem %s2, 32
      %v1937 = vld [vmem:[%s1936] sm:$0xff]
      %v1939 = vsel %vm347, %v1904, 0
      %v1942 = vsel %vm347, %v1905, 0
      %v1945 = vsel %vm347, %v1906, 0
      %v1948 = vsel %vm347, %v1907, 0
      %v1951 = vsel %vm347, %v1908, 0
      %v1954 = vsel %vm347, %v1909, 0
      %v1957 = vsel %vm347, %v1910, 0
      %v1960 = vsel %vm347, %v1911, 0
      %v1963 = vsel %vm347, %v1912, 0
      %v1966 = vsel %vm347, %v1913, 0
      %v1969 = vsel %vm347, %v1914, 0
      %v1972 = vsel %vm347, %v1915, 0
      %v1975 = vsel %vm347, %v1916, 0
      %v1978 = vsel %vm347, %v1917, 0
      %v1981 = vsel %vm347, %v1918, 0
      %v1984 = vsel %vm347, %v1919, 0
      %v1987 = vsel %vm347, %v1920, 0
      %v1990 = vsel %vm347, %v1921, 0
      %v1993 = vsel %vm347, %v1922, 0
      %v1996 = vsel %vm347, %v1923, 0
      %v1999 = vsel %vm347, %v1924, 0
      %v2002 = vsel %vm347, %v1925, 0
      %v2005 = vsel %vm347, %v1926, 0
      %v2008 = vsel %vm347, %v1927, 0
      %v2011 = vsel %vm347, %v1928, 0
      %v2014 = vsel %vm347, %v1929, 0
      %v2017 = vsel %vm347, %v1930, 0
      %v2020 = vsel %vm347, %v1931, 0
      %v2023 = vsel %vm347, %v1932, 0
      %v2026 = vsel %vm347, %v1933, 0
      %v2029 = vsel %vm347, %v1934, 0
      %v2032 = vsel %vm347, %v1935, 0
      %2034 = vmatprep.subr.mxu0 0.0
      %2035 = vmatpush1.msra.mxu0 %v1937
      %2036 = vmatprep.subr.mxu0 0.0
      %2037 = vmatpush1.msra.mxu0 0.0
      %2038 = vmatprep.subr.mxu0 0.0
      %2039 = vmatpush1.msra.mxu0 0.0
      %2040 = vmatprep.subr.mxu0 0.0
      %2041 = vmatpush1.msra.mxu0 0.0
      %2042 = vmatprep.subr.mxu0 0.0
      %2043 = vmatpush1.msra.mxu0 0.0
      %2044 = vmatprep.subr.mxu0 0.0
      %2045 = vmatpush1.msra.mxu0 0.0
      %2046 = vmatprep.subr.mxu0 0.0
      %2047 = vmatpush1.msra.mxu0 0.0
      %2048 = vmatprep.subr.mxu0 0.0
      %2049 = vmatpush1.msra.mxu0 0.0
      %2050 = vmatprep.subr.mxu0 0.0
      %2051 = vmatpush1.msra.mxu0 0.0
      %2052 = vmatprep.subr.mxu0 0.0
      %2053 = vmatpush1.msra.mxu0 0.0
      %2054 = vmatprep.subr.mxu0 0.0
      %2055 = vmatpush1.msra.mxu0 0.0
      %2056 = vmatprep.subr.mxu0 0.0
      %2057 = vmatpush1.msra.mxu0 0.0
      %2058 = vmatprep.subr.mxu0 0.0
      %2059 = vmatpush1.msra.mxu0 0.0
      %2060 = vmatprep.subr.mxu0 0.0
      %2061 = vmatpush1.msra.mxu0 0.0
      %2062 = vmatprep.subr.mxu0 0.0
      %2063 = vmatpush1.msra.mxu0 0.0
      %2064 = vmatprep.subr.mxu0 0.0
      %2065 = vmatpush1.msra.mxu0 0.0
      %2066 = vmatprep.subr.mxu0 0.0
      %2067 = vmatpush1.msra.mxu0 0.0
      %2068 = vmatprep.subr.mxu0 0.0
      %2069 = vmatpush1.msra.mxu0 0.0
      %2070 = vmatprep.subr.mxu0 0.0
      %2071 = vmatpush1.msra.mxu0 0.0
      %2072 = vmatprep.subr.mxu0 0.0
      %2073 = vmatpush1.msra.mxu0 0.0
      %2074 = vmatprep.subr.mxu0 0.0
      %2075 = vmatpush1.msra.mxu0 0.0
      %2076 = vmatprep.subr.mxu0 0.0
      %2077 = vmatpush1.msra.mxu0 0.0
      %2078 = vmatprep.subr.mxu0 0.0
      %2079 = vmatpush1.msra.mxu0 0.0
      %2080 = vmatprep.subr.mxu0 0.0
      %2081 = vmatpush1.msra.mxu0 0.0
      %2082 = vmatprep.subr.mxu0 0.0
      %2083 = vmatpush1.msra.mxu0 0.0
      %2084 = vmatprep.subr.mxu0 0.0
      %2085 = vmatpush1.msra.mxu0 0.0
      %2086 = vmatprep.subr.mxu0 0.0
      %2087 = vmatpush1.msra.mxu0 0.0
      %2088 = vmatprep.subr.mxu0 0.0
      %2089 = vmatpush1.msra.mxu0 0.0
      %2090 = vmatprep.subr.mxu0 0.0
      %2091 = vmatpush1.msra.mxu0 0.0
      %2092 = vmatprep.subr.mxu0 0.0
      %2093 = vmatpush1.msra.mxu0 0.0
      %2094 = vmatprep.subr.mxu0 0.0
      %2095 = vmatpush1.msra.mxu0 0.0
      %2096 = vmatprep.subr.mxu0 0.0
      %2097 = vmatpush1.msra.mxu0 0.0
      %2098 = vmatprep.mubr.f32.mxu0 0.0
      %2099 = vmatmul.mubr.f32.gmra.mrb[0].mxu0 %v1939
      %v2100 = vpop.f32.mrb[0].mxu0
      %v2101 = vadd.f32 0.0, %v2100
      %v2102 = vpop.f32.mrb[0].mxu0
      %2103 = vmatprep.mubr.f32.mxu0 0.0
      %2104 = vmatmul.mubr.f32.gmra.mrb[0].mxu0 %v1942
      %v2105 = vpop.f32.mrb[0].mxu0
      %v2106 = vadd.f32 0.0, %v2105
      %v2107 = vpop.f32.mrb[0].mxu0
      %2108 = vmatprep.mubr.f32.mxu0 0.0
      %2109 = vmatmul.mubr.f32.gmra.mrb[0].mxu0 %v1945
      %v2110 = vpop.f32.mrb[0].mxu0
      %v2111 = vadd.f32 0.0, %v2110
      %v2112 = vpop.f32.mrb[0].mxu0
      %2113 = vmatprep.mubr.f32.mxu0 0.0
      %2114 = vmatmul.mubr.f32.gmra.mrb[0].mxu0 %v1948
      %v2115 = vpop.f32.mrb[0].mxu0
      %v2116 = vadd.f32 0.0, %v2115
      %v2117 = vpop.f32.mrb[0].mxu0
      %2118 = vmatprep.mubr.f32.mxu0 0.0
      %2119 = vmatmul.mubr.f32.gmra.mrb[0].mxu0 %v1951
      %v2120 = vpop.f32.mrb[0].mxu0
      %v2121 = vadd.f32 0.0, %v2120
      %v2122 = vpop.f32.mrb[0].mxu0
      %2123 = vmatprep.mubr.f32.mxu0 0.0
      %2124 = vmatmul.mubr.f32.gmra.mrb[0].mxu0 %v1954
      %v2125 = vpop.f32.mrb[0].mxu0
      %v2126 = vadd.f32 0.0, %v2125
      %v2127 = vpop.f32.mrb[0].mxu0
      %2128 = vmatprep.mubr.f32.mxu0 0.0
      %2129 = vmatmul.mubr.f32.gmra.mrb[0].mxu0 %v1957
      %v2130 = vpop.f32.mrb[0].mxu0
      %v2131 = vadd.f32 0.0, %v2130
      %v2132 = vpop.f32.mrb[0].mxu0
      %2133 = vmatprep.mubr.f32.mxu0 0.0
      %2134 = vmatmul.mubr.f32.gmra.mrb[0].mxu0 %v1960
      %v2135 = vpop.f32.mrb[0].mxu0
      %v2136 = vadd.f32 0.0, %v2135
      %v2137 = vpop.f32.mrb[0].mxu0
      %2138 = vmatprep.mubr.f32.mxu0 0.0
      %2139 = vmatmul.mubr.f32.gmra.mrb[0].mxu0 %v1963
      %v2140 = vpop.f32.mrb[0].mxu0
      %v2141 = vadd.f32 0.0, %v2140
      %v2142 = vpop.f32.mrb[0].mxu0
      %2143 = vmatprep.mubr.f32.mxu0 0.0
      %2144 = vmatmul.mubr.f32.gmra.mrb[0].mxu0 %v1966
      %v2145 = vpop.f32.mrb[0].mxu0
      %v2146 = vadd.f32 0.0, %v2145
      %v2147 = vpop.f32.mrb[0].mxu0
      %2148 = vmatprep.mubr.f32.mxu0 0.0
      %2149 = vmatmul.mubr.f32.gmra.mrb[0].mxu0 %v1969
      %v2150 = vpop.f32.mrb[0].mxu0
      %v2151 = vadd.f32 0.0, %v2150
      %v2152 = vpop.f32.mrb[0].mxu0
      %2153 = vmatprep.mubr.f32.mxu0 0.0
      %2154 = vmatmul.mubr.f32.gmra.mrb[0].mxu0 %v1972
      %v2155 = vpop.f32.mrb[0].mxu0
      %v2156 = vadd.f32 0.0, %v2155
      %v2157 = vpop.f32.mrb[0].mxu0
      %2158 = vmatprep.mubr.f32.mxu0 0.0
      %2159 = vmatmul.mubr.f32.gmra.mrb[0].mxu0 %v1975
      %v2160 = vpop.f32.mrb[0].mxu0
      %v2161 = vadd.f32 0.0, %v2160
      %v2162 = vpop.f32.mrb[0].mxu0
      %2163 = vmatprep.mubr.f32.mxu0 0.0
      %2164 = vmatmul.mubr.f32.gmra.mrb[0].mxu0 %v1978
      %v2165 = vpop.f32.mrb[0].mxu0
      %v2166 = vadd.f32 0.0, %v2165
      %v2167 = vpop.f32.mrb[0].mxu0
      %2168 = vmatprep.mubr.f32.mxu0 0.0
      %2169 = vmatmul.mubr.f32.gmra.mrb[0].mxu0 %v1981
      %v2170 = vpop.f32.mrb[0].mxu0
      %v2171 = vadd.f32 0.0, %v2170
      %v2172 = vpop.f32.mrb[0].mxu0
      %2173 = vmatprep.mubr.f32.mxu0 0.0
      %2174 = vmatmul.mubr.f32.gmra.mrb[0].mxu0 %v1984
      %v2175 = vpop.f32.mrb[0].mxu0
      %v2176 = vadd.f32 0.0, %v2175
      %v2177 = vpop.f32.mrb[0].mxu0
      %2178 = vmatprep.mubr.f32.mxu0 0.0
      %2179 = vmatmul.mubr.f32.gmra.mrb[0].mxu0 %v1987
      %v2180 = vpop.f32.mrb[0].mxu0
      %v2181 = vadd.f32 0.0, %v2180
      %v2182 = vpop.f32.mrb[0].mxu0
      %2183 = vmatprep.mubr.f32.mxu0 0.0
      %2184 = vmatmul.mubr.f32.gmra.mrb[0].mxu0 %v1990
      %v2185 = vpop.f32.mrb[0].mxu0
      %v2186 = vadd.f32 0.0, %v2185
      %v2187 = vpop.f32.mrb[0].mxu0
      %2188 = vmatprep.mubr.f32.mxu0 0.0
      %2189 = vmatmul.mubr.f32.gmra.mrb[0].mxu0 %v1993
      %v2190 = vpop.f32.mrb[0].mxu0
      %v2191 = vadd.f32 0.0, %v2190
      %v2192 = vpop.f32.mrb[0].mxu0
      %2193 = vmatprep.mubr.f32.mxu0 0.0
      %2194 = vmatmul.mubr.f32.gmra.mrb[0].mxu0 %v1996
      %v2195 = vpop.f32.mrb[0].mxu0
      %v2196 = vadd.f32 0.0, %v2195
      %v2197 = vpop.f32.mrb[0].mxu0
      %2198 = vmatprep.mubr.f32.mxu0 0.0
      %2199 = vmatmul.mubr.f32.gmra.mrb[0].mxu0 %v1999
      %v2200 = vpop.f32.mrb[0].mxu0
      %v2201 = vadd.f32 0.0, %v2200
      %v2202 = vpop.f32.mrb[0].mxu0
      %2203 = vmatprep.mubr.f32.mxu0 0.0
      %2204 = vmatmul.mubr.f32.gmra.mrb[0].mxu0 %v2002
      %v2205 = vpop.f32.mrb[0].mxu0
      %v2206 = vadd.f32 0.0, %v2205
      %v2207 = vpop.f32.mrb[0].mxu0
      %2208 = vmatprep.mubr.f32.mxu0 0.0
      %2209 = vmatmul.mubr.f32.gmra.mrb[0].mxu0 %v2005
      %v2210 = vpop.f32.mrb[0].mxu0
      %v2211 = vadd.f32 0.0, %v2210
      %v2212 = vpop.f32.mrb[0].mxu0
      %2213 = vmatprep.mubr.f32.mxu0 0.0
      %2214 = vmatmul.mubr.f32.gmra.mrb[0].mxu0 %v2008
      %v2215 = vpop.f32.mrb[0].mxu0
      %v2216 = vadd.f32 0.0, %v2215
      %v2217 = vpop.f32.mrb[0].mxu0
      %2218 = vmatprep.mubr.f32.mxu0 0.0
      %2219 = vmatmul.mubr.f32.gmra.mrb[0].mxu0 %v2011
      %v2220 = vpop.f32.mrb[0].mxu0
      %v2221 = vadd.f32 0.0, %v2220
      %v2222 = vpop.f32.mrb[0].mxu0
      %2223 = vmatprep.mubr.f32.mxu0 0.0
      %2224 = vmatmul.mubr.f32.gmra.mrb[0].mxu0 %v2014
      %v2225 = vpop.f32.mrb[0].mxu0
      %v2226 = vadd.f32 0.0, %v2225
      %v2227 = vpop.f32.mrb[0].mxu0
      %2228 = vmatprep.mubr.f32.mxu0 0.0
      %2229 = vmatmul.mubr.f32.gmra.mrb[0].mxu0 %v2017
      %v2230 = vpop.f32.mrb[0].mxu0
      %v2231 = vadd.f32 0.0, %v2230
      %v2232 = vpop.f32.mrb[0].mxu0
      %2233 = vmatprep.mubr.f32.mxu0 0.0
      %2234 = vmatmul.mubr.f32.gmra.mrb[0].mxu0 %v2020
      %v2235 = vpop.f32.mrb[0].mxu0
      %v2236 = vadd.f32 0.0, %v2235
      %v2237 = vpop.f32.mrb[0].mxu0
      %2238 = vmatprep.mubr.f32.mxu0 0.0
      %2239 = vmatmul.mubr.f32.gmra.mrb[0].mxu0 %v2023
      %v2240 = vpop.f32.mrb[0].mxu0
      %v2241 = vadd.f32 0.0, %v2240
      %v2242 = vpop.f32.mrb[0].mxu0
      %2243 = vmatprep.mubr.f32.mxu0 0.0
      %2244 = vmatmul.mubr.f32.gmra.mrb[0].mxu0 %v2026
      %v2245 = vpop.f32.mrb[0].mxu0
      %v2246 = vadd.f32 0.0, %v2245
      %v2247 = vpop.f32.mrb[0].mxu0
      %2248 = vmatprep.mubr.f32.mxu0 0.0
      %2249 = vmatmul.mubr.f32.gmra.mrb[0].mxu0 %v2029
      %v2250 = vpop.f32.mrb[0].mxu0
      %v2251 = vadd.f32 0.0, %v2250
      %v2252 = vpop.f32.mrb[0].mxu0
      %2253 = vmatprep.mubr.f32.mxu0 0.0
      %2254 = vmatmul.mubr.f32.gmra.mrb[0].mxu0 %v2032
      %v2255 = vpop.f32.mrb[0].mxu0
      %v2256 = vadd.f32 0.0, %v2255
      %v2257 = vpop.f32.mrb[0].mxu0
      %2258 = vdwg.mxu0
      %v2259 = vadd.f32 %v1872, %v2101
      %v2260 = vadd.f32 %v1873, %v2106
      %v2261 = vadd.f32 %v1874, %v2111
      %v2262 = vadd.f32 %v1875, %v2116
      %v2263 = vadd.f32 %v1876, %v2121
      %v2264 = vadd.f32 %v1877, %v2126
      %v2265 = vadd.f32 %v1878, %v2131
      %v2266 = vadd.f32 %v1879, %v2136
      %v2267 = vadd.f32 %v1880, %v2141
      %v2268 = vadd.f32 %v1881, %v2146
      %v2269 = vadd.f32 %v1882, %v2151
      %v2270 = vadd.f32 %v1883, %v2156
      %v2271 = vadd.f32 %v1884, %v2161
      %v2272 = vadd.f32 %v1885, %v2166
      %v2273 = vadd.f32 %v1886, %v2171
      %v2274 = vadd.f32 %v1887, %v2176
      %v2275 = vadd.f32 %v1888, %v2181
      %v2276 = vadd.f32 %v1889, %v2186
      %v2277 = vadd.f32 %v1890, %v2191
      %v2278 = vadd.f32 %v1891, %v2196
      %v2279 = vadd.f32 %v1892, %v2201
      %v2280 = vadd.f32 %v1893, %v2206
      %v2281 = vadd.f32 %v1894, %v2211
      %v2282 = vadd.f32 %v1895, %v2216
      %v2283 = vadd.f32 %v1896, %v2221
      %v2284 = vadd.f32 %v1897, %v2226
      %v2285 = vadd.f32 %v1898, %v2231
      %v2286 = vadd.f32 %v1899, %v2236
      %v2287 = vadd.f32 %v1900, %v2241
      %v2288 = vadd.f32 %v1901, %v2246
      %v2289 = vadd.f32 %v1902, %v2251
      %v2290 = vadd.f32 %v1903, %v2256
      %v2291 = vld [vmem:[%s355 + $0x2] sm:$0xff]
      %v2292 = vld [vmem:[%s355 + $0xa] sm:$0xff]
      %v2293 = vld [vmem:[%s355 + $0x1a] sm:$0xff]
      %v2294 = vld [vmem:[%s355 + $0x22] sm:$0xff]
      %v2295 = vld [vmem:[%s355 + $0x32] sm:$0xff]
      %v2296 = vld [vmem:[%s355 + $0x3a] sm:$0xff]
      %v2297 = vld [vmem:[%s355 + $0x4a] sm:$0xff]
      %v2298 = vld [vmem:[%s355 + $0x52] sm:$0xff]
      %v2299 = vld [vmem:[%s355 + $0x62] sm:$0xff]
      %v2300 = vld [vmem:[%s355 + $0x6a] sm:$0xff]
      %v2301 = vld [vmem:[%s355 + $0x7a] sm:$0xff]
      %v2302 = vld [vmem:[%s355 + $0x82] sm:$0xff]
      %v2303 = vld [vmem:[%s355 + $0x92] sm:$0xff]
      %v2304 = vld [vmem:[%s355 + $0x9a] sm:$0xff]
      %v2305 = vld [vmem:[%s355 + $0xaa] sm:$0xff]
      %v2306 = vld [vmem:[%s355 + $0xb2] sm:$0xff]
      %v2307 = vld [vmem:[%s355 + $0xc2] sm:$0xff]
      %v2308 = vld [vmem:[%s355 + $0xca] sm:$0xff]
      %v2309 = vld [vmem:[%s355 + $0xda] sm:$0xff]
      %v2310 = vld [vmem:[%s355 + $0xe2] sm:$0xff]
      %v2311 = vld [vmem:[%s355 + $0xf2] sm:$0xff]
      %v2312 = vld [vmem:[%s355 + $0xfa] sm:$0xff]
      %v2313 = vld [vmem:[%s355 + $0x10a] sm:$0xff]
      %v2314 = vld [vmem:[%s355 + $0x112] sm:$0xff]
      %v2315 = vld [vmem:[%s355 + $0x122] sm:$0xff]
      %v2316 = vld [vmem:[%s355 + $0x12a] sm:$0xff]
      %v2317 = vld [vmem:[%s355 + $0x13a] sm:$0xff]
      %v2318 = vld [vmem:[%s355 + $0x142] sm:$0xff]
      %v2319 = vld [vmem:[%s355 + $0x152] sm:$0xff]
      %v2320 = vld [vmem:[%s355 + $0x15a] sm:$0xff]
      %v2321 = vld [vmem:[%s355 + $0x16a] sm:$0xff]
      %v2322 = vld [vmem:[%s355 + $0x172] sm:$0xff]
      %s2323 = scalar_lea.vmem %s2, 40
      %v2324 = vld [vmem:[%s2323] sm:$0xff]
      %v2326 = vsel %vm347, %v2291, 0
      %v2329 = vsel %vm347, %v2292, 0
      %v2332 = vsel %vm347, %v2293, 0
      %v2335 = vsel %vm347, %v2294, 0
      %v2338 = vsel %vm347, %v2295, 0
      %v2341 = vsel %vm347, %v2296, 0
      %v2344 = vsel %vm347, %v2297, 0
      %v2347 = vsel %vm347, %v2298, 0
      %v2350 = vsel %vm347, %v2299, 0
      %v2353 = vsel %vm347, %v2300, 0
      %v2356 = vsel %vm347, %v2301, 0
      %v2359 = vsel %vm347, %v2302, 0
      %v2362 = vsel %vm347, %v2303, 0
      %v2365 = vsel %vm347, %v2304, 0
      %v2368 = vsel %vm347, %v2305, 0
      %v2371 = vsel %vm347, %v2306, 0
      %v2374 = vsel %vm347, %v2307, 0
      %v2377 = vsel %vm347, %v2308, 0
      %v2380 = vsel %vm347, %v2309, 0
      %v2383 = vsel %vm347, %v2310, 0
      %v2386 = vsel %vm347, %v2311, 0
      %v2389 = vsel %vm347, %v2312, 0
      %v2392 = vsel %vm347, %v2313, 0
      %v2395 = vsel %vm347, %v2314, 0
      %v2398 = vsel %vm347, %v2315, 0
      %v2401 = vsel %vm347, %v2316, 0
      %v2404 = vsel %vm347, %v2317, 0
      %v2407 = vsel %vm347, %v2318, 0
      %v2410 = vsel %vm347, %v2319, 0
      %v2413 = vsel %vm347, %v2320, 0
      %v2416 = vsel %vm347, %v2321, 0
      %v2419 = vsel %vm347, %v2322, 0
      %2421 = vmatprep.subr.mxu0 0.0
      %2422 = vmatpush1.msra.mxu0 %v2324
      %2423 = vmatprep.subr.mxu0 0.0
      %2424 = vmatpush1.msra.mxu0 0.0
      %2425 = vmatprep.subr.mxu0 0.0
      %2426 = vmatpush1.msra.mxu0 0.0
      %2427 = vmatprep.subr.mxu0 0.0
      %2428 = vmatpush1.msra.mxu0 0.0
      %2429 = vmatprep.subr.mxu0 0.0
      %2430 = vmatpush1.msra.mxu0 0.0
      %2431 = vmatprep.subr.mxu0 0.0
      %2432 = vmatpush1.msra.mxu0 0.0
      %2433 = vmatprep.subr.mxu0 0.0
      %2434 = vmatpush1.msra.mxu0 0.0
      %2435 = vmatprep.subr.mxu0 0.0
      %2436 = vmatpush1.msra.mxu0 0.0
      %2437 = vmatprep.subr.mxu0 0.0
      %2438 = vmatpush1.msra.mxu0 0.0
      %2439 = vmatprep.subr.mxu0 0.0
      %2440 = vmatpush1.msra.mxu0 0.0
      %2441 = vmatprep.subr.mxu0 0.0
      %2442 = vmatpush1.msra.mxu0 0.0
      %2443 = vmatprep.subr.mxu0 0.0
      %2444 = vmatpush1.msra.mxu0 0.0
      %2445 = vmatprep.subr.mxu0 0.0
      %2446 = vmatpush1.msra.mxu0 0.0
      %2447 = vmatprep.subr.mxu0 0.0
      %2448 = vmatpush1.msra.mxu0 0.0
      %2449 = vmatprep.subr.mxu0 0.0
      %2450 = vmatpush1.msra.mxu0 0.0
      %2451 = vmatprep.subr.mxu0 0.0
      %2452 = vmatpush1.msra.mxu0 0.0
      %2453 = vmatprep.subr.mxu0 0.0
      %2454 = vmatpush1.msra.mxu0 0.0
      %2455 = vmatprep.subr.mxu0 0.0
      %2456 = vmatpush1.msra.mxu0 0.0
      %2457 = vmatprep.subr.mxu0 0.0
      %2458 = vmatpush1.msra.mxu0 0.0
      %2459 = vmatprep.subr.mxu0 0.0
      %2460 = vmatpush1.msra.mxu0 0.0
      %2461 = vmatprep.subr.mxu0 0.0
      %2462 = vmatpush1.msra.mxu0 0.0
      %2463 = vmatprep.subr.mxu0 0.0
      %2464 = vmatpush1.msra.mxu0 0.0
      %2465 = vmatprep.subr.mxu0 0.0
      %2466 = vmatpush1.msra.mxu0 0.0
      %2467 = vmatprep.subr.mxu0 0.0
      %2468 = vmatpush1.msra.mxu0 0.0
      %2469 = vmatprep.subr.mxu0 0.0
      %2470 = vmatpush1.msra.mxu0 0.0
      %2471 = vmatprep.subr.mxu0 0.0
      %2472 = vmatpush1.msra.mxu0 0.0
      %2473 = vmatprep.subr.mxu0 0.0
      %2474 = vmatpush1.msra.mxu0 0.0
      %2475 = vmatprep.subr.mxu0 0.0
      %2476 = vmatpush1.msra.mxu0 0.0
      %2477 = vmatprep.subr.mxu0 0.0
      %2478 = vmatpush1.msra.mxu0 0.0
      %2479 = vmatprep.subr.mxu0 0.0
      %2480 = vmatpush1.msra.mxu0 0.0
      %2481 = vmatprep.subr.mxu0 0.0
      %2482 = vmatpush1.msra.mxu0 0.0
      %2483 = vmatprep.subr.mxu0 0.0
      %2484 = vmatpush1.msra.mxu0 0.0
      %2485 = vmatprep.mubr.f32.mxu0 0.0
      %2486 = vmatmul.mubr.f32.gmra.mrb[0].mxu0 %v2326
      %v2487 = vpop.f32.mrb[0].mxu0
      %v2488 = vadd.f32 0.0, %v2487
      %v2489 = vpop.f32.mrb[0].mxu0
      %2490 = vmatprep.mubr.f32.mxu0 0.0
      %2491 = vmatmul.mubr.f32.gmra.mrb[0].mxu0 %v2329
      %v2492 = vpop.f32.mrb[0].mxu0
      %v2493 = vadd.f32 0.0, %v2492
      %v2494 = vpop.f32.mrb[0].mxu0
      %2495 = vmatprep.mubr.f32.mxu0 0.0
      %2496 = vmatmul.mubr.f32.gmra.mrb[0].mxu0 %v2332
      %v2497 = vpop.f32.mrb[0].mxu0
      %v2498 = vadd.f32 0.0, %v2497
      %v2499 = vpop.f32.mrb[0].mxu0
      %2500 = vmatprep.mubr.f32.mxu0 0.0
      %2501 = vmatmul.mubr.f32.gmra.mrb[0].mxu0 %v2335
      %v2502 = vpop.f32.mrb[0].mxu0
      %v2503 = vadd.f32 0.0, %v2502
      %v2504 = vpop.f32.mrb[0].mxu0
      %2505 = vmatprep.mubr.f32.mxu0 0.0
      %2506 = vmatmul.mubr.f32.gmra.mrb[0].mxu0 %v2338
      %v2507 = vpop.f32.mrb[0].mxu0
      %v2508 = vadd.f32 0.0, %v2507
      %v2509 = vpop.f32.mrb[0].mxu0
      %2510 = vmatprep.mubr.f32.mxu0 0.0
      %2511 = vmatmul.mubr.f32.gmra.mrb[0].mxu0 %v2341
      %v2512 = vpop.f32.mrb[0].mxu0
      %v2513 = vadd.f32 0.0, %v2512
      %v2514 = vpop.f32.mrb[0].mxu0
      %2515 = vmatprep.mubr.f32.mxu0 0.0
      %2516 = vmatmul.mubr.f32.gmra.mrb[0].mxu0 %v2344
      %v2517 = vpop.f32.mrb[0].mxu0
      %v2518 = vadd.f32 0.0, %v2517
      %v2519 = vpop.f32.mrb[0].mxu0
      %2520 = vmatprep.mubr.f32.mxu0 0.0
      %2521 = vmatmul.mubr.f32.gmra.mrb[0].mxu0 %v2347
      %v2522 = vpop.f32.mrb[0].mxu0
      %v2523 = vadd.f32 0.0, %v2522
      %v2524 = vpop.f32.mrb[0].mxu0
      %2525 = vmatprep.mubr.f32.mxu0 0.0
      %2526 = vmatmul.mubr.f32.gmra.mrb[0].mxu0 %v2350
      %v2527 = vpop.f32.mrb[0].mxu0
      %v2528 = vadd.f32 0.0, %v2527
      %v2529 = vpop.f32.mrb[0].mxu0
      %2530 = vmatprep.mubr.f32.mxu0 0.0
      %2531 = vmatmul.mubr.f32.gmra.mrb[0].mxu0 %v2353
      %v2532 = vpop.f32.mrb[0].mxu0
      %v2533 = vadd.f32 0.0, %v2532
      %v2534 = vpop.f32.mrb[0].mxu0
      %2535 = vmatprep.mubr.f32.mxu0 0.0
      %2536 = vmatmul.mubr.f32.gmra.mrb[0].mxu0 %v2356
      %v2537 = vpop.f32.mrb[0].mxu0
      %v2538 = vadd.f32 0.0, %v2537
      %v2539 = vpop.f32.mrb[0].mxu0
      %2540 = vmatprep.mubr.f32.mxu0 0.0
      %2541 = vmatmul.mubr.f32.gmra.mrb[0].mxu0 %v2359
      %v2542 = vpop.f32.mrb[0].mxu0
      %v2543 = vadd.f32 0.0, %v2542
      %v2544 = vpop.f32.mrb[0].mxu0
      %2545 = vmatprep.mubr.f32.mxu0 0.0
      %2546 = vmatmul.mubr.f32.gmra.mrb[0].mxu0 %v2362
      %v2547 = vpop.f32.mrb[0].mxu0
      %v2548 = vadd.f32 0.0, %v2547
      %v2549 = vpop.f32.mrb[0].mxu0
      %2550 = vmatprep.mubr.f32.mxu0 0.0
      %2551 = vmatmul.mubr.f32.gmra.mrb[0].mxu0 %v2365
      %v2552 = vpop.f32.mrb[0].mxu0
      %v2553 = vadd.f32 0.0, %v2552
      %v2554 = vpop.f32.mrb[0].mxu0
      %2555 = vmatprep.mubr.f32.mxu0 0.0
      %2556 = vmatmul.mubr.f32.gmra.mrb[0].mxu0 %v2368
      %v2557 = vpop.f32.mrb[0].mxu0
      %v2558 = vadd.f32 0.0, %v2557
      %v2559 = vpop.f32.mrb[0].mxu0
      %2560 = vmatprep.mubr.f32.mxu0 0.0
      %2561 = vmatmul.mubr.f32.gmra.mrb[0].mxu0 %v2371
      %v2562 = vpop.f32.mrb[0].mxu0
      %v2563 = vadd.f32 0.0, %v2562
      %v2564 = vpop.f32.mrb[0].mxu0
      %2565 = vmatprep.mubr.f32.mxu0 0.0
      %2566 = vmatmul.mubr.f32.gmra.mrb[0].mxu0 %v2374
      %v2567 = vpop.f32.mrb[0].mxu0
      %v2568 = vadd.f32 0.0, %v2567
      %v2569 = vpop.f32.mrb[0].mxu0
      %2570 = vmatprep.mubr.f32.mxu0 0.0
      %2571 = vmatmul.mubr.f32.gmra.mrb[0].mxu0 %v2377
      %v2572 = vpop.f32.mrb[0].mxu0
      %v2573 = vadd.f32 0.0, %v2572
      %v2574 = vpop.f32.mrb[0].mxu0
      %2575 = vmatprep.mubr.f32.mxu0 0.0
      %2576 = vmatmul.mubr.f32.gmra.mrb[0].mxu0 %v2380
      %v2577 = vpop.f32.mrb[0].mxu0
      %v2578 = vadd.f32 0.0, %v2577
      %v2579 = vpop.f32.mrb[0].mxu0
      %2580 = vmatprep.mubr.f32.mxu0 0.0
      %2581 = vmatmul.mubr.f32.gmra.mrb[0].mxu0 %v2383
      %v2582 = vpop.f32.mrb[0].mxu0
      %v2583 = vadd.f32 0.0, %v2582
      %v2584 = vpop.f32.mrb[0].mxu0
      %2585 = vmatprep.mubr.f32.mxu0 0.0
      %2586 = vmatmul.mubr.f32.gmra.mrb[0].mxu0 %v2386
      %v2587 = vpop.f32.mrb[0].mxu0
      %v2588 = vadd.f32 0.0, %v2587
      %v2589 = vpop.f32.mrb[0].mxu0
      %2590 = vmatprep.mubr.f32.mxu0 0.0
      %2591 = vmatmul.mubr.f32.gmra.mrb[0].mxu0 %v2389
      %v2592 = vpop.f32.mrb[0].mxu0
      %v2593 = vadd.f32 0.0, %v2592
      %v2594 = vpop.f32.mrb[0].mxu0
      %2595 = vmatprep.mubr.f32.mxu0 0.0
      %2596 = vmatmul.mubr.f32.gmra.mrb[0].mxu0 %v2392
      %v2597 = vpop.f32.mrb[0].mxu0
      %v2598 = vadd.f32 0.0, %v2597
      %v2599 = vpop.f32.mrb[0].mxu0
      %2600 = vmatprep.mubr.f32.mxu0 0.0
      %2601 = vmatmul.mubr.f32.gmra.mrb[0].mxu0 %v2395
      %v2602 = vpop.f32.mrb[0].mxu0
      %v2603 = vadd.f32 0.0, %v2602
      %v2604 = vpop.f32.mrb[0].mxu0
      %2605 = vmatprep.mubr.f32.mxu0 0.0
      %2606 = vmatmul.mubr.f32.gmra.mrb[0].mxu0 %v2398
      %v2607 = vpop.f32.mrb[0].mxu0
      %v2608 = vadd.f32 0.0, %v2607
      %v2609 = vpop.f32.mrb[0].mxu0
      %2610 = vmatprep.mubr.f32.mxu0 0.0
      %2611 = vmatmul.mubr.f32.gmra.mrb[0].mxu0 %v2401
      %v2612 = vpop.f32.mrb[0].mxu0
      %v2613 = vadd.f32 0.0, %v2612
      %v2614 = vpop.f32.mrb[0].mxu0
      %2615 = vmatprep.mubr.f32.mxu0 0.0
      %2616 = vmatmul.mubr.f32.gmra.mrb[0].mxu0 %v2404
      %v2617 = vpop.f32.mrb[0].mxu0
      %v2618 = vadd.f32 0.0, %v2617
      %v2619 = vpop.f32.mrb[0].mxu0
      %2620 = vmatprep.mubr.f32.mxu0 0.0
      %2621 = vmatmul.mubr.f32.gmra.mrb[0].mxu0 %v2407
      %v2622 = vpop.f32.mrb[0].mxu0
      %v2623 = vadd.f32 0.0, %v2622
      %v2624 = vpop.f32.mrb[0].mxu0
      %2625 = vmatprep.mubr.f32.mxu0 0.0
      %2626 = vmatmul.mubr.f32.gmra.mrb[0].mxu0 %v2410
      %v2627 = vpop.f32.mrb[0].mxu0
      %v2628 = vadd.f32 0.0, %v2627
      %v2629 = vpop.f32.mrb[0].mxu0
      %2630 = vmatprep.mubr.f32.mxu0 0.0
      %2631 = vmatmul.mubr.f32.gmra.mrb[0].mxu0 %v2413
      %v2632 = vpop.f32.mrb[0].mxu0
      %v2633 = vadd.f32 0.0, %v2632
      %v2634 = vpop.f32.mrb[0].mxu0
      %2635 = vmatprep.mubr.f32.mxu0 0.0
      %2636 = vmatmul.mubr.f32.gmra.mrb[0].mxu0 %v2416
      %v2637 = vpop.f32.mrb[0].mxu0
      %v2638 = vadd.f32 0.0, %v2637
      %v2639 = vpop.f32.mrb[0].mxu0
      %2640 = vmatprep.mubr.f32.mxu0 0.0
      %2641 = vmatmul.mubr.f32.gmra.mrb[0].mxu0 %v2419
      %v2642 = vpop.f32.mrb[0].mxu0
      %v2643 = vadd.f32 0.0, %v2642
      %v2644 = vpop.f32.mrb[0].mxu0
      %2645 = vdwg.mxu0
      %v2646 = vadd.f32 %v2259, %v2488
      %v2647 = vadd.f32 %v2260, %v2493
      %v2648 = vadd.f32 %v2261, %v2498
      %v2649 = vadd.f32 %v2262, %v2503
      %v2650 = vadd.f32 %v2263, %v2508
      %v2651 = vadd.f32 %v2264, %v2513
      %v2652 = vadd.f32 %v2265, %v2518
      %v2653 = vadd.f32 %v2266, %v2523
      %v2654 = vadd.f32 %v2267, %v2528
      %v2655 = vadd.f32 %v2268, %v2533
      %v2656 = vadd.f32 %v2269, %v2538
      %v2657 = vadd.f32 %v2270, %v2543
      %v2658 = vadd.f32 %v2271, %v2548
      %v2659 = vadd.f32 %v2272, %v2553
      %v2660 = vadd.f32 %v2273, %v2558
      %v2661 = vadd.f32 %v2274, %v2563
      %v2662 = vadd.f32 %v2275, %v2568
      %v2663 = vadd.f32 %v2276, %v2573
      %v2664 = vadd.f32 %v2277, %v2578
      %v2665 = vadd.f32 %v2278, %v2583
      %v2666 = vadd.f32 %v2279, %v2588
      %v2667 = vadd.f32 %v2280, %v2593
      %v2668 = vadd.f32 %v2281, %v2598
      %v2669 = vadd.f32 %v2282, %v2603
      %v2670 = vadd.f32 %v2283, %v2608
      %v2671 = vadd.f32 %v2284, %v2613
      %v2672 = vadd.f32 %v2285, %v2618
      %v2673 = vadd.f32 %v2286, %v2623
      %v2674 = vadd.f32 %v2287, %v2628
      %v2675 = vadd.f32 %v2288, %v2633
      %v2676 = vadd.f32 %v2289, %v2638
      %v2677 = vadd.f32 %v2290, %v2643
      %s2678 = scalar_lea.vmem [#allocation2], 48
      %v2679 = vld [vmem:[%s2678] sm:$0xff]
      %v2680 = vld [vmem:[%s2678 + $0x8] sm:$0xff]
      %v2681 = vld [vmem:[%s2678 + $0x18] sm:$0xff]
      %v2682 = vld [vmem:[%s2678 + $0x20] sm:$0xff]
      %v2683 = vld [vmem:[%s2678 + $0x30] sm:$0xff]
      %v2684 = vld [vmem:[%s2678 + $0x38] sm:$0xff]
      %v2685 = vld [vmem:[%s2678 + $0x48] sm:$0xff]
      %v2686 = vld [vmem:[%s2678 + $0x50] sm:$0xff]
      %v2687 = vld [vmem:[%s2678 + $0x60] sm:$0xff]
      %v2688 = vld [vmem:[%s2678 + $0x68] sm:$0xff]
      %v2689 = vld [vmem:[%s2678 + $0x78] sm:$0xff]
      %v2690 = vld [vmem:[%s2678 + $0x80] sm:$0xff]
      %v2691 = vld [vmem:[%s2678 + $0x90] sm:$0xff]
      %v2692 = vld [vmem:[%s2678 + $0x98] sm:$0xff]
      %v2693 = vld [vmem:[%s2678 + $0xa8] sm:$0xff]
      %v2694 = vld [vmem:[%s2678 + $0xb0] sm:$0xff]
      %v2695 = vld [vmem:[%s2678 + $0xc0] sm:$0xff]
      %v2696 = vld [vmem:[%s2678 + $0xc8] sm:$0xff]
      %v2697 = vld [vmem:[%s2678 + $0xd8] sm:$0xff]
      %v2698 = vld [vmem:[%s2678 + $0xe0] sm:$0xff]
      %v2699 = vld [vmem:[%s2678 + $0xf0] sm:$0xff]
      %v2700 = vld [vmem:[%s2678 + $0xf8] sm:$0xff]
      %v2701 = vld [vmem:[%s2678 + $0x108] sm:$0xff]
      %v2702 = vld [vmem:[%s2678 + $0x110] sm:$0xff]
      %v2703 = vld [vmem:[%s2678 + $0x120] sm:$0xff]
      %v2704 = vld [vmem:[%s2678 + $0x128] sm:$0xff]
      %v2705 = vld [vmem:[%s2678 + $0x138] sm:$0xff]
      %v2706 = vld [vmem:[%s2678 + $0x140] sm:$0xff]
      %v2707 = vld [vmem:[%s2678 + $0x150] sm:$0xff]
      %v2708 = vld [vmem:[%s2678 + $0x158] sm:$0xff]
      %v2709 = vld [vmem:[%s2678 + $0x168] sm:$0xff]
      %v2710 = vld [vmem:[%s2678 + $0x170] sm:$0xff]
      %s2711 = scalar_lea.vmem %s2, 48
      %v2712 = vld [vmem:[%s2711] sm:$0xff]
      %v2714 = vsel %vm347, %v2679, 0
      %v2717 = vsel %vm347, %v2680, 0
      %v2720 = vsel %vm347, %v2681, 0
      %v2723 = vsel %vm347, %v2682, 0
      %v2726 = vsel %vm347, %v2683, 0
      %v2729 = vsel %vm347, %v2684, 0
      %v2732 = vsel %vm347, %v2685, 0
      %v2735 = vsel %vm347, %v2686, 0
      %v2738 = vsel %vm347, %v2687, 0
      %v2741 = vsel %vm347, %v2688, 0
      %v2744 = vsel %vm347, %v2689, 0
      %v2747 = vsel %vm347, %v2690, 0
      %v2750 = vsel %vm347, %v2691, 0
      %v2753 = vsel %vm347, %v2692, 0
      %v2756 = vsel %vm347, %v2693, 0
      %v2759 = vsel %vm347, %v2694, 0
      %v2762 = vsel %vm347, %v2695, 0
      %v2765 = vsel %vm347, %v2696, 0
      %v2768 = vsel %vm347, %v2697, 0
      %v2771 = vsel %vm347, %v2698, 0
      %v2774 = vsel %vm347, %v2699, 0
      %v2777 = vsel %vm347, %v2700, 0
      %v2780 = vsel %vm347, %v2701, 0
      %v2783 = vsel %vm347, %v2702, 0
      %v2786 = vsel %vm347, %v2703, 0
      %v2789 = vsel %vm347, %v2704, 0
      %v2792 = vsel %vm347, %v2705, 0
      %v2795 = vsel %vm347, %v2706, 0
      %v2798 = vsel %vm347, %v2707, 0
      %v2801 = vsel %vm347, %v2708, 0
      %v2804 = vsel %vm347, %v2709, 0
      %v2807 = vsel %vm347, %v2710, 0
      %2809 = vmatprep.subr.mxu0 0.0
      %2810 = vmatpush1.msra.mxu0 %v2712
      %2811 = vmatprep.subr.mxu0 0.0
      %2812 = vmatpush1.msra.mxu0 0.0
      %2813 = vmatprep.subr.mxu0 0.0
      %2814 = vmatpush1.msra.mxu0 0.0
      %2815 = vmatprep.subr.mxu0 0.0
      %2816 = vmatpush1.msra.mxu0 0.0
      %2817 = vmatprep.subr.mxu0 0.0
      %2818 = vmatpush1.msra.mxu0 0.0
      %2819 = vmatprep.subr.mxu0 0.0
      %2820 = vmatpush1.msra.mxu0 0.0
      %2821 = vmatprep.subr.mxu0 0.0
      %2822 = vmatpush1.msra.mxu0 0.0
      %2823 = vmatprep.subr.mxu0 0.0
      %2824 = vmatpush1.msra.mxu0 0.0
      %2825 = vmatprep.subr.mxu0 0.0
      %2826 = vmatpush1.msra.mxu0 0.0
      %2827 = vmatprep.subr.mxu0 0.0
      %2828 = vmatpush1.msra.mxu0 0.0
      %2829 = vmatprep.subr.mxu0 0.0
      %2830 = vmatpush1.msra.mxu0 0.0
      %2831 = vmatprep.subr.mxu0 0.0
      %2832 = vmatpush1.msra.mxu0 0.0
      %2833 = vmatprep.subr.mxu0 0.0
      %2834 = vmatpush1.msra.mxu0 0.0
      %2835 = vmatprep.subr.mxu0 0.0
      %2836 = vmatpush1.msra.mxu0 0.0
      %2837 = vmatprep.subr.mxu0 0.0
      %2838 = vmatpush1.msra.mxu0 0.0
      %2839 = vmatprep.subr.mxu0 0.0
      %2840 = vmatpush1.msra.mxu0 0.0
      %2841 = vmatprep.subr.mxu0 0.0
      %2842 = vmatpush1.msra.mxu0 0.0
      %2843 = vmatprep.subr.mxu0 0.0
      %2844 = vmatpush1.msra.mxu0 0.0
      %2845 = vmatprep.subr.mxu0 0.0
      %2846 = vmatpush1.msra.mxu0 0.0
      %2847 = vmatprep.subr.mxu0 0.0
      %2848 = vmatpush1.msra.mxu0 0.0
      %2849 = vmatprep.subr.mxu0 0.0
      %2850 = vmatpush1.msra.mxu0 0.0
      %2851 = vmatprep.subr.mxu0 0.0
      %2852 = vmatpush1.msra.mxu0 0.0
      %2853 = vmatprep.subr.mxu0 0.0
      %2854 = vmatpush1.msra.mxu0 0.0
      %2855 = vmatprep.subr.mxu0 0.0
      %2856 = vmatpush1.msra.mxu0 0.0
      %2857 = vmatprep.subr.mxu0 0.0
      %2858 = vmatpush1.msra.mxu0 0.0
      %2859 = vmatprep.subr.mxu0 0.0
      %2860 = vmatpush1.msra.mxu0 0.0
      %2861 = vmatprep.subr.mxu0 0.0
      %2862 = vmatpush1.msra.mxu0 0.0
      %2863 = vmatprep.subr.mxu0 0.0
      %2864 = vmatpush1.msra.mxu0 0.0
      %2865 = vmatprep.subr.mxu0 0.0
      %2866 = vmatpush1.msra.mxu0 0.0
      %2867 = vmatprep.subr.mxu0 0.0
      %2868 = vmatpush1.msra.mxu0 0.0
      %2869 = vmatprep.subr.mxu0 0.0
      %2870 = vmatpush1.msra.mxu0 0.0
      %2871 = vmatprep.subr.mxu0 0.0
      %2872 = vmatpush1.msra.mxu0 0.0
      %2873 = vmatprep.mubr.f32.mxu0 0.0
      %2874 = vmatmul.mubr.f32.gmra.mrb[0].mxu0 %v2714
      %v2875 = vpop.f32.mrb[0].mxu0
      %v2876 = vadd.f32 0.0, %v2875
      %v2877 = vpop.f32.mrb[0].mxu0
      %2878 = vmatprep.mubr.f32.mxu0 0.0
      %2879 = vmatmul.mubr.f32.gmra.mrb[0].mxu0 %v2717
      %v2880 = vpop.f32.mrb[0].mxu0
      %v2881 = vadd.f32 0.0, %v2880
      %v2882 = vpop.f32.mrb[0].mxu0
      %2883 = vmatprep.mubr.f32.mxu0 0.0
      %2884 = vmatmul.mubr.f32.gmra.mrb[0].mxu0 %v2720
      %v2885 = vpop.f32.mrb[0].mxu0
      %v2886 = vadd.f32 0.0, %v2885
      %v2887 = vpop.f32.mrb[0].mxu0
      %2888 = vmatprep.mubr.f32.mxu0 0.0
      %2889 = vmatmul.mubr.f32.gmra.mrb[0].mxu0 %v2723
      %v2890 = vpop.f32.mrb[0].mxu0
      %v2891 = vadd.f32 0.0, %v2890
      %v2892 = vpop.f32.mrb[0].mxu0
      %2893 = vmatprep.mubr.f32.mxu0 0.0
      %2894 = vmatmul.mubr.f32.gmra.mrb[0].mxu0 %v2726
      %v2895 = vpop.f32.mrb[0].mxu0
      %v2896 = vadd.f32 0.0, %v2895
      %v2897 = vpop.f32.mrb[0].mxu0
      %2898 = vmatprep.mubr.f32.mxu0 0.0
      %2899 = vmatmul.mubr.f32.gmra.mrb[0].mxu0 %v2729
      %v2900 = vpop.f32.mrb[0].mxu0
      %v2901 = vadd.f32 0.0, %v2900
      %v2902 = vpop.f32.mrb[0].mxu0
      %2903 = vmatprep.mubr.f32.mxu0 0.0
      %2904 = vmatmul.mubr.f32.gmra.mrb[0].mxu0 %v2732
      %v2905 = vpop.f32.mrb[0].mxu0
      %v2906 = vadd.f32 0.0, %v2905
      %v2907 = vpop.f32.mrb[0].mxu0
      %2908 = vmatprep.mubr.f32.mxu0 0.0
      %2909 = vmatmul.mubr.f32.gmra.mrb[0].mxu0 %v2735
      %v2910 = vpop.f32.mrb[0].mxu0
      %v2911 = vadd.f32 0.0, %v2910
      %v2912 = vpop.f32.mrb[0].mxu0
      %2913 = vmatprep.mubr.f32.mxu0 0.0
      %2914 = vmatmul.mubr.f32.gmra.mrb[0].mxu0 %v2738
      %v2915 = vpop.f32.mrb[0].mxu0
      %v2916 = vadd.f32 0.0, %v2915
      %v2917 = vpop.f32.mrb[0].mxu0
      %2918 = vmatprep.mubr.f32.mxu0 0.0
      %2919 = vmatmul.mubr.f32.gmra.mrb[0].mxu0 %v2741
      %v2920 = vpop.f32.mrb[0].mxu0
      %v2921 = vadd.f32 0.0, %v2920
      %v2922 = vpop.f32.mrb[0].mxu0
      %2923 = vmatprep.mubr.f32.mxu0 0.0
      %2924 = vmatmul.mubr.f32.gmra.mrb[0].mxu0 %v2744
      %v2925 = vpop.f32.mrb[0].mxu0
      %v2926 = vadd.f32 0.0, %v2925
      %v2927 = vpop.f32.mrb[0].mxu0
      %2928 = vmatprep.mubr.f32.mxu0 0.0
      %2929 = vmatmul.mubr.f32.gmra.mrb[0].mxu0 %v2747
      %v2930 = vpop.f32.mrb[0].mxu0
      %v2931 = vadd.f32 0.0, %v2930
      %v2932 = vpop.f32.mrb[0].mxu0
      %2933 = vmatprep.mubr.f32.mxu0 0.0
      %2934 = vmatmul.mubr.f32.gmra.mrb[0].mxu0 %v2750
      %v2935 = vpop.f32.mrb[0].mxu0
      %v2936 = vadd.f32 0.0, %v2935
      %v2937 = vpop.f32.mrb[0].mxu0
      %2938 = vmatprep.mubr.f32.mxu0 0.0
      %2939 = vmatmul.mubr.f32.gmra.mrb[0].mxu0 %v2753
      %v2940 = vpop.f32.mrb[0].mxu0
      %v2941 = vadd.f32 0.0, %v2940
      %v2942 = vpop.f32.mrb[0].mxu0
      %2943 = vmatprep.mubr.f32.mxu0 0.0
      %2944 = vmatmul.mubr.f32.gmra.mrb[0].mxu0 %v2756
      %v2945 = vpop.f32.mrb[0].mxu0
      %v2946 = vadd.f32 0.0, %v2945
      %v2947 = vpop.f32.mrb[0].mxu0
      %2948 = vmatprep.mubr.f32.mxu0 0.0
      %2949 = vmatmul.mubr.f32.gmra.mrb[0].mxu0 %v2759
      %v2950 = vpop.f32.mrb[0].mxu0
      %v2951 = vadd.f32 0.0, %v2950
      %v2952 = vpop.f32.mrb[0].mxu0
      %2953 = vmatprep.mubr.f32.mxu0 0.0
      %2954 = vmatmul.mubr.f32.gmra.mrb[0].mxu0 %v2762
      %v2955 = vpop.f32.mrb[0].mxu0
      %v2956 = vadd.f32 0.0, %v2955
      %v2957 = vpop.f32.mrb[0].mxu0
      %2958 = vmatprep.mubr.f32.mxu0 0.0
      %2959 = vmatmul.mubr.f32.gmra.mrb[0].mxu0 %v2765
      %v2960 = vpop.f32.mrb[0].mxu0
      %v2961 = vadd.f32 0.0, %v2960
      %v2962 = vpop.f32.mrb[0].mxu0
      %2963 = vmatprep.mubr.f32.mxu0 0.0
      %2964 = vmatmul.mubr.f32.gmra.mrb[0].mxu0 %v2768
      %v2965 = vpop.f32.mrb[0].mxu0
      %v2966 = vadd.f32 0.0, %v2965
      %v2967 = vpop.f32.mrb[0].mxu0
      %2968 = vmatprep.mubr.f32.mxu0 0.0
      %2969 = vmatmul.mubr.f32.gmra.mrb[0].mxu0 %v2771
      %v2970 = vpop.f32.mrb[0].mxu0
      %v2971 = vadd.f32 0.0, %v2970
      %v2972 = vpop.f32.mrb[0].mxu0
      %2973 = vmatprep.mubr.f32.mxu0 0.0
      %2974 = vmatmul.mubr.f32.gmra.mrb[0].mxu0 %v2774
      %v2975 = vpop.f32.mrb[0].mxu0
      %v2976 = vadd.f32 0.0, %v2975
      %v2977 = vpop.f32.mrb[0].mxu0
      %2978 = vmatprep.mubr.f32.mxu0 0.0
      %2979 = vmatmul.mubr.f32.gmra.mrb[0].mxu0 %v2777
      %v2980 = vpop.f32.mrb[0].mxu0
      %v2981 = vadd.f32 0.0, %v2980
      %v2982 = vpop.f32.mrb[0].mxu0
      %2983 = vmatprep.mubr.f32.mxu0 0.0
      %2984 = vmatmul.mubr.f32.gmra.mrb[0].mxu0 %v2780
      %v2985 = vpop.f32.mrb[0].mxu0
      %v2986 = vadd.f32 0.0, %v2985
      %v2987 = vpop.f32.mrb[0].mxu0
      %2988 = vmatprep.mubr.f32.mxu0 0.0
      %2989 = vmatmul.mubr.f32.gmra.mrb[0].mxu0 %v2783
      %v2990 = vpop.f32.mrb[0].mxu0
      %v2991 = vadd.f32 0.0, %v2990
      %v2992 = vpop.f32.mrb[0].mxu0
      %2993 = vmatprep.mubr.f32.mxu0 0.0
      %2994 = vmatmul.mubr.f32.gmra.mrb[0].mxu0 %v2786
      %v2995 = vpop.f32.mrb[0].mxu0
      %v2996 = vadd.f32 0.0, %v2995
      %v2997 = vpop.f32.mrb[0].mxu0
      %2998 = vmatprep.mubr.f32.mxu0 0.0
      %2999 = vmatmul.mubr.f32.gmra.mrb[0].mxu0 %v2789
      %v3000 = vpop.f32.mrb[0].mxu0
      %v3001 = vadd.f32 0.0, %v3000
      %v3002 = vpop.f32.mrb[0].mxu0
      %3003 = vmatprep.mubr.f32.mxu0 0.0
      %3004 = vmatmul.mubr.f32.gmra.mrb[0].mxu0 %v2792
      %v3005 = vpop.f32.mrb[0].mxu0
      %v3006 = vadd.f32 0.0, %v3005
      %v3007 = vpop.f32.mrb[0].mxu0
      %3008 = vmatprep.mubr.f32.mxu0 0.0
      %3009 = vmatmul.mubr.f32.gmra.mrb[0].mxu0 %v2795
      %v3010 = vpop.f32.mrb[0].mxu0
      %v3011 = vadd.f32 0.0, %v3010
      %v3012 = vpop.f32.mrb[0].mxu0
      %3013 = vmatprep.mubr.f32.mxu0 0.0
      %3014 = vmatmul.mubr.f32.gmra.mrb[0].mxu0 %v2798
      %v3015 = vpop.f32.mrb[0].mxu0
      %v3016 = vadd.f32 0.0, %v3015
      %v3017 = vpop.f32.mrb[0].mxu0
      %3018 = vmatprep.mubr.f32.mxu0 0.0
      %3019 = vmatmul.mubr.f32.gmra.mrb[0].mxu0 %v2801
      %v3020 = vpop.f32.mrb[0].mxu0
      %v3021 = vadd.f32 0.0, %v3020
      %v3022 = vpop.f32.mrb[0].mxu0
      %3023 = vmatprep.mubr.f32.mxu0 0.0
      %3024 = vmatmul.mubr.f32.gmra.mrb[0].mxu0 %v2804
      %v3025 = vpop.f32.mrb[0].mxu0
      %v3026 = vadd.f32 0.0, %v3025
      %v3027 = vpop.f32.mrb[0].mxu0
      %3028 = vmatprep.mubr.f32.mxu0 0.0
      %3029 = vmatmul.mubr.f32.gmra.mrb[0].mxu0 %v2807
      %v3030 = vpop.f32.mrb[0].mxu0
      %v3031 = vadd.f32 0.0, %v3030
      %v3032 = vpop.f32.mrb[0].mxu0
      %3033 = vdwg.mxu0
      %v3034 = vadd.f32 %v2646, %v2876
      %v3035 = vadd.f32 %v2647, %v2881
      %v3036 = vadd.f32 %v2648, %v2886
      %v3037 = vadd.f32 %v2649, %v2891
      %v3038 = vadd.f32 %v2650, %v2896
      %v3039 = vadd.f32 %v2651, %v2901
      %v3040 = vadd.f32 %v2652, %v2906
      %v3041 = vadd.f32 %v2653, %v2911
      %v3042 = vadd.f32 %v2654, %v2916
      %v3043 = vadd.f32 %v2655, %v2921
      %v3044 = vadd.f32 %v2656, %v2926
      %v3045 = vadd.f32 %v2657, %v2931
      %v3046 = vadd.f32 %v2658, %v2936
      %v3047 = vadd.f32 %v2659, %v2941
      %v3048 = vadd.f32 %v2660, %v2946
      %v3049 = vadd.f32 %v2661, %v2951
      %v3050 = vadd.f32 %v2662, %v2956
      %v3051 = vadd.f32 %v2663, %v2961
      %v3052 = vadd.f32 %v2664, %v2966
      %v3053 = vadd.f32 %v2665, %v2971
      %v3054 = vadd.f32 %v2666, %v2976
      %v3055 = vadd.f32 %v2667, %v2981
      %v3056 = vadd.f32 %v2668, %v2986
      %v3057 = vadd.f32 %v2669, %v2991
      %v3058 = vadd.f32 %v2670, %v2996
      %v3059 = vadd.f32 %v2671, %v3001
      %v3060 = vadd.f32 %v2672, %v3006
      %v3061 = vadd.f32 %v2673, %v3011
      %v3062 = vadd.f32 %v2674, %v3016
      %v3063 = vadd.f32 %v2675, %v3021
      %v3064 = vadd.f32 %v2676, %v3026
      %v3065 = vadd.f32 %v2677, %v3031
      %v3066 = vld [vmem:[%s2678 + $0x1] sm:$0xff]
      %v3067 = vld [vmem:[%s2678 + $0x9] sm:$0xff]
      %v3068 = vld [vmem:[%s2678 + $0x19] sm:$0xff]
      %v3069 = vld [vmem:[%s2678 + $0x21] sm:$0xff]
      %v3070 = vld [vmem:[%s2678 + $0x31] sm:$0xff]
      %v3071 = vld [vmem:[%s2678 + $0x39] sm:$0xff]
      %v3072 = vld [vmem:[%s2678 + $0x49] sm:$0xff]
      %v3073 = vld [vmem:[%s2678 + $0x51] sm:$0xff]
      %v3074 = vld [vmem:[%s2678 + $0x61] sm:$0xff]
      %v3075 = vld [vmem:[%s2678 + $0x69] sm:$0xff]
      %v3076 = vld [vmem:[%s2678 + $0x79] sm:$0xff]
      %v3077 = vld [vmem:[%s2678 + $0x81] sm:$0xff]
      %v3078 = vld [vmem:[%s2678 + $0x91] sm:$0xff]
      %v3079 = vld [vmem:[%s2678 + $0x99] sm:$0xff]
      %v3080 = vld [vmem:[%s2678 + $0xa9] sm:$0xff]
      %v3081 = vld [vmem:[%s2678 + $0xb1] sm:$0xff]
      %v3082 = vld [vmem:[%s2678 + $0xc1] sm:$0xff]
      %v3083 = vld [vmem:[%s2678 + $0xc9] sm:$0xff]
      %v3084 = vld [vmem:[%s2678 + $0xd9] sm:$0xff]
      %v3085 = vld [vmem:[%s2678 + $0xe1] sm:$0xff]
      %v3086 = vld [vmem:[%s2678 + $0xf1] sm:$0xff]
      %v3087 = vld [vmem:[%s2678 + $0xf9] sm:$0xff]
      %v3088 = vld [vmem:[%s2678 + $0x109] sm:$0xff]
      %v3089 = vld [vmem:[%s2678 + $0x111] sm:$0xff]
      %v3090 = vld [vmem:[%s2678 + $0x121] sm:$0xff]
      %v3091 = vld [vmem:[%s2678 + $0x129] sm:$0xff]
      %v3092 = vld [vmem:[%s2678 + $0x139] sm:$0xff]
      %v3093 = vld [vmem:[%s2678 + $0x141] sm:$0xff]
      %v3094 = vld [vmem:[%s2678 + $0x151] sm:$0xff]
      %v3095 = vld [vmem:[%s2678 + $0x159] sm:$0xff]
      %v3096 = vld [vmem:[%s2678 + $0x169] sm:$0xff]
      %v3097 = vld [vmem:[%s2678 + $0x171] sm:$0xff]
      %s3098 = scalar_lea.vmem %s2, 56
      %v3099 = vld [vmem:[%s3098] sm:$0xff]
      %v3101 = vsel %vm347, %v3066, 0
      %v3104 = vsel %vm347, %v3067, 0
      %v3107 = vsel %vm347, %v3068, 0
      %v3110 = vsel %vm347, %v3069, 0
      %v3113 = vsel %vm347, %v3070, 0
      %v3116 = vsel %vm347, %v3071, 0
      %v3119 = vsel %vm347, %v3072, 0
      %v3122 = vsel %vm347, %v3073, 0
      %v3125 = vsel %vm347, %v3074, 0
      %v3128 = vsel %vm347, %v3075, 0
      %v3131 = vsel %vm347, %v3076, 0
      %v3134 = vsel %vm347, %v3077, 0
      %v3137 = vsel %vm347, %v3078, 0
      %v3140 = vsel %vm347, %v3079, 0
      %v3143 = vsel %vm347, %v3080, 0
      %v3146 = vsel %vm347, %v3081, 0
      %v3149 = vsel %vm347, %v3082, 0
      %v3152 = vsel %vm347, %v3083, 0
      %v3155 = vsel %vm347, %v3084, 0
      %v3158 = vsel %vm347, %v3085, 0
      %v3161 = vsel %vm347, %v3086, 0
      %v3164 = vsel %vm347, %v3087, 0
      %v3167 = vsel %vm347, %v3088, 0
      %v3170 = vsel %vm347, %v3089, 0
      %v3173 = vsel %vm347, %v3090, 0
      %v3176 = vsel %vm347, %v3091, 0
      %v3179 = vsel %vm347, %v3092, 0
      %v3182 = vsel %vm347, %v3093, 0
      %v3185 = vsel %vm347, %v3094, 0
      %v3188 = vsel %vm347, %v3095, 0
      %v3191 = vsel %vm347, %v3096, 0
      %v3194 = vsel %vm347, %v3097, 0
      %3196 = vmatprep.subr.mxu0 0.0
      %3197 = vmatpush1.msra.mxu0 %v3099
      %3198 = vmatprep.subr.mxu0 0.0
      %3199 = vmatpush1.msra.mxu0 0.0
      %3200 = vmatprep.subr.mxu0 0.0
      %3201 = vmatpush1.msra.mxu0 0.0
      %3202 = vmatprep.subr.mxu0 0.0
      %3203 = vmatpush1.msra.mxu0 0.0
      %3204 = vmatprep.subr.mxu0 0.0
      %3205 = vmatpush1.msra.mxu0 0.0
      %3206 = vmatprep.subr.mxu0 0.0
      %3207 = vmatpush1.msra.mxu0 0.0
      %3208 = vmatprep.subr.mxu0 0.0
      %3209 = vmatpush1.msra.mxu0 0.0
      %3210 = vmatprep.subr.mxu0 0.0
      %3211 = vmatpush1.msra.mxu0 0.0
      %3212 = vmatprep.subr.mxu0 0.0
      %3213 = vmatpush1.msra.mxu0 0.0
      %3214 = vmatprep.subr.mxu0 0.0
      %3215 = vmatpush1.msra.mxu0 0.0
      %3216 = vmatprep.subr.mxu0 0.0
      %3217 = vmatpush1.msra.mxu0 0.0
      %3218 = vmatprep.subr.mxu0 0.0
      %3219 = vmatpush1.msra.mxu0 0.0
      %3220 = vmatprep.subr.mxu0 0.0
      %3221 = vmatpush1.msra.mxu0 0.0
      %3222 = vmatprep.subr.mxu0 0.0
      %3223 = vmatpush1.msra.mxu0 0.0
      %3224 = vmatprep.subr.mxu0 0.0
      %3225 = vmatpush1.msra.mxu0 0.0
      %3226 = vmatprep.subr.mxu0 0.0
      %3227 = vmatpush1.msra.mxu0 0.0
      %3228 = vmatprep.subr.mxu0 0.0
      %3229 = vmatpush1.msra.mxu0 0.0
      %3230 = vmatprep.subr.mxu0 0.0
      %3231 = vmatpush1.msra.mxu0 0.0
      %3232 = vmatprep.subr.mxu0 0.0
      %3233 = vmatpush1.msra.mxu0 0.0
      %3234 = vmatprep.subr.mxu0 0.0
      %3235 = vmatpush1.msra.mxu0 0.0
      %3236 = vmatprep.subr.mxu0 0.0
      %3237 = vmatpush1.msra.mxu0 0.0
      %3238 = vmatprep.subr.mxu0 0.0
      %3239 = vmatpush1.msra.mxu0 0.0
      %3240 = vmatprep.subr.mxu0 0.0
      %3241 = vmatpush1.msra.mxu0 0.0
      %3242 = vmatprep.subr.mxu0 0.0
      %3243 = vmatpush1.msra.mxu0 0.0
      %3244 = vmatprep.subr.mxu0 0.0
      %3245 = vmatpush1.msra.mxu0 0.0
      %3246 = vmatprep.subr.mxu0 0.0
      %3247 = vmatpush1.msra.mxu0 0.0
      %3248 = vmatprep.subr.mxu0 0.0
      %3249 = vmatpush1.msra.mxu0 0.0
      %3250 = vmatprep.subr.mxu0 0.0
      %3251 = vmatpush1.msra.mxu0 0.0
      %3252 = vmatprep.subr.mxu0 0.0
      %3253 = vmatpush1.msra.mxu0 0.0
      %3254 = vmatprep.subr.mxu0 0.0
      %3255 = vmatpush1.msra.mxu0 0.0
      %3256 = vmatprep.subr.mxu0 0.0
      %3257 = vmatpush1.msra.mxu0 0.0
      %3258 = vmatprep.subr.mxu0 0.0
      %3259 = vmatpush1.msra.mxu0 0.0
      %3260 = vmatprep.mubr.f32.mxu0 0.0
      %3261 = vmatmul.mubr.f32.gmra.mrb[0].mxu0 %v3101
      %v3262 = vpop.f32.mrb[0].mxu0
      %v3263 = vadd.f32 0.0, %v3262
      %v3264 = vpop.f32.mrb[0].mxu0
      %3265 = vmatprep.mubr.f32.mxu0 0.0
      %3266 = vmatmul.mubr.f32.gmra.mrb[0].mxu0 %v3104
      %v3267 = vpop.f32.mrb[0].mxu0
      %v3268 = vadd.f32 0.0, %v3267
      %v3269 = vpop.f32.mrb[0].mxu0
      %3270 = vmatprep.mubr.f32.mxu0 0.0
      %3271 = vmatmul.mubr.f32.gmra.mrb[0].mxu0 %v3107
      %v3272 = vpop.f32.mrb[0].mxu0
      %v3273 = vadd.f32 0.0, %v3272
      %v3274 = vpop.f32.mrb[0].mxu0
      %3275 = vmatprep.mubr.f32.mxu0 0.0
      %3276 = vmatmul.mubr.f32.gmra.mrb[0].mxu0 %v3110
      %v3277 = vpop.f32.mrb[0].mxu0
      %v3278 = vadd.f32 0.0, %v3277
      %v3279 = vpop.f32.mrb[0].mxu0
      %3280 = vmatprep.mubr.f32.mxu0 0.0
      %3281 = vmatmul.mubr.f32.gmra.mrb[0].mxu0 %v3113
      %v3282 = vpop.f32.mrb[0].mxu0
      %v3283 = vadd.f32 0.0, %v3282
      %v3284 = vpop.f32.mrb[0].mxu0
      %3285 = vmatprep.mubr.f32.mxu0 0.0
      %3286 = vmatmul.mubr.f32.gmra.mrb[0].mxu0 %v3116
      %v3287 = vpop.f32.mrb[0].mxu0
      %v3288 = vadd.f32 0.0, %v3287
      %v3289 = vpop.f32.mrb[0].mxu0
      %3290 = vmatprep.mubr.f32.mxu0 0.0
      %3291 = vmatmul.mubr.f32.gmra.mrb[0].mxu0 %v3119
      %v3292 = vpop.f32.mrb[0].mxu0
      %v3293 = vadd.f32 0.0, %v3292
      %v3294 = vpop.f32.mrb[0].mxu0
      %3295 = vmatprep.mubr.f32.mxu0 0.0
      %3296 = vmatmul.mubr.f32.gmra.mrb[0].mxu0 %v3122
      %v3297 = vpop.f32.mrb[0].mxu0
      %v3298 = vadd.f32 0.0, %v3297
      %v3299 = vpop.f32.mrb[0].mxu0
      %3300 = vmatprep.mubr.f32.mxu0 0.0
      %3301 = vmatmul.mubr.f32.gmra.mrb[0].mxu0 %v3125
      %v3302 = vpop.f32.mrb[0].mxu0
      %v3303 = vadd.f32 0.0, %v3302
      %v3304 = vpop.f32.mrb[0].mxu0
      %3305 = vmatprep.mubr.f32.mxu0 0.0
      %3306 = vmatmul.mubr.f32.gmra.mrb[0].mxu0 %v3128
      %v3307 = vpop.f32.mrb[0].mxu0
      %v3308 = vadd.f32 0.0, %v3307
      %v3309 = vpop.f32.mrb[0].mxu0
      %3310 = vmatprep.mubr.f32.mxu0 0.0
      %3311 = vmatmul.mubr.f32.gmra.mrb[0].mxu0 %v3131
      %v3312 = vpop.f32.mrb[0].mxu0
      %v3313 = vadd.f32 0.0, %v3312
      %v3314 = vpop.f32.mrb[0].mxu0
      %3315 = vmatprep.mubr.f32.mxu0 0.0
      %3316 = vmatmul.mubr.f32.gmra.mrb[0].mxu0 %v3134
      %v3317 = vpop.f32.mrb[0].mxu0
      %v3318 = vadd.f32 0.0, %v3317
      %v3319 = vpop.f32.mrb[0].mxu0
      %3320 = vmatprep.mubr.f32.mxu0 0.0
      %3321 = vmatmul.mubr.f32.gmra.mrb[0].mxu0 %v3137
      %v3322 = vpop.f32.mrb[0].mxu0
      %v3323 = vadd.f32 0.0, %v3322
      %v3324 = vpop.f32.mrb[0].mxu0
      %3325 = vmatprep.mubr.f32.mxu0 0.0
      %3326 = vmatmul.mubr.f32.gmra.mrb[0].mxu0 %v3140
      %v3327 = vpop.f32.mrb[0].mxu0
      %v3328 = vadd.f32 0.0, %v3327
      %v3329 = vpop.f32.mrb[0].mxu0
      %3330 = vmatprep.mubr.f32.mxu0 0.0
      %3331 = vmatmul.mubr.f32.gmra.mrb[0].mxu0 %v3143
      %v3332 = vpop.f32.mrb[0].mxu0
      %v3333 = vadd.f32 0.0, %v3332
      %v3334 = vpop.f32.mrb[0].mxu0
      %3335 = vmatprep.mubr.f32.mxu0 0.0
      %3336 = vmatmul.mubr.f32.gmra.mrb[0].mxu0 %v3146
      %v3337 = vpop.f32.mrb[0].mxu0
      %v3338 = vadd.f32 0.0, %v3337
      %v3339 = vpop.f32.mrb[0].mxu0
      %3340 = vmatprep.mubr.f32.mxu0 0.0
      %3341 = vmatmul.mubr.f32.gmra.mrb[0].mxu0 %v3149
      %v3342 = vpop.f32.mrb[0].mxu0
      %v3343 = vadd.f32 0.0, %v3342
      %v3344 = vpop.f32.mrb[0].mxu0
      %3345 = vmatprep.mubr.f32.mxu0 0.0
      %3346 = vmatmul.mubr.f32.gmra.mrb[0].mxu0 %v3152
      %v3347 = vpop.f32.mrb[0].mxu0
      %v3348 = vadd.f32 0.0, %v3347
      %v3349 = vpop.f32.mrb[0].mxu0
      %3350 = vmatprep.mubr.f32.mxu0 0.0
      %3351 = vmatmul.mubr.f32.gmra.mrb[0].mxu0 %v3155
      %v3352 = vpop.f32.mrb[0].mxu0
      %v3353 = vadd.f32 0.0, %v3352
      %v3354 = vpop.f32.mrb[0].mxu0
      %3355 = vmatprep.mubr.f32.mxu0 0.0
      %3356 = vmatmul.mubr.f32.gmra.mrb[0].mxu0 %v3158
      %v3357 = vpop.f32.mrb[0].mxu0
      %v3358 = vadd.f32 0.0, %v3357
      %v3359 = vpop.f32.mrb[0].mxu0
      %3360 = vmatprep.mubr.f32.mxu0 0.0
      %3361 = vmatmul.mubr.f32.gmra.mrb[0].mxu0 %v3161
      %v3362 = vpop.f32.mrb[0].mxu0
      %v3363 = vadd.f32 0.0, %v3362
      %v3364 = vpop.f32.mrb[0].mxu0
      %3365 = vmatprep.mubr.f32.mxu0 0.0
      %3366 = vmatmul.mubr.f32.gmra.mrb[0].mxu0 %v3164
      %v3367 = vpop.f32.mrb[0].mxu0
      %v3368 = vadd.f32 0.0, %v3367
      %v3369 = vpop.f32.mrb[0].mxu0
      %3370 = vmatprep.mubr.f32.mxu0 0.0
      %3371 = vmatmul.mubr.f32.gmra.mrb[0].mxu0 %v3167
      %v3372 = vpop.f32.mrb[0].mxu0
      %v3373 = vadd.f32 0.0, %v3372
      %v3374 = vpop.f32.mrb[0].mxu0
      %3375 = vmatprep.mubr.f32.mxu0 0.0
      %3376 = vmatmul.mubr.f32.gmra.mrb[0].mxu0 %v3170
      %v3377 = vpop.f32.mrb[0].mxu0
      %v3378 = vadd.f32 0.0, %v3377
      %v3379 = vpop.f32.mrb[0].mxu0
      %3380 = vmatprep.mubr.f32.mxu0 0.0
      %3381 = vmatmul.mubr.f32.gmra.mrb[0].mxu0 %v3173
      %v3382 = vpop.f32.mrb[0].mxu0
      %v3383 = vadd.f32 0.0, %v3382
      %v3384 = vpop.f32.mrb[0].mxu0
      %3385 = vmatprep.mubr.f32.mxu0 0.0
      %3386 = vmatmul.mubr.f32.gmra.mrb[0].mxu0 %v3176
      %v3387 = vpop.f32.mrb[0].mxu0
      %v3388 = vadd.f32 0.0, %v3387
      %v3389 = vpop.f32.mrb[0].mxu0
      %3390 = vmatprep.mubr.f32.mxu0 0.0
      %3391 = vmatmul.mubr.f32.gmra.mrb[0].mxu0 %v3179
      %v3392 = vpop.f32.mrb[0].mxu0
      %v3393 = vadd.f32 0.0, %v3392
      %v3394 = vpop.f32.mrb[0].mxu0
      %3395 = vmatprep.mubr.f32.mxu0 0.0
      %3396 = vmatmul.mubr.f32.gmra.mrb[0].mxu0 %v3182
      %v3397 = vpop.f32.mrb[0].mxu0
      %v3398 = vadd.f32 0.0, %v3397
      %v3399 = vpop.f32.mrb[0].mxu0
      %3400 = vmatprep.mubr.f32.mxu0 0.0
      %3401 = vmatmul.mubr.f32.gmra.mrb[0].mxu0 %v3185
      %v3402 = vpop.f32.mrb[0].mxu0
      %v3403 = vadd.f32 0.0, %v3402
      %v3404 = vpop.f32.mrb[0].mxu0
      %3405 = vmatprep.mubr.f32.mxu0 0.0
      %3406 = vmatmul.mubr.f32.gmra.mrb[0].mxu0 %v3188
      %v3407 = vpop.f32.mrb[0].mxu0
      %v3408 = vadd.f32 0.0, %v3407
      %v3409 = vpop.f32.mrb[0].mxu0
      %3410 = vmatprep.mubr.f32.mxu0 0.0
      %3411 = vmatmul.mubr.f32.gmra.mrb[0].mxu0 %v3191
      %v3412 = vpop.f32.mrb[0].mxu0
      %v3413 = vadd.f32 0.0, %v3412
      %v3414 = vpop.f32.mrb[0].mxu0
      %3415 = vmatprep.mubr.f32.mxu0 0.0
      %3416 = vmatmul.mubr.f32.gmra.mrb[0].mxu0 %v3194
      %v3417 = vpop.f32.mrb[0].mxu0
      %v3418 = vadd.f32 0.0, %v3417
      %v3419 = vpop.f32.mrb[0].mxu0
      %3420 = vdwg.mxu0
      %v3421 = vadd.f32 %v3034, %v3263
      %v3422 = vadd.f32 %v3035, %v3268
      %v3423 = vadd.f32 %v3036, %v3273
      %v3424 = vadd.f32 %v3037, %v3278
      %v3425 = vadd.f32 %v3038, %v3283
      %v3426 = vadd.f32 %v3039, %v3288
      %v3427 = vadd.f32 %v3040, %v3293
      %v3428 = vadd.f32 %v3041, %v3298
      %v3429 = vadd.f32 %v3042, %v3303
      %v3430 = vadd.f32 %v3043, %v3308
      %v3431 = vadd.f32 %v3044, %v3313
      %v3432 = vadd.f32 %v3045, %v3318
      %v3433 = vadd.f32 %v3046, %v3323
      %v3434 = vadd.f32 %v3047, %v3328
      %v3435 = vadd.f32 %v3048, %v3333
      %v3436 = vadd.f32 %v3049, %v3338
      %v3437 = vadd.f32 %v3050, %v3343
      %v3438 = vadd.f32 %v3051, %v3348
      %v3439 = vadd.f32 %v3052, %v3353
      %v3440 = vadd.f32 %v3053, %v3358
      %v3441 = vadd.f32 %v3054, %v3363
      %v3442 = vadd.f32 %v3055, %v3368
      %v3443 = vadd.f32 %v3056, %v3373
      %v3444 = vadd.f32 %v3057, %v3378
      %v3445 = vadd.f32 %v3058, %v3383
      %v3446 = vadd.f32 %v3059, %v3388
      %v3447 = vadd.f32 %v3060, %v3393
      %v3448 = vadd.f32 %v3061, %v3398
      %v3449 = vadd.f32 %v3062, %v3403
      %v3450 = vadd.f32 %v3063, %v3408
      %v3451 = vadd.f32 %v3064, %v3413
      %v3452 = vadd.f32 %v3065, %v3418
      %v3453 = vld [vmem:[%s2678 + $0x2] sm:$0xff]
      %v3454 = vld [vmem:[%s2678 + $0xa] sm:$0xff]
      %v3455 = vld [vmem:[%s2678 + $0x1a] sm:$0xff]
      %v3456 = vld [vmem:[%s2678 + $0x22] sm:$0xff]
      %v3457 = vld [vmem:[%s2678 + $0x32] sm:$0xff]
      %v3458 = vld [vmem:[%s2678 + $0x3a] sm:$0xff]
      %v3459 = vld [vmem:[%s2678 + $0x4a] sm:$0xff]
      %v3460 = vld [vmem:[%s2678 + $0x52] sm:$0xff]
      %v3461 = vld [vmem:[%s2678 + $0x62] sm:$0xff]
      %v3462 = vld [vmem:[%s2678 + $0x6a] sm:$0xff]
      %v3463 = vld [vmem:[%s2678 + $0x7a] sm:$0xff]
      %v3464 = vld [vmem:[%s2678 + $0x82] sm:$0xff]
      %v3465 = vld [vmem:[%s2678 + $0x92] sm:$0xff]
      %v3466 = vld [vmem:[%s2678 + $0x9a] sm:$0xff]
      %v3467 = vld [vmem:[%s2678 + $0xaa] sm:$0xff]
      %v3468 = vld [vmem:[%s2678 + $0xb2] sm:$0xff]
      %v3469 = vld [vmem:[%s2678 + $0xc2] sm:$0xff]
      %v3470 = vld [vmem:[%s2678 + $0xca] sm:$0xff]
      %v3471 = vld [vmem:[%s2678 + $0xda] sm:$0xff]
      %v3472 = vld [vmem:[%s2678 + $0xe2] sm:$0xff]
      %v3473 = vld [vmem:[%s2678 + $0xf2] sm:$0xff]
      %v3474 = vld [vmem:[%s2678 + $0xfa] sm:$0xff]
      %v3475 = vld [vmem:[%s2678 + $0x10a] sm:$0xff]
      %v3476 = vld [vmem:[%s2678 + $0x112] sm:$0xff]
      %v3477 = vld [vmem:[%s2678 + $0x122] sm:$0xff]
      %v3478 = vld [vmem:[%s2678 + $0x12a] sm:$0xff]
      %v3479 = vld [vmem:[%s2678 + $0x13a] sm:$0xff]
      %v3480 = vld [vmem:[%s2678 + $0x142] sm:$0xff]
      %v3481 = vld [vmem:[%s2678 + $0x152] sm:$0xff]
      %v3482 = vld [vmem:[%s2678 + $0x15a] sm:$0xff]
      %v3483 = vld [vmem:[%s2678 + $0x16a] sm:$0xff]
      %v3484 = vld [vmem:[%s2678 + $0x172] sm:$0xff]
      %s3485 = scalar_lea.vmem %s2, 64
      %v3486 = vld [vmem:[%s3485] sm:$0xff]
      %v3488 = vsel %vm347, %v3453, 0
      %v3491 = vsel %vm347, %v3454, 0
      %v3494 = vsel %vm347, %v3455, 0
      %v3497 = vsel %vm347, %v3456, 0
      %v3500 = vsel %vm347, %v3457, 0
      %v3503 = vsel %vm347, %v3458, 0
      %v3506 = vsel %vm347, %v3459, 0
      %v3509 = vsel %vm347, %v3460, 0
      %v3512 = vsel %vm347, %v3461, 0
      %v3515 = vsel %vm347, %v3462, 0
      %v3518 = vsel %vm347, %v3463, 0
      %v3521 = vsel %vm347, %v3464, 0
      %v3524 = vsel %vm347, %v3465, 0
      %v3527 = vsel %vm347, %v3466, 0
      %v3530 = vsel %vm347, %v3467, 0
      %v3533 = vsel %vm347, %v3468, 0
      %v3536 = vsel %vm347, %v3469, 0
      %v3539 = vsel %vm347, %v3470, 0
      %v3542 = vsel %vm347, %v3471, 0
      %v3545 = vsel %vm347, %v3472, 0
      %v3548 = vsel %vm347, %v3473, 0
      %v3551 = vsel %vm347, %v3474, 0
      %v3554 = vsel %vm347, %v3475, 0
      %v3557 = vsel %vm347, %v3476, 0
      %v3560 = vsel %vm347, %v3477, 0
      %v3563 = vsel %vm347, %v3478, 0
      %v3566 = vsel %vm347, %v3479, 0
      %v3569 = vsel %vm347, %v3480, 0
      %v3572 = vsel %vm347, %v3481, 0
      %v3575 = vsel %vm347, %v3482, 0
      %v3578 = vsel %vm347, %v3483, 0
      %v3581 = vsel %vm347, %v3484, 0
      %3583 = vmatprep.subr.mxu0 0.0
      %3584 = vmatpush1.msra.mxu0 %v3486
      %3585 = vmatprep.subr.mxu0 0.0
      %3586 = vmatpush1.msra.mxu0 0.0
      %3587 = vmatprep.subr.mxu0 0.0
      %3588 = vmatpush1.msra.mxu0 0.0
      %3589 = vmatprep.subr.mxu0 0.0
      %3590 = vmatpush1.msra.mxu0 0.0
      %3591 = vmatprep.subr.mxu0 0.0
      %3592 = vmatpush1.msra.mxu0 0.0
      %3593 = vmatprep.subr.mxu0 0.0
      %3594 = vmatpush1.msra.mxu0 0.0
      %3595 = vmatprep.subr.mxu0 0.0
      %3596 = vmatpush1.msra.mxu0 0.0
      %3597 = vmatprep.subr.mxu0 0.0
      %3598 = vmatpush1.msra.mxu0 0.0
      %3599 = vmatprep.subr.mxu0 0.0
      %3600 = vmatpush1.msra.mxu0 0.0
      %3601 = vmatprep.subr.mxu0 0.0
      %3602 = vmatpush1.msra.mxu0 0.0
      %3603 = vmatprep.subr.mxu0 0.0
      %3604 = vmatpush1.msra.mxu0 0.0
      %3605 = vmatprep.subr.mxu0 0.0
      %3606 = vmatpush1.msra.mxu0 0.0
      %3607 = vmatprep.subr.mxu0 0.0
      %3608 = vmatpush1.msra.mxu0 0.0
      %3609 = vmatprep.subr.mxu0 0.0
      %3610 = vmatpush1.msra.mxu0 0.0
      %3611 = vmatprep.subr.mxu0 0.0
      %3612 = vmatpush1.msra.mxu0 0.0
      %3613 = vmatprep.subr.mxu0 0.0
      %3614 = vmatpush1.msra.mxu0 0.0
      %3615 = vmatprep.subr.mxu0 0.0
      %3616 = vmatpush1.msra.mxu0 0.0
      %3617 = vmatprep.subr.mxu0 0.0
      %3618 = vmatpush1.msra.mxu0 0.0
      %3619 = vmatprep.subr.mxu0 0.0
      %3620 = vmatpush1.msra.mxu0 0.0
      %3621 = vmatprep.subr.mxu0 0.0
      %3622 = vmatpush1.msra.mxu0 0.0
      %3623 = vmatprep.subr.mxu0 0.0
      %3624 = vmatpush1.msra.mxu0 0.0
      %3625 = vmatprep.subr.mxu0 0.0
      %3626 = vmatpush1.msra.mxu0 0.0
      %3627 = vmatprep.subr.mxu0 0.0
      %3628 = vmatpush1.msra.mxu0 0.0
      %3629 = vmatprep.subr.mxu0 0.0
      %3630 = vmatpush1.msra.mxu0 0.0
      %3631 = vmatprep.subr.mxu0 0.0
      %3632 = vmatpush1.msra.mxu0 0.0
      %3633 = vmatprep.subr.mxu0 0.0
      %3634 = vmatpush1.msra.mxu0 0.0
      %3635 = vmatprep.subr.mxu0 0.0
      %3636 = vmatpush1.msra.mxu0 0.0
      %3637 = vmatprep.subr.mxu0 0.0
      %3638 = vmatpush1.msra.mxu0 0.0
      %3639 = vmatprep.subr.mxu0 0.0
      %3640 = vmatpush1.msra.mxu0 0.0
      %3641 = vmatprep.subr.mxu0 0.0
      %3642 = vmatpush1.msra.mxu0 0.0
      %3643 = vmatprep.subr.mxu0 0.0
      %3644 = vmatpush1.msra.mxu0 0.0
      %3645 = vmatprep.subr.mxu0 0.0
      %3646 = vmatpush1.msra.mxu0 0.0
      %3647 = vmatprep.mubr.f32.mxu0 0.0
      %3648 = vmatmul.mubr.f32.gmra.mrb[0].mxu0 %v3488
      %v3649 = vpop.f32.mrb[0].mxu0
      %v3650 = vadd.f32 0.0, %v3649
      %v3651 = vpop.f32.mrb[0].mxu0
      %3652 = vmatprep.mubr.f32.mxu0 0.0
      %3653 = vmatmul.mubr.f32.gmra.mrb[0].mxu0 %v3491
      %v3654 = vpop.f32.mrb[0].mxu0
      %v3655 = vadd.f32 0.0, %v3654
      %v3656 = vpop.f32.mrb[0].mxu0
      %3657 = vmatprep.mubr.f32.mxu0 0.0
      %3658 = vmatmul.mubr.f32.gmra.mrb[0].mxu0 %v3494
      %v3659 = vpop.f32.mrb[0].mxu0
      %v3660 = vadd.f32 0.0, %v3659
      %v3661 = vpop.f32.mrb[0].mxu0
      %3662 = vmatprep.mubr.f32.mxu0 0.0
      %3663 = vmatmul.mubr.f32.gmra.mrb[0].mxu0 %v3497
      %v3664 = vpop.f32.mrb[0].mxu0
      %v3665 = vadd.f32 0.0, %v3664
      %v3666 = vpop.f32.mrb[0].mxu0
      %3667 = vmatprep.mubr.f32.mxu0 0.0
      %3668 = vmatmul.mubr.f32.gmra.mrb[0].mxu0 %v3500
      %v3669 = vpop.f32.mrb[0].mxu0
      %v3670 = vadd.f32 0.0, %v3669
      %v3671 = vpop.f32.mrb[0].mxu0
      %3672 = vmatprep.mubr.f32.mxu0 0.0
      %3673 = vmatmul.mubr.f32.gmra.mrb[0].mxu0 %v3503
      %v3674 = vpop.f32.mrb[0].mxu0
      %v3675 = vadd.f32 0.0, %v3674
      %v3676 = vpop.f32.mrb[0].mxu0
      %3677 = vmatprep.mubr.f32.mxu0 0.0
      %3678 = vmatmul.mubr.f32.gmra.mrb[0].mxu0 %v3506
      %v3679 = vpop.f32.mrb[0].mxu0
      %v3680 = vadd.f32 0.0, %v3679
      %v3681 = vpop.f32.mrb[0].mxu0
      %3682 = vmatprep.mubr.f32.mxu0 0.0
      %3683 = vmatmul.mubr.f32.gmra.mrb[0].mxu0 %v3509
      %v3684 = vpop.f32.mrb[0].mxu0
      %v3685 = vadd.f32 0.0, %v3684
      %v3686 = vpop.f32.mrb[0].mxu0
      %3687 = vmatprep.mubr.f32.mxu0 0.0
      %3688 = vmatmul.mubr.f32.gmra.mrb[0].mxu0 %v3512
      %v3689 = vpop.f32.mrb[0].mxu0
      %v3690 = vadd.f32 0.0, %v3689
      %v3691 = vpop.f32.mrb[0].mxu0
      %3692 = vmatprep.mubr.f32.mxu0 0.0
      %3693 = vmatmul.mubr.f32.gmra.mrb[0].mxu0 %v3515
      %v3694 = vpop.f32.mrb[0].mxu0
      %v3695 = vadd.f32 0.0, %v3694
      %v3696 = vpop.f32.mrb[0].mxu0
      %3697 = vmatprep.mubr.f32.mxu0 0.0
      %3698 = vmatmul.mubr.f32.gmra.mrb[0].mxu0 %v3518
      %v3699 = vpop.f32.mrb[0].mxu0
      %v3700 = vadd.f32 0.0, %v3699
      %v3701 = vpop.f32.mrb[0].mxu0
      %3702 = vmatprep.mubr.f32.mxu0 0.0
      %3703 = vmatmul.mubr.f32.gmra.mrb[0].mxu0 %v3521
      %v3704 = vpop.f32.mrb[0].mxu0
      %v3705 = vadd.f32 0.0, %v3704
      %v3706 = vpop.f32.mrb[0].mxu0
      %3707 = vmatprep.mubr.f32.mxu0 0.0
      %3708 = vmatmul.mubr.f32.gmra.mrb[0].mxu0 %v3524
      %v3709 = vpop.f32.mrb[0].mxu0
      %v3710 = vadd.f32 0.0, %v3709
      %v3711 = vpop.f32.mrb[0].mxu0
      %3712 = vmatprep.mubr.f32.mxu0 0.0
      %3713 = vmatmul.mubr.f32.gmra.mrb[0].mxu0 %v3527
      %v3714 = vpop.f32.mrb[0].mxu0
      %v3715 = vadd.f32 0.0, %v3714
      %v3716 = vpop.f32.mrb[0].mxu0
      %3717 = vmatprep.mubr.f32.mxu0 0.0
      %3718 = vmatmul.mubr.f32.gmra.mrb[0].mxu0 %v3530
      %v3719 = vpop.f32.mrb[0].mxu0
      %v3720 = vadd.f32 0.0, %v3719
      %v3721 = vpop.f32.mrb[0].mxu0
      %3722 = vmatprep.mubr.f32.mxu0 0.0
      %3723 = vmatmul.mubr.f32.gmra.mrb[0].mxu0 %v3533
      %v3724 = vpop.f32.mrb[0].mxu0
      %v3725 = vadd.f32 0.0, %v3724
      %v3726 = vpop.f32.mrb[0].mxu0
      %3727 = vmatprep.mubr.f32.mxu0 0.0
      %3728 = vmatmul.mubr.f32.gmra.mrb[0].mxu0 %v3536
      %v3729 = vpop.f32.mrb[0].mxu0
      %v3730 = vadd.f32 0.0, %v3729
      %v3731 = vpop.f32.mrb[0].mxu0
      %3732 = vmatprep.mubr.f32.mxu0 0.0
      %3733 = vmatmul.mubr.f32.gmra.mrb[0].mxu0 %v3539
      %v3734 = vpop.f32.mrb[0].mxu0
      %v3735 = vadd.f32 0.0, %v3734
      %v3736 = vpop.f32.mrb[0].mxu0
      %3737 = vmatprep.mubr.f32.mxu0 0.0
      %3738 = vmatmul.mubr.f32.gmra.mrb[0].mxu0 %v3542
      %v3739 = vpop.f32.mrb[0].mxu0
      %v3740 = vadd.f32 0.0, %v3739
      %v3741 = vpop.f32.mrb[0].mxu0
      %3742 = vmatprep.mubr.f32.mxu0 0.0
      %3743 = vmatmul.mubr.f32.gmra.mrb[0].mxu0 %v3545
      %v3744 = vpop.f32.mrb[0].mxu0
      %v3745 = vadd.f32 0.0, %v3744
      %v3746 = vpop.f32.mrb[0].mxu0
      %3747 = vmatprep.mubr.f32.mxu0 0.0
      %3748 = vmatmul.mubr.f32.gmra.mrb[0].mxu0 %v3548
      %v3749 = vpop.f32.mrb[0].mxu0
      %v3750 = vadd.f32 0.0, %v3749
      %v3751 = vpop.f32.mrb[0].mxu0
      %3752 = vmatprep.mubr.f32.mxu0 0.0
      %3753 = vmatmul.mubr.f32.gmra.mrb[0].mxu0 %v3551
      %v3754 = vpop.f32.mrb[0].mxu0
      %v3755 = vadd.f32 0.0, %v3754
      %v3756 = vpop.f32.mrb[0].mxu0
      %3757 = vmatprep.mubr.f32.mxu0 0.0
      %3758 = vmatmul.mubr.f32.gmra.mrb[0].mxu0 %v3554
      %v3759 = vpop.f32.mrb[0].mxu0
      %v3760 = vadd.f32 0.0, %v3759
      %v3761 = vpop.f32.mrb[0].mxu0
      %3762 = vmatprep.mubr.f32.mxu0 0.0
      %3763 = vmatmul.mubr.f32.gmra.mrb[0].mxu0 %v3557
      %v3764 = vpop.f32.mrb[0].mxu0
      %v3765 = vadd.f32 0.0, %v3764
      %v3766 = vpop.f32.mrb[0].mxu0
      %3767 = vmatprep.mubr.f32.mxu0 0.0
      %3768 = vmatmul.mubr.f32.gmra.mrb[0].mxu0 %v3560
      %v3769 = vpop.f32.mrb[0].mxu0
      %v3770 = vadd.f32 0.0, %v3769
      %v3771 = vpop.f32.mrb[0].mxu0
      %3772 = vmatprep.mubr.f32.mxu0 0.0
      %3773 = vmatmul.mubr.f32.gmra.mrb[0].mxu0 %v3563
      %v3774 = vpop.f32.mrb[0].mxu0
      %v3775 = vadd.f32 0.0, %v3774
      %v3776 = vpop.f32.mrb[0].mxu0
      %3777 = vmatprep.mubr.f32.mxu0 0.0
      %3778 = vmatmul.mubr.f32.gmra.mrb[0].mxu0 %v3566
      %v3779 = vpop.f32.mrb[0].mxu0
      %v3780 = vadd.f32 0.0, %v3779
      %v3781 = vpop.f32.mrb[0].mxu0
      %3782 = vmatprep.mubr.f32.mxu0 0.0
      %3783 = vmatmul.mubr.f32.gmra.mrb[0].mxu0 %v3569
      %v3784 = vpop.f32.mrb[0].mxu0
      %v3785 = vadd.f32 0.0, %v3784
      %v3786 = vpop.f32.mrb[0].mxu0
      %3787 = vmatprep.mubr.f32.mxu0 0.0
      %3788 = vmatmul.mubr.f32.gmra.mrb[0].mxu0 %v3572
      %v3789 = vpop.f32.mrb[0].mxu0
      %v3790 = vadd.f32 0.0, %v3789
      %v3791 = vpop.f32.mrb[0].mxu0
      %3792 = vmatprep.mubr.f32.mxu0 0.0
      %3793 = vmatmul.mubr.f32.gmra.mrb[0].mxu0 %v3575
      %v3794 = vpop.f32.mrb[0].mxu0
      %v3795 = vadd.f32 0.0, %v3794
      %v3796 = vpop.f32.mrb[0].mxu0
      %3797 = vmatprep.mubr.f32.mxu0 0.0
      %3798 = vmatmul.mubr.f32.gmra.mrb[0].mxu0 %v3578
      %v3799 = vpop.f32.mrb[0].mxu0
      %v3800 = vadd.f32 0.0, %v3799
      %v3801 = vpop.f32.mrb[0].mxu0
      %3802 = vmatprep.mubr.f32.mxu0 0.0
      %3803 = vmatmul.mubr.f32.gmra.mrb[0].mxu0 %v3581
      %v3804 = vpop.f32.mrb[0].mxu0
      %v3805 = vadd.f32 0.0, %v3804
      %v3806 = vpop.f32.mrb[0].mxu0
      %3807 = vdwg.mxu0
      %v3808 = vadd.f32 %v3421, %v3650
      %v3809 = vadd.f32 %v3422, %v3655
      %v3810 = vadd.f32 %v3423, %v3660
      %v3811 = vadd.f32 %v3424, %v3665
      %v3812 = vadd.f32 %v3425, %v3670
      %v3813 = vadd.f32 %v3426, %v3675
      %v3814 = vadd.f32 %v3427, %v3680
      %v3815 = vadd.f32 %v3428, %v3685
      %v3816 = vadd.f32 %v3429, %v3690
      %v3817 = vadd.f32 %v3430, %v3695
      %v3818 = vadd.f32 %v3431, %v3700
      %v3819 = vadd.f32 %v3432, %v3705
      %v3820 = vadd.f32 %v3433, %v3710
      %v3821 = vadd.f32 %v3434, %v3715
      %v3822 = vadd.f32 %v3435, %v3720
      %v3823 = vadd.f32 %v3436, %v3725
      %v3824 = vadd.f32 %v3437, %v3730
      %v3825 = vadd.f32 %v3438, %v3735
      %v3826 = vadd.f32 %v3439, %v3740
      %v3827 = vadd.f32 %v3440, %v3745
      %v3828 = vadd.f32 %v3441, %v3750
      %v3829 = vadd.f32 %v3442, %v3755
      %v3830 = vadd.f32 %v3443, %v3760
      %v3831 = vadd.f32 %v3444, %v3765
      %v3832 = vadd.f32 %v3445, %v3770
      %v3833 = vadd.f32 %v3446, %v3775
      %v3834 = vadd.f32 %v3447, %v3780
      %v3835 = vadd.f32 %v3448, %v3785
      %v3836 = vadd.f32 %v3449, %v3790
      %v3837 = vadd.f32 %v3450, %v3795
      %v3838 = vadd.f32 %v3451, %v3800
      %v3839 = vadd.f32 %v3452, %v3805
      %v3840 = vsel %vm347, %v3808, 0.0
      %v3841 = vsel %vm347, %v3809, 0.0
      %v3842 = vadd.f32 %v3840, %v3841
      %v3843 = vsel %vm347, %v3810, 0.0
      %v3844 = vadd.f32 %v3842, %v3843
      %v3845 = vsel %vm347, %v3811, 0.0
      %v3846 = vadd.f32 %v3844, %v3845
      %v3847 = vsel %vm347, %v3812, 0.0
      %v3848 = vadd.f32 %v3846, %v3847
      %v3849 = vsel %vm347, %v3813, 0.0
      %v3850 = vadd.f32 %v3848, %v3849
      %v3851 = vsel %vm347, %v3814, 0.0
      %v3852 = vadd.f32 %v3850, %v3851
      %v3853 = vsel %vm347, %v3815, 0.0
      %v3854 = vadd.f32 %v3852, %v3853
      %v3855 = vsel %vm347, %v3816, 0.0
      %v3856 = vadd.f32 %v3854, %v3855
      %v3857 = vsel %vm347, %v3817, 0.0
      %v3858 = vadd.f32 %v3856, %v3857
      %v3859 = vsel %vm347, %v3818, 0.0
      %v3860 = vadd.f32 %v3858, %v3859
      %v3861 = vsel %vm347, %v3819, 0.0
      %v3862 = vadd.f32 %v3860, %v3861
      %v3863 = vsel %vm347, %v3820, 0.0
      %v3864 = vadd.f32 %v3862, %v3863
      %v3865 = vsel %vm347, %v3821, 0.0
      %v3866 = vadd.f32 %v3864, %v3865
      %v3867 = vsel %vm347, %v3822, 0.0
      %v3868 = vadd.f32 %v3866, %v3867
      %v3869 = vsel %vm347, %v3823, 0.0
      %v3870 = vadd.f32 %v3868, %v3869
      %v3871 = vsel %vm347, %v3824, 0.0
      %v3872 = vadd.f32 %v3870, %v3871
      %v3873 = vsel %vm347, %v3825, 0.0
      %v3874 = vadd.f32 %v3872, %v3873
      %v3875 = vsel %vm347, %v3826, 0.0
      %v3876 = vadd.f32 %v3874, %v3875
      %v3877 = vsel %vm347, %v3827, 0.0
      %v3878 = vadd.f32 %v3876, %v3877
      %v3879 = vsel %vm347, %v3828, 0.0
      %v3880 = vadd.f32 %v3878, %v3879
      %v3881 = vsel %vm347, %v3829, 0.0
      %v3882 = vadd.f32 %v3880, %v3881
      %v3883 = vsel %vm347, %v3830, 0.0
      %v3884 = vadd.f32 %v3882, %v3883
      %v3885 = vsel %vm347, %v3831, 0.0
      %v3886 = vadd.f32 %v3884, %v3885
      %v3887 = vsel %vm347, %v3832, 0.0
      %v3888 = vadd.f32 %v3886, %v3887
      %v3889 = vsel %vm347, %v3833, 0.0
      %v3890 = vadd.f32 %v3888, %v3889
      %v3891 = vsel %vm347, %v3834, 0.0
      %v3892 = vadd.f32 %v3890, %v3891
      %v3893 = vsel %vm347, %v3835, 0.0
      %v3894 = vadd.f32 %v3892, %v3893
      %v3895 = vsel %vm347, %v3836, 0.0
      %v3896 = vadd.f32 %v3894, %v3895
      %v3897 = vsel %vm347, %v3837, 0.0
      %v3898 = vadd.f32 %v3896, %v3897
      %v3899 = vsel %vm347, %v3838, 0.0
      %v3900 = vadd.f32 %v3898, %v3899
      %v3901 = vsel %vm347, %v3839, 0.0
      %v3902 = vadd.f32 %v3900, %v3901
      %v3903 = vrot.slane %v3902, 4
      %v3904 = vadd.f32 %v3902, %v3903
      %v3905 = vrot.slane %v3904, 2
      %v3906 = vadd.f32 %v3904, %v3905
      %v3907 = vrot.slane %v3906, 1
      %v3908 = vadd.f32 %v3906, %v3907
      %v3909 = vmul.f32 %v3908, 0.00390625
      %v3910 = vsub.f32 %v3808, %v3909
      %v3911 = vsub.f32 %v3809, %v3909
      %v3912 = vsub.f32 %v3810, %v3909
      %v3913 = vsub.f32 %v3811, %v3909
      %v3914 = vsub.f32 %v3812, %v3909
      %v3915 = vsub.f32 %v3813, %v3909
      %v3916 = vsub.f32 %v3814, %v3909
      %v3917 = vsub.f32 %v3815, %v3909
      %v3918 = vsub.f32 %v3816, %v3909
      %v3919 = vsub.f32 %v3817, %v3909
      %v3920 = vsub.f32 %v3818, %v3909
      %v3921 = vsub.f32 %v3819, %v3909
      %v3922 = vsub.f32 %v3820, %v3909
      %v3923 = vsub.f32 %v3821, %v3909
      %v3924 = vsub.f32 %v3822, %v3909
      %v3925 = vsub.f32 %v3823, %v3909
      %v3926 = vsub.f32 %v3824, %v3909
      %v3927 = vsub.f32 %v3825, %v3909
      %v3928 = vsub.f32 %v3826, %v3909
      %v3929 = vsub.f32 %v3827, %v3909
      %v3930 = vsub.f32 %v3828, %v3909
      %v3931 = vsub.f32 %v3829, %v3909
      %v3932 = vsub.f32 %v3830, %v3909
      %v3933 = vsub.f32 %v3831, %v3909
      %v3934 = vsub.f32 %v3832, %v3909
      %v3935 = vsub.f32 %v3833, %v3909
      %v3936 = vsub.f32 %v3834, %v3909
      %v3937 = vsub.f32 %v3835, %v3909
      %v3938 = vsub.f32 %v3836, %v3909
      %v3939 = vsub.f32 %v3837, %v3909
      %v3940 = vsub.f32 %v3838, %v3909
      %v3941 = vsub.f32 %v3839, %v3909
      %v3942 = vmul.f32 %v3910, %v3910
      %v3943 = vmul.f32 %v3911, %v3911
      %v3944 = vmul.f32 %v3912, %v3912
      %v3945 = vmul.f32 %v3913, %v3913
      %v3946 = vmul.f32 %v3914, %v3914
      %v3947 = vmul.f32 %v3915, %v3915
      %v3948 = vmul.f32 %v3916, %v3916
      %v3949 = vmul.f32 %v3917, %v3917
      %v3950 = vmul.f32 %v3918, %v3918
      %v3951 = vmul.f32 %v3919, %v3919
      %v3952 = vmul.f32 %v3920, %v3920
      %v3953 = vmul.f32 %v3921, %v3921
      %v3954 = vmul.f32 %v3922, %v3922
      %v3955 = vmul.f32 %v3923, %v3923
      %v3956 = vmul.f32 %v3924, %v3924
      %v3957 = vmul.f32 %v3925, %v3925
      %v3958 = vmul.f32 %v3926, %v3926
      %v3959 = vmul.f32 %v3927, %v3927
      %v3960 = vmul.f32 %v3928, %v3928
      %v3961 = vmul.f32 %v3929, %v3929
      %v3962 = vmul.f32 %v3930, %v3930
      %v3963 = vmul.f32 %v3931, %v3931
      %v3964 = vmul.f32 %v3932, %v3932
      %v3965 = vmul.f32 %v3933, %v3933
      %v3966 = vmul.f32 %v3934, %v3934
      %v3967 = vmul.f32 %v3935, %v3935
      %v3968 = vmul.f32 %v3936, %v3936
      %v3969 = vmul.f32 %v3937, %v3937
      %v3970 = vmul.f32 %v3938, %v3938
      %v3971 = vmul.f32 %v3939, %v3939
      %v3972 = vmul.f32 %v3940, %v3940
      %v3973 = vmul.f32 %v3941, %v3941
      %v3974 = vsel %vm347, %v3942, 0.0
      %v3975 = vsel %vm347, %v3943, 0.0
      %v3976 = vadd.f32 %v3974, %v3975
      %v3977 = vsel %vm347, %v3944, 0.0
      %v3978 = vadd.f32 %v3976, %v3977
      %v3979 = vsel %vm347, %v3945, 0.0
      %v3980 = vadd.f32 %v3978, %v3979
      %v3981 = vsel %vm347, %v3946, 0.0
      %v3982 = vadd.f32 %v3980, %v3981
      %v3983 = vsel %vm347, %v3947, 0.0
      %v3984 = vadd.f32 %v3982, %v3983
      %v3985 = vsel %vm347, %v3948, 0.0
      %v3986 = vadd.f32 %v3984, %v3985
      %v3987 = vsel %vm347, %v3949, 0.0
      %v3988 = vadd.f32 %v3986, %v3987
      %v3989 = vsel %vm347, %v3950, 0.0
      %v3990 = vadd.f32 %v3988, %v3989
      %v3991 = vsel %vm347, %v3951, 0.0
      %v3992 = vadd.f32 %v3990, %v3991
      %v3993 = vsel %vm347, %v3952, 0.0
      %v3994 = vadd.f32 %v3992, %v3993
      %v3995 = vsel %vm347, %v3953, 0.0
      %v3996 = vadd.f32 %v3994, %v3995
      %v3997 = vsel %vm347, %v3954, 0.0
      %v3998 = vadd.f32 %v3996, %v3997
      %v3999 = vsel %vm347, %v3955, 0.0
      %v4000 = vadd.f32 %v3998, %v3999
      %v4001 = vsel %vm347, %v3956, 0.0
      %v4002 = vadd.f32 %v4000, %v4001
      %v4003 = vsel %vm347, %v3957, 0.0
      %v4004 = vadd.f32 %v4002, %v4003
      %v4005 = vsel %vm347, %v3958, 0.0
      %v4006 = vadd.f32 %v4004, %v4005
      %v4007 = vsel %vm347, %v3959, 0.0
      %v4008 = vadd.f32 %v4006, %v4007
      %v4009 = vsel %vm347, %v3960, 0.0
      %v4010 = vadd.f32 %v4008, %v4009
      %v4011 = vsel %vm347, %v3961, 0.0
      %v4012 = vadd.f32 %v4010, %v4011
      %v4013 = vsel %vm347, %v3962, 0.0
      %v4014 = vadd.f32 %v4012, %v4013
      %v4015 = vsel %vm347, %v3963, 0.0
      %v4016 = vadd.f32 %v4014, %v4015
      %v4017 = vsel %vm347, %v3964, 0.0
      %v4018 = vadd.f32 %v4016, %v4017
      %v4019 = vsel %vm347, %v3965, 0.0
      %v4020 = vadd.f32 %v4018, %v4019
      %v4021 = vsel %vm347, %v3966, 0.0
      %v4022 = vadd.f32 %v4020, %v4021
      %v4023 = vsel %vm347, %v3967, 0.0
      %v4024 = vadd.f32 %v4022, %v4023
      %v4025 = vsel %vm347, %v3968, 0.0
      %v4026 = vadd.f32 %v4024, %v4025
      %v4027 = vsel %vm347, %v3969, 0.0
      %v4028 = vadd.f32 %v4026, %v4027
      %v4029 = vsel %vm347, %v3970, 0.0
      %v4030 = vadd.f32 %v4028, %v4029
      %v4031 = vsel %vm347, %v3971, 0.0
      %v4032 = vadd.f32 %v4030, %v4031
      %v4033 = vsel %vm347, %v3972, 0.0
      %v4034 = vadd.f32 %v4032, %v4033
      %v4035 = vsel %vm347, %v3973, 0.0
      %v4036 = vadd.f32 %v4034, %v4035
      %v4037 = vrot.slane %v4036, 4
      %v4038 = vadd.f32 %v4036, %v4037
      %v4039 = vrot.slane %v4038, 2
      %v4040 = vadd.f32 %v4038, %v4039
      %v4041 = vrot.slane %v4040, 1
      %v4042 = vadd.f32 %v4040, %v4041
      %vm4043 = vcmask 1040384
      %v4044 = vsel %vm4043, %v3908, %v4042
      %vm4045 = vcmask 58368
      %4046 = vst.msk [vmem:[%s208] sm:$0x3] %vm4045, %v4044
      %4047 = vst.msk [vmem:[%s204] sm:$0xff] %vm347, %v3808
      %4048 = vst.msk [vmem:[%s204 + $0x8] sm:$0xff] %vm347, %v3809
      %4049 = vst.msk [vmem:[%s204 + $0x10] sm:$0xff] %vm347, %v3810
      %4050 = vst.msk [vmem:[%s204 + $0x18] sm:$0xff] %vm347, %v3811
      %4051 = vst.msk [vmem:[%s204 + $0x20] sm:$0xff] %vm347, %v3812
      %4052 = vst.msk [vmem:[%s204 + $0x28] sm:$0xff] %vm347, %v3813
      %4053 = vst.msk [vmem:[%s204 + $0x30] sm:$0xff] %vm347, %v3814
      %4054 = vst.msk [vmem:[%s204 + $0x38] sm:$0xff] %vm347, %v3815
      %4055 = vst.msk [vmem:[%s204 + $0x40] sm:$0xff] %vm347, %v3816
      %4056 = vst.msk [vmem:[%s204 + $0x48] sm:$0xff] %vm347, %v3817
      %4057 = vst.msk [vmem:[%s204 + $0x50] sm:$0xff] %vm347, %v3818
      %4058 = vst.msk [vmem:[%s204 + $0x58] sm:$0xff] %vm347, %v3819
      %4059 = vst.msk [vmem:[%s204 + $0x60] sm:$0xff] %vm347, %v3820
      %4060 = vst.msk [vmem:[%s204 + $0x68] sm:$0xff] %vm347, %v3821
      %4061 = vst.msk [vmem:[%s204 + $0x70] sm:$0xff] %vm347, %v3822
      %4062 = vst.msk [vmem:[%s204 + $0x78] sm:$0xff] %vm347, %v3823
      %4063 = vst.msk [vmem:[%s204 + $0x80] sm:$0xff] %vm347, %v3824
      %4064 = vst.msk [vmem:[%s204 + $0x88] sm:$0xff] %vm347, %v3825
      %4065 = vst.msk [vmem:[%s204 + $0x90] sm:$0xff] %vm347, %v3826
      %4066 = vst.msk [vmem:[%s204 + $0x98] sm:$0xff] %vm347, %v3827
      %4067 = vst.msk [vmem:[%s204 + $0xa0] sm:$0xff] %vm347, %v3828
      %4068 = vst.msk [vmem:[%s204 + $0xa8] sm:$0xff] %vm347, %v3829
      %4069 = vst.msk [vmem:[%s204 + $0xb0] sm:$0xff] %vm347, %v3830
      %4070 = vst.msk [vmem:[%s204 + $0xb8] sm:$0xff] %vm347, %v3831
      %4071 = vst.msk [vmem:[%s204 + $0xc0] sm:$0xff] %vm347, %v3832
      %4072 = vst.msk [vmem:[%s204 + $0xc8] sm:$0xff] %vm347, %v3833
      %4073 = vst.msk [vmem:[%s204 + $0xd0] sm:$0xff] %vm347, %v3834
      %4074 = vst.msk [vmem:[%s204 + $0xd8] sm:$0xff] %vm347, %v3835
      %4075 = vst.msk [vmem:[%s204 + $0xe0] sm:$0xff] %vm347, %v3836
      %4076 = vst.msk [vmem:[%s204 + $0xe8] sm:$0xff] %vm347, %v3837
      %4077 = vst.msk [vmem:[%s204 + $0xf0] sm:$0xff] %vm347, %v3838
      %4078 = vst.msk [vmem:[%s204 + $0xf8] sm:$0xff] %vm347, %v3839
      %p4079 = scmp.lt.s32.totalorder %s16, 1
      %s4080 = scalar_select %p4079, %s16, 1
      %s4081 = smul.addr %s4080, 32
      %s4082 = smul.addr %s4081, 8
      %s4083 = scalar_lea.vmem %s3, %s4082
      %p4084 = scmp.lt.s32.totalorder %s16, 1
      %s4085 = scalar_select %p4084, %s16, 1
      %s4086 = smul.addr %s4085, 2
      %s4087 = scalar_lea.vmem %s4, %s4086
      // Predicated region
      $region33: #{double_conv.4} parent=31 // pred_check
        %p4088 = pneg %p102
      $region34: #{double_conv.4} parent=31 // pred_check_branch
        %4090 = sbr.rel (%p4088) target = $region36
      $region35: #{double_conv.4} parent=31 // pred_region
        _
      $region36: #{double_conv.4} parent=31 // pred_fallthru
        _
      // Predicated region
      $region37: #{double_conv.4} parent=31 // pred_check
        %p4091 = pneg %p128
      $region38: #{double_conv.4} parent=31 // pred_check_branch
        %4093 = sbr.rel (%p4091) target = $region40
      $region39: #{double_conv.4} parent=31 // pred_region
        _
      $region40: #{double_conv.4} parent=31 // pred_fallthru
        _
    $region32: #{double_conv.4} parent=5 // pred_fallthru
      _
    %p4094 = scmp.le.s32.totalorder 2, %s11
    // Predicated region
    $region41: #{double_conv.4} parent=5 // pred_check
      %p4095 = pneg %p4094
    $region42: #{double_conv.4} parent=5 // pred_check_branch
      %4097 = sbr.rel (%p4095) target = $region44
    $region43: #{double_conv.4} parent=5 // pred_region
      %s4098 = ssub.s32 %s11, 2
      // Predicated region
      $region45: #{double_conv.4} parent=43 // pred_check
        %p4099 = pneg %p108
      $region46: #{double_conv.4} parent=43 // pred_check_branch
        %4101 = sbr.rel (%p4099) target = $region48
      $region47: #{double_conv.4} parent=43 // pred_region
        %p4102 = scmp.lt.s32.totalorder %s17, 1
        %s4103 = scalar_select %p4102, %s17, 1
        %s4104 = smul.addr %s4103, 32
        %s4105 = smul.addr %s4104, 8
        %s4106 = scalar_lea.vmem %s3, %s4105
      $region48: #{double_conv.4} parent=43 // pred_fallthru
        _
      // Predicated region
      $region49: #{double_conv.4} parent=43 // pred_check
        %p4107 = pneg %p134
      $region50: #{double_conv.4} parent=43 // pred_check_branch
        %4109 = sbr.rel (%p4107) target = $region52
      $region51: #{double_conv.4} parent=43 // pred_region
        %p4110 = scmp.lt.s32.totalorder %s17, 1
        %s4111 = scalar_select %p4110, %s17, 1
        %s4112 = smul.addr %s4111, 2
        %s4113 = scalar_lea.vmem %s4, %s4112
      $region52: #{double_conv.4} parent=43 // pred_fallthru
        _
    $region44: #{double_conv.4} parent=5 // pred_fallthru
      _
  $region6: #{double_conv.4} parent=0 // loop_footer
    %s15 = sadd.s32 1, %s11
  $region7: #{double_conv.4} parent=0 // loop_footer_branch
    %10 = sbr.rel target = $region3
  $region8: #{double_conv.4} parent=0 // loop_exit
    _

</llo_original>
